<compile_context>
chip_gen: v6e
topology: v6e:2x2x1
jax: 0.10.0
libtpu: 0.0.40
codegen_flags: <defaults>
</compile_context>

<pallas_src>
import functools

import jax
import jax.numpy as jnp
import numpy as np
from jax.experimental import pallas as pl
from jax.experimental.pallas import tpu as pltpu

EPS = 1e-5
MXU_DTYPE = jnp.bfloat16      # MXU operand dtype; accumulation is always f32.
Y_DTYPE = jnp.bfloat16        # dtype of the pre-BN conv outputs stored to HBM.
HP = 8                        # aligned front pad (rows) in the scratch's H axis.


def _vmem_limit(footprint_bytes):
    # Footprint + 50% margin; no artificial 32 MiB floor; stay well under v7x's
    # 64 MiB physical VMEM (v5e/v6e have 128 MiB).
    return int(min(48 * 1024 * 1024,
                   max(16 * 1024 * 1024, (3 * footprint_bytes) // 2)))


# ----------------------------------------------------------------------------
# Host-side weight folding: (3,3,3,Cin,Cout) DHWIO  ->  (9, W*Cin, W*Cout)
# block-Toeplitz matrices that absorb the kw shift and the W zero-padding.
#   M[t=kd*3+kh, w'*Cin+ci, w*Cout+co] = wgt[kd, kh, w'-w+1, ci, co]  if 0<=w'-w+1<3.
# ----------------------------------------------------------------------------
def _build_folded_weights(w_dhwio, W, mxu_dtype):
    kD, kH, kW, Cin, Cout = w_dhwio.shape
    E = np.zeros((kW, W, W), np.float32)          # E[kw, w', w] = 1 iff w' == w + kw - 1
    for kw in range(kW):
        for w in range(W):
            wp = w + kw - 1
            if 0 <= wp < W:
                E[kw, wp, w] = 1.0
    M = jnp.einsum("kpw,dhkio->dhpiwo", jnp.asarray(E), w_dhwio)   # (3,3,W,Cin,W,Cout)
    return M.reshape(kD * kH, W * Cin, W * Cout).astype(mxu_dtype)


# ----------------------------------------------------------------------------
# Kernel: fused [optional BN+ReLU of previous layer] -> 3x3x3 conv -> BN stats.
# Grid = (N, num_d_tiles); stats accumulate over the sequential D-tile axis into a
# per-batch (8, W*Cout) partial block; the batch axis is fully parallel.
# ----------------------------------------------------------------------------
def _conv_bn_stats_kernel(x_ref, w_ref, scale_ref, shift_ref,
                          y_ref, sum_ref, sumsq_ref, xp_ref,
                          *, D, H, W, Cin, Cout, TD, apply_input_act, mxu_dtype):
    # x_ref:     (1, D, H, W*Cin)      full-D width-folded input block (fetched once per n)
    # w_ref:     (9, W*Cin, W*Cout)    width-folded block-Toeplitz weights (mxu dtype)
    # scale/shift_ref: (1, W*Cin)      fused pre-BN affine (used iff apply_input_act)
    # y_ref:     (1, TD, H, W*Cout)    conv output tile (pre-BN)
    # sum_/sumsq_ref: (8, W*Cout)      per-batch partial stats (accumulated over D tiles)
    # xp_ref:    (TD+2, HP+H+2, W*Cin) padded activation scratch (mxu dtype)
    WCi = W * Cin
    WCo = W * Cout
    t = pl.program_id(1)
    nt = pl.num_programs(1)
    d0 = pl.multiple_of(t * TD, TD)

    if apply_input_act:
        scale = scale_ref[...]                        # (1, WCi) f32
        shift = shift_ref[...]

    def act(v):
        # BN + ReLU of the previous layer (f32 VPU math), then one cast to bf16.
        if apply_input_act:
            v = jnp.maximum(v.astype(jnp.float32) * scale + shift, 0.0)
        return v.astype(mxu_dtype)

    # Re-zero the padded scratch every step (previous steps on this core may have
    # left halo data behind); interior is overwritten below.  Cheap: tens of KB.
    xp_ref[...] = jnp.zeros_like(xp_ref)

    # Interior D rows [d0, d0+TD) -> scratch D rows [1, TD+1), H columns [HP, HP+H)
    # (HP=8 keeps the bf16 store sublane-aligned; the W halo lives in the weights).
    xin = x_ref[0, pl.ds(d0, TD), :, :]               # (TD, H, WCi)
    xp_ref[pl.ds(1, TD), pl.ds(HP, H), :] = act(xin)

    # D halo rows: real data when a neighbouring tile exists, zero pad at volume edges.
    @pl.when(t > 0)
    def _():
        lo = x_ref[0, pl.ds(d0 - 1, 1), :, :]         # (1, H, WCi)
        xp_ref[pl.ds(0, 1), pl.ds(HP, H), :] = act(lo)

    @pl.when(t < nt - 1)
    def _():
        hi = x_ref[0, pl.ds(d0 + TD, 1), :, :]
        xp_ref[pl.ds(TD + 1, 1), pl.ds(HP, H), :] = act(hi)

    # 9 lane-dense MXU matmuls: (TD*H, W*Cin) @ (W*Cin, W*Cout), f32 accumulation.
    # Taps are ref views into the scratch (no concatenate copies, no per-tap casts).
    acc = jnp.zeros((TD * H, WCo), jnp.float32)
    for kd in range(3):
        for kh in range(3):
            slab = xp_ref[pl.ds(kd, TD), pl.ds(HP - 1 + kh, H), :].reshape(TD * H, WCi)
            acc = acc + jnp.dot(slab, w_ref[kd * 3 + kh],
                                preferred_element_type=jnp.float32)

    y_ref[...] = acc.reshape(1, TD, H, WCo).astype(y_ref.dtype)

    # Per-batch partial BN statistics (f32), reduced to 8 sublane rows in-kernel and
    # accumulated across the sequential D-tile axis; host folds the rest.
    ps = jnp.sum(acc.reshape(TD * H // 8, 8, WCo), axis=0)          # (8, WCo)
    pq = jnp.sum((acc * acc).reshape(TD * H // 8, 8, WCo), axis=0)  # (8, WCo)

    @pl.when(t == 0)
    def _():
        sum_ref[...] = ps
        sumsq_ref[...] = pq

    @pl.when(t > 0)
    def _():
        sum_ref[...] += ps
        sumsq_ref[...] += pq


def conv3d_bn_stats_pallas(x_fold, w_dhwio, scale_fold, shift_fold,
                           *, D, H, W, Cin, Cout):
    # x_fold: (N, D, H, W*Cin); returns (y_fold[bf16], sum_part, sumsq_part).
    N = x_fold.shape[0]
    WCi, WCo = W * Cin, W * Cout

    TD = 8 if (D % 8 == 0 and D >= 8) else D          # D-tile size
    NT = D // TD
    assert D % TD == 0 and (TD * H) % 8 == 0

    w_big = _build_folded_weights(w_dhwio, W, MXU_DTYPE)             # (9, W*Cin, W*Cout)

    apply_act = scale_fold is not None
    if not apply_act:
        scale_fold = jnp.ones((1, WCi), jnp.float32)
        shift_fold = jnp.zeros((1, WCi), jnp.float32)

    kernel = functools.partial(
        _conv_bn_stats_kernel, D=D, H=H, W=W, Cin=Cin, Cout=Cout, TD=TD,
        apply_input_act=apply_act, mxu_dtype=MXU_DTYPE)

    # VMEM footprint estimate (lane-padded) -> vmem_limit_bytes.
    lane = 128
    mxu_b = jnp.dtype(MXU_DTYPE).itemsize
    in_blk = D * H * max(WCi, lane) * x_fold.dtype.itemsize
    out_blk = TD * H * max(WCo, lane) * jnp.dtype(Y_DTYPE).itemsize
    w_bytes = 9 * WCi * max(WCo, lane) * mxu_b
    scratch_bytes = (TD + 2) * (HP + H + 2) * max(WCi, lane) * mxu_b
    stat_bytes = 2 * 8 * max(WCo, lane) * 4
    acc_bytes = TD * H * max(WCo, lane) * 4
    footprint = (2 * (in_blk + out_blk + stat_bytes) + 2 * w_bytes
                 + scratch_bytes + 3 * acc_bytes)

    y, s, sq = pl.pallas_call(
        kernel,
        out_shape=(jax.ShapeDtypeStruct((N, D, H, WCo), Y_DTYPE),
                   jax.ShapeDtypeStruct((N * 8, WCo), jnp.float32),
                   jax.ShapeDtypeStruct((N * 8, WCo), jnp.float32)),
        grid_spec=pltpu.PrefetchScalarGridSpec(
            num_scalar_prefetch=0,
            grid=(N, NT),
            in_specs=[
                pl.BlockSpec((1, D, H, WCi), lambda n, t: (n, 0, 0, 0)),
                pl.BlockSpec((9, WCi, WCo), lambda n, t: (0, 0, 0)),
                pl.BlockSpec((1, WCi), lambda n, t: (0, 0)),
                pl.BlockSpec((1, WCi), lambda n, t: (0, 0)),
            ],
            out_specs=[
                pl.BlockSpec((1, TD, H, WCo), lambda n, t: (n, t, 0, 0)),
                pl.BlockSpec((8, WCo), lambda n, t: (n, 0)),
                pl.BlockSpec((8, WCo), lambda n, t: (n, 0)),
            ],
            scratch_shapes=[pltpu.VMEM((TD + 2, HP + H + 2, WCi), MXU_DTYPE)],
        ),
        compiler_params=pltpu.CompilerParams(
            # Batch axis parallel (dual-TC on v7x; stats are per-batch partials so
            # there is no race); D-tile axis sequential (stat accumulation).
            dimension_semantics=("parallel", "arbitrary"),
            vmem_limit_bytes=_vmem_limit(footprint),
        ),
    )(x_fold, w_big, scale_fold, shift_fold)
    return y, s, sq


# ----------------------------------------------------------------------------
# BN affine coefficients from the fused statistics (host side, tiny).
# ----------------------------------------------------------------------------
def _bn_scale_shift(s_part, sq_part, gamma, beta, count, W, eps=EPS):
    C = gamma.shape[0]
    s = jnp.sum(s_part.reshape(-1, W, C), axis=(0, 1))
    sq = jnp.sum(sq_part.reshape(-1, W, C), axis=(0, 1))
    mean = s / count
    var = sq / count - mean * mean                 # biased variance (training-mode BN)
    scale = gamma / jnp.sqrt(var + eps)
    shift = beta - mean * scale
    return (jnp.tile(scale, W).reshape(1, W * C).astype(jnp.float32),
            jnp.tile(shift, W).reshape(1, W * C).astype(jnp.float32))


# ----------------------------------------------------------------------------
# ConvBlock3D forward (NCDHW in / NCDHW out, matching the PyTorch module)
# ----------------------------------------------------------------------------
def conv_block3d_forward(x_ncdhw, w1, b1, g1, be1, w2, b2, g2, be2):
    # b1/b2 accepted for API parity but unused: training-mode BatchNorm exactly
    # cancels an additive per-channel conv bias, so dropping it is a no-op.
    del b1, b2
    N, Cin, D, H, W = x_ncdhw.shape
    Cout = w1.shape[-1]
    count = float(N * D * H * W)

    # NCDHW -> NDHWC -> width-folded (N, D, H, W*Cin)
    x = jnp.transpose(x_ncdhw, (0, 2, 3, 4, 1)).reshape(N, D, H, W * Cin)

    # conv1 + fused BN1 statistics
    y1, s1, sq1 = conv3d_bn_stats_pallas(x, w1, None, None,
                                         D=D, H=H, W=W, Cin=Cin, Cout=Cout)
    scale1, shift1 = _bn_scale_shift(s1, sq1, g1, be1, count, W)

    # conv2 with BN1+ReLU fused into its input load, + fused BN2 statistics
    y2, s2, sq2 = conv3d_bn_stats_pallas(y1, w2, scale1, shift1,
                                         D=D, H=H, W=W, Cin=Cout, Cout=Cout)
    scale2, shift2 = _bn_scale_shift(s2, sq2, g2, be2, count, W)

    # Final BN2 + ReLU as plain jnp: XLA fuses it into the layout change back to
    # NCDHW (removes one full HBM round trip over the largest tensor).
    out = jnp.maximum(y2.astype(jnp.float32) * scale2 + shift2, 0.0)
    out = out.reshape(N, D, H, W, Cout)
    return jnp.transpose(out, (0, 4, 1, 2, 3))                   # -> NCDHW


# ----------------------------------------------------------------------------
# Pure-JAX f32 reference (PyTorch forward semantics) for a correctness check
# ----------------------------------------------------------------------------
def ref_forward(x_ncdhw, w1, b1, g1, be1, w2, b2, g2, be2, eps=EPS):
    def conv(x, w, b):
        y = jax.lax.conv_general_dilated(
            x, w, window_strides=(1, 1, 1), padding="SAME",
            dimension_numbers=("NDHWC", "DHWIO", "NDHWC"))
        return y + b.reshape(1, 1, 1, 1, -1)

    def bn_relu(y, g, be):
        mean = jnp.mean(y, axis=(0, 1, 2, 3), keepdims=True)
        var = jnp.mean((y - mean) ** 2, axis=(0, 1, 2, 3), keepdims=True)
        z = (y - mean) / jnp.sqrt(var + eps)
        z = z * g.reshape(1, 1, 1, 1, -1) + be.reshape(1, 1, 1, 1, -1)
        return jnp.maximum(z, 0.0)

    x = jnp.transpose(x_ncdhw, (0, 2, 3, 4, 1))
    y = bn_relu(conv(x, w1, b1), g1, be1)
    y = bn_relu(conv(y, w2, b2), g2, be2)
    return jnp.transpose(y, (0, 4, 1, 2, 3))


if __name__ == "__main__":
    N, Cin, Cout, D, H, W = 2, 4, 8, 16, 16, 16   # W*Cout = 128 -> lane-dense folded layout

    key = jax.random.PRNGKey(0)
    keys = jax.random.split(key, 9)
    x_ncdhw = jax.random.normal(keys[0], (N, Cin, D, H, W), jnp.float32)
    # Deterministic synthetic parameters (shapes from the module __init__), DHWIO layout.
    w1 = 0.1 * jax.random.normal(keys[1], (3, 3, 3, Cin, Cout), jnp.float32)
    b1 = 0.1 * jax.random.normal(keys[2], (Cout,), jnp.float32)
    g1 = 1.0 + 0.1 * jax.random.normal(keys[3], (Cout,), jnp.float32)
    be1 = 0.1 * jax.random.normal(keys[4], (Cout,), jnp.float32)
    w2 = 0.1 * jax.random.normal(keys[5], (3, 3, 3, Cout, Cout), jnp.float32)
    b2 = 0.1 * jax.random.normal(keys[6], (Cout,), jnp.float32)
    g2 = 1.0 + 0.1 * jax.random.normal(keys[7], (Cout,), jnp.float32)
    be2 = 0.1 * jax.random.normal(keys[8], (Cout,), jnp.float32)

    fwd = jax.jit(conv_block3d_forward)
    out = fwd(x_ncdhw, w1, b1, g1, be1, w2, b2, g2, be2)
    out = jax.block_until_ready(out)

    ref = ref_forward(x_ncdhw, w1, b1, g1, be1, w2, b2, g2, be2)
    # bf16 MXU operands and bf16 intermediates (f32 accumulation / BN math) => loose
    # tolerance vs the exact-f32 reference.
    np.testing.assert_allclose(np.asarray(out), np.asarray(ref),
                               rtol=5e-2, atol=5e-2)
    print("KERNEL_OK")
</pallas_src>

<mosaic_0001>
module attributes {stable_mosaic.version = 11 : i64} {
  func.func @_conv_bn_stats_kernel(%arg0: i32, %arg1: i32, %arg2: memref<1x16x16x64xf32, #tpu.memory_space<vmem>>, %arg3: memref<9x64x128xbf16, #tpu.memory_space<vmem>>, %arg4: memref<1x64xf32, #tpu.memory_space<vmem>>, %arg5: memref<1x64xf32, #tpu.memory_space<vmem>>, %arg6: memref<1x8x16x128xbf16, #tpu.memory_space<vmem>>, %arg7: memref<8x128xf32, #tpu.memory_space<vmem>>, %arg8: memref<8x128xf32, #tpu.memory_space<vmem>>, %arg9: memref<10x26x64xbf16, #tpu.memory_space<vmem>>) attributes {dimension_semantics = [#tpu.dimension_semantics<parallel>, #tpu.dimension_semantics<arbitrary>], iteration_bounds = array<i64: 2, 2>, scalar_prefetch = 0 : i64, scratch_operands = 1 : i64, tpu.core_type = #tpu.core_type<tc>, window_params = [{transform_indices = @transform_0, window_bounds = array<i64: 1, 16, 16, 64>}, {pipeline_mode = #tpu.pipeline_mode<synchronous>, transform_indices = @transform_1, window_bounds = array<i64: 9, 64, 128>}, {pipeline_mode = #tpu.pipeline_mode<synchronous>, transform_indices = @transform_2, window_bounds = array<i64: 1, 64>}, {pipeline_mode = #tpu.pipeline_mode<synchronous>, transform_indices = @transform_3, window_bounds = array<i64: 1, 64>}, {transform_indices = @transform_4, window_bounds = array<i64: 1, 8, 16, 128>}, {transform_indices = @transform_5, window_bounds = array<i64: 8, 128>}, {transform_indices = @transform_6, window_bounds = array<i64: 8, 128>}]} {
    %c8_i32 = arith.constant 8 : i32
    %0 = arith.muli %arg1, %c8_i32 : i32
    %1 = tpu.assume_multiple %0, 8 : i32
    %cst = arith.constant 0.000000e+00 : bf16
    %2 = vector.broadcast %cst : bf16 to vector<10x26x64xbf16>
    %c0 = arith.constant 0 : index
    %c0_0 = arith.constant 0 : index
    %c0_1 = arith.constant 0 : index
    %3 = vector.load %arg9[%c0, %c0_0, %c0_1] : memref<10x26x64xbf16, #tpu.memory_space<vmem>>, vector<10x26x64xbf16>
    tpu.vector_store %arg9[%c0, %c0_0, %c0_1], %2 {strides = array<i32>} : memref<10x26x64xbf16, #tpu.memory_space<vmem>>, vector<10x26x64xbf16>,
    %c0_2 = arith.constant 0 : index
    %4 = arith.index_cast %1 : i32 to index
    %c0_3 = arith.constant 0 : index
    %c0_4 = arith.constant 0 : index
    %5 = vector.load %arg2[%c0_2, %4, %c0_3, %c0_4] : memref<1x16x16x64xf32, #tpu.memory_space<vmem>>, vector<1x8x16x64xf32>
    %6 = vector.shape_cast %5 : vector<1x8x16x64xf32> to vector<8x16x64xf32>
    %7 = arith.truncf %6 : vector<8x16x64xf32> to vector<8x16x64xbf16>
    %c1 = arith.constant 1 : index
    %c8 = arith.constant 8 : index
    %c0_5 = arith.constant 0 : index
    %8 = vector.load %arg9[%c1, %c8, %c0_5] : memref<10x26x64xbf16, #tpu.memory_space<vmem>>, vector<8x16x64xbf16>
    tpu.vector_store %arg9[%c1, %c8, %c0_5], %7 {strides = array<i32>} : memref<10x26x64xbf16, #tpu.memory_space<vmem>>, vector<8x16x64xbf16>,
    %c0_i32 = arith.constant 0 : i32
    %9 = arith.cmpi sgt, %arg1, %c0_i32 : i32
    %10 = arith.extui %9 : i1 to i32
    %c0_i32_6 = arith.constant 0 : i32
    %11 = arith.cmpi ne, %10, %c0_i32_6 : i32
    scf.if %11 {
      %c1_i32_75 = arith.constant 1 : i32
      %84 = arith.subi %1, %c1_i32_75 : i32
      %c0_76 = arith.constant 0 : index
      %85 = arith.index_cast %84 : i32 to index
      %c0_77 = arith.constant 0 : index
      %c0_78 = arith.constant 0 : index
      %86 = vector.load %arg2[%c0_76, %85, %c0_77, %c0_78] : memref<1x16x16x64xf32, #tpu.memory_space<vmem>>, vector<1x1x16x64xf32>
      %87 = vector.shape_cast %86 : vector<1x1x16x64xf32> to vector<1x16x64xf32>
      %88 = arith.truncf %87 : vector<1x16x64xf32> to vector<1x16x64xbf16>
      %c0_79 = arith.constant 0 : index
      %c8_80 = arith.constant 8 : index
      %c0_81 = arith.constant 0 : index
      %89 = vector.load %arg9[%c0_79, %c8_80, %c0_81] : memref<10x26x64xbf16, #tpu.memory_space<vmem>>, vector<1x16x64xbf16>
      tpu.vector_store %arg9[%c0_79, %c8_80, %c0_81], %88 {strides = array<i32>} : memref<10x26x64xbf16, #tpu.memory_space<vmem>>, vector<1x16x64xbf16>,
    } else {
    }
    %c1_i32 = arith.constant 1 : i32
    %12 = arith.cmpi slt, %arg1, %c1_i32 : i32
    %13 = arith.extui %12 : i1 to i32
    %c0_i32_7 = arith.constant 0 : i32
    %14 = arith.cmpi ne, %13, %c0_i32_7 : i32
    scf.if %14 {
      %c8_i32_75 = arith.constant 8 : i32
      %84 = arith.addi %1, %c8_i32_75 : i32
      %c0_76 = arith.constant 0 : index
      %85 = arith.index_cast %84 : i32 to index
      %c0_77 = arith.constant 0 : index
      %c0_78 = arith.constant 0 : index
      %86 = vector.load %arg2[%c0_76, %85, %c0_77, %c0_78] : memref<1x16x16x64xf32, #tpu.memory_space<vmem>>, vector<1x1x16x64xf32>
      %87 = vector.shape_cast %86 : vector<1x1x16x64xf32> to vector<1x16x64xf32>
      %88 = arith.truncf %87 : vector<1x16x64xf32> to vector<1x16x64xbf16>
      %c9_79 = arith.constant 9 : index
      %c8_80 = arith.constant 8 : index
      %c0_81 = arith.constant 0 : index
      %89 = vector.load %arg9[%c9_79, %c8_80, %c0_81] : memref<10x26x64xbf16, #tpu.memory_space<vmem>>, vector<1x16x64xbf16>
      tpu.vector_store %arg9[%c9_79, %c8_80, %c0_81], %88 {strides = array<i32>} : memref<10x26x64xbf16, #tpu.memory_space<vmem>>, vector<1x16x64xbf16>,
    } else {
    }
    %cst_8 = arith.constant 0.000000e+00 : f32
    %15 = vector.broadcast %cst_8 : f32 to vector<128x128xf32>
    %c0_9 = arith.constant 0 : index
    %c7 = arith.constant 7 : index
    %c0_10 = arith.constant 0 : index
    %16 = vector.load %arg9[%c0_9, %c7, %c0_10] : memref<10x26x64xbf16, #tpu.memory_space<vmem>>, vector<8x16x64xbf16>
    %17 = vector.shape_cast %16 : vector<8x16x64xbf16> to vector<128x64xbf16>
    %c0_11 = arith.constant 0 : index
    %c0_12 = arith.constant 0 : index
    %c0_13 = arith.constant 0 : index
    %18 = vector.load %arg3[%c0_11, %c0_12, %c0_13] : memref<9x64x128xbf16, #tpu.memory_space<vmem>>, vector<1x64x128xbf16>
    %19 = vector.shape_cast %18 : vector<1x64x128xbf16> to vector<64x128xbf16>
    %cst_14 = arith.constant dense<0.000000e+00> : vector<128x128xf32>
    %20 = tpu.matmul %17, %19, %cst_14 {dimension_numbers = #tpu.dot_dimension_numbers<[1], [0], [0], [1], [0, 0, 1, 1], [], []>} : vector<128x64xbf16>, vector<64x128xbf16>, vector<128x128xf32> -> vector<128x128xf32>
    %21 = arith.addf %15, %20 : vector<128x128xf32>
    %c0_15 = arith.constant 0 : index
    %c8_16 = arith.constant 8 : index
    %c0_17 = arith.constant 0 : index
    %22 = vector.load %arg9[%c0_15, %c8_16, %c0_17] : memref<10x26x64xbf16, #tpu.memory_space<vmem>>, vector<8x16x64xbf16>
    %23 = vector.shape_cast %22 : vector<8x16x64xbf16> to vector<128x64xbf16>
    %c1_18 = arith.constant 1 : index
    %c0_19 = arith.constant 0 : index
    %c0_20 = arith.constant 0 : index
    %24 = vector.load %arg3[%c1_18, %c0_19, %c0_20] : memref<9x64x128xbf16, #tpu.memory_space<vmem>>, vector<1x64x128xbf16>
    %25 = vector.shape_cast %24 : vector<1x64x128xbf16> to vector<64x128xbf16>
    %cst_21 = arith.constant dense<0.000000e+00> : vector<128x128xf32>
    %26 = tpu.matmul %23, %25, %cst_21 {dimension_numbers = #tpu.dot_dimension_numbers<[1], [0], [0], [1], [0, 0, 1, 1], [], []>} : vector<128x64xbf16>, vector<64x128xbf16>, vector<128x128xf32> -> vector<128x128xf32>
    %27 = arith.addf %21, %26 : vector<128x128xf32>
    %c0_22 = arith.constant 0 : index
    %c9 = arith.constant 9 : index
    %c0_23 = arith.constant 0 : index
    %28 = vector.load %arg9[%c0_22, %c9, %c0_23] : memref<10x26x64xbf16, #tpu.memory_space<vmem>>, vector<8x16x64xbf16>
    %29 = vector.shape_cast %28 : vector<8x16x64xbf16> to vector<128x64xbf16>
    %c2 = arith.constant 2 : index
    %c0_24 = arith.constant 0 : index
    %c0_25 = arith.constant 0 : index
    %30 = vector.load %arg3[%c2, %c0_24, %c0_25] : memref<9x64x128xbf16, #tpu.memory_space<vmem>>, vector<1x64x128xbf16>
    %31 = vector.shape_cast %30 : vector<1x64x128xbf16> to vector<64x128xbf16>
    %cst_26 = arith.constant dense<0.000000e+00> : vector<128x128xf32>
    %32 = tpu.matmul %29, %31, %cst_26 {dimension_numbers = #tpu.dot_dimension_numbers<[1], [0], [0], [1], [0, 0, 1, 1], [], []>} : vector<128x64xbf16>, vector<64x128xbf16>, vector<128x128xf32> -> vector<128x128xf32>
    %33 = arith.addf %27, %32 : vector<128x128xf32>
    %c1_27 = arith.constant 1 : index
    %c7_28 = arith.constant 7 : index
    %c0_29 = arith.constant 0 : index
    %34 = vector.load %arg9[%c1_27, %c7_28, %c0_29] : memref<10x26x64xbf16, #tpu.memory_space<vmem>>, vector<8x16x64xbf16>
    %35 = vector.shape_cast %34 : vector<8x16x64xbf16> to vector<128x64xbf16>
    %c3 = arith.constant 3 : index
    %c0_30 = arith.constant 0 : index
    %c0_31 = arith.constant 0 : index
    %36 = vector.load %arg3[%c3, %c0_30, %c0_31] : memref<9x64x128xbf16, #tpu.memory_space<vmem>>, vector<1x64x128xbf16>
    %37 = vector.shape_cast %36 : vector<1x64x128xbf16> to vector<64x128xbf16>
    %cst_32 = arith.constant dense<0.000000e+00> : vector<128x128xf32>
    %38 = tpu.matmul %35, %37, %cst_32 {dimension_numbers = #tpu.dot_dimension_numbers<[1], [0], [0], [1], [0, 0, 1, 1], [], []>} : vector<128x64xbf16>, vector<64x128xbf16>, vector<128x128xf32> -> vector<128x128xf32>
    %39 = arith.addf %33, %38 : vector<128x128xf32>
    %c1_33 = arith.constant 1 : index
    %c8_34 = arith.constant 8 : index
    %c0_35 = arith.constant 0 : index
    %40 = vector.load %arg9[%c1_33, %c8_34, %c0_35] : memref<10x26x64xbf16, #tpu.memory_space<vmem>>, vector<8x16x64xbf16>
    %41 = vector.shape_cast %40 : vector<8x16x64xbf16> to vector<128x64xbf16>
    %c4 = arith.constant 4 : index
    %c0_36 = arith.constant 0 : index
    %c0_37 = arith.constant 0 : index
    %42 = vector.load %arg3[%c4, %c0_36, %c0_37] : memref<9x64x128xbf16, #tpu.memory_space<vmem>>, vector<1x64x128xbf16>
    %43 = vector.shape_cast %42 : vector<1x64x128xbf16> to vector<64x128xbf16>
    %cst_38 = arith.constant dense<0.000000e+00> : vector<128x128xf32>
    %44 = tpu.matmul %41, %43, %cst_38 {dimension_numbers = #tpu.dot_dimension_numbers<[1], [0], [0], [1], [0, 0, 1, 1], [], []>} : vector<128x64xbf16>, vector<64x128xbf16>, vector<128x128xf32> -> vector<128x128xf32>
    %45 = arith.addf %39, %44 : vector<128x128xf32>
    %c1_39 = arith.constant 1 : index
    %c9_40 = arith.constant 9 : index
    %c0_41 = arith.constant 0 : index
    %46 = vector.load %arg9[%c1_39, %c9_40, %c0_41] : memref<10x26x64xbf16, #tpu.memory_space<vmem>>, vector<8x16x64xbf16>
    %47 = vector.shape_cast %46 : vector<8x16x64xbf16> to vector<128x64xbf16>
    %c5 = arith.constant 5 : index
    %c0_42 = arith.constant 0 : index
    %c0_43 = arith.constant 0 : index
    %48 = vector.load %arg3[%c5, %c0_42, %c0_43] : memref<9x64x128xbf16, #tpu.memory_space<vmem>>, vector<1x64x128xbf16>
    %49 = vector.shape_cast %48 : vector<1x64x128xbf16> to vector<64x128xbf16>
    %cst_44 = arith.constant dense<0.000000e+00> : vector<128x128xf32>
    %50 = tpu.matmul %47, %49, %cst_44 {dimension_numbers = #tpu.dot_dimension_numbers<[1], [0], [0], [1], [0, 0, 1, 1], [], []>} : vector<128x64xbf16>, vector<64x128xbf16>, vector<128x128xf32> -> vector<128x128xf32>
    %51 = arith.addf %45, %50 : vector<128x128xf32>
    %c2_45 = arith.constant 2 : index
    %c7_46 = arith.constant 7 : index
    %c0_47 = arith.constant 0 : index
    %52 = vector.load %arg9[%c2_45, %c7_46, %c0_47] : memref<10x26x64xbf16, #tpu.memory_space<vmem>>, vector<8x16x64xbf16>
    %53 = vector.shape_cast %52 : vector<8x16x64xbf16> to vector<128x64xbf16>
    %c6 = arith.constant 6 : index
    %c0_48 = arith.constant 0 : index
    %c0_49 = arith.constant 0 : index
    %54 = vector.load %arg3[%c6, %c0_48, %c0_49] : memref<9x64x128xbf16, #tpu.memory_space<vmem>>, vector<1x64x128xbf16>
    %55 = vector.shape_cast %54 : vector<1x64x128xbf16> to vector<64x128xbf16>
    %cst_50 = arith.constant dense<0.000000e+00> : vector<128x128xf32>
    %56 = tpu.matmul %53, %55, %cst_50 {dimension_numbers = #tpu.dot_dimension_numbers<[1], [0], [0], [1], [0, 0, 1, 1], [], []>} : vector<128x64xbf16>, vector<64x128xbf16>, vector<128x128xf32> -> vector<128x128xf32>
    %57 = arith.addf %51, %56 : vector<128x128xf32>
    %c2_51 = arith.constant 2 : index
    %c8_52 = arith.constant 8 : index
    %c0_53 = arith.constant 0 : index
    %58 = vector.load %arg9[%c2_51, %c8_52, %c0_53] : memref<10x26x64xbf16, #tpu.memory_space<vmem>>, vector<8x16x64xbf16>
    %59 = vector.shape_cast %58 : vector<8x16x64xbf16> to vector<128x64xbf16>
    %c7_54 = arith.constant 7 : index
    %c0_55 = arith.constant 0 : index
    %c0_56 = arith.constant 0 : index
    %60 = vector.load %arg3[%c7_54, %c0_55, %c0_56] : memref<9x64x128xbf16, #tpu.memory_space<vmem>>, vector<1x64x128xbf16>
    %61 = vector.shape_cast %60 : vector<1x64x128xbf16> to vector<64x128xbf16>
    %cst_57 = arith.constant dense<0.000000e+00> : vector<128x128xf32>
    %62 = tpu.matmul %59, %61, %cst_57 {dimension_numbers = #tpu.dot_dimension_numbers<[1], [0], [0], [1], [0, 0, 1, 1], [], []>} : vector<128x64xbf16>, vector<64x128xbf16>, vector<128x128xf32> -> vector<128x128xf32>
    %63 = arith.addf %57, %62 : vector<128x128xf32>
    %c2_58 = arith.constant 2 : index
    %c9_59 = arith.constant 9 : index
    %c0_60 = arith.constant 0 : index
    %64 = vector.load %arg9[%c2_58, %c9_59, %c0_60] : memref<10x26x64xbf16, #tpu.memory_space<vmem>>, vector<8x16x64xbf16>
    %65 = vector.shape_cast %64 : vector<8x16x64xbf16> to vector<128x64xbf16>
    %c8_61 = arith.constant 8 : index
    %c0_62 = arith.constant 0 : index
    %c0_63 = arith.constant 0 : index
    %66 = vector.load %arg3[%c8_61, %c0_62, %c0_63] : memref<9x64x128xbf16, #tpu.memory_space<vmem>>, vector<1x64x128xbf16>
    %67 = vector.shape_cast %66 : vector<1x64x128xbf16> to vector<64x128xbf16>
    %cst_64 = arith.constant dense<0.000000e+00> : vector<128x128xf32>
    %68 = tpu.matmul %65, %67, %cst_64 {dimension_numbers = #tpu.dot_dimension_numbers<[1], [0], [0], [1], [0, 0, 1, 1], [], []>} : vector<128x64xbf16>, vector<64x128xbf16>, vector<128x128xf32> -> vector<128x128xf32>
    %69 = arith.addf %63, %68 : vector<128x128xf32>
    %70 = vector.shape_cast %69 : vector<128x128xf32> to vector<1x8x16x128xf32>
    %71 = arith.truncf %70 : vector<1x8x16x128xf32> to vector<1x8x16x128xbf16>
    %c0_65 = arith.constant 0 : index
    %c0_66 = arith.constant 0 : index
    %c0_67 = arith.constant 0 : index
    %c0_68 = arith.constant 0 : index
    %72 = vector.load %arg6[%c0_65, %c0_66, %c0_67, %c0_68] : memref<1x8x16x128xbf16, #tpu.memory_space<vmem>>, vector<1x8x16x128xbf16>
    tpu.vector_store %arg6[%c0_65, %c0_66, %c0_67, %c0_68], %71 {strides = array<i32>} : memref<1x8x16x128xbf16, #tpu.memory_space<vmem>>, vector<1x8x16x128xbf16>,
    %73 = vector.shape_cast %69 : vector<128x128xf32> to vector<16x8x128xf32>
    %cst_69 = arith.constant dense<0.000000e+00> : vector<8x128xf32>
    %74 = vector.multi_reduction <add>, %73, %cst_69 [0] : vector<16x8x128xf32> to vector<8x128xf32>
    %75 = arith.mulf %69, %69 : vector<128x128xf32>
    %76 = vector.shape_cast %75 : vector<128x128xf32> to vector<16x8x128xf32>
    %cst_70 = arith.constant dense<0.000000e+00> : vector<8x128xf32>
    %77 = vector.multi_reduction <add>, %76, %cst_70 [0] : vector<16x8x128xf32> to vector<8x128xf32>
    %c0_i32_71 = arith.constant 0 : i32
    %78 = arith.cmpi eq, %arg1, %c0_i32_71 : i32
    %79 = arith.extui %78 : i1 to i32
    %c0_i32_72 = arith.constant 0 : i32
    %80 = arith.cmpi ne, %79, %c0_i32_72 : i32
    scf.if %80 {
      %c0_75 = arith.constant 0 : index
      %c0_76 = arith.constant 0 : index
      %84 = vector.load %arg7[%c0_75, %c0_76] : memref<8x128xf32, #tpu.memory_space<vmem>>, vector<8x128xf32>
      tpu.vector_store %arg7[%c0_75, %c0_76], %74 {strides = array<i32>} : memref<8x128xf32, #tpu.memory_space<vmem>>, vector<8x128xf32>,
      %c0_77 = arith.constant 0 : index
      %c0_78 = arith.constant 0 : index
      %85 = vector.load %arg8[%c0_77, %c0_78] : memref<8x128xf32, #tpu.memory_space<vmem>>, vector<8x128xf32>
      tpu.vector_store %arg8[%c0_77, %c0_78], %77 {strides = array<i32>} : memref<8x128xf32, #tpu.memory_space<vmem>>, vector<8x128xf32>,
    } else {
    }
    %c0_i32_73 = arith.constant 0 : i32
    %81 = arith.cmpi sgt, %arg1, %c0_i32_73 : i32
    %82 = arith.extui %81 : i1 to i32
    %c0_i32_74 = arith.constant 0 : i32
    %83 = arith.cmpi ne, %82, %c0_i32_74 : i32
    scf.if %83 {
      %c0_75 = arith.constant 0 : index
      %c0_76 = arith.constant 0 : index
      %84 = vector.load %arg7[%c0_75, %c0_76] : memref<8x128xf32, #tpu.memory_space<vmem>>, vector<8x128xf32>
      %85 = arith.addf %84, %74 : vector<8x128xf32>
      %c0_77 = arith.constant 0 : index
      %c0_78 = arith.constant 0 : index
      %86 = vector.load %arg7[%c0_77, %c0_78] : memref<8x128xf32, #tpu.memory_space<vmem>>, vector<8x128xf32>
      tpu.vector_store %arg7[%c0_77, %c0_78], %85 {strides = array<i32>} : memref<8x128xf32, #tpu.memory_space<vmem>>, vector<8x128xf32>,
      %c0_79 = arith.constant 0 : index
      %c0_80 = arith.constant 0 : index
      %87 = vector.load %arg8[%c0_79, %c0_80] : memref<8x128xf32, #tpu.memory_space<vmem>>, vector<8x128xf32>
      %88 = arith.addf %87, %77 : vector<8x128xf32>
      %c0_81 = arith.constant 0 : index
      %c0_82 = arith.constant 0 : index
      %89 = vector.load %arg8[%c0_81, %c0_82] : memref<8x128xf32, #tpu.memory_space<vmem>>, vector<8x128xf32>
      tpu.vector_store %arg8[%c0_81, %c0_82], %88 {strides = array<i32>} : memref<8x128xf32, #tpu.memory_space<vmem>>, vector<8x128xf32>,
    } else {
    }
    return
  }
  func.func @transform_0(%arg0: i32, %arg1: i32) -> (i32, i32, i32, i32) {
    %c0_i32 = arith.constant 0 : i32
    %c0_i32_0 = arith.constant 0 : i32
    %c0_i32_1 = arith.constant 0 : i32
    %c0_i32_2 = arith.constant 0 : i32
    return %arg0, %c0_i32, %c0_i32_0, %c0_i32_1 : i32, i32, i32, i32
  }
  func.func @transform_1(%arg0: i32, %arg1: i32) -> (i32, i32, i32) {
    %c0_i32 = arith.constant 0 : i32
    %c0_i32_0 = arith.constant 0 : i32
    %c0_i32_1 = arith.constant 0 : i32
    %c0_i32_2 = arith.constant 0 : i32
    return %c0_i32, %c0_i32_0, %c0_i32_1 : i32, i32, i32
  }
  func.func @transform_2(%arg0: i32, %arg1: i32) -> (i32, i32) {
    %c0_i32 = arith.constant 0 : i32
    %c0_i32_0 = arith.constant 0 : i32
    %c0_i32_1 = arith.constant 0 : i32
    return %c0_i32, %c0_i32_0 : i32, i32
  }
  func.func @transform_3(%arg0: i32, %arg1: i32) -> (i32, i32) {
    %c0_i32 = arith.constant 0 : i32
    %c0_i32_0 = arith.constant 0 : i32
    %c0_i32_1 = arith.constant 0 : i32
    return %c0_i32, %c0_i32_0 : i32, i32
  }
  func.func @transform_4(%arg0: i32, %arg1: i32) -> (i32, i32, i32, i32) {
    %c0_i32 = arith.constant 0 : i32
    %c0_i32_0 = arith.constant 0 : i32
    %c0_i32_1 = arith.constant 0 : i32
    return %arg0, %arg1, %c0_i32, %c0_i32_0 : i32, i32, i32, i32
  }
  func.func @transform_5(%arg0: i32, %arg1: i32) -> (i32, i32) {
    %c0_i32 = arith.constant 0 : i32
    %c0_i32_0 = arith.constant 0 : i32
    return %arg0, %c0_i32 : i32, i32
  }
  func.func @transform_6(%arg0: i32, %arg1: i32) -> (i32, i32) {
    %c0_i32 = arith.constant 0 : i32
    %c0_i32_0 = arith.constant 0 : i32
    return %arg0, %c0_i32 : i32, i32
  }
}

module attributes {stable_mosaic.version = 11 : i64} {
  func.func @_conv_bn_stats_kernel(%arg0: i32, %arg1: i32, %arg2: memref<1x16x16x128xbf16, #tpu.memory_space<vmem>>, %arg3: memref<9x128x128xbf16, #tpu.memory_space<vmem>>, %arg4: memref<1x128xf32, #tpu.memory_space<vmem>>, %arg5: memref<1x128xf32, #tpu.memory_space<vmem>>, %arg6: memref<1x8x16x128xbf16, #tpu.memory_space<vmem>>, %arg7: memref<8x128xf32, #tpu.memory_space<vmem>>, %arg8: memref<8x128xf32, #tpu.memory_space<vmem>>, %arg9: memref<10x26x128xbf16, #tpu.memory_space<vmem>>) attributes {dimension_semantics = [#tpu.dimension_semantics<parallel>, #tpu.dimension_semantics<arbitrary>], iteration_bounds = array<i64: 2, 2>, scalar_prefetch = 0 : i64, scratch_operands = 1 : i64, tpu.core_type = #tpu.core_type<tc>, window_params = [{transform_indices = @transform_0, window_bounds = array<i64: 1, 16, 16, 128>}, {pipeline_mode = #tpu.pipeline_mode<synchronous>, transform_indices = @transform_1, window_bounds = array<i64: 9, 128, 128>}, {pipeline_mode = #tpu.pipeline_mode<synchronous>, transform_indices = @transform_2, window_bounds = array<i64: 1, 128>}, {pipeline_mode = #tpu.pipeline_mode<synchronous>, transform_indices = @transform_3, window_bounds = array<i64: 1, 128>}, {transform_indices = @transform_4, window_bounds = array<i64: 1, 8, 16, 128>}, {transform_indices = @transform_5, window_bounds = array<i64: 8, 128>}, {transform_indices = @transform_6, window_bounds = array<i64: 8, 128>}]} {
    %c8_i32 = arith.constant 8 : i32
    %0 = arith.muli %arg1, %c8_i32 : i32
    %1 = tpu.assume_multiple %0, 8 : i32
    %c0 = arith.constant 0 : index
    %c0_0 = arith.constant 0 : index
    %2 = vector.load %arg4[%c0, %c0_0] : memref<1x128xf32, #tpu.memory_space<vmem>>, vector<1x128xf32>
    %c0_1 = arith.constant 0 : index
    %c0_2 = arith.constant 0 : index
    %3 = vector.load %arg5[%c0_1, %c0_2] : memref<1x128xf32, #tpu.memory_space<vmem>>, vector<1x128xf32>
    %cst = arith.constant 0.000000e+00 : bf16
    %4 = vector.broadcast %cst : bf16 to vector<10x26x128xbf16>
    %c0_3 = arith.constant 0 : index
    %c0_4 = arith.constant 0 : index
    %c0_5 = arith.constant 0 : index
    %5 = vector.load %arg9[%c0_3, %c0_4, %c0_5] : memref<10x26x128xbf16, #tpu.memory_space<vmem>>, vector<10x26x128xbf16>
    tpu.vector_store %arg9[%c0_3, %c0_4, %c0_5], %4 {strides = array<i32>} : memref<10x26x128xbf16, #tpu.memory_space<vmem>>, vector<10x26x128xbf16>,
    %c0_6 = arith.constant 0 : index
    %6 = arith.index_cast %1 : i32 to index
    %c0_7 = arith.constant 0 : index
    %c0_8 = arith.constant 0 : index
    %7 = vector.load %arg2[%c0_6, %6, %c0_7, %c0_8] : memref<1x16x16x128xbf16, #tpu.memory_space<vmem>>, vector<1x8x16x128xbf16>
    %8 = vector.shape_cast %7 : vector<1x8x16x128xbf16> to vector<8x16x128xbf16>
    %9 = arith.extf %8 : vector<8x16x128xbf16> to vector<8x16x128xf32>
    %10 = vector.shape_cast %2 : vector<1x128xf32> to vector<1x1x128xf32>
    %11 = vector.broadcast %10 : vector<1x1x128xf32> to vector<8x16x128xf32>
    %12 = arith.mulf %9, %11 : vector<8x16x128xf32>
    %13 = vector.shape_cast %3 : vector<1x128xf32> to vector<1x1x128xf32>
    %14 = vector.broadcast %13 : vector<1x1x128xf32> to vector<8x16x128xf32>
    %15 = arith.addf %12, %14 : vector<8x16x128xf32>
    %cst_9 = arith.constant 0.000000e+00 : f32
    %16 = vector.broadcast %cst_9 : f32 to vector<8x16x128xf32>
    %17 = arith.maximumf %15, %16 : vector<8x16x128xf32>
    %18 = arith.truncf %17 : vector<8x16x128xf32> to vector<8x16x128xbf16>
    %c1 = arith.constant 1 : index
    %c8 = arith.constant 8 : index
    %c0_10 = arith.constant 0 : index
    %19 = vector.load %arg9[%c1, %c8, %c0_10] : memref<10x26x128xbf16, #tpu.memory_space<vmem>>, vector<8x16x128xbf16>
    tpu.vector_store %arg9[%c1, %c8, %c0_10], %18 {strides = array<i32>} : memref<10x26x128xbf16, #tpu.memory_space<vmem>>, vector<8x16x128xbf16>,
    %c0_i32 = arith.constant 0 : i32
    %20 = arith.cmpi sgt, %arg1, %c0_i32 : i32
    %21 = arith.extui %20 : i1 to i32
    %c0_i32_11 = arith.constant 0 : i32
    %22 = arith.cmpi ne, %21, %c0_i32_11 : i32
    scf.if %22 {
      %c1_i32_80 = arith.constant 1 : i32
      %95 = arith.subi %1, %c1_i32_80 : i32
      %c0_81 = arith.constant 0 : index
      %96 = arith.index_cast %95 : i32 to index
      %c0_82 = arith.constant 0 : index
      %c0_83 = arith.constant 0 : index
      %97 = vector.load %arg2[%c0_81, %96, %c0_82, %c0_83] : memref<1x16x16x128xbf16, #tpu.memory_space<vmem>>, vector<1x1x16x128xbf16>
      %98 = vector.shape_cast %97 : vector<1x1x16x128xbf16> to vector<1x16x128xbf16>
      %99 = arith.extf %98 : vector<1x16x128xbf16> to vector<1x16x128xf32>
      %100 = vector.shape_cast %2 : vector<1x128xf32> to vector<1x1x128xf32>
      %101 = vector.broadcast %100 : vector<1x1x128xf32> to vector<1x16x128xf32>
      %102 = arith.mulf %99, %101 : vector<1x16x128xf32>
      %103 = vector.shape_cast %3 : vector<1x128xf32> to vector<1x1x128xf32>
      %104 = vector.broadcast %103 : vector<1x1x128xf32> to vector<1x16x128xf32>
      %105 = arith.addf %102, %104 : vector<1x16x128xf32>
      %cst_84 = arith.constant 0.000000e+00 : f32
      %106 = vector.broadcast %cst_84 : f32 to vector<1x16x128xf32>
      %107 = arith.maximumf %105, %106 : vector<1x16x128xf32>
      %108 = arith.truncf %107 : vector<1x16x128xf32> to vector<1x16x128xbf16>
      %c0_85 = arith.constant 0 : index
      %c8_86 = arith.constant 8 : index
      %c0_87 = arith.constant 0 : index
      %109 = vector.load %arg9[%c0_85, %c8_86, %c0_87] : memref<10x26x128xbf16, #tpu.memory_space<vmem>>, vector<1x16x128xbf16>
      tpu.vector_store %arg9[%c0_85, %c8_86, %c0_87], %108 {strides = array<i32>} : memref<10x26x128xbf16, #tpu.memory_space<vmem>>, vector<1x16x128xbf16>,
    } else {
    }
    %c1_i32 = arith.constant 1 : i32
    %23 = arith.cmpi slt, %arg1, %c1_i32 : i32
    %24 = arith.extui %23 : i1 to i32
    %c0_i32_12 = arith.constant 0 : i32
    %25 = arith.cmpi ne, %24, %c0_i32_12 : i32
    scf.if %25 {
      %c8_i32_80 = arith.constant 8 : i32
      %95 = arith.addi %1, %c8_i32_80 : i32
      %c0_81 = arith.constant 0 : index
      %96 = arith.index_cast %95 : i32 to index
      %c0_82 = arith.constant 0 : index
      %c0_83 = arith.constant 0 : index
      %97 = vector.load %arg2[%c0_81, %96, %c0_82, %c0_83] : memref<1x16x16x128xbf16, #tpu.memory_space<vmem>>, vector<1x1x16x128xbf16>
      %98 = vector.shape_cast %97 : vector<1x1x16x128xbf16> to vector<1x16x128xbf16>
      %99 = arith.extf %98 : vector<1x16x128xbf16> to vector<1x16x128xf32>
      %100 = vector.shape_cast %2 : vector<1x128xf32> to vector<1x1x128xf32>
      %101 = vector.broadcast %100 : vector<1x1x128xf32> to vector<1x16x128xf32>
      %102 = arith.mulf %99, %101 : vector<1x16x128xf32>
      %103 = vector.shape_cast %3 : vector<1x128xf32> to vector<1x1x128xf32>
      %104 = vector.broadcast %103 : vector<1x1x128xf32> to vector<1x16x128xf32>
      %105 = arith.addf %102, %104 : vector<1x16x128xf32>
      %cst_84 = arith.constant 0.000000e+00 : f32
      %106 = vector.broadcast %cst_84 : f32 to vector<1x16x128xf32>
      %107 = arith.maximumf %105, %106 : vector<1x16x128xf32>
      %108 = arith.truncf %107 : vector<1x16x128xf32> to vector<1x16x128xbf16>
      %c9_85 = arith.constant 9 : index
      %c8_86 = arith.constant 8 : index
      %c0_87 = arith.constant 0 : index
      %109 = vector.load %arg9[%c9_85, %c8_86, %c0_87] : memref<10x26x128xbf16, #tpu.memory_space<vmem>>, vector<1x16x128xbf16>
      tpu.vector_store %arg9[%c9_85, %c8_86, %c0_87], %108 {strides = array<i32>} : memref<10x26x128xbf16, #tpu.memory_space<vmem>>, vector<1x16x128xbf16>,
    } else {
    }
    %cst_13 = arith.constant 0.000000e+00 : f32
    %26 = vector.broadcast %cst_13 : f32 to vector<128x128xf32>
    %c0_14 = arith.constant 0 : index
    %c7 = arith.constant 7 : index
    %c0_15 = arith.constant 0 : index
    %27 = vector.load %arg9[%c0_14, %c7, %c0_15] : memref<10x26x128xbf16, #tpu.memory_space<vmem>>, vector<8x16x128xbf16>
    %28 = vector.shape_cast %27 : vector<8x16x128xbf16> to vector<128x128xbf16>
    %c0_16 = arith.constant 0 : index
    %c0_17 = arith.constant 0 : index
    %c0_18 = arith.constant 0 : index
    %29 = vector.load %arg3[%c0_16, %c0_17, %c0_18] : memref<9x128x128xbf16, #tpu.memory_space<vmem>>, vector<1x128x128xbf16>
    %30 = vector.shape_cast %29 : vector<1x128x128xbf16> to vector<128x128xbf16>
    %cst_19 = arith.constant dense<0.000000e+00> : vector<128x128xf32>
    %31 = tpu.matmul %28, %30, %cst_19 {dimension_numbers = #tpu.dot_dimension_numbers<[1], [0], [0], [1], [0, 0, 1, 1], [], []>} : vector<128x128xbf16>, vector<128x128xbf16>, vector<128x128xf32> -> vector<128x128xf32>
    %32 = arith.addf %26, %31 : vector<128x128xf32>
    %c0_20 = arith.constant 0 : index
    %c8_21 = arith.constant 8 : index
    %c0_22 = arith.constant 0 : index
    %33 = vector.load %arg9[%c0_20, %c8_21, %c0_22] : memref<10x26x128xbf16, #tpu.memory_space<vmem>>, vector<8x16x128xbf16>
    %34 = vector.shape_cast %33 : vector<8x16x128xbf16> to vector<128x128xbf16>
    %c1_23 = arith.constant 1 : index
    %c0_24 = arith.constant 0 : index
    %c0_25 = arith.constant 0 : index
    %35 = vector.load %arg3[%c1_23, %c0_24, %c0_25] : memref<9x128x128xbf16, #tpu.memory_space<vmem>>, vector<1x128x128xbf16>
    %36 = vector.shape_cast %35 : vector<1x128x128xbf16> to vector<128x128xbf16>
    %cst_26 = arith.constant dense<0.000000e+00> : vector<128x128xf32>
    %37 = tpu.matmul %34, %36, %cst_26 {dimension_numbers = #tpu.dot_dimension_numbers<[1], [0], [0], [1], [0, 0, 1, 1], [], []>} : vector<128x128xbf16>, vector<128x128xbf16>, vector<128x128xf32> -> vector<128x128xf32>
    %38 = arith.addf %32, %37 : vector<128x128xf32>
    %c0_27 = arith.constant 0 : index
    %c9 = arith.constant 9 : index
    %c0_28 = arith.constant 0 : index
    %39 = vector.load %arg9[%c0_27, %c9, %c0_28] : memref<10x26x128xbf16, #tpu.memory_space<vmem>>, vector<8x16x128xbf16>
    %40 = vector.shape_cast %39 : vector<8x16x128xbf16> to vector<128x128xbf16>
    %c2 = arith.constant 2 : index
    %c0_29 = arith.constant 0 : index
    %c0_30 = arith.constant 0 : index
    %41 = vector.load %arg3[%c2, %c0_29, %c0_30] : memref<9x128x128xbf16, #tpu.memory_space<vmem>>, vector<1x128x128xbf16>
    %42 = vector.shape_cast %41 : vector<1x128x128xbf16> to vector<128x128xbf16>
    %cst_31 = arith.constant dense<0.000000e+00> : vector<128x128xf32>
    %43 = tpu.matmul %40, %42, %cst_31 {dimension_numbers = #tpu.dot_dimension_numbers<[1], [0], [0], [1], [0, 0, 1, 1], [], []>} : vector<128x128xbf16>, vector<128x128xbf16>, vector<128x128xf32> -> vector<128x128xf32>
    %44 = arith.addf %38, %43 : vector<128x128xf32>
    %c1_32 = arith.constant 1 : index
    %c7_33 = arith.constant 7 : index
    %c0_34 = arith.constant 0 : index
    %45 = vector.load %arg9[%c1_32, %c7_33, %c0_34] : memref<10x26x128xbf16, #tpu.memory_space<vmem>>, vector<8x16x128xbf16>
    %46 = vector.shape_cast %45 : vector<8x16x128xbf16> to vector<128x128xbf16>
    %c3 = arith.constant 3 : index
    %c0_35 = arith.constant 0 : index
    %c0_36 = arith.constant 0 : index
    %47 = vector.load %arg3[%c3, %c0_35, %c0_36] : memref<9x128x128xbf16, #tpu.memory_space<vmem>>, vector<1x128x128xbf16>
    %48 = vector.shape_cast %47 : vector<1x128x128xbf16> to vector<128x128xbf16>
    %cst_37 = arith.constant dense<0.000000e+00> : vector<128x128xf32>
    %49 = tpu.matmul %46, %48, %cst_37 {dimension_numbers = #tpu.dot_dimension_numbers<[1], [0], [0], [1], [0, 0, 1, 1], [], []>} : vector<128x128xbf16>, vector<128x128xbf16>, vector<128x128xf32> -> vector<128x128xf32>
    %50 = arith.addf %44, %49 : vector<128x128xf32>
    %c1_38 = arith.constant 1 : index
    %c8_39 = arith.constant 8 : index
    %c0_40 = arith.constant 0 : index
    %51 = vector.load %arg9[%c1_38, %c8_39, %c0_40] : memref<10x26x128xbf16, #tpu.memory_space<vmem>>, vector<8x16x128xbf16>
    %52 = vector.shape_cast %51 : vector<8x16x128xbf16> to vector<128x128xbf16>
    %c4 = arith.constant 4 : index
    %c0_41 = arith.constant 0 : index
    %c0_42 = arith.constant 0 : index
    %53 = vector.load %arg3[%c4, %c0_41, %c0_42] : memref<9x128x128xbf16, #tpu.memory_space<vmem>>, vector<1x128x128xbf16>
    %54 = vector.shape_cast %53 : vector<1x128x128xbf16> to vector<128x128xbf16>
    %cst_43 = arith.constant dense<0.000000e+00> : vector<128x128xf32>
    %55 = tpu.matmul %52, %54, %cst_43 {dimension_numbers = #tpu.dot_dimension_numbers<[1], [0], [0], [1], [0, 0, 1, 1], [], []>} : vector<128x128xbf16>, vector<128x128xbf16>, vector<128x128xf32> -> vector<128x128xf32>
    %56 = arith.addf %50, %55 : vector<128x128xf32>
    %c1_44 = arith.constant 1 : index
    %c9_45 = arith.constant 9 : index
    %c0_46 = arith.constant 0 : index
    %57 = vector.load %arg9[%c1_44, %c9_45, %c0_46] : memref<10x26x128xbf16, #tpu.memory_space<vmem>>, vector<8x16x128xbf16>
    %58 = vector.shape_cast %57 : vector<8x16x128xbf16> to vector<128x128xbf16>
    %c5 = arith.constant 5 : index
    %c0_47 = arith.constant 0 : index
    %c0_48 = arith.constant 0 : index
    %59 = vector.load %arg3[%c5, %c0_47, %c0_48] : memref<9x128x128xbf16, #tpu.memory_space<vmem>>, vector<1x128x128xbf16>
    %60 = vector.shape_cast %59 : vector<1x128x128xbf16> to vector<128x128xbf16>
    %cst_49 = arith.constant dense<0.000000e+00> : vector<128x128xf32>
    %61 = tpu.matmul %58, %60, %cst_49 {dimension_numbers = #tpu.dot_dimension_numbers<[1], [0], [0], [1], [0, 0, 1, 1], [], []>} : vector<128x128xbf16>, vector<128x128xbf16>, vector<128x128xf32> -> vector<128x128xf32>
    %62 = arith.addf %56, %61 : vector<128x128xf32>
    %c2_50 = arith.constant 2 : index
    %c7_51 = arith.constant 7 : index
    %c0_52 = arith.constant 0 : index
    %63 = vector.load %arg9[%c2_50, %c7_51, %c0_52] : memref<10x26x128xbf16, #tpu.memory_space<vmem>>, vector<8x16x128xbf16>
    %64 = vector.shape_cast %63 : vector<8x16x128xbf16> to vector<128x128xbf16>
    %c6 = arith.constant 6 : index
    %c0_53 = arith.constant 0 : index
    %c0_54 = arith.constant 0 : index
    %65 = vector.load %arg3[%c6, %c0_53, %c0_54] : memref<9x128x128xbf16, #tpu.memory_space<vmem>>, vector<1x128x128xbf16>
    %66 = vector.shape_cast %65 : vector<1x128x128xbf16> to vector<128x128xbf16>
    %cst_55 = arith.constant dense<0.000000e+00> : vector<128x128xf32>
    %67 = tpu.matmul %64, %66, %cst_55 {dimension_numbers = #tpu.dot_dimension_numbers<[1], [0], [0], [1], [0, 0, 1, 1], [], []>} : vector<128x128xbf16>, vector<128x128xbf16>, vector<128x128xf32> -> vector<128x128xf32>
    %68 = arith.addf %62, %67 : vector<128x128xf32>
    %c2_56 = arith.constant 2 : index
    %c8_57 = arith.constant 8 : index
    %c0_58 = arith.constant 0 : index
    %69 = vector.load %arg9[%c2_56, %c8_57, %c0_58] : memref<10x26x128xbf16, #tpu.memory_space<vmem>>, vector<8x16x128xbf16>
    %70 = vector.shape_cast %69 : vector<8x16x128xbf16> to vector<128x128xbf16>
    %c7_59 = arith.constant 7 : index
    %c0_60 = arith.constant 0 : index
    %c0_61 = arith.constant 0 : index
    %71 = vector.load %arg3[%c7_59, %c0_60, %c0_61] : memref<9x128x128xbf16, #tpu.memory_space<vmem>>, vector<1x128x128xbf16>
    %72 = vector.shape_cast %71 : vector<1x128x128xbf16> to vector<128x128xbf16>
    %cst_62 = arith.constant dense<0.000000e+00> : vector<128x128xf32>
    %73 = tpu.matmul %70, %72, %cst_62 {dimension_numbers = #tpu.dot_dimension_numbers<[1], [0], [0], [1], [0, 0, 1, 1], [], []>} : vector<128x128xbf16>, vector<128x128xbf16>, vector<128x128xf32> -> vector<128x128xf32>
    %74 = arith.addf %68, %73 : vector<128x128xf32>
    %c2_63 = arith.constant 2 : index
    %c9_64 = arith.constant 9 : index
    %c0_65 = arith.constant 0 : index
    %75 = vector.load %arg9[%c2_63, %c9_64, %c0_65] : memref<10x26x128xbf16, #tpu.memory_space<vmem>>, vector<8x16x128xbf16>
    %76 = vector.shape_cast %75 : vector<8x16x128xbf16> to vector<128x128xbf16>
    %c8_66 = arith.constant 8 : index
    %c0_67 = arith.constant 0 : index
    %c0_68 = arith.constant 0 : index
    %77 = vector.load %arg3[%c8_66, %c0_67, %c0_68] : memref<9x128x128xbf16, #tpu.memory_space<vmem>>, vector<1x128x128xbf16>
    %78 = vector.shape_cast %77 : vector<1x128x128xbf16> to vector<128x128xbf16>
    %cst_69 = arith.constant dense<0.000000e+00> : vector<128x128xf32>
    %79 = tpu.matmul %76, %78, %cst_69 {dimension_numbers = #tpu.dot_dimension_numbers<[1], [0], [0], [1], [0, 0, 1, 1], [], []>} : vector<128x128xbf16>, vector<128x128xbf16>, vector<128x128xf32> -> vector<128x128xf32>
    %80 = arith.addf %74, %79 : vector<128x128xf32>
    %81 = vector.shape_cast %80 : vector<128x128xf32> to vector<1x8x16x128xf32>
    %82 = arith.truncf %81 : vector<1x8x16x128xf32> to vector<1x8x16x128xbf16>
    %c0_70 = arith.constant 0 : index
    %c0_71 = arith.constant 0 : index
    %c0_72 = arith.constant 0 : index
    %c0_73 = arith.constant 0 : index
    %83 = vector.load %arg6[%c0_70, %c0_71, %c0_72, %c0_73] : memref<1x8x16x128xbf16, #tpu.memory_space<vmem>>, vector<1x8x16x128xbf16>
    tpu.vector_store %arg6[%c0_70, %c0_71, %c0_72, %c0_73], %82 {strides = array<i32>} : memref<1x8x16x128xbf16, #tpu.memory_space<vmem>>, vector<1x8x16x128xbf16>,
    %84 = vector.shape_cast %80 : vector<128x128xf32> to vector<16x8x128xf32>
    %cst_74 = arith.constant dense<0.000000e+00> : vector<8x128xf32>
    %85 = vector.multi_reduction <add>, %84, %cst_74 [0] : vector<16x8x128xf32> to vector<8x128xf32>
    %86 = arith.mulf %80, %80 : vector<128x128xf32>
    %87 = vector.shape_cast %86 : vector<128x128xf32> to vector<16x8x128xf32>
    %cst_75 = arith.constant dense<0.000000e+00> : vector<8x128xf32>
    %88 = vector.multi_reduction <add>, %87, %cst_75 [0] : vector<16x8x128xf32> to vector<8x128xf32>
    %c0_i32_76 = arith.constant 0 : i32
    %89 = arith.cmpi eq, %arg1, %c0_i32_76 : i32
    %90 = arith.extui %89 : i1 to i32
    %c0_i32_77 = arith.constant 0 : i32
    %91 = arith.cmpi ne, %90, %c0_i32_77 : i32
    scf.if %91 {
      %c0_80 = arith.constant 0 : index
      %c0_81 = arith.constant 0 : index
      %95 = vector.load %arg7[%c0_80, %c0_81] : memref<8x128xf32, #tpu.memory_space<vmem>>, vector<8x128xf32>
      tpu.vector_store %arg7[%c0_80, %c0_81], %85 {strides = array<i32>} : memref<8x128xf32, #tpu.memory_space<vmem>>, vector<8x128xf32>,
      %c0_82 = arith.constant 0 : index
      %c0_83 = arith.constant 0 : index
      %96 = vector.load %arg8[%c0_82, %c0_83] : memref<8x128xf32, #tpu.memory_space<vmem>>, vector<8x128xf32>
      tpu.vector_store %arg8[%c0_82, %c0_83], %88 {strides = array<i32>} : memref<8x128xf32, #tpu.memory_space<vmem>>, vector<8x128xf32>,
    } else {
    }
    %c0_i32_78 = arith.constant 0 : i32
    %92 = arith.cmpi sgt, %arg1, %c0_i32_78 : i32
    %93 = arith.extui %92 : i1 to i32
    %c0_i32_79 = arith.constant 0 : i32
    %94 = arith.cmpi ne, %93, %c0_i32_79 : i32
    scf.if %94 {
      %c0_80 = arith.constant 0 : index
      %c0_81 = arith.constant 0 : index
      %95 = vector.load %arg7[%c0_80, %c0_81] : memref<8x128xf32, #tpu.memory_space<vmem>>, vector<8x128xf32>
      %96 = arith.addf %95, %85 : vector<8x128xf32>
      %c0_82 = arith.constant 0 : index
      %c0_83 = arith.constant 0 : index
      %97 = vector.load %arg7[%c0_82, %c0_83] : memref<8x128xf32, #tpu.memory_space<vmem>>, vector<8x128xf32>
      tpu.vector_store %arg7[%c0_82, %c0_83], %96 {strides = array<i32>} : memref<8x128xf32, #tpu.memory_space<vmem>>, vector<8x128xf32>,
      %c0_84 = arith.constant 0 : index
      %c0_85 = arith.constant 0 : index
      %98 = vector.load %arg8[%c0_84, %c0_85] : memref<8x128xf32, #tpu.memory_space<vmem>>, vector<8x128xf32>
      %99 = arith.addf %98, %88 : vector<8x128xf32>
      %c0_86 = arith.constant 0 : index
      %c0_87 = arith.constant 0 : index
      %100 = vector.load %arg8[%c0_86, %c0_87] : memref<8x128xf32, #tpu.memory_space<vmem>>, vector<8x128xf32>
      tpu.vector_store %arg8[%c0_86, %c0_87], %99 {strides = array<i32>} : memref<8x128xf32, #tpu.memory_space<vmem>>, vector<8x128xf32>,
    } else {
    }
    return
  }
  func.func @transform_0(%arg0: i32, %arg1: i32) -> (i32, i32, i32, i32) {
    %c0_i32 = arith.constant 0 : i32
    %c0_i32_0 = arith.constant 0 : i32
    %c0_i32_1 = arith.constant 0 : i32
    %c0_i32_2 = arith.constant 0 : i32
    return %arg0, %c0_i32, %c0_i32_0, %c0_i32_1 : i32, i32, i32, i32
  }
  func.func @transform_1(%arg0: i32, %arg1: i32) -> (i32, i32, i32) {
    %c0_i32 = arith.constant 0 : i32
    %c0_i32_0 = arith.constant 0 : i32
    %c0_i32_1 = arith.constant 0 : i32
    %c0_i32_2 = arith.constant 0 : i32
    return %c0_i32, %c0_i32_0, %c0_i32_1 : i32, i32, i32
  }
  func.func @transform_2(%arg0: i32, %arg1: i32) -> (i32, i32) {
    %c0_i32 = arith.constant 0 : i32
    %c0_i32_0 = arith.constant 0 : i32
    %c0_i32_1 = arith.constant 0 : i32
    return %c0_i32, %c0_i32_0 : i32, i32
  }
  func.func @transform_3(%arg0: i32, %arg1: i32) -> (i32, i32) {
    %c0_i32 = arith.constant 0 : i32
    %c0_i32_0 = arith.constant 0 : i32
    %c0_i32_1 = arith.constant 0 : i32
    return %c0_i32, %c0_i32_0 : i32, i32
  }
  func.func @transform_4(%arg0: i32, %arg1: i32) -> (i32, i32, i32, i32) {
    %c0_i32 = arith.constant 0 : i32
    %c0_i32_0 = arith.constant 0 : i32
    %c0_i32_1 = arith.constant 0 : i32
    return %arg0, %arg1, %c0_i32, %c0_i32_0 : i32, i32, i32, i32
  }
  func.func @transform_5(%arg0: i32, %arg1: i32) -> (i32, i32) {
    %c0_i32 = arith.constant 0 : i32
    %c0_i32_0 = arith.constant 0 : i32
    return %arg0, %c0_i32 : i32, i32
  }
  func.func @transform_6(%arg0: i32, %arg1: i32) -> (i32, i32) {
    %c0_i32 = arith.constant 0 : i32
    %c0_i32_0 = arith.constant 0 : i32
    return %arg0, %c0_i32 : i32, i32
  }
}

</mosaic_0001>

<llo_original>
// kernel: tile.28
$region0: #{tile.28}
  #allocation0 [shape = 's32[1]{0}', space=sflag, size = 0x4, scoped, tag = 'scoped memory for tile.28']
  %s0 = inlined_call_operand.vmem [shape: f32[8], index: 0, kind: input, shape index: {}]
  %s1 = inlined_call_operand.vmem [shape: f32[16,8], index: 1, kind: output, shape index: {}]
  // Predicated region
  $region2: #{tile.28} parent=0 // pred_check
    _
  $region3: #{tile.28} parent=0 // pred_check_branch
    %3 = sbr.rel (0) target = $region5
  $region4: #{tile.28} parent=0 // pred_region
    _
  $region5: #{tile.28} parent=0 // pred_fallthru
    _
  %v4 = vld [vmem:[%s0] ss:$0 sm:$0xff]
  %5 = vst [vmem:[%s1] sm:$0xff] %v4
  %s6 = scalar_lea.vmem %s1, 8
  %7 = vst [vmem:[%s6] sm:$0xff] %v4

// kernel: tile.29
$region0: #{tile.29}
  %s0 = inlined_call_operand.vmem [shape: f32[16,8], index: 0, kind: input, shape index: {}]
  %s1 = inlined_call_operand.vmem [shape: f32[1,128], index: 1, kind: output, shape index: {}]
  $region1: #{tile.29} parent=0
    #allocation0 [shape = 'u8[4096]{0}', space=vmem, size = 0x1000, scoped, tag = 'scoped mem for output reshape']
    %v2 = vld [vmem:[%s0] sm:$0x1]
    %vm3 = vcmask 64512
    %4 = vst.msk [vmem:[#allocation0] sm:$0x1] %vm3, %v2
    %s5 = scalar_lea.vmem %s0, 15
    %v6 = vld [vmem:[%s5] sm:$0x1]
    %7 = vrot.lane.b32.xlu0 %v6, 120
    %v8 = vpop.permute.xlu0 %7
    %vm9 = vcmask 1048512
    %10 = vst.msk [vmem:[#allocation0] sm:$0x1] %vm9, %v8
    %s11 = scalar_lea.vmem %s0, 14
    %v12 = vld [vmem:[%s11] sm:$0x1]
    %13 = vrot.lane.b32.xlu0 %v12, 112
    %v14 = vpop.permute.xlu0 %13
    %vm15 = vcmask 982912
    %16 = vst.msk [vmem:[#allocation0] sm:$0x1] %vm15, %v14
    %s17 = scalar_lea.vmem %s0, 13
    %v18 = vld [vmem:[%s17] sm:$0x1]
    %19 = vrot.lane.b32.xlu0 %v18, 104
    %v20 = vpop.permute.xlu0 %19
    %vm21 = vcmask 917312
    %22 = vst.msk [vmem:[#allocation0] sm:$0x1] %vm21, %v20
    %s23 = scalar_lea.vmem %s0, 12
    %v24 = vld [vmem:[%s23] sm:$0x1]
    %25 = vrot.lane.b32.xlu0 %v24, 96
    %v26 = vpop.permute.xlu0 %25
    %vm27 = vcmask 851712
    %28 = vst.msk [vmem:[#allocation0] sm:$0x1] %vm27, %v26
    %s29 = scalar_lea.vmem %s0, 11
    %v30 = vld [vmem:[%s29] sm:$0x1]
    %31 = vrot.lane.b32.xlu0 %v30, 88
    %v32 = vpop.permute.xlu0 %31
    %vm33 = vcmask 786112
    %34 = vst.msk [vmem:[#allocation0] sm:$0x1] %vm33, %v32
    %s35 = scalar_lea.vmem %s0, 10
    %v36 = vld [vmem:[%s35] sm:$0x1]
    %37 = vrot.lane.b32.xlu0 %v36, 80
    %v38 = vpop.permute.xlu0 %37
    %vm39 = vcmask 720512
    %40 = vst.msk [vmem:[#allocation0] sm:$0x1] %vm39, %v38
    %s41 = scalar_lea.vmem %s0, 9
    %v42 = vld [vmem:[%s41] sm:$0x1]
    %43 = vrot.lane.b32.xlu0 %v42, 72
    %v44 = vpop.permute.xlu0 %43
    %vm45 = vcmask 654912
    %46 = vst.msk [vmem:[#allocation0] sm:$0x1] %vm45, %v44
    %s47 = scalar_lea.vmem %s0, 8
    %v48 = vld [vmem:[%s47] sm:$0x1]
    %49 = vrot.lane.b32.xlu0 %v48, 64
    %v50 = vpop.permute.xlu0 %49
    %vm51 = vcmask 589312
    %52 = vst.msk [vmem:[#allocation0] sm:$0x1] %vm51, %v50
    %s53 = scalar_lea.vmem %s0, 7
    %v54 = vld [vmem:[%s53] sm:$0x1]
    %55 = vrot.lane.b32.xlu0 %v54, 56
    %v56 = vpop.permute.xlu0 %55
    %vm57 = vcmask 523712
    %58 = vst.msk [vmem:[#allocation0] sm:$0x1] %vm57, %v56
    %s59 = scalar_lea.vmem %s0, 6
    %v60 = vld [vmem:[%s59] sm:$0x1]
    %61 = vrot.lane.b32.xlu0 %v60, 48
    %v62 = vpop.permute.xlu0 %61
    %vm63 = vcmask 458112
    %64 = vst.msk [vmem:[#allocation0] sm:$0x1] %vm63, %v62
    %s65 = scalar_lea.vmem %s0, 5
    %v66 = vld [vmem:[%s65] sm:$0x1]
    %67 = vrot.lane.b32.xlu0 %v66, 40
    %v68 = vpop.permute.xlu0 %67
    %vm69 = vcmask 392512
    %70 = vst.msk [vmem:[#allocation0] sm:$0x1] %vm69, %v68
    %s71 = scalar_lea.vmem %s0, 4
    %v72 = vld [vmem:[%s71] sm:$0x1]
    %73 = vrot.lane.b32.xlu0 %v72, 32
    %v74 = vpop.permute.xlu0 %73
    %vm75 = vcmask 326912
    %76 = vst.msk [vmem:[#allocation0] sm:$0x1] %vm75, %v74
    %s77 = scalar_lea.vmem %s0, 3
    %v78 = vld [vmem:[%s77] sm:$0x1]
    %79 = vrot.lane.b32.xlu0 %v78, 24
    %v80 = vpop.permute.xlu0 %79
    %vm81 = vcmask 261312
    %82 = vst.msk [vmem:[#allocation0] sm:$0x1] %vm81, %v80
    %s83 = scalar_lea.vmem %s0, 2
    %v84 = vld [vmem:[%s83] sm:$0x1]
    %85 = vrot.lane.b32.xlu0 %v84, 16
    %v86 = vpop.permute.xlu0 %85
    %vm87 = vcmask 195712
    %88 = vst.msk [vmem:[#allocation0] sm:$0x1] %vm87, %v86
    %s89 = scalar_lea.vmem %s0, 1
    %v90 = vld [vmem:[%s89] sm:$0x1]
    %91 = vrot.lane.b32.xlu0 %v90, 8
    %v92 = vpop.permute.xlu0 %91
    %vm93 = vcmask 130112
    %94 = vst.msk [vmem:[#allocation0] sm:$0x1] %vm93, %v92
    %s96 = sshll.u32 1, 1
    %s97 = ssub.s32 %s96, 1
    %v99 = vld [vmem:[#allocation0] sm:%s97]
    %s100 = sshll.u32 1, 1
    %s101 = ssub.s32 %s100, 1
    %102 = vst [vmem:[%s1] sm:%s101] %v99

// kernel: conv_block3d_forward.2
$region0: #{conv_block3d_forward.2}
  #allocation0 [shape = 'u32[]', space=smem, size = 0x4, offset = 0x4, fixed_abs, tag = 'smem constant byte address 0x4 - core index']
  #allocation1 [shape = 'u32[144,128]{1,0:T(1,128)}', space=vmem, size = 0x12000, scoped, tag = 'internal scratch']
  #allocation2 [shape = 'bf16[10,26,64]{2,1,0:T(8,128)(2,1)}', space=vmem, size = 0x14000, scoped, tag = 'scratch operand']
  %s0 = inlined_call_operand.vmem [shape: f32[2,16,16,64], index: 0, kind: input, shape index: {}]
  %s1 = inlined_call_operand.vmem [shape: bf16[9,64,128], index: 1, kind: input, shape index: {}]
  %s2 = inlined_call_operand.vmem [shape: f32[1,64], index: 2, kind: input, shape index: {}]
  %s3 = inlined_call_operand.vmem [shape: f32[1,64], index: 3, kind: input, shape index: {}]
  %s4 = inlined_call_operand.vmem [shape: bf16[2,16,16,128], index: 4, kind: output, shape index: {0}]
  %s5 = inlined_call_operand.vmem [shape: f32[16,128], index: 5, kind: output, shape index: {1}]
  %s6 = inlined_call_operand.vmem [shape: f32[16,128], index: 6, kind: output, shape index: {2}]
  %7 = xla_tuple %s4, %s5, %s6
  %s8 = sld [smem:[#allocation0]]
  $region81: #{conv_block3d_forward.2} parent=0
    _
  %s10 = ssub.s32 1, %s8
  %s11 = scalar_select 0, %s10, %s8
  loop: start=0, step=1, limit=6
  $region2: #{conv_block3d_forward.2} parent=0 // loop_pre_header
    _
  $region3: #{conv_block3d_forward.2} parent=0 // loop_header
    %s13 = sphi 0, %s17
    %p14 = scmp.ge.s32.totalorder %s13, 6
    %s20 = sphi 0, %s32
    %s21 = sphi 0, %s28
    %s22 = sphi 0, %s20
    %s23 = sphi 0, %s21
    %s24 = sphi 0, %s22
    %s25 = sphi 0, %s23
    %s35 = sphi 0, %s37
    %s38 = sphi 0, %s35
    %s39 = sphi 0, %s38
    %s55 = sphi 0, %s39
    %s59 = sphi 0, %s59
    %s61 = sphi 0, %s59
    %s62 = sphi 0, %s61
    %s76 = sphi 0, %s62
    %s80 = sphi 0, %s80
    %s82 = sphi 0, %s80
    %s83 = sphi 0, %s82
    %s97 = sphi 0, %s83
    %s101 = sphi 0, %s101
    %s103 = sphi 0, %s101
    %s104 = sphi 0, %s103
    %s118 = sphi 0, %s104
    %s126 = sphi 0, %s128
    %s129 = sphi 0, %s126
    %s130 = sphi 0, %s129
    %s146 = sphi 0, %s130
    %s152 = sphi 0, %s154
    %s155 = sphi 0, %s152
    %s156 = sphi 0, %s155
    %s172 = sphi 0, %s156
    %s178 = sphi 0, %s180
    %s181 = sphi 0, %s178
    %s182 = sphi 0, %s181
    %s198 = sphi 0, %s182
  $region4: #{conv_block3d_forward.2} parent=0 // loop_header_branch
    %16 = sbr.rel (%p14) target = $region8
  $region5: #{conv_block3d_forward.2} parent=0 // loop_body
    %s18 = ssub.s32 %s13, 1
    %s19 = ssub.s32 %s13, 2
    %s26 = sadd.s32 1, %s21
    %p27 = scmp.ge.s32.totalorder %s26, 2
    %s28 = scalar_select %p27, 0, %s26
    %s29 = sadd.s32 1, %s20
    %s30 = scalar_select %p27, %s29, %s20
    %p31 = scmp.ge.s32.totalorder %s30, 2
    %s32 = scalar_select %p31, 0, %s30
    %s33 = ssub.s32 %s20, %s32
    %p34 = scmp.eq.s32.totalorder %s33, 0
    %s36 = sadd.s32 %s35, 1
    %s37 = scalar_select %p34, %s35, %s36
    %p40 = pneg %p34
    %p41 = scmp.eq.s32.totalorder %s13, 3
    %p42 = por %p40, %p41
    %p43 = scmp.ne.s32.totalorder %s35, %s38
    %p44 = scmp.eq.s32.totalorder %s13, 0
    %p45 = por %p43, %p44
    %p46 = scmp.ne.s32.totalorder %s35, %s38
    %p47 = scmp.eq.s32.totalorder %s18, 3
    %p48 = por %p46, %p47
    %p49 = scmp.ne.s32.totalorder %s38, %s39
    %p50 = scmp.eq.s32.totalorder %s18, 0
    %p51 = por %p49, %p50
    %p52 = scmp.ne.s32.totalorder %s38, %s39
    %p53 = scmp.eq.s32.totalorder %s19, 3
    %p54 = por %p52, %p53
    %p56 = scmp.ne.s32.totalorder %s39, %s55
    %p57 = scmp.eq.s32.totalorder %s19, 0
    %p58 = por %p56, %p57
    %s60 = sadd.s32 %s59, 1
    %p63 = scmp.eq.s32.totalorder %s13, 3
    %p64 = scmp.ne.s32.totalorder %s59, %s61
    %p65 = scmp.eq.s32.totalorder %s13, 0
    %p66 = por %p64, %p65
    %p67 = scmp.ne.s32.totalorder %s59, %s61
    %p68 = scmp.eq.s32.totalorder %s18, 3
    %p69 = por %p67, %p68
    %p70 = scmp.ne.s32.totalorder %s61, %s62
    %p71 = scmp.eq.s32.totalorder %s18, 0
    %p72 = por %p70, %p71
    %p73 = scmp.ne.s32.totalorder %s61, %s62
    %p74 = scmp.eq.s32.totalorder %s19, 3
    %p75 = por %p73, %p74
    %p77 = scmp.ne.s32.totalorder %s62, %s76
    %p78 = scmp.eq.s32.totalorder %s19, 0
    %p79 = por %p77, %p78
    %s81 = sadd.s32 %s80, 1
    %p84 = scmp.eq.s32.totalorder %s13, 3
    %p85 = scmp.ne.s32.totalorder %s80, %s82
    %p86 = scmp.eq.s32.totalorder %s13, 0
    %p87 = por %p85, %p86
    %p88 = scmp.ne.s32.totalorder %s80, %s82
    %p89 = scmp.eq.s32.totalorder %s18, 3
    %p90 = por %p88, %p89
    %p91 = scmp.ne.s32.totalorder %s82, %s83
    %p92 = scmp.eq.s32.totalorder %s18, 0
    %p93 = por %p91, %p92
    %p94 = scmp.ne.s32.totalorder %s82, %s83
    %p95 = scmp.eq.s32.totalorder %s19, 3
    %p96 = por %p94, %p95
    %p98 = scmp.ne.s32.totalorder %s83, %s97
    %p99 = scmp.eq.s32.totalorder %s19, 0
    %p100 = por %p98, %p99
    %s102 = sadd.s32 %s101, 1
    %p105 = scmp.eq.s32.totalorder %s13, 3
    %p106 = scmp.ne.s32.totalorder %s101, %s103
    %p107 = scmp.eq.s32.totalorder %s13, 0
    %p108 = por %p106, %p107
    %p109 = scmp.ne.s32.totalorder %s101, %s103
    %p110 = scmp.eq.s32.totalorder %s18, 3
    %p111 = por %p109, %p110
    %p112 = scmp.ne.s32.totalorder %s103, %s104
    %p113 = scmp.eq.s32.totalorder %s18, 0
    %p114 = por %p112, %p113
    %p115 = scmp.ne.s32.totalorder %s103, %s104
    %p116 = scmp.eq.s32.totalorder %s19, 3
    %p117 = por %p115, %p116
    %p119 = scmp.ne.s32.totalorder %s104, %s118
    %p120 = scmp.eq.s32.totalorder %s19, 0
    %p121 = por %p119, %p120
    %s122 = ssub.s32 %s20, %s32
    %s123 = ssub.s32 %s21, %s28
    %s124 = sor.u32 %s122, %s123
    %p125 = scmp.eq.s32.totalorder %s124, 0
    %s127 = sadd.s32 %s126, 1
    %s128 = scalar_select %p125, %s126, %s127
    %p131 = pneg %p125
    %p132 = scmp.eq.s32.totalorder %s13, 3
    %p133 = por %p131, %p132
    %p134 = scmp.ne.s32.totalorder %s126, %s129
    %p135 = scmp.eq.s32.totalorder %s13, 0
    %p136 = por %p134, %p135
    %p137 = scmp.ne.s32.totalorder %s126, %s129
    %p138 = scmp.eq.s32.totalorder %s18, 3
    %p139 = por %p137, %p138
    %p140 = scmp.ne.s32.totalorder %s129, %s130
    %p141 = scmp.eq.s32.totalorder %s18, 0
    %p142 = por %p140, %p141
    %p143 = scmp.ne.s32.totalorder %s129, %s130
    %p144 = scmp.eq.s32.totalorder %s19, 3
    %p145 = por %p143, %p144
    %p147 = scmp.ne.s32.totalorder %s130, %s146
    %p148 = scmp.eq.s32.totalorder %s19, 0
    %p149 = por %p147, %p148
    %s150 = ssub.s32 %s20, %s32
    %p151 = scmp.eq.s32.totalorder %s150, 0
    %s153 = sadd.s32 %s152, 1
    %s154 = scalar_select %p151, %s152, %s153
    %p157 = pneg %p151
    %p158 = scmp.eq.s32.totalorder %s13, 3
    %p159 = por %p157, %p158
    %p160 = scmp.ne.s32.totalorder %s152, %s155
    %p161 = scmp.eq.s32.totalorder %s13, 0
    %p162 = por %p160, %p161
    %p163 = scmp.ne.s32.totalorder %s152, %s155
    %p164 = scmp.eq.s32.totalorder %s18, 3
    %p165 = por %p163, %p164
    %p166 = scmp.ne.s32.totalorder %s155, %s156
    %p167 = scmp.eq.s32.totalorder %s18, 0
    %p168 = por %p166, %p167
    %p169 = scmp.ne.s32.totalorder %s155, %s156
    %p170 = scmp.eq.s32.totalorder %s19, 3
    %p171 = por %p169, %p170
    %p173 = scmp.ne.s32.totalorder %s156, %s172
    %p174 = scmp.eq.s32.totalorder %s19, 0
    %p175 = por %p173, %p174
    %s176 = ssub.s32 %s20, %s32
    %p177 = scmp.eq.s32.totalorder %s176, 0
    %s179 = sadd.s32 %s178, 1
    %s180 = scalar_select %p177, %s178, %s179
    %p183 = pneg %p177
    %p184 = scmp.eq.s32.totalorder %s13, 3
    %p185 = por %p183, %p184
    %p186 = scmp.ne.s32.totalorder %s178, %s181
    %p187 = scmp.eq.s32.totalorder %s13, 0
    %p188 = por %p186, %p187
    %p189 = scmp.ne.s32.totalorder %s178, %s181
    %p190 = scmp.eq.s32.totalorder %s18, 3
    %p191 = por %p189, %p190
    %p192 = scmp.ne.s32.totalorder %s181, %s182
    %p193 = scmp.eq.s32.totalorder %s18, 0
    %p194 = por %p192, %p193
    %p195 = scmp.ne.s32.totalorder %s181, %s182
    %p196 = scmp.eq.s32.totalorder %s19, 3
    %p197 = por %p195, %p196
    %p199 = scmp.ne.s32.totalorder %s182, %s198
    %p200 = scmp.eq.s32.totalorder %s19, 0
    %p201 = por %p199, %p200
    %p202 = scmp.le.s32.totalorder 1, %s13
    %p203 = scmp.lt.s32.totalorder %s13, 5
    %p204 = pnand %p202, %p203
    %p205 = pneg %p204
    // Predicated region
    $region9: #{conv_block3d_forward.2} parent=5 // pred_check
      _
    $region10: #{conv_block3d_forward.2} parent=5 // pred_check_branch
      %207 = sbr.rel (%p204) target = $region12
    $region11: #{conv_block3d_forward.2} parent=5 // pred_region
      %s208 = ssub.s32 %s13, 1
      // Predicated region
      $region13: #{conv_block3d_forward.2} parent=11 // pred_check
        %p209 = pneg %p72
      $region14: #{conv_block3d_forward.2} parent=11 // pred_check_branch
        %211 = sbr.rel (%p209) target = $region16
      $region15: #{conv_block3d_forward.2} parent=11 // pred_region
        _
      $region16: #{conv_block3d_forward.2} parent=11 // pred_fallthru
        _
      // Predicated region
      $region17: #{conv_block3d_forward.2} parent=11 // pred_check
        %p212 = pneg %p93
      $region18: #{conv_block3d_forward.2} parent=11 // pred_check_branch
        %214 = sbr.rel (%p212) target = $region20
      $region19: #{conv_block3d_forward.2} parent=11 // pred_region
        _
      $region20: #{conv_block3d_forward.2} parent=11 // pred_fallthru
        _
      // Predicated region
      $region21: #{conv_block3d_forward.2} parent=11 // pred_check
        %p215 = pneg %p114
      $region22: #{conv_block3d_forward.2} parent=11 // pred_check_branch
        %217 = sbr.rel (%p215) target = $region24
      $region23: #{conv_block3d_forward.2} parent=11 // pred_region
        _
      $region24: #{conv_block3d_forward.2} parent=11 // pred_fallthru
        _
    $region12: #{conv_block3d_forward.2} parent=5 // pred_fallthru
      _
    %p218 = scmp.lt.s32.totalorder %s13, 4
    // Predicated region
    $region25: #{conv_block3d_forward.2} parent=5 // pred_check
      %p219 = pneg %p218
    $region26: #{conv_block3d_forward.2} parent=5 // pred_check_branch
      %221 = sbr.rel (%p219) target = $region28
    $region27: #{conv_block3d_forward.2} parent=5 // pred_region
      // Predicated region
      $region29: #{conv_block3d_forward.2} parent=27 // pred_check
        %p222 = pneg %p45
      $region30: #{conv_block3d_forward.2} parent=27 // pred_check_branch
        %224 = sbr.rel (%p222) target = $region32
      $region31: #{conv_block3d_forward.2} parent=27 // pred_region
        %p225 = scmp.lt.s32.totalorder %s20, 1
        %s226 = scalar_select %p225, %s20, 1
        %s227 = smul.addr %s226, 32
        %s228 = smul.addr %s227, 8
        %s229 = scalar_lea.vmem %s0, %s228
      $region32: #{conv_block3d_forward.2} parent=27 // pred_fallthru
        _
    $region28: #{conv_block3d_forward.2} parent=5 // pred_fallthru
      _
    %p230 = scmp.le.s32.totalorder 1, %s13
    %p231 = scmp.lt.s32.totalorder %s13, 5
    %p232 = pnand %p230, %p231
    %p233 = pneg %p232
    // Predicated region
    $region33: #{conv_block3d_forward.2} parent=5 // pred_check
      _
    $region34: #{conv_block3d_forward.2} parent=5 // pred_check_branch
      %235 = sbr.rel (%p232) target = $region36
    $region35: #{conv_block3d_forward.2} parent=5 // pred_region
      %s236 = ssub.s32 %s13, 1
      %p237 = scmp.lt.s32.totalorder %s22, 1
      %s238 = scalar_select %p237, %s22, 1
      %s239 = smul.addr %s238, 32
      %s240 = smul.addr %s239, 8
      %s241 = scalar_lea.vmem %s0, %s240
      %p242 = pneg %p51
      %p243 = pneg %p48
      %p244 = pneg %p72
      %p245 = pneg %p69
      %p246 = pneg %p93
      %p247 = pneg %p90
      %p248 = pneg %p114
      %p249 = pneg %p111
      %p250 = pneg %p142
      %p251 = pneg %p139
      %s252 = smul.u32 8, %s23
      %p253 = scmp.lt.s32.totalorder %s22, 1
      %s254 = scalar_select %p253, %s22, 1
      %p255 = scmp.lt.s32.totalorder %s252, 15
      %s256 = scalar_select %p255, %s252, 15
      %s257 = smul.addr %s256, 2
      %s258 = smul.addr %s254, 32
      %s259 = sadd.s32 %s257, %s258
      %s260 = smul.addr %s259, 4
      %s261 = scalar_lea.vmem %s4, %s260
      %p262 = pneg %p168
      %p263 = pneg %p165
      %p264 = scmp.lt.s32.totalorder %s22, 1
      %s265 = scalar_select %p264, %s22, 1
      %s266 = smul.addr %s265, 8
      %s267 = scalar_lea.vmem %s5, %s266
      %p268 = pneg %p194
      %p269 = pneg %p191
      %p270 = scmp.lt.s32.totalorder %s22, 1
      %s271 = scalar_select %p270, %s22, 1
      %s272 = smul.addr %s271, 8
      %s273 = scalar_lea.vmem %s6, %s272
      %p274 = scmp.lt.s32.totalorder %s22, 1
      %s275 = scalar_select %p274, %s22, 1
      %s276 = smul.addr %s275, 32
      %s277 = smul.addr %s276, 8
      %s278 = scalar_lea.vmem %s0, %s277
      %s279 = smul.u32 8, %s23
      %p280 = scmp.lt.s32.totalorder %s22, 1
      %s281 = scalar_select %p280, %s22, 1
      %p282 = scmp.lt.s32.totalorder %s279, 15
      %s283 = scalar_select %p282, %s279, 15
      %s284 = smul.addr %s283, 2
      %s285 = smul.addr %s281, 32
      %s286 = sadd.s32 %s284, %s285
      %s287 = smul.addr %s286, 4
      %s288 = scalar_lea.vmem %s4, %s287
      %s289 = smul.u32 8, %s23
      %p290 = scmp.lt.s32.totalorder %s22, 1
      %s291 = scalar_select %p290, %s22, 1
      %s292 = smul.addr %s291, 8
      %s293 = scalar_lea.vmem %s5, %s292
      %p294 = scmp.lt.s32.totalorder %s22, 1
      %s295 = scalar_select %p294, %s22, 1
      %s296 = smul.addr %s295, 8
      %s297 = scalar_lea.vmem %s6, %s296
      %s299 = smul.u32 %s23, 8
      %vm300 = vcmask 519168
      %301 = vst.msk [vmem:[#allocation2] sm:$0xf] %vm300, 0
      %302 = vst.msk [vmem:[#allocation2 + $0x4] sm:$0xf] %vm300, 0
      %303 = vst.msk [vmem:[#allocation2 + $0x8] sm:$0xf] %vm300, 0
      %vm304 = vcmask 516096
      %305 = vst.msk [vmem:[#allocation2 + $0xc] sm:$0x1] %vm304, 0
      %306 = vst.msk [vmem:[#allocation2 + $0x10] sm:$0xf] %vm300, 0
      %307 = vst.msk [vmem:[#allocation2 + $0x14] sm:$0xf] %vm300, 0
      %308 = vst.msk [vmem:[#allocation2 + $0x18] sm:$0xf] %vm300, 0
      %309 = vst.msk [vmem:[#allocation2 + $0x1c] sm:$0x1] %vm304, 0
      %310 = vst.msk [vmem:[#allocation2 + $0x20] sm:$0xf] %vm300, 0
      %311 = vst.msk [vmem:[#allocation2 + $0x24] sm:$0xf] %vm300, 0
      %312 = vst.msk [vmem:[#allocation2 + $0x28] sm:$0xf] %vm300, 0
      %313 = vst.msk [vmem:[#allocation2 + $0x2c] sm:$0x1] %vm304, 0
      %314 = vst.msk [vmem:[#allocation2 + $0x30] sm:$0xf] %vm300, 0
      %315 = vst.msk [vmem:[#allocation2 + $0x34] sm:$0xf] %vm300, 0
      %316 = vst.msk [vmem:[#allocation2 + $0x38] sm:$0xf] %vm300, 0
      %317 = vst.msk [vmem:[#allocation2 + $0x3c] sm:$0x1] %vm304, 0
      %318 = vst.msk [vmem:[#allocation2 + $0x40] sm:$0xf] %vm300, 0
      %319 = vst.msk [vmem:[#allocation2 + $0x44] sm:$0xf] %vm300, 0
      %320 = vst.msk [vmem:[#allocation2 + $0x48] sm:$0xf] %vm300, 0
      %321 = vst.msk [vmem:[#allocation2 + $0x4c] sm:$0x1] %vm304, 0
      %322 = vst.msk [vmem:[#allocation2 + $0x50] sm:$0xf] %vm300, 0
      %323 = vst.msk [vmem:[#allocation2 + $0x54] sm:$0xf] %vm300, 0
      %324 = vst.msk [vmem:[#allocation2 + $0x58] sm:$0xf] %vm300, 0
      %325 = vst.msk [vmem:[#allocation2 + $0x5c] sm:$0x1] %vm304, 0
      %326 = vst.msk [vmem:[#allocation2 + $0x60] sm:$0xf] %vm300, 0
      %327 = vst.msk [vmem:[#allocation2 + $0x64] sm:$0xf] %vm300, 0
      %328 = vst.msk [vmem:[#allocation2 + $0x68] sm:$0xf] %vm300, 0
      %329 = vst.msk [vmem:[#allocation2 + $0x6c] sm:$0x1] %vm304, 0
      %330 = vst.msk [vmem:[#allocation2 + $0x70] sm:$0xf] %vm300, 0
      %331 = vst.msk [vmem:[#allocation2 + $0x74] sm:$0xf] %vm300, 0
      %332 = vst.msk [vmem:[#allocation2 + $0x78] sm:$0xf] %vm300, 0
      %333 = vst.msk [vmem:[#allocation2 + $0x7c] sm:$0x1] %vm304, 0
      %334 = vst.msk [vmem:[#allocation2 + $0x80] sm:$0xf] %vm300, 0
      %335 = vst.msk [vmem:[#allocation2 + $0x84] sm:$0xf] %vm300, 0
      %336 = vst.msk [vmem:[#allocation2 + $0x88] sm:$0xf] %vm300, 0
      %337 = vst.msk [vmem:[#allocation2 + $0x8c] sm:$0x1] %vm304, 0
      %338 = vst.msk [vmem:[#allocation2 + $0x90] sm:$0xf] %vm300, 0
      %339 = vst.msk [vmem:[#allocation2 + $0x94] sm:$0xf] %vm300, 0
      %340 = vst.msk [vmem:[#allocation2 + $0x98] sm:$0xf] %vm300, 0
      %341 = vst.msk [vmem:[#allocation2 + $0x9c] sm:$0x1] %vm304, 0
      %s342 = smul.u32 %s299, 16
      %s343 = scalar_lea.vmem %s278, %s342
      %v344 = vld [vmem:[%s343] sm:$0xff]
      %v345 = vld [vmem:[%s343 + $0x8] sm:$0xff]
      %v346 = vld [vmem:[%s343 + $0x10] sm:$0xff]
      %v347 = vld [vmem:[%s343 + $0x18] sm:$0xff]
      %v348 = vld [vmem:[%s343 + $0x20] sm:$0xff]
      %v349 = vld [vmem:[%s343 + $0x28] sm:$0xff]
      %v350 = vld [vmem:[%s343 + $0x30] sm:$0xff]
      %v351 = vld [vmem:[%s343 + $0x38] sm:$0xff]
      %v352 = vld [vmem:[%s343 + $0x40] sm:$0xff]
      %v353 = vld [vmem:[%s343 + $0x48] sm:$0xff]
      %v354 = vld [vmem:[%s343 + $0x50] sm:$0xff]
      %v355 = vld [vmem:[%s343 + $0x58] sm:$0xff]
      %v356 = vld [vmem:[%s343 + $0x60] sm:$0xff]
      %v357 = vld [vmem:[%s343 + $0x68] sm:$0xff]
      %v358 = vld [vmem:[%s343 + $0x70] sm:$0xff]
      %v359 = vld [vmem:[%s343 + $0x78] sm:$0xff]
      %v360 = vpack.c.bf16 %v345, %v344
      %v361 = vpack.c.bf16 %v347, %v346
      %v362 = vpack.c.bf16 %v349, %v348
      %v363 = vpack.c.bf16 %v351, %v350
      %v364 = vpack.c.bf16 %v353, %v352
      %v365 = vpack.c.bf16 %v355, %v354
      %v366 = vpack.c.bf16 %v357, %v356
      %v367 = vpack.c.bf16 %v359, %v358
      %v376 = vunpack.c.l.b16 %v360
      %v377 = vunpack.c.h.b16 %v360
      %v378 = vunpack.c.l.b16 %v361
      %v379 = vunpack.c.h.b16 %v361
      %v380 = vunpack.c.l.b16 %v362
      %v381 = vunpack.c.h.b16 %v362
      %v382 = vunpack.c.l.b16 %v363
      %v383 = vunpack.c.h.b16 %v363
      %v384 = vunpack.c.l.b16 %v364
      %v385 = vunpack.c.h.b16 %v364
      %v386 = vunpack.c.l.b16 %v365
      %v387 = vunpack.c.h.b16 %v365
      %v388 = vunpack.c.l.b16 %v366
      %v389 = vunpack.c.h.b16 %v366
      %v390 = vunpack.c.l.b16 %v367
      %v391 = vunpack.c.h.b16 %v367
      %v392 = vpack.c.b16 %v376, %v376
      %v393 = vpack.c.b16 %v377, %v377
      %v394 = vpack.c.b16 %v378, %v378
      %v395 = vpack.c.b16 %v379, %v379
      %v396 = vpack.c.b16 %v380, %v380
      %v397 = vpack.c.b16 %v381, %v381
      %v398 = vpack.c.b16 %v382, %v382
      %v399 = vpack.c.b16 %v383, %v383
      %v400 = vpack.c.b16 %v384, %v384
      %v401 = vpack.c.b16 %v385, %v385
      %v402 = vpack.c.b16 %v386, %v386
      %v403 = vpack.c.b16 %v387, %v387
      %v404 = vpack.c.b16 %v388, %v388
      %v405 = vpack.c.b16 %v389, %v389
      %v406 = vpack.c.b16 %v390, %v390
      %v407 = vpack.c.b16 %v391, %v391
      %s424 = scalar_lea.vmem [#allocation2], 16
      %425 = vst.msk [vmem:[%s424 + $0x4] sm:$0xf] %vm300, %v392
      %426 = vst.msk [vmem:[%s424 + $0x8] sm:$0xf] %vm300, %v393
      %427 = vst.msk [vmem:[%s424 + $0x14] sm:$0xf] %vm300, %v394
      %428 = vst.msk [vmem:[%s424 + $0x18] sm:$0xf] %vm300, %v395
      %429 = vst.msk [vmem:[%s424 + $0x24] sm:$0xf] %vm300, %v396
      %430 = vst.msk [vmem:[%s424 + $0x28] sm:$0xf] %vm300, %v397
      %431 = vst.msk [vmem:[%s424 + $0x34] sm:$0xf] %vm300, %v398
      %432 = vst.msk [vmem:[%s424 + $0x38] sm:$0xf] %vm300, %v399
      %433 = vst.msk [vmem:[%s424 + $0x44] sm:$0xf] %vm300, %v400
      %434 = vst.msk [vmem:[%s424 + $0x48] sm:$0xf] %vm300, %v401
      %435 = vst.msk [vmem:[%s424 + $0x54] sm:$0xf] %vm300, %v402
      %436 = vst.msk [vmem:[%s424 + $0x58] sm:$0xf] %vm300, %v403
      %437 = vst.msk [vmem:[%s424 + $0x64] sm:$0xf] %vm300, %v404
      %438 = vst.msk [vmem:[%s424 + $0x68] sm:$0xf] %vm300, %v405
      %439 = vst.msk [vmem:[%s424 + $0x74] sm:$0xf] %vm300, %v406
      %440 = vst.msk [vmem:[%s424 + $0x78] sm:$0xf] %vm300, %v407
      %p441 = scmp.gt.s32.totalorder %s23, 0
      // Predicated region
      $region37: #{conv_block3d_forward.2} parent=35 // pred_check
        %p442 = pneg %p441
      $region38: #{conv_block3d_forward.2} parent=35 // pred_check_branch
        %444 = sbr.rel (%p442) target = $region40
      $region39: #{conv_block3d_forward.2} parent=35 // pred_region
        %s445 = ssub.s32 %s299, 1
        %s446 = smul.u32 %s445, 16
        %s447 = scalar_lea.vmem %s278, %s446
        %v448 = vld [vmem:[%s447] sm:$0xff]
        %v449 = vld [vmem:[%s447 + $0x8] sm:$0xff]
        %v450 = vpack.c.bf16 %v449, %v448
        %v452 = vunpack.c.l.b16 %v450
        %v453 = vunpack.c.h.b16 %v450
        %v454 = vpack.c.b16 %v452, %v452
        %v455 = vpack.c.b16 %v453, %v453
        %458 = vst.msk [vmem:[#allocation2 + $0x4] sm:$0xf] %vm300, %v454
        %459 = vst.msk [vmem:[#allocation2 + $0x8] sm:$0xf] %vm300, %v455
      $region40: #{conv_block3d_forward.2} parent=35 // pred_fallthru
        _
      %p460 = scmp.lt.s32.totalorder %s23, 1
      // Predicated region
      $region41: #{conv_block3d_forward.2} parent=35 // pred_check
        %p461 = pneg %p460
      $region42: #{conv_block3d_forward.2} parent=35 // pred_check_branch
        %463 = sbr.rel (%p461) target = $region44
      $region43: #{conv_block3d_forward.2} parent=35 // pred_region
        %s464 = sadd.s32 %s299, 8
        %s465 = smul.u32 %s464, 16
        %s466 = scalar_lea.vmem %s278, %s465
        %v467 = vld [vmem:[%s466] sm:$0xff]
        %v468 = vld [vmem:[%s466 + $0x8] sm:$0xff]
        %v469 = vpack.c.bf16 %v468, %v467
        %v471 = vunpack.c.l.b16 %v469
        %v472 = vunpack.c.h.b16 %v469
        %v473 = vpack.c.b16 %v471, %v471
        %v474 = vpack.c.b16 %v472, %v472
        %s477 = scalar_lea.vmem [#allocation2], 144
        %478 = vst.msk [vmem:[%s477 + $0x4] sm:$0xf] %vm300, %v473
        %479 = vst.msk [vmem:[%s477 + $0x8] sm:$0xf] %vm300, %v474
      $region44: #{conv_block3d_forward.2} parent=35 // pred_fallthru
        _
      %v480 = vld [vmem:[#allocation2] sm:$0x8]
      %v481 = vld [vmem:[#allocation2 + $0x4] sm:$0xf]
      %v482 = vld [vmem:[#allocation2 + $0x8] sm:$0xf]
      %v483 = vld [vmem:[#allocation2 + $0x10] sm:$0x8]
      %v484 = vld [vmem:[#allocation2 + $0x14] sm:$0xf]
      %v485 = vld [vmem:[#allocation2 + $0x18] sm:$0xf]
      %v486 = vld [vmem:[#allocation2 + $0x20] sm:$0x8]
      %v487 = vld [vmem:[#allocation2 + $0x24] sm:$0xf]
      %v488 = vld [vmem:[#allocation2 + $0x28] sm:$0xf]
      %v489 = vld [vmem:[#allocation2 + $0x30] sm:$0x8]
      %v490 = vld [vmem:[#allocation2 + $0x34] sm:$0xf]
      %v491 = vld [vmem:[#allocation2 + $0x38] sm:$0xf]
      %v492 = vld [vmem:[#allocation2 + $0x40] sm:$0x8]
      %v493 = vld [vmem:[#allocation2 + $0x44] sm:$0xf]
      %v494 = vld [vmem:[#allocation2 + $0x48] sm:$0xf]
      %v495 = vld [vmem:[#allocation2 + $0x50] sm:$0x8]
      %v496 = vld [vmem:[#allocation2 + $0x54] sm:$0xf]
      %v497 = vld [vmem:[#allocation2 + $0x58] sm:$0xf]
      %v498 = vld [vmem:[#allocation2 + $0x60] sm:$0x8]
      %v499 = vld [vmem:[#allocation2 + $0x64] sm:$0xf]
      %v500 = vld [vmem:[#allocation2 + $0x68] sm:$0xf]
      %v501 = vld [vmem:[#allocation2 + $0x70] sm:$0x8]
      %v502 = vld [vmem:[#allocation2 + $0x74] sm:$0xf]
      %v503 = vld [vmem:[#allocation2 + $0x78] sm:$0xf]
      %vm504 = vsmask.f32 256
      %vm505 = vsmask.f32 4368
      %vm506 = vmor %vm504, %vm505
      %v508 = vshrl.u32 %v480, 16
      %v510 = vrot.slane %v508, 7
      %v511 = vrot.slane %v510, 4
      %v513 = vshrl.u32 %v481, 16
      %v515 = vrot.slane %v513, 7
      %v516 = vshll.u32 %v481, 16
      %v518 = vor.u32 %v515, %v516
      %v519 = vsel %vm506, %v511, %v518
      %v520 = vrot.slane %v515, 4
      %v522 = vshrl.u32 %v482, 16
      %v524 = vrot.slane %v522, 7
      %v525 = vshll.u32 %v482, 16
      %v527 = vor.u32 %v524, %v525
      %v528 = vsel %vm506, %v520, %v527
      %v530 = vshrl.u32 %v483, 16
      %v532 = vrot.slane %v530, 7
      %v533 = vrot.slane %v532, 4
      %v535 = vshrl.u32 %v484, 16
      %v537 = vrot.slane %v535, 7
      %v538 = vshll.u32 %v484, 16
      %v540 = vor.u32 %v537, %v538
      %v541 = vsel %vm506, %v533, %v540
      %v542 = vrot.slane %v537, 4
      %v544 = vshrl.u32 %v485, 16
      %v546 = vrot.slane %v544, 7
      %v547 = vshll.u32 %v485, 16
      %v549 = vor.u32 %v546, %v547
      %v550 = vsel %vm506, %v542, %v549
      %v552 = vshrl.u32 %v486, 16
      %v554 = vrot.slane %v552, 7
      %v555 = vrot.slane %v554, 4
      %v557 = vshrl.u32 %v487, 16
      %v559 = vrot.slane %v557, 7
      %v560 = vshll.u32 %v487, 16
      %v562 = vor.u32 %v559, %v560
      %v563 = vsel %vm506, %v555, %v562
      %v564 = vrot.slane %v559, 4
      %v566 = vshrl.u32 %v488, 16
      %v568 = vrot.slane %v566, 7
      %v569 = vshll.u32 %v488, 16
      %v571 = vor.u32 %v568, %v569
      %v572 = vsel %vm506, %v564, %v571
      %v574 = vshrl.u32 %v489, 16
      %v576 = vrot.slane %v574, 7
      %v577 = vrot.slane %v576, 4
      %v579 = vshrl.u32 %v490, 16
      %v581 = vrot.slane %v579, 7
      %v582 = vshll.u32 %v490, 16
      %v584 = vor.u32 %v581, %v582
      %v585 = vsel %vm506, %v577, %v584
      %v586 = vrot.slane %v581, 4
      %v588 = vshrl.u32 %v491, 16
      %v590 = vrot.slane %v588, 7
      %v591 = vshll.u32 %v491, 16
      %v593 = vor.u32 %v590, %v591
      %v594 = vsel %vm506, %v586, %v593
      %v596 = vshrl.u32 %v492, 16
      %v598 = vrot.slane %v596, 7
      %v599 = vrot.slane %v598, 4
      %v601 = vshrl.u32 %v493, 16
      %v603 = vrot.slane %v601, 7
      %v604 = vshll.u32 %v493, 16
      %v606 = vor.u32 %v603, %v604
      %v607 = vsel %vm506, %v599, %v606
      %v608 = vrot.slane %v603, 4
      %v610 = vshrl.u32 %v494, 16
      %v612 = vrot.slane %v610, 7
      %v613 = vshll.u32 %v494, 16
      %v615 = vor.u32 %v612, %v613
      %v616 = vsel %vm506, %v608, %v615
      %v618 = vshrl.u32 %v495, 16
      %v620 = vrot.slane %v618, 7
      %v621 = vrot.slane %v620, 4
      %v623 = vshrl.u32 %v496, 16
      %v625 = vrot.slane %v623, 7
      %v626 = vshll.u32 %v496, 16
      %v628 = vor.u32 %v625, %v626
      %v629 = vsel %vm506, %v621, %v628
      %v630 = vrot.slane %v625, 4
      %v632 = vshrl.u32 %v497, 16
      %v634 = vrot.slane %v632, 7
      %v635 = vshll.u32 %v497, 16
      %v637 = vor.u32 %v634, %v635
      %v638 = vsel %vm506, %v630, %v637
      %v640 = vshrl.u32 %v498, 16
      %v642 = vrot.slane %v640, 7
      %v643 = vrot.slane %v642, 4
      %v645 = vshrl.u32 %v499, 16
      %v647 = vrot.slane %v645, 7
      %v648 = vshll.u32 %v499, 16
      %v650 = vor.u32 %v647, %v648
      %v651 = vsel %vm506, %v643, %v650
      %v652 = vrot.slane %v647, 4
      %v654 = vshrl.u32 %v500, 16
      %v656 = vrot.slane %v654, 7
      %v657 = vshll.u32 %v500, 16
      %v659 = vor.u32 %v656, %v657
      %v660 = vsel %vm506, %v652, %v659
      %v662 = vshrl.u32 %v501, 16
      %v664 = vrot.slane %v662, 7
      %v665 = vrot.slane %v664, 4
      %v667 = vshrl.u32 %v502, 16
      %v669 = vrot.slane %v667, 7
      %v670 = vshll.u32 %v502, 16
      %v672 = vor.u32 %v669, %v670
      %v673 = vsel %vm506, %v665, %v672
      %v674 = vrot.slane %v669, 4
      %v676 = vshrl.u32 %v503, 16
      %v678 = vrot.slane %v676, 7
      %v679 = vshll.u32 %v503, 16
      %v681 = vor.u32 %v678, %v679
      %v682 = vsel %vm506, %v674, %v681
      %v683 = vld [vmem:[%s1] sm:$0xf]
      %v684 = vld [vmem:[%s1 + $0x4] sm:$0xf]
      %v685 = vld [vmem:[%s1 + $0x8] sm:$0xf]
      %v686 = vld [vmem:[%s1 + $0xc] sm:$0xf]
      %v687 = vld [vmem:[%s1 + $0x10] sm:$0xf]
      %v688 = vld [vmem:[%s1 + $0x14] sm:$0xf]
      %v689 = vld [vmem:[%s1 + $0x18] sm:$0xf]
      %v690 = vld [vmem:[%s1 + $0x1c] sm:$0xf]
      %s691 = scalar_lea.vmem %s1, 32
      %v692 = vld [vmem:[%s691] sm:$0xf]
      %v693 = vld [vmem:[%s691 + $0x4] sm:$0xf]
      %v694 = vld [vmem:[%s691 + $0x8] sm:$0xf]
      %v695 = vld [vmem:[%s691 + $0xc] sm:$0xf]
      %v696 = vld [vmem:[%s691 + $0x10] sm:$0xf]
      %v697 = vld [vmem:[%s691 + $0x14] sm:$0xf]
      %v698 = vld [vmem:[%s691 + $0x18] sm:$0xf]
      %v699 = vld [vmem:[%s691 + $0x1c] sm:$0xf]
      %v716 = vunpack.c.l.b16 %v481
      %v717 = vunpack.c.l.b16 %v482
      %v718 = vunpack.c.l.b16 %v484
      %v719 = vunpack.c.l.b16 %v485
      %v720 = vunpack.c.l.b16 %v487
      %v721 = vunpack.c.l.b16 %v488
      %v722 = vunpack.c.l.b16 %v490
      %v723 = vunpack.c.l.b16 %v491
      %v724 = vunpack.c.l.b16 %v493
      %v725 = vunpack.c.l.b16 %v494
      %v726 = vunpack.c.l.b16 %v496
      %v727 = vunpack.c.l.b16 %v497
      %v728 = vunpack.c.l.b16 %v499
      %v729 = vunpack.c.l.b16 %v500
      %v730 = vunpack.c.l.b16 %v502
      %v731 = vunpack.c.l.b16 %v503
      %v732 = vpack.c.b16 %v717, %v716
      %v733 = vpack.c.b16 %v719, %v718
      %v734 = vpack.c.b16 %v721, %v720
      %v735 = vpack.c.b16 %v723, %v722
      %v736 = vpack.c.b16 %v725, %v724
      %v737 = vpack.c.b16 %v727, %v726
      %v738 = vpack.c.b16 %v729, %v728
      %v739 = vpack.c.b16 %v731, %v730
      %v748 = vunpack.c.l.b16 %v692
      %v749 = vunpack.c.l.b16 %v693
      %v750 = vunpack.c.l.b16 %v694
      %v751 = vunpack.c.l.b16 %v695
      %v752 = vunpack.c.l.b16 %v696
      %v753 = vunpack.c.l.b16 %v697
      %v754 = vunpack.c.l.b16 %v698
      %v755 = vunpack.c.l.b16 %v699
      %v756 = vpack.c.b16 %v749, %v748
      %v757 = vpack.c.b16 %v751, %v750
      %v758 = vpack.c.b16 %v753, %v752
      %v759 = vpack.c.b16 %v755, %v754
      %vm764 = vcmask 523264
      %v766 = vsel %vm764, %v732, 0
      %v769 = vsel %vm764, %v733, 0
      %v772 = vsel %vm764, %v734, 0
      %v775 = vsel %vm764, %v735, 0
      %v778 = vsel %vm764, %v736, 0
      %v781 = vsel %vm764, %v737, 0
      %v784 = vsel %vm764, %v738, 0
      %v787 = vsel %vm764, %v739, 0
      %789 = vmatprep.subr.bf16.mxu0 0
      %790 = vmatpush1.bf16.msra.mxu0 0
      %791 = vmatprep.subr.bf16.mxu0 0
      %792 = vmatpush1.bf16.msra.mxu0 0
      %793 = vmatprep.subr.bf16.mxu0 0
      %794 = vmatpush1.bf16.msra.mxu0 0
      %795 = vmatprep.subr.bf16.mxu0 0
      %796 = vmatpush1.bf16.msra.mxu0 0
      %797 = vmatprep.subr.bf16.mxu0 0
      %798 = vmatpush1.bf16.msra.mxu0 %v759
      %799 = vmatprep.subr.bf16.mxu0 0
      %800 = vmatpush1.bf16.msra.mxu0 %v758
      %801 = vmatprep.subr.bf16.mxu0 0
      %802 = vmatpush1.bf16.msra.mxu0 %v757
      %803 = vmatprep.subr.bf16.mxu0 0
      %804 = vmatpush1.bf16.msra.mxu0 %v756
      %805 = vmatprep.subr.bf16.mxu0 0
      %806 = vmatpush2.bf16.msra.mxu0 0
      %807 = vmatprep.subr.bf16.mxu0 0
      %808 = vmatpush2.bf16.msra.mxu0 0
      %809 = vmatprep.subr.bf16.mxu0 0
      %810 = vmatpush2.bf16.msra.mxu0 0
      %811 = vmatprep.subr.bf16.mxu0 0
      %812 = vmatpush2.bf16.msra.mxu0 0
      %813 = vmatprep.subr.bf16.mxu0 0
      %814 = vmatpush2.bf16.msra.mxu0 0
      %815 = vmatprep.subr.bf16.mxu0 0
      %816 = vmatpush2.bf16.msra.mxu0 0
      %817 = vmatprep.subr.bf16.mxu0 0
      %818 = vmatpush2.bf16.msra.mxu0 0
      %819 = vmatprep.subr.bf16.mxu0 0
      %820 = vmatpush2.bf16.msra.mxu0 0
      %821 = vmatprep.mubr.bf16.mxu0 0
      %822 = vmatmul.mubr.bf16.gmra.mxu0 %v766
      %v823 = vpop.f32.mrf.mxu0
      %v824 = vadd.f32 0.0, %v823
      %v825 = vpop.f32.mrf.mxu0
      %v826 = vpop.f32.mrf.mxu0
      %v827 = vadd.f32 0.0, %v826
      %v828 = vpop.f32.mrf.mxu0
      %829 = vmatprep.mubr.bf16.mxu0 0
      %830 = vmatmul.mubr.bf16.gmra.mxu0 %v769
      %v831 = vpop.f32.mrf.mxu0
      %v832 = vadd.f32 0.0, %v831
      %v833 = vpop.f32.mrf.mxu0
      %v834 = vpop.f32.mrf.mxu0
      %v835 = vadd.f32 0.0, %v834
      %v836 = vpop.f32.mrf.mxu0
      %837 = vmatprep.mubr.bf16.mxu0 0
      %838 = vmatmul.mubr.bf16.gmra.mxu0 %v772
      %v839 = vpop.f32.mrf.mxu0
      %v840 = vadd.f32 0.0, %v839
      %v841 = vpop.f32.mrf.mxu0
      %v842 = vpop.f32.mrf.mxu0
      %v843 = vadd.f32 0.0, %v842
      %v844 = vpop.f32.mrf.mxu0
      %845 = vmatprep.mubr.bf16.mxu0 0
      %846 = vmatmul.mubr.bf16.gmra.mxu0 %v775
      %v847 = vpop.f32.mrf.mxu0
      %v848 = vadd.f32 0.0, %v847
      %v849 = vpop.f32.mrf.mxu0
      %v850 = vpop.f32.mrf.mxu0
      %v851 = vadd.f32 0.0, %v850
      %v852 = vpop.f32.mrf.mxu0
      %853 = vmatprep.mubr.bf16.mxu0 0
      %854 = vmatmul.mubr.bf16.gmra.mxu0 %v778
      %v855 = vpop.f32.mrf.mxu0
      %v856 = vadd.f32 0.0, %v855
      %v857 = vpop.f32.mrf.mxu0
      %v858 = vpop.f32.mrf.mxu0
      %v859 = vadd.f32 0.0, %v858
      %v860 = vpop.f32.mrf.mxu0
      %861 = vmatprep.mubr.bf16.mxu0 0
      %862 = vmatmul.mubr.bf16.gmra.mxu0 %v781
      %v863 = vpop.f32.mrf.mxu0
      %v864 = vadd.f32 0.0, %v863
      %v865 = vpop.f32.mrf.mxu0
      %v866 = vpop.f32.mrf.mxu0
      %v867 = vadd.f32 0.0, %v866
      %v868 = vpop.f32.mrf.mxu0
      %869 = vmatprep.mubr.bf16.mxu0 0
      %870 = vmatmul.mubr.bf16.gmra.mxu0 %v784
      %v871 = vpop.f32.mrf.mxu0
      %v872 = vadd.f32 0.0, %v871
      %v873 = vpop.f32.mrf.mxu0
      %v874 = vpop.f32.mrf.mxu0
      %v875 = vadd.f32 0.0, %v874
      %v876 = vpop.f32.mrf.mxu0
      %877 = vmatprep.mubr.bf16.mxu0 0
      %878 = vmatmul.mubr.bf16.gmra.mxu0 %v787
      %v879 = vpop.f32.mrf.mxu0
      %v880 = vadd.f32 0.0, %v879
      %v881 = vpop.f32.mrf.mxu0
      %v882 = vpop.f32.mrf.mxu0
      %v883 = vadd.f32 0.0, %v882
      %v884 = vpop.f32.mrf.mxu0
      %885 = vdwg.mxu0
      %v886 = vunpack.c.l.b16 %v519
      %v887 = vunpack.c.l.b16 %v528
      %v888 = vunpack.c.l.b16 %v541
      %v889 = vunpack.c.l.b16 %v550
      %v890 = vunpack.c.l.b16 %v563
      %v891 = vunpack.c.l.b16 %v572
      %v892 = vunpack.c.l.b16 %v585
      %v893 = vunpack.c.l.b16 %v594
      %v894 = vunpack.c.l.b16 %v607
      %v895 = vunpack.c.l.b16 %v616
      %v896 = vunpack.c.l.b16 %v629
      %v897 = vunpack.c.l.b16 %v638
      %v898 = vunpack.c.l.b16 %v651
      %v899 = vunpack.c.l.b16 %v660
      %v900 = vunpack.c.l.b16 %v673
      %v901 = vunpack.c.l.b16 %v682
      %v902 = vpack.c.b16 %v887, %v886
      %v903 = vpack.c.b16 %v889, %v888
      %v904 = vpack.c.b16 %v891, %v890
      %v905 = vpack.c.b16 %v893, %v892
      %v906 = vpack.c.b16 %v895, %v894
      %v907 = vpack.c.b16 %v897, %v896
      %v908 = vpack.c.b16 %v899, %v898
      %v909 = vpack.c.b16 %v901, %v900
      %v918 = vunpack.c.l.b16 %v683
      %v919 = vunpack.c.l.b16 %v684
      %v920 = vunpack.c.l.b16 %v685
      %v921 = vunpack.c.l.b16 %v686
      %v922 = vunpack.c.l.b16 %v687
      %v923 = vunpack.c.l.b16 %v688
      %v924 = vunpack.c.l.b16 %v689
      %v925 = vunpack.c.l.b16 %v690
      %v926 = vpack.c.b16 %v919, %v918
      %v927 = vpack.c.b16 %v921, %v920
      %v928 = vpack.c.b16 %v923, %v922
      %v929 = vpack.c.b16 %v925, %v924
      %v935 = vsel %vm764, %v902, 0
      %v938 = vsel %vm764, %v903, 0
      %v941 = vsel %vm764, %v904, 0
      %v944 = vsel %vm764, %v905, 0
      %v947 = vsel %vm764, %v906, 0
      %v950 = vsel %vm764, %v907, 0
      %v953 = vsel %vm764, %v908, 0
      %v956 = vsel %vm764, %v909, 0
      %958 = vmatprep.subr.bf16.mxu0 0
      %959 = vmatpush1.bf16.msra.mxu0 0
      %960 = vmatprep.subr.bf16.mxu0 0
      %961 = vmatpush1.bf16.msra.mxu0 0
      %962 = vmatprep.subr.bf16.mxu0 0
      %963 = vmatpush1.bf16.msra.mxu0 0
      %964 = vmatprep.subr.bf16.mxu0 0
      %965 = vmatpush1.bf16.msra.mxu0 0
      %966 = vmatprep.subr.bf16.mxu0 0
      %967 = vmatpush1.bf16.msra.mxu0 %v929
      %968 = vmatprep.subr.bf16.mxu0 0
      %969 = vmatpush1.bf16.msra.mxu0 %v928
      %970 = vmatprep.subr.bf16.mxu0 0
      %971 = vmatpush1.bf16.msra.mxu0 %v927
      %972 = vmatprep.subr.bf16.mxu0 0
      %973 = vmatpush1.bf16.msra.mxu0 %v926
      %974 = vmatprep.subr.bf16.mxu0 0
      %975 = vmatpush2.bf16.msra.mxu0 0
      %976 = vmatprep.subr.bf16.mxu0 0
      %977 = vmatpush2.bf16.msra.mxu0 0
      %978 = vmatprep.subr.bf16.mxu0 0
      %979 = vmatpush2.bf16.msra.mxu0 0
      %980 = vmatprep.subr.bf16.mxu0 0
      %981 = vmatpush2.bf16.msra.mxu0 0
      %982 = vmatprep.subr.bf16.mxu0 0
      %983 = vmatpush2.bf16.msra.mxu0 0
      %984 = vmatprep.subr.bf16.mxu0 0
      %985 = vmatpush2.bf16.msra.mxu0 0
      %986 = vmatprep.subr.bf16.mxu0 0
      %987 = vmatpush2.bf16.msra.mxu0 0
      %988 = vmatprep.subr.bf16.mxu0 0
      %989 = vmatpush2.bf16.msra.mxu0 0
      %990 = vmatprep.mubr.bf16.mxu0 0
      %991 = vmatmul.mubr.bf16.gmra.mxu0 %v935
      %v992 = vpop.f32.mrf.mxu0
      %v993 = vadd.f32 %v824, %v992
      %v994 = vpop.f32.mrf.mxu0
      %v995 = vpop.f32.mrf.mxu0
      %v996 = vadd.f32 %v827, %v995
      %v997 = vpop.f32.mrf.mxu0
      %998 = vmatprep.mubr.bf16.mxu0 0
      %999 = vmatmul.mubr.bf16.gmra.mxu0 %v938
      %v1000 = vpop.f32.mrf.mxu0
      %v1001 = vadd.f32 %v832, %v1000
      %v1002 = vpop.f32.mrf.mxu0
      %v1003 = vpop.f32.mrf.mxu0
      %v1004 = vadd.f32 %v835, %v1003
      %v1005 = vpop.f32.mrf.mxu0
      %1006 = vmatprep.mubr.bf16.mxu0 0
      %1007 = vmatmul.mubr.bf16.gmra.mxu0 %v941
      %v1008 = vpop.f32.mrf.mxu0
      %v1009 = vadd.f32 %v840, %v1008
      %v1010 = vpop.f32.mrf.mxu0
      %v1011 = vpop.f32.mrf.mxu0
      %v1012 = vadd.f32 %v843, %v1011
      %v1013 = vpop.f32.mrf.mxu0
      %1014 = vmatprep.mubr.bf16.mxu0 0
      %1015 = vmatmul.mubr.bf16.gmra.mxu0 %v944
      %v1016 = vpop.f32.mrf.mxu0
      %v1017 = vadd.f32 %v848, %v1016
      %v1018 = vpop.f32.mrf.mxu0
      %v1019 = vpop.f32.mrf.mxu0
      %v1020 = vadd.f32 %v851, %v1019
      %v1021 = vpop.f32.mrf.mxu0
      %1022 = vmatprep.mubr.bf16.mxu0 0
      %1023 = vmatmul.mubr.bf16.gmra.mxu0 %v947
      %v1024 = vpop.f32.mrf.mxu0
      %v1025 = vadd.f32 %v856, %v1024
      %v1026 = vpop.f32.mrf.mxu0
      %v1027 = vpop.f32.mrf.mxu0
      %v1028 = vadd.f32 %v859, %v1027
      %v1029 = vpop.f32.mrf.mxu0
      %1030 = vmatprep.mubr.bf16.mxu0 0
      %1031 = vmatmul.mubr.bf16.gmra.mxu0 %v950
      %v1032 = vpop.f32.mrf.mxu0
      %v1033 = vadd.f32 %v864, %v1032
      %v1034 = vpop.f32.mrf.mxu0
      %v1035 = vpop.f32.mrf.mxu0
      %v1036 = vadd.f32 %v867, %v1035
      %v1037 = vpop.f32.mrf.mxu0
      %1038 = vmatprep.mubr.bf16.mxu0 0
      %1039 = vmatmul.mubr.bf16.gmra.mxu0 %v953
      %v1040 = vpop.f32.mrf.mxu0
      %v1041 = vadd.f32 %v872, %v1040
      %v1042 = vpop.f32.mrf.mxu0
      %v1043 = vpop.f32.mrf.mxu0
      %v1044 = vadd.f32 %v875, %v1043
      %v1045 = vpop.f32.mrf.mxu0
      %1046 = vmatprep.mubr.bf16.mxu0 0
      %1047 = vmatmul.mubr.bf16.gmra.mxu0 %v956
      %v1048 = vpop.f32.mrf.mxu0
      %v1049 = vadd.f32 %v880, %v1048
      %v1050 = vpop.f32.mrf.mxu0
      %v1051 = vpop.f32.mrf.mxu0
      %v1052 = vadd.f32 %v883, %v1051
      %v1053 = vpop.f32.mrf.mxu0
      %1054 = vdwg.mxu0
      %v1055 = vld [vmem:[#allocation2 + $0x4] sm:$0xf]
      %v1056 = vld [vmem:[#allocation2 + $0x8] sm:$0xf]
      %v1057 = vld [vmem:[#allocation2 + $0xc] sm:$0x1]
      %v1058 = vld [vmem:[#allocation2 + $0x14] sm:$0xf]
      %v1059 = vld [vmem:[#allocation2 + $0x18] sm:$0xf]
      %v1060 = vld [vmem:[#allocation2 + $0x1c] sm:$0x1]
      %v1061 = vld [vmem:[#allocation2 + $0x24] sm:$0xf]
      %v1062 = vld [vmem:[#allocation2 + $0x28] sm:$0xf]
      %v1063 = vld [vmem:[#allocation2 + $0x2c] sm:$0x1]
      %v1064 = vld [vmem:[#allocation2 + $0x34] sm:$0xf]
      %v1065 = vld [vmem:[#allocation2 + $0x38] sm:$0xf]
      %v1066 = vld [vmem:[#allocation2 + $0x3c] sm:$0x1]
      %v1067 = vld [vmem:[#allocation2 + $0x44] sm:$0xf]
      %v1068 = vld [vmem:[#allocation2 + $0x48] sm:$0xf]
      %v1069 = vld [vmem:[#allocation2 + $0x4c] sm:$0x1]
      %v1070 = vld [vmem:[#allocation2 + $0x54] sm:$0xf]
      %v1071 = vld [vmem:[#allocation2 + $0x58] sm:$0xf]
      %v1072 = vld [vmem:[#allocation2 + $0x5c] sm:$0x1]
      %v1073 = vld [vmem:[#allocation2 + $0x64] sm:$0xf]
      %v1074 = vld [vmem:[#allocation2 + $0x68] sm:$0xf]
      %v1075 = vld [vmem:[#allocation2 + $0x6c] sm:$0x1]
      %v1076 = vld [vmem:[#allocation2 + $0x74] sm:$0xf]
      %v1077 = vld [vmem:[#allocation2 + $0x78] sm:$0xf]
      %v1078 = vld [vmem:[#allocation2 + $0x7c] sm:$0x1]
      %vm1079 = vsmask.f32 3328
      %vm1080 = vsmask.f32 7440
      %vm1081 = vmor %vm1079, %vm1080
      %v1083 = vshrl.u32 %v1055, 16
      %v1085 = vrot.slane %v1083, 4
      %v1086 = vshll.u32 %v1055, 16
      %v1088 = vrot.slane %v1086, 5
      %v1089 = vor.u32 %v1085, %v1088
      %v1090 = vrot.slane %v1089, 4
      %v1092 = vshll.u32 %v1056, 16
      %v1094 = vrot.slane %v1092, 5
      %v1095 = vsel %vm1081, %v1090, %v1094
      %v1096 = vshrl.u32 %v1056, 16
      %v1098 = vrot.slane %v1096, 4
      %v1099 = vor.u32 %v1098, %v1094
      %v1100 = vrot.slane %v1099, 4
      %v1102 = vshll.u32 %v1057, 16
      %v1104 = vrot.slane %v1102, 5
      %v1105 = vsel %vm1081, %v1100, %v1104
      %v1107 = vshrl.u32 %v1058, 16
      %v1109 = vrot.slane %v1107, 4
      %v1110 = vshll.u32 %v1058, 16
      %v1112 = vrot.slane %v1110, 5
      %v1113 = vor.u32 %v1109, %v1112
      %v1114 = vrot.slane %v1113, 4
      %v1116 = vshll.u32 %v1059, 16
      %v1118 = vrot.slane %v1116, 5
      %v1119 = vsel %vm1081, %v1114, %v1118
      %v1120 = vshrl.u32 %v1059, 16
      %v1122 = vrot.slane %v1120, 4
      %v1123 = vor.u32 %v1122, %v1118
      %v1124 = vrot.slane %v1123, 4
      %v1126 = vshll.u32 %v1060, 16
      %v1128 = vrot.slane %v1126, 5
      %v1129 = vsel %vm1081, %v1124, %v1128
      %v1131 = vshrl.u32 %v1061, 16
      %v1133 = vrot.slane %v1131, 4
      %v1134 = vshll.u32 %v1061, 16
      %v1136 = vrot.slane %v1134, 5
      %v1137 = vor.u32 %v1133, %v1136
      %v1138 = vrot.slane %v1137, 4
      %v1140 = vshll.u32 %v1062, 16
      %v1142 = vrot.slane %v1140, 5
      %v1143 = vsel %vm1081, %v1138, %v1142
      %v1144 = vshrl.u32 %v1062, 16
      %v1146 = vrot.slane %v1144, 4
      %v1147 = vor.u32 %v1146, %v1142
      %v1148 = vrot.slane %v1147, 4
      %v1150 = vshll.u32 %v1063, 16
      %v1152 = vrot.slane %v1150, 5
      %v1153 = vsel %vm1081, %v1148, %v1152
      %v1155 = vshrl.u32 %v1064, 16
      %v1157 = vrot.slane %v1155, 4
      %v1158 = vshll.u32 %v1064, 16
      %v1160 = vrot.slane %v1158, 5
      %v1161 = vor.u32 %v1157, %v1160
      %v1162 = vrot.slane %v1161, 4
      %v1164 = vshll.u32 %v1065, 16
      %v1166 = vrot.slane %v1164, 5
      %v1167 = vsel %vm1081, %v1162, %v1166
      %v1168 = vshrl.u32 %v1065, 16
      %v1170 = vrot.slane %v1168, 4
      %v1171 = vor.u32 %v1170, %v1166
      %v1172 = vrot.slane %v1171, 4
      %v1174 = vshll.u32 %v1066, 16
      %v1176 = vrot.slane %v1174, 5
      %v1177 = vsel %vm1081, %v1172, %v1176
      %v1179 = vshrl.u32 %v1067, 16
      %v1181 = vrot.slane %v1179, 4
      %v1182 = vshll.u32 %v1067, 16
      %v1184 = vrot.slane %v1182, 5
      %v1185 = vor.u32 %v1181, %v1184
      %v1186 = vrot.slane %v1185, 4
      %v1188 = vshll.u32 %v1068, 16
      %v1190 = vrot.slane %v1188, 5
      %v1191 = vsel %vm1081, %v1186, %v1190
      %v1192 = vshrl.u32 %v1068, 16
      %v1194 = vrot.slane %v1192, 4
      %v1195 = vor.u32 %v1194, %v1190
      %v1196 = vrot.slane %v1195, 4
      %v1198 = vshll.u32 %v1069, 16
      %v1200 = vrot.slane %v1198, 5
      %v1201 = vsel %vm1081, %v1196, %v1200
      %v1203 = vshrl.u32 %v1070, 16
      %v1205 = vrot.slane %v1203, 4
      %v1206 = vshll.u32 %v1070, 16
      %v1208 = vrot.slane %v1206, 5
      %v1209 = vor.u32 %v1205, %v1208
      %v1210 = vrot.slane %v1209, 4
      %v1212 = vshll.u32 %v1071, 16
      %v1214 = vrot.slane %v1212, 5
      %v1215 = vsel %vm1081, %v1210, %v1214
      %v1216 = vshrl.u32 %v1071, 16
      %v1218 = vrot.slane %v1216, 4
      %v1219 = vor.u32 %v1218, %v1214
      %v1220 = vrot.slane %v1219, 4
      %v1222 = vshll.u32 %v1072, 16
      %v1224 = vrot.slane %v1222, 5
      %v1225 = vsel %vm1081, %v1220, %v1224
      %v1227 = vshrl.u32 %v1073, 16
      %v1229 = vrot.slane %v1227, 4
      %v1230 = vshll.u32 %v1073, 16
      %v1232 = vrot.slane %v1230, 5
      %v1233 = vor.u32 %v1229, %v1232
      %v1234 = vrot.slane %v1233, 4
      %v1236 = vshll.u32 %v1074, 16
      %v1238 = vrot.slane %v1236, 5
      %v1239 = vsel %vm1081, %v1234, %v1238
      %v1240 = vshrl.u32 %v1074, 16
      %v1242 = vrot.slane %v1240, 4
      %v1243 = vor.u32 %v1242, %v1238
      %v1244 = vrot.slane %v1243, 4
      %v1246 = vshll.u32 %v1075, 16
      %v1248 = vrot.slane %v1246, 5
      %v1249 = vsel %vm1081, %v1244, %v1248
      %v1251 = vshrl.u32 %v1076, 16
      %v1253 = vrot.slane %v1251, 4
      %v1254 = vshll.u32 %v1076, 16
      %v1256 = vrot.slane %v1254, 5
      %v1257 = vor.u32 %v1253, %v1256
      %v1258 = vrot.slane %v1257, 4
      %v1260 = vshll.u32 %v1077, 16
      %v1262 = vrot.slane %v1260, 5
      %v1263 = vsel %vm1081, %v1258, %v1262
      %v1264 = vshrl.u32 %v1077, 16
      %v1266 = vrot.slane %v1264, 4
      %v1267 = vor.u32 %v1266, %v1262
      %v1268 = vrot.slane %v1267, 4
      %v1270 = vshll.u32 %v1078, 16
      %v1272 = vrot.slane %v1270, 5
      %v1273 = vsel %vm1081, %v1268, %v1272
      %s1274 = scalar_lea.vmem %s1, 64
      %v1275 = vld [vmem:[%s1274] sm:$0xf]
      %v1276 = vld [vmem:[%s1274 + $0x4] sm:$0xf]
      %v1277 = vld [vmem:[%s1274 + $0x8] sm:$0xf]
      %v1278 = vld [vmem:[%s1274 + $0xc] sm:$0xf]
      %v1279 = vld [vmem:[%s1274 + $0x10] sm:$0xf]
      %v1280 = vld [vmem:[%s1274 + $0x14] sm:$0xf]
      %v1281 = vld [vmem:[%s1274 + $0x18] sm:$0xf]
      %v1282 = vld [vmem:[%s1274 + $0x1c] sm:$0xf]
      %v1283 = vunpack.c.l.b16 %v1095
      %v1284 = vunpack.c.l.b16 %v1105
      %v1285 = vunpack.c.l.b16 %v1119
      %v1286 = vunpack.c.l.b16 %v1129
      %v1287 = vunpack.c.l.b16 %v1143
      %v1288 = vunpack.c.l.b16 %v1153
      %v1289 = vunpack.c.l.b16 %v1167
      %v1290 = vunpack.c.l.b16 %v1177
      %v1291 = vunpack.c.l.b16 %v1191
      %v1292 = vunpack.c.l.b16 %v1201
      %v1293 = vunpack.c.l.b16 %v1215
      %v1294 = vunpack.c.l.b16 %v1225
      %v1295 = vunpack.c.l.b16 %v1239
      %v1296 = vunpack.c.l.b16 %v1249
      %v1297 = vunpack.c.l.b16 %v1263
      %v1298 = vunpack.c.l.b16 %v1273
      %v1299 = vpack.c.b16 %v1284, %v1283
      %v1300 = vpack.c.b16 %v1286, %v1285
      %v1301 = vpack.c.b16 %v1288, %v1287
      %v1302 = vpack.c.b16 %v1290, %v1289
      %v1303 = vpack.c.b16 %v1292, %v1291
      %v1304 = vpack.c.b16 %v1294, %v1293
      %v1305 = vpack.c.b16 %v1296, %v1295
      %v1306 = vpack.c.b16 %v1298, %v1297
      %v1315 = vunpack.c.l.b16 %v1275
      %v1316 = vunpack.c.l.b16 %v1276
      %v1317 = vunpack.c.l.b16 %v1277
      %v1318 = vunpack.c.l.b16 %v1278
      %v1319 = vunpack.c.l.b16 %v1279
      %v1320 = vunpack.c.l.b16 %v1280
      %v1321 = vunpack.c.l.b16 %v1281
      %v1322 = vunpack.c.l.b16 %v1282
      %v1323 = vpack.c.b16 %v1316, %v1315
      %v1324 = vpack.c.b16 %v1318, %v1317
      %v1325 = vpack.c.b16 %v1320, %v1319
      %v1326 = vpack.c.b16 %v1322, %v1321
      %v1332 = vsel %vm764, %v1299, 0
      %v1335 = vsel %vm764, %v1300, 0
      %v1338 = vsel %vm764, %v1301, 0
      %v1341 = vsel %vm764, %v1302, 0
      %v1344 = vsel %vm764, %v1303, 0
      %v1347 = vsel %vm764, %v1304, 0
      %v1350 = vsel %vm764, %v1305, 0
      %v1353 = vsel %vm764, %v1306, 0
      %1355 = vmatprep.subr.bf16.mxu0 0
      %1356 = vmatpush1.bf16.msra.mxu0 0
      %1357 = vmatprep.subr.bf16.mxu0 0
      %1358 = vmatpush1.bf16.msra.mxu0 0
      %1359 = vmatprep.subr.bf16.mxu0 0
      %1360 = vmatpush1.bf16.msra.mxu0 0
      %1361 = vmatprep.subr.bf16.mxu0 0
      %1362 = vmatpush1.bf16.msra.mxu0 0
      %1363 = vmatprep.subr.bf16.mxu0 0
      %1364 = vmatpush1.bf16.msra.mxu0 %v1326
      %1365 = vmatprep.subr.bf16.mxu0 0
      %1366 = vmatpush1.bf16.msra.mxu0 %v1325
      %1367 = vmatprep.subr.bf16.mxu0 0
      %1368 = vmatpush1.bf16.msra.mxu0 %v1324
      %1369 = vmatprep.subr.bf16.mxu0 0
      %1370 = vmatpush1.bf16.msra.mxu0 %v1323
      %1371 = vmatprep.subr.bf16.mxu0 0
      %1372 = vmatpush2.bf16.msra.mxu0 0
      %1373 = vmatprep.subr.bf16.mxu0 0
      %1374 = vmatpush2.bf16.msra.mxu0 0
      %1375 = vmatprep.subr.bf16.mxu0 0
      %1376 = vmatpush2.bf16.msra.mxu0 0
      %1377 = vmatprep.subr.bf16.mxu0 0
      %1378 = vmatpush2.bf16.msra.mxu0 0
      %1379 = vmatprep.subr.bf16.mxu0 0
      %1380 = vmatpush2.bf16.msra.mxu0 0
      %1381 = vmatprep.subr.bf16.mxu0 0
      %1382 = vmatpush2.bf16.msra.mxu0 0
      %1383 = vmatprep.subr.bf16.mxu0 0
      %1384 = vmatpush2.bf16.msra.mxu0 0
      %1385 = vmatprep.subr.bf16.mxu0 0
      %1386 = vmatpush2.bf16.msra.mxu0 0
      %1387 = vmatprep.mubr.bf16.mxu0 0
      %1388 = vmatmul.mubr.bf16.gmra.mxu0 %v1332
      %v1389 = vpop.f32.mrf.mxu0
      %v1390 = vadd.f32 0.0, %v1389
      %v1391 = vpop.f32.mrf.mxu0
      %v1392 = vpop.f32.mrf.mxu0
      %v1393 = vadd.f32 0.0, %v1392
      %v1394 = vpop.f32.mrf.mxu0
      %1395 = vmatprep.mubr.bf16.mxu0 0
      %1396 = vmatmul.mubr.bf16.gmra.mxu0 %v1335
      %v1397 = vpop.f32.mrf.mxu0
      %v1398 = vadd.f32 0.0, %v1397
      %v1399 = vpop.f32.mrf.mxu0
      %v1400 = vpop.f32.mrf.mxu0
      %v1401 = vadd.f32 0.0, %v1400
      %v1402 = vpop.f32.mrf.mxu0
      %1403 = vmatprep.mubr.bf16.mxu0 0
      %1404 = vmatmul.mubr.bf16.gmra.mxu0 %v1338
      %v1405 = vpop.f32.mrf.mxu0
      %v1406 = vadd.f32 0.0, %v1405
      %v1407 = vpop.f32.mrf.mxu0
      %v1408 = vpop.f32.mrf.mxu0
      %v1409 = vadd.f32 0.0, %v1408
      %v1410 = vpop.f32.mrf.mxu0
      %1411 = vmatprep.mubr.bf16.mxu0 0
      %1412 = vmatmul.mubr.bf16.gmra.mxu0 %v1341
      %v1413 = vpop.f32.mrf.mxu0
      %v1414 = vadd.f32 0.0, %v1413
      %v1415 = vpop.f32.mrf.mxu0
      %v1416 = vpop.f32.mrf.mxu0
      %v1417 = vadd.f32 0.0, %v1416
      %v1418 = vpop.f32.mrf.mxu0
      %1419 = vmatprep.mubr.bf16.mxu0 0
      %1420 = vmatmul.mubr.bf16.gmra.mxu0 %v1344
      %v1421 = vpop.f32.mrf.mxu0
      %v1422 = vadd.f32 0.0, %v1421
      %v1423 = vpop.f32.mrf.mxu0
      %v1424 = vpop.f32.mrf.mxu0
      %v1425 = vadd.f32 0.0, %v1424
      %v1426 = vpop.f32.mrf.mxu0
      %1427 = vmatprep.mubr.bf16.mxu0 0
      %1428 = vmatmul.mubr.bf16.gmra.mxu0 %v1347
      %v1429 = vpop.f32.mrf.mxu0
      %v1430 = vadd.f32 0.0, %v1429
      %v1431 = vpop.f32.mrf.mxu0
      %v1432 = vpop.f32.mrf.mxu0
      %v1433 = vadd.f32 0.0, %v1432
      %v1434 = vpop.f32.mrf.mxu0
      %1435 = vmatprep.mubr.bf16.mxu0 0
      %1436 = vmatmul.mubr.bf16.gmra.mxu0 %v1350
      %v1437 = vpop.f32.mrf.mxu0
      %v1438 = vadd.f32 0.0, %v1437
      %v1439 = vpop.f32.mrf.mxu0
      %v1440 = vpop.f32.mrf.mxu0
      %v1441 = vadd.f32 0.0, %v1440
      %v1442 = vpop.f32.mrf.mxu0
      %1443 = vmatprep.mubr.bf16.mxu0 0
      %1444 = vmatmul.mubr.bf16.gmra.mxu0 %v1353
      %v1445 = vpop.f32.mrf.mxu0
      %v1446 = vadd.f32 0.0, %v1445
      %v1447 = vpop.f32.mrf.mxu0
      %v1448 = vpop.f32.mrf.mxu0
      %v1449 = vadd.f32 0.0, %v1448
      %v1450 = vpop.f32.mrf.mxu0
      %1451 = vdwg.mxu0
      %v1452 = vadd.f32 %v993, %v1390
      %v1453 = vadd.f32 %v996, %v1393
      %v1454 = vadd.f32 %v1001, %v1398
      %v1455 = vadd.f32 %v1004, %v1401
      %v1456 = vadd.f32 %v1009, %v1406
      %v1457 = vadd.f32 %v1012, %v1409
      %v1458 = vadd.f32 %v1017, %v1414
      %v1459 = vadd.f32 %v1020, %v1417
      %v1460 = vadd.f32 %v1025, %v1422
      %v1461 = vadd.f32 %v1028, %v1425
      %v1462 = vadd.f32 %v1033, %v1430
      %v1463 = vadd.f32 %v1036, %v1433
      %v1464 = vadd.f32 %v1041, %v1438
      %v1465 = vadd.f32 %v1044, %v1441
      %v1466 = vadd.f32 %v1049, %v1446
      %v1467 = vadd.f32 %v1052, %v1449
      %v1468 = vld [vmem:[%s424] sm:$0x8]
      %v1469 = vld [vmem:[%s424 + $0x4] sm:$0xf]
      %v1470 = vld [vmem:[%s424 + $0x8] sm:$0xf]
      %v1471 = vld [vmem:[%s424 + $0x10] sm:$0x8]
      %v1472 = vld [vmem:[%s424 + $0x14] sm:$0xf]
      %v1473 = vld [vmem:[%s424 + $0x18] sm:$0xf]
      %v1474 = vld [vmem:[%s424 + $0x20] sm:$0x8]
      %v1475 = vld [vmem:[%s424 + $0x24] sm:$0xf]
      %v1476 = vld [vmem:[%s424 + $0x28] sm:$0xf]
      %v1477 = vld [vmem:[%s424 + $0x30] sm:$0x8]
      %v1478 = vld [vmem:[%s424 + $0x34] sm:$0xf]
      %v1479 = vld [vmem:[%s424 + $0x38] sm:$0xf]
      %v1480 = vld [vmem:[%s424 + $0x40] sm:$0x8]
      %v1481 = vld [vmem:[%s424 + $0x44] sm:$0xf]
      %v1482 = vld [vmem:[%s424 + $0x48] sm:$0xf]
      %v1483 = vld [vmem:[%s424 + $0x50] sm:$0x8]
      %v1484 = vld [vmem:[%s424 + $0x54] sm:$0xf]
      %v1485 = vld [vmem:[%s424 + $0x58] sm:$0xf]
      %v1486 = vld [vmem:[%s424 + $0x60] sm:$0x8]
      %v1487 = vld [vmem:[%s424 + $0x64] sm:$0xf]
      %v1488 = vld [vmem:[%s424 + $0x68] sm:$0xf]
      %v1489 = vld [vmem:[%s424 + $0x70] sm:$0x8]
      %v1490 = vld [vmem:[%s424 + $0x74] sm:$0xf]
      %v1491 = vld [vmem:[%s424 + $0x78] sm:$0xf]
      %v1493 = vshrl.u32 %v1468, 16
      %v1495 = vrot.slane %v1493, 7
      %v1496 = vrot.slane %v1495, 4
      %v1498 = vshrl.u32 %v1469, 16
      %v1500 = vrot.slane %v1498, 7
      %v1501 = vshll.u32 %v1469, 16
      %v1503 = vor.u32 %v1500, %v1501
      %v1504 = vsel %vm506, %v1496, %v1503
      %v1505 = vrot.slane %v1500, 4
      %v1507 = vshrl.u32 %v1470, 16
      %v1509 = vrot.slane %v1507, 7
      %v1510 = vshll.u32 %v1470, 16
      %v1512 = vor.u32 %v1509, %v1510
      %v1513 = vsel %vm506, %v1505, %v1512
      %v1515 = vshrl.u32 %v1471, 16
      %v1517 = vrot.slane %v1515, 7
      %v1518 = vrot.slane %v1517, 4
      %v1520 = vshrl.u32 %v1472, 16
      %v1522 = vrot.slane %v1520, 7
      %v1523 = vshll.u32 %v1472, 16
      %v1525 = vor.u32 %v1522, %v1523
      %v1526 = vsel %vm506, %v1518, %v1525
      %v1527 = vrot.slane %v1522, 4
      %v1529 = vshrl.u32 %v1473, 16
      %v1531 = vrot.slane %v1529, 7
      %v1532 = vshll.u32 %v1473, 16
      %v1534 = vor.u32 %v1531, %v1532
      %v1535 = vsel %vm506, %v1527, %v1534
      %v1537 = vshrl.u32 %v1474, 16
      %v1539 = vrot.slane %v1537, 7
      %v1540 = vrot.slane %v1539, 4
      %v1542 = vshrl.u32 %v1475, 16
      %v1544 = vrot.slane %v1542, 7
      %v1545 = vshll.u32 %v1475, 16
      %v1547 = vor.u32 %v1544, %v1545
      %v1548 = vsel %vm506, %v1540, %v1547
      %v1549 = vrot.slane %v1544, 4
      %v1551 = vshrl.u32 %v1476, 16
      %v1553 = vrot.slane %v1551, 7
      %v1554 = vshll.u32 %v1476, 16
      %v1556 = vor.u32 %v1553, %v1554
      %v1557 = vsel %vm506, %v1549, %v1556
      %v1559 = vshrl.u32 %v1477, 16
      %v1561 = vrot.slane %v1559, 7
      %v1562 = vrot.slane %v1561, 4
      %v1564 = vshrl.u32 %v1478, 16
      %v1566 = vrot.slane %v1564, 7
      %v1567 = vshll.u32 %v1478, 16
      %v1569 = vor.u32 %v1566, %v1567
      %v1570 = vsel %vm506, %v1562, %v1569
      %v1571 = vrot.slane %v1566, 4
      %v1573 = vshrl.u32 %v1479, 16
      %v1575 = vrot.slane %v1573, 7
      %v1576 = vshll.u32 %v1479, 16
      %v1578 = vor.u32 %v1575, %v1576
      %v1579 = vsel %vm506, %v1571, %v1578
      %v1581 = vshrl.u32 %v1480, 16
      %v1583 = vrot.slane %v1581, 7
      %v1584 = vrot.slane %v1583, 4
      %v1586 = vshrl.u32 %v1481, 16
      %v1588 = vrot.slane %v1586, 7
      %v1589 = vshll.u32 %v1481, 16
      %v1591 = vor.u32 %v1588, %v1589
      %v1592 = vsel %vm506, %v1584, %v1591
      %v1593 = vrot.slane %v1588, 4
      %v1595 = vshrl.u32 %v1482, 16
      %v1597 = vrot.slane %v1595, 7
      %v1598 = vshll.u32 %v1482, 16
      %v1600 = vor.u32 %v1597, %v1598
      %v1601 = vsel %vm506, %v1593, %v1600
      %v1603 = vshrl.u32 %v1483, 16
      %v1605 = vrot.slane %v1603, 7
      %v1606 = vrot.slane %v1605, 4
      %v1608 = vshrl.u32 %v1484, 16
      %v1610 = vrot.slane %v1608, 7
      %v1611 = vshll.u32 %v1484, 16
      %v1613 = vor.u32 %v1610, %v1611
      %v1614 = vsel %vm506, %v1606, %v1613
      %v1615 = vrot.slane %v1610, 4
      %v1617 = vshrl.u32 %v1485, 16
      %v1619 = vrot.slane %v1617, 7
      %v1620 = vshll.u32 %v1485, 16
      %v1622 = vor.u32 %v1619, %v1620
      %v1623 = vsel %vm506, %v1615, %v1622
      %v1625 = vshrl.u32 %v1486, 16
      %v1627 = vrot.slane %v1625, 7
      %v1628 = vrot.slane %v1627, 4
      %v1630 = vshrl.u32 %v1487, 16
      %v1632 = vrot.slane %v1630, 7
      %v1633 = vshll.u32 %v1487, 16
      %v1635 = vor.u32 %v1632, %v1633
      %v1636 = vsel %vm506, %v1628, %v1635
      %v1637 = vrot.slane %v1632, 4
      %v1639 = vshrl.u32 %v1488, 16
      %v1641 = vrot.slane %v1639, 7
      %v1642 = vshll.u32 %v1488, 16
      %v1644 = vor.u32 %v1641, %v1642
      %v1645 = vsel %vm506, %v1637, %v1644
      %v1647 = vshrl.u32 %v1489, 16
      %v1649 = vrot.slane %v1647, 7
      %v1650 = vrot.slane %v1649, 4
      %v1652 = vshrl.u32 %v1490, 16
      %v1654 = vrot.slane %v1652, 7
      %v1655 = vshll.u32 %v1490, 16
      %v1657 = vor.u32 %v1654, %v1655
      %v1658 = vsel %vm506, %v1650, %v1657
      %v1659 = vrot.slane %v1654, 4
      %v1661 = vshrl.u32 %v1491, 16
      %v1663 = vrot.slane %v1661, 7
      %v1664 = vshll.u32 %v1491, 16
      %v1666 = vor.u32 %v1663, %v1664
      %v1667 = vsel %vm506, %v1659, %v1666
      %s1668 = scalar_lea.vmem %s1, 96
      %v1669 = vld [vmem:[%s1668] sm:$0xf]
      %v1670 = vld [vmem:[%s1668 + $0x4] sm:$0xf]
      %v1671 = vld [vmem:[%s1668 + $0x8] sm:$0xf]
      %v1672 = vld [vmem:[%s1668 + $0xc] sm:$0xf]
      %v1673 = vld [vmem:[%s1668 + $0x10] sm:$0xf]
      %v1674 = vld [vmem:[%s1668 + $0x14] sm:$0xf]
      %v1675 = vld [vmem:[%s1668 + $0x18] sm:$0xf]
      %v1676 = vld [vmem:[%s1668 + $0x1c] sm:$0xf]
      %v1677 = vunpack.c.l.b16 %v1504
      %v1678 = vunpack.c.l.b16 %v1513
      %v1679 = vunpack.c.l.b16 %v1526
      %v1680 = vunpack.c.l.b16 %v1535
      %v1681 = vunpack.c.l.b16 %v1548
      %v1682 = vunpack.c.l.b16 %v1557
      %v1683 = vunpack.c.l.b16 %v1570
      %v1684 = vunpack.c.l.b16 %v1579
      %v1685 = vunpack.c.l.b16 %v1592
      %v1686 = vunpack.c.l.b16 %v1601
      %v1687 = vunpack.c.l.b16 %v1614
      %v1688 = vunpack.c.l.b16 %v1623
      %v1689 = vunpack.c.l.b16 %v1636
      %v1690 = vunpack.c.l.b16 %v1645
      %v1691 = vunpack.c.l.b16 %v1658
      %v1692 = vunpack.c.l.b16 %v1667
      %v1693 = vpack.c.b16 %v1678, %v1677
      %v1694 = vpack.c.b16 %v1680, %v1679
      %v1695 = vpack.c.b16 %v1682, %v1681
      %v1696 = vpack.c.b16 %v1684, %v1683
      %v1697 = vpack.c.b16 %v1686, %v1685
      %v1698 = vpack.c.b16 %v1688, %v1687
      %v1699 = vpack.c.b16 %v1690, %v1689
      %v1700 = vpack.c.b16 %v1692, %v1691
      %v1709 = vunpack.c.l.b16 %v1669
      %v1710 = vunpack.c.l.b16 %v1670
      %v1711 = vunpack.c.l.b16 %v1671
      %v1712 = vunpack.c.l.b16 %v1672
      %v1713 = vunpack.c.l.b16 %v1673
      %v1714 = vunpack.c.l.b16 %v1674
      %v1715 = vunpack.c.l.b16 %v1675
      %v1716 = vunpack.c.l.b16 %v1676
      %v1717 = vpack.c.b16 %v1710, %v1709
      %v1718 = vpack.c.b16 %v1712, %v1711
      %v1719 = vpack.c.b16 %v1714, %v1713
      %v1720 = vpack.c.b16 %v1716, %v1715
      %v1726 = vsel %vm764, %v1693, 0
      %v1729 = vsel %vm764, %v1694, 0
      %v1732 = vsel %vm764, %v1695, 0
      %v1735 = vsel %vm764, %v1696, 0
      %v1738 = vsel %vm764, %v1697, 0
      %v1741 = vsel %vm764, %v1698, 0
      %v1744 = vsel %vm764, %v1699, 0
      %v1747 = vsel %vm764, %v1700, 0
      %1749 = vmatprep.subr.bf16.mxu0 0
      %1750 = vmatpush1.bf16.msra.mxu0 0
      %1751 = vmatprep.subr.bf16.mxu0 0
      %1752 = vmatpush1.bf16.msra.mxu0 0
      %1753 = vmatprep.subr.bf16.mxu0 0
      %1754 = vmatpush1.bf16.msra.mxu0 0
      %1755 = vmatprep.subr.bf16.mxu0 0
      %1756 = vmatpush1.bf16.msra.mxu0 0
      %1757 = vmatprep.subr.bf16.mxu0 0
      %1758 = vmatpush1.bf16.msra.mxu0 %v1720
      %1759 = vmatprep.subr.bf16.mxu0 0
      %1760 = vmatpush1.bf16.msra.mxu0 %v1719
      %1761 = vmatprep.subr.bf16.mxu0 0
      %1762 = vmatpush1.bf16.msra.mxu0 %v1718
      %1763 = vmatprep.subr.bf16.mxu0 0
      %1764 = vmatpush1.bf16.msra.mxu0 %v1717
      %1765 = vmatprep.subr.bf16.mxu0 0
      %1766 = vmatpush2.bf16.msra.mxu0 0
      %1767 = vmatprep.subr.bf16.mxu0 0
      %1768 = vmatpush2.bf16.msra.mxu0 0
      %1769 = vmatprep.subr.bf16.mxu0 0
      %1770 = vmatpush2.bf16.msra.mxu0 0
      %1771 = vmatprep.subr.bf16.mxu0 0
      %1772 = vmatpush2.bf16.msra.mxu0 0
      %1773 = vmatprep.subr.bf16.mxu0 0
      %1774 = vmatpush2.bf16.msra.mxu0 0
      %1775 = vmatprep.subr.bf16.mxu0 0
      %1776 = vmatpush2.bf16.msra.mxu0 0
      %1777 = vmatprep.subr.bf16.mxu0 0
      %1778 = vmatpush2.bf16.msra.mxu0 0
      %1779 = vmatprep.subr.bf16.mxu0 0
      %1780 = vmatpush2.bf16.msra.mxu0 0
      %1781 = vmatprep.mubr.bf16.mxu0 0
      %1782 = vmatmul.mubr.bf16.gmra.mxu0 %v1726
      %v1783 = vpop.f32.mrf.mxu0
      %v1784 = vadd.f32 0.0, %v1783
      %v1785 = vpop.f32.mrf.mxu0
      %v1786 = vpop.f32.mrf.mxu0
      %v1787 = vadd.f32 0.0, %v1786
      %v1788 = vpop.f32.mrf.mxu0
      %1789 = vmatprep.mubr.bf16.mxu0 0
      %1790 = vmatmul.mubr.bf16.gmra.mxu0 %v1729
      %v1791 = vpop.f32.mrf.mxu0
      %v1792 = vadd.f32 0.0, %v1791
      %v1793 = vpop.f32.mrf.mxu0
      %v1794 = vpop.f32.mrf.mxu0
      %v1795 = vadd.f32 0.0, %v1794
      %v1796 = vpop.f32.mrf.mxu0
      %1797 = vmatprep.mubr.bf16.mxu0 0
      %1798 = vmatmul.mubr.bf16.gmra.mxu0 %v1732
      %v1799 = vpop.f32.mrf.mxu0
      %v1800 = vadd.f32 0.0, %v1799
      %v1801 = vpop.f32.mrf.mxu0
      %v1802 = vpop.f32.mrf.mxu0
      %v1803 = vadd.f32 0.0, %v1802
      %v1804 = vpop.f32.mrf.mxu0
      %1805 = vmatprep.mubr.bf16.mxu0 0
      %1806 = vmatmul.mubr.bf16.gmra.mxu0 %v1735
      %v1807 = vpop.f32.mrf.mxu0
      %v1808 = vadd.f32 0.0, %v1807
      %v1809 = vpop.f32.mrf.mxu0
      %v1810 = vpop.f32.mrf.mxu0
      %v1811 = vadd.f32 0.0, %v1810
      %v1812 = vpop.f32.mrf.mxu0
      %1813 = vmatprep.mubr.bf16.mxu0 0
      %1814 = vmatmul.mubr.bf16.gmra.mxu0 %v1738
      %v1815 = vpop.f32.mrf.mxu0
      %v1816 = vadd.f32 0.0, %v1815
      %v1817 = vpop.f32.mrf.mxu0
      %v1818 = vpop.f32.mrf.mxu0
      %v1819 = vadd.f32 0.0, %v1818
      %v1820 = vpop.f32.mrf.mxu0
      %1821 = vmatprep.mubr.bf16.mxu0 0
      %1822 = vmatmul.mubr.bf16.gmra.mxu0 %v1741
      %v1823 = vpop.f32.mrf.mxu0
      %v1824 = vadd.f32 0.0, %v1823
      %v1825 = vpop.f32.mrf.mxu0
      %v1826 = vpop.f32.mrf.mxu0
      %v1827 = vadd.f32 0.0, %v1826
      %v1828 = vpop.f32.mrf.mxu0
      %1829 = vmatprep.mubr.bf16.mxu0 0
      %1830 = vmatmul.mubr.bf16.gmra.mxu0 %v1744
      %v1831 = vpop.f32.mrf.mxu0
      %v1832 = vadd.f32 0.0, %v1831
      %v1833 = vpop.f32.mrf.mxu0
      %v1834 = vpop.f32.mrf.mxu0
      %v1835 = vadd.f32 0.0, %v1834
      %v1836 = vpop.f32.mrf.mxu0
      %1837 = vmatprep.mubr.bf16.mxu0 0
      %1838 = vmatmul.mubr.bf16.gmra.mxu0 %v1747
      %v1839 = vpop.f32.mrf.mxu0
      %v1840 = vadd.f32 0.0, %v1839
      %v1841 = vpop.f32.mrf.mxu0
      %v1842 = vpop.f32.mrf.mxu0
      %v1843 = vadd.f32 0.0, %v1842
      %v1844 = vpop.f32.mrf.mxu0
      %1845 = vdwg.mxu0
      %v1846 = vadd.f32 %v1452, %v1784
      %v1847 = vadd.f32 %v1453, %v1787
      %v1848 = vadd.f32 %v1454, %v1792
      %v1849 = vadd.f32 %v1455, %v1795
      %v1850 = vadd.f32 %v1456, %v1800
      %v1851 = vadd.f32 %v1457, %v1803
      %v1852 = vadd.f32 %v1458, %v1808
      %v1853 = vadd.f32 %v1459, %v1811
      %v1854 = vadd.f32 %v1460, %v1816
      %v1855 = vadd.f32 %v1461, %v1819
      %v1856 = vadd.f32 %v1462, %v1824
      %v1857 = vadd.f32 %v1463, %v1827
      %v1858 = vadd.f32 %v1464, %v1832
      %v1859 = vadd.f32 %v1465, %v1835
      %v1860 = vadd.f32 %v1466, %v1840
      %v1861 = vadd.f32 %v1467, %v1843
      %s1862 = scalar_lea.vmem %s1, 128
      %v1863 = vld [vmem:[%s1862] sm:$0xf]
      %v1864 = vld [vmem:[%s1862 + $0x4] sm:$0xf]
      %v1865 = vld [vmem:[%s1862 + $0x8] sm:$0xf]
      %v1866 = vld [vmem:[%s1862 + $0xc] sm:$0xf]
      %v1867 = vld [vmem:[%s1862 + $0x10] sm:$0xf]
      %v1868 = vld [vmem:[%s1862 + $0x14] sm:$0xf]
      %v1869 = vld [vmem:[%s1862 + $0x18] sm:$0xf]
      %v1870 = vld [vmem:[%s1862 + $0x1c] sm:$0xf]
      %v1887 = vunpack.c.l.b16 %v1469
      %v1888 = vunpack.c.l.b16 %v1470
      %v1889 = vunpack.c.l.b16 %v1472
      %v1890 = vunpack.c.l.b16 %v1473
      %v1891 = vunpack.c.l.b16 %v1475
      %v1892 = vunpack.c.l.b16 %v1476
      %v1893 = vunpack.c.l.b16 %v1478
      %v1894 = vunpack.c.l.b16 %v1479
      %v1895 = vunpack.c.l.b16 %v1481
      %v1896 = vunpack.c.l.b16 %v1482
      %v1897 = vunpack.c.l.b16 %v1484
      %v1898 = vunpack.c.l.b16 %v1485
      %v1899 = vunpack.c.l.b16 %v1487
      %v1900 = vunpack.c.l.b16 %v1488
      %v1901 = vunpack.c.l.b16 %v1490
      %v1902 = vunpack.c.l.b16 %v1491
      %v1903 = vpack.c.b16 %v1888, %v1887
      %v1904 = vpack.c.b16 %v1890, %v1889
      %v1905 = vpack.c.b16 %v1892, %v1891
      %v1906 = vpack.c.b16 %v1894, %v1893
      %v1907 = vpack.c.b16 %v1896, %v1895
      %v1908 = vpack.c.b16 %v1898, %v1897
      %v1909 = vpack.c.b16 %v1900, %v1899
      %v1910 = vpack.c.b16 %v1902, %v1901
      %v1919 = vunpack.c.l.b16 %v1863
      %v1920 = vunpack.c.l.b16 %v1864
      %v1921 = vunpack.c.l.b16 %v1865
      %v1922 = vunpack.c.l.b16 %v1866
      %v1923 = vunpack.c.l.b16 %v1867
      %v1924 = vunpack.c.l.b16 %v1868
      %v1925 = vunpack.c.l.b16 %v1869
      %v1926 = vunpack.c.l.b16 %v1870
      %v1927 = vpack.c.b16 %v1920, %v1919
      %v1928 = vpack.c.b16 %v1922, %v1921
      %v1929 = vpack.c.b16 %v1924, %v1923
      %v1930 = vpack.c.b16 %v1926, %v1925
      %v1936 = vsel %vm764, %v1903, 0
      %v1939 = vsel %vm764, %v1904, 0
      %v1942 = vsel %vm764, %v1905, 0
      %v1945 = vsel %vm764, %v1906, 0
      %v1948 = vsel %vm764, %v1907, 0
      %v1951 = vsel %vm764, %v1908, 0
      %v1954 = vsel %vm764, %v1909, 0
      %v1957 = vsel %vm764, %v1910, 0
      %1959 = vmatprep.subr.bf16.mxu0 0
      %1960 = vmatpush1.bf16.msra.mxu0 0
      %1961 = vmatprep.subr.bf16.mxu0 0
      %1962 = vmatpush1.bf16.msra.mxu0 0
      %1963 = vmatprep.subr.bf16.mxu0 0
      %1964 = vmatpush1.bf16.msra.mxu0 0
      %1965 = vmatprep.subr.bf16.mxu0 0
      %1966 = vmatpush1.bf16.msra.mxu0 0
      %1967 = vmatprep.subr.bf16.mxu0 0
      %1968 = vmatpush1.bf16.msra.mxu0 %v1930
      %1969 = vmatprep.subr.bf16.mxu0 0
      %1970 = vmatpush1.bf16.msra.mxu0 %v1929
      %1971 = vmatprep.subr.bf16.mxu0 0
      %1972 = vmatpush1.bf16.msra.mxu0 %v1928
      %1973 = vmatprep.subr.bf16.mxu0 0
      %1974 = vmatpush1.bf16.msra.mxu0 %v1927
      %1975 = vmatprep.subr.bf16.mxu0 0
      %1976 = vmatpush2.bf16.msra.mxu0 0
      %1977 = vmatprep.subr.bf16.mxu0 0
      %1978 = vmatpush2.bf16.msra.mxu0 0
      %1979 = vmatprep.subr.bf16.mxu0 0
      %1980 = vmatpush2.bf16.msra.mxu0 0
      %1981 = vmatprep.subr.bf16.mxu0 0
      %1982 = vmatpush2.bf16.msra.mxu0 0
      %1983 = vmatprep.subr.bf16.mxu0 0
      %1984 = vmatpush2.bf16.msra.mxu0 0
      %1985 = vmatprep.subr.bf16.mxu0 0
      %1986 = vmatpush2.bf16.msra.mxu0 0
      %1987 = vmatprep.subr.bf16.mxu0 0
      %1988 = vmatpush2.bf16.msra.mxu0 0
      %1989 = vmatprep.subr.bf16.mxu0 0
      %1990 = vmatpush2.bf16.msra.mxu0 0
      %1991 = vmatprep.mubr.bf16.mxu0 0
      %1992 = vmatmul.mubr.bf16.gmra.mxu0 %v1936
      %v1993 = vpop.f32.mrf.mxu0
      %v1994 = vadd.f32 0.0, %v1993
      %v1995 = vpop.f32.mrf.mxu0
      %v1996 = vpop.f32.mrf.mxu0
      %v1997 = vadd.f32 0.0, %v1996
      %v1998 = vpop.f32.mrf.mxu0
      %1999 = vmatprep.mubr.bf16.mxu0 0
      %2000 = vmatmul.mubr.bf16.gmra.mxu0 %v1939
      %v2001 = vpop.f32.mrf.mxu0
      %v2002 = vadd.f32 0.0, %v2001
      %v2003 = vpop.f32.mrf.mxu0
      %v2004 = vpop.f32.mrf.mxu0
      %v2005 = vadd.f32 0.0, %v2004
      %v2006 = vpop.f32.mrf.mxu0
      %2007 = vmatprep.mubr.bf16.mxu0 0
      %2008 = vmatmul.mubr.bf16.gmra.mxu0 %v1942
      %v2009 = vpop.f32.mrf.mxu0
      %v2010 = vadd.f32 0.0, %v2009
      %v2011 = vpop.f32.mrf.mxu0
      %v2012 = vpop.f32.mrf.mxu0
      %v2013 = vadd.f32 0.0, %v2012
      %v2014 = vpop.f32.mrf.mxu0
      %2015 = vmatprep.mubr.bf16.mxu0 0
      %2016 = vmatmul.mubr.bf16.gmra.mxu0 %v1945
      %v2017 = vpop.f32.mrf.mxu0
      %v2018 = vadd.f32 0.0, %v2017
      %v2019 = vpop.f32.mrf.mxu0
      %v2020 = vpop.f32.mrf.mxu0
      %v2021 = vadd.f32 0.0, %v2020
      %v2022 = vpop.f32.mrf.mxu0
      %2023 = vmatprep.mubr.bf16.mxu0 0
      %2024 = vmatmul.mubr.bf16.gmra.mxu0 %v1948
      %v2025 = vpop.f32.mrf.mxu0
      %v2026 = vadd.f32 0.0, %v2025
      %v2027 = vpop.f32.mrf.mxu0
      %v2028 = vpop.f32.mrf.mxu0
      %v2029 = vadd.f32 0.0, %v2028
      %v2030 = vpop.f32.mrf.mxu0
      %2031 = vmatprep.mubr.bf16.mxu0 0
      %2032 = vmatmul.mubr.bf16.gmra.mxu0 %v1951
      %v2033 = vpop.f32.mrf.mxu0
      %v2034 = vadd.f32 0.0, %v2033
      %v2035 = vpop.f32.mrf.mxu0
      %v2036 = vpop.f32.mrf.mxu0
      %v2037 = vadd.f32 0.0, %v2036
      %v2038 = vpop.f32.mrf.mxu0
      %2039 = vmatprep.mubr.bf16.mxu0 0
      %2040 = vmatmul.mubr.bf16.gmra.mxu0 %v1954
      %v2041 = vpop.f32.mrf.mxu0
      %v2042 = vadd.f32 0.0, %v2041
      %v2043 = vpop.f32.mrf.mxu0
      %v2044 = vpop.f32.mrf.mxu0
      %v2045 = vadd.f32 0.0, %v2044
      %v2046 = vpop.f32.mrf.mxu0
      %2047 = vmatprep.mubr.bf16.mxu0 0
      %2048 = vmatmul.mubr.bf16.gmra.mxu0 %v1957
      %v2049 = vpop.f32.mrf.mxu0
      %v2050 = vadd.f32 0.0, %v2049
      %v2051 = vpop.f32.mrf.mxu0
      %v2052 = vpop.f32.mrf.mxu0
      %v2053 = vadd.f32 0.0, %v2052
      %v2054 = vpop.f32.mrf.mxu0
      %2055 = vdwg.mxu0
      %v2056 = vadd.f32 %v1846, %v1994
      %v2057 = vadd.f32 %v1847, %v1997
      %v2058 = vadd.f32 %v1848, %v2002
      %v2059 = vadd.f32 %v1849, %v2005
      %v2060 = vadd.f32 %v1850, %v2010
      %v2061 = vadd.f32 %v1851, %v2013
      %v2062 = vadd.f32 %v1852, %v2018
      %v2063 = vadd.f32 %v1853, %v2021
      %v2064 = vadd.f32 %v1854, %v2026
      %v2065 = vadd.f32 %v1855, %v2029
      %v2066 = vadd.f32 %v1856, %v2034
      %v2067 = vadd.f32 %v1857, %v2037
      %v2068 = vadd.f32 %v1858, %v2042
      %v2069 = vadd.f32 %v1859, %v2045
      %v2070 = vadd.f32 %v1860, %v2050
      %v2071 = vadd.f32 %v1861, %v2053
      %v2072 = vld [vmem:[%s424 + $0x4] sm:$0xf]
      %v2073 = vld [vmem:[%s424 + $0x8] sm:$0xf]
      %v2074 = vld [vmem:[%s424 + $0xc] sm:$0x1]
      %v2075 = vld [vmem:[%s424 + $0x14] sm:$0xf]
      %v2076 = vld [vmem:[%s424 + $0x18] sm:$0xf]
      %v2077 = vld [vmem:[%s424 + $0x1c] sm:$0x1]
      %v2078 = vld [vmem:[%s424 + $0x24] sm:$0xf]
      %v2079 = vld [vmem:[%s424 + $0x28] sm:$0xf]
      %v2080 = vld [vmem:[%s424 + $0x2c] sm:$0x1]
      %v2081 = vld [vmem:[%s424 + $0x34] sm:$0xf]
      %v2082 = vld [vmem:[%s424 + $0x38] sm:$0xf]
      %v2083 = vld [vmem:[%s424 + $0x3c] sm:$0x1]
      %v2084 = vld [vmem:[%s424 + $0x44] sm:$0xf]
      %v2085 = vld [vmem:[%s424 + $0x48] sm:$0xf]
      %v2086 = vld [vmem:[%s424 + $0x4c] sm:$0x1]
      %v2087 = vld [vmem:[%s424 + $0x54] sm:$0xf]
      %v2088 = vld [vmem:[%s424 + $0x58] sm:$0xf]
      %v2089 = vld [vmem:[%s424 + $0x5c] sm:$0x1]
      %v2090 = vld [vmem:[%s424 + $0x64] sm:$0xf]
      %v2091 = vld [vmem:[%s424 + $0x68] sm:$0xf]
      %v2092 = vld [vmem:[%s424 + $0x6c] sm:$0x1]
      %v2093 = vld [vmem:[%s424 + $0x74] sm:$0xf]
      %v2094 = vld [vmem:[%s424 + $0x78] sm:$0xf]
      %v2095 = vld [vmem:[%s424 + $0x7c] sm:$0x1]
      %v2097 = vshrl.u32 %v2072, 16
      %v2099 = vrot.slane %v2097, 4
      %v2100 = vshll.u32 %v2072, 16
      %v2102 = vrot.slane %v2100, 5
      %v2103 = vor.u32 %v2099, %v2102
      %v2104 = vrot.slane %v2103, 4
      %v2106 = vshll.u32 %v2073, 16
      %v2108 = vrot.slane %v2106, 5
      %v2109 = vsel %vm1081, %v2104, %v2108
      %v2110 = vshrl.u32 %v2073, 16
      %v2112 = vrot.slane %v2110, 4
      %v2113 = vor.u32 %v2112, %v2108
      %v2114 = vrot.slane %v2113, 4
      %v2116 = vshll.u32 %v2074, 16
      %v2118 = vrot.slane %v2116, 5
      %v2119 = vsel %vm1081, %v2114, %v2118
      %v2121 = vshrl.u32 %v2075, 16
      %v2123 = vrot.slane %v2121, 4
      %v2124 = vshll.u32 %v2075, 16
      %v2126 = vrot.slane %v2124, 5
      %v2127 = vor.u32 %v2123, %v2126
      %v2128 = vrot.slane %v2127, 4
      %v2130 = vshll.u32 %v2076, 16
      %v2132 = vrot.slane %v2130, 5
      %v2133 = vsel %vm1081, %v2128, %v2132
      %v2134 = vshrl.u32 %v2076, 16
      %v2136 = vrot.slane %v2134, 4
      %v2137 = vor.u32 %v2136, %v2132
      %v2138 = vrot.slane %v2137, 4
      %v2140 = vshll.u32 %v2077, 16
      %v2142 = vrot.slane %v2140, 5
      %v2143 = vsel %vm1081, %v2138, %v2142
      %v2145 = vshrl.u32 %v2078, 16
      %v2147 = vrot.slane %v2145, 4
      %v2148 = vshll.u32 %v2078, 16
      %v2150 = vrot.slane %v2148, 5
      %v2151 = vor.u32 %v2147, %v2150
      %v2152 = vrot.slane %v2151, 4
      %v2154 = vshll.u32 %v2079, 16
      %v2156 = vrot.slane %v2154, 5
      %v2157 = vsel %vm1081, %v2152, %v2156
      %v2158 = vshrl.u32 %v2079, 16
      %v2160 = vrot.slane %v2158, 4
      %v2161 = vor.u32 %v2160, %v2156
      %v2162 = vrot.slane %v2161, 4
      %v2164 = vshll.u32 %v2080, 16
      %v2166 = vrot.slane %v2164, 5
      %v2167 = vsel %vm1081, %v2162, %v2166
      %v2169 = vshrl.u32 %v2081, 16
      %v2171 = vrot.slane %v2169, 4
      %v2172 = vshll.u32 %v2081, 16
      %v2174 = vrot.slane %v2172, 5
      %v2175 = vor.u32 %v2171, %v2174
      %v2176 = vrot.slane %v2175, 4
      %v2178 = vshll.u32 %v2082, 16
      %v2180 = vrot.slane %v2178, 5
      %v2181 = vsel %vm1081, %v2176, %v2180
      %v2182 = vshrl.u32 %v2082, 16
      %v2184 = vrot.slane %v2182, 4
      %v2185 = vor.u32 %v2184, %v2180
      %v2186 = vrot.slane %v2185, 4
      %v2188 = vshll.u32 %v2083, 16
      %v2190 = vrot.slane %v2188, 5
      %v2191 = vsel %vm1081, %v2186, %v2190
      %v2193 = vshrl.u32 %v2084, 16
      %v2195 = vrot.slane %v2193, 4
      %v2196 = vshll.u32 %v2084, 16
      %v2198 = vrot.slane %v2196, 5
      %v2199 = vor.u32 %v2195, %v2198
      %v2200 = vrot.slane %v2199, 4
      %v2202 = vshll.u32 %v2085, 16
      %v2204 = vrot.slane %v2202, 5
      %v2205 = vsel %vm1081, %v2200, %v2204
      %v2206 = vshrl.u32 %v2085, 16
      %v2208 = vrot.slane %v2206, 4
      %v2209 = vor.u32 %v2208, %v2204
      %v2210 = vrot.slane %v2209, 4
      %v2212 = vshll.u32 %v2086, 16
      %v2214 = vrot.slane %v2212, 5
      %v2215 = vsel %vm1081, %v2210, %v2214
      %v2217 = vshrl.u32 %v2087, 16
      %v2219 = vrot.slane %v2217, 4
      %v2220 = vshll.u32 %v2087, 16
      %v2222 = vrot.slane %v2220, 5
      %v2223 = vor.u32 %v2219, %v2222
      %v2224 = vrot.slane %v2223, 4
      %v2226 = vshll.u32 %v2088, 16
      %v2228 = vrot.slane %v2226, 5
      %v2229 = vsel %vm1081, %v2224, %v2228
      %v2230 = vshrl.u32 %v2088, 16
      %v2232 = vrot.slane %v2230, 4
      %v2233 = vor.u32 %v2232, %v2228
      %v2234 = vrot.slane %v2233, 4
      %v2236 = vshll.u32 %v2089, 16
      %v2238 = vrot.slane %v2236, 5
      %v2239 = vsel %vm1081, %v2234, %v2238
      %v2241 = vshrl.u32 %v2090, 16
      %v2243 = vrot.slane %v2241, 4
      %v2244 = vshll.u32 %v2090, 16
      %v2246 = vrot.slane %v2244, 5
      %v2247 = vor.u32 %v2243, %v2246
      %v2248 = vrot.slane %v2247, 4
      %v2250 = vshll.u32 %v2091, 16
      %v2252 = vrot.slane %v2250, 5
      %v2253 = vsel %vm1081, %v2248, %v2252
      %v2254 = vshrl.u32 %v2091, 16
      %v2256 = vrot.slane %v2254, 4
      %v2257 = vor.u32 %v2256, %v2252
      %v2258 = vrot.slane %v2257, 4
      %v2260 = vshll.u32 %v2092, 16
      %v2262 = vrot.slane %v2260, 5
      %v2263 = vsel %vm1081, %v2258, %v2262
      %v2265 = vshrl.u32 %v2093, 16
      %v2267 = vrot.slane %v2265, 4
      %v2268 = vshll.u32 %v2093, 16
      %v2270 = vrot.slane %v2268, 5
      %v2271 = vor.u32 %v2267, %v2270
      %v2272 = vrot.slane %v2271, 4
      %v2274 = vshll.u32 %v2094, 16
      %v2276 = vrot.slane %v2274, 5
      %v2277 = vsel %vm1081, %v2272, %v2276
      %v2278 = vshrl.u32 %v2094, 16
      %v2280 = vrot.slane %v2278, 4
      %v2281 = vor.u32 %v2280, %v2276
      %v2282 = vrot.slane %v2281, 4
      %v2284 = vshll.u32 %v2095, 16
      %v2286 = vrot.slane %v2284, 5
      %v2287 = vsel %vm1081, %v2282, %v2286
      %s2288 = scalar_lea.vmem %s1, 160
      %v2289 = vld [vmem:[%s2288] sm:$0xf]
      %v2290 = vld [vmem:[%s2288 + $0x4] sm:$0xf]
      %v2291 = vld [vmem:[%s2288 + $0x8] sm:$0xf]
      %v2292 = vld [vmem:[%s2288 + $0xc] sm:$0xf]
      %v2293 = vld [vmem:[%s2288 + $0x10] sm:$0xf]
      %v2294 = vld [vmem:[%s2288 + $0x14] sm:$0xf]
      %v2295 = vld [vmem:[%s2288 + $0x18] sm:$0xf]
      %v2296 = vld [vmem:[%s2288 + $0x1c] sm:$0xf]
      %v2297 = vunpack.c.l.b16 %v2109
      %v2298 = vunpack.c.l.b16 %v2119
      %v2299 = vunpack.c.l.b16 %v2133
      %v2300 = vunpack.c.l.b16 %v2143
      %v2301 = vunpack.c.l.b16 %v2157
      %v2302 = vunpack.c.l.b16 %v2167
      %v2303 = vunpack.c.l.b16 %v2181
      %v2304 = vunpack.c.l.b16 %v2191
      %v2305 = vunpack.c.l.b16 %v2205
      %v2306 = vunpack.c.l.b16 %v2215
      %v2307 = vunpack.c.l.b16 %v2229
      %v2308 = vunpack.c.l.b16 %v2239
      %v2309 = vunpack.c.l.b16 %v2253
      %v2310 = vunpack.c.l.b16 %v2263
      %v2311 = vunpack.c.l.b16 %v2277
      %v2312 = vunpack.c.l.b16 %v2287
      %v2313 = vpack.c.b16 %v2298, %v2297
      %v2314 = vpack.c.b16 %v2300, %v2299
      %v2315 = vpack.c.b16 %v2302, %v2301
      %v2316 = vpack.c.b16 %v2304, %v2303
      %v2317 = vpack.c.b16 %v2306, %v2305
      %v2318 = vpack.c.b16 %v2308, %v2307
      %v2319 = vpack.c.b16 %v2310, %v2309
      %v2320 = vpack.c.b16 %v2312, %v2311
      %v2329 = vunpack.c.l.b16 %v2289
      %v2330 = vunpack.c.l.b16 %v2290
      %v2331 = vunpack.c.l.b16 %v2291
      %v2332 = vunpack.c.l.b16 %v2292
      %v2333 = vunpack.c.l.b16 %v2293
      %v2334 = vunpack.c.l.b16 %v2294
      %v2335 = vunpack.c.l.b16 %v2295
      %v2336 = vunpack.c.l.b16 %v2296
      %v2337 = vpack.c.b16 %v2330, %v2329
      %v2338 = vpack.c.b16 %v2332, %v2331
      %v2339 = vpack.c.b16 %v2334, %v2333
      %v2340 = vpack.c.b16 %v2336, %v2335
      %v2346 = vsel %vm764, %v2313, 0
      %v2349 = vsel %vm764, %v2314, 0
      %v2352 = vsel %vm764, %v2315, 0
      %v2355 = vsel %vm764, %v2316, 0
      %v2358 = vsel %vm764, %v2317, 0
      %v2361 = vsel %vm764, %v2318, 0
      %v2364 = vsel %vm764, %v2319, 0
      %v2367 = vsel %vm764, %v2320, 0
      %2369 = vmatprep.subr.bf16.mxu0 0
      %2370 = vmatpush1.bf16.msra.mxu0 0
      %2371 = vmatprep.subr.bf16.mxu0 0
      %2372 = vmatpush1.bf16.msra.mxu0 0
      %2373 = vmatprep.subr.bf16.mxu0 0
      %2374 = vmatpush1.bf16.msra.mxu0 0
      %2375 = vmatprep.subr.bf16.mxu0 0
      %2376 = vmatpush1.bf16.msra.mxu0 0
      %2377 = vmatprep.subr.bf16.mxu0 0
      %2378 = vmatpush1.bf16.msra.mxu0 %v2340
      %2379 = vmatprep.subr.bf16.mxu0 0
      %2380 = vmatpush1.bf16.msra.mxu0 %v2339
      %2381 = vmatprep.subr.bf16.mxu0 0
      %2382 = vmatpush1.bf16.msra.mxu0 %v2338
      %2383 = vmatprep.subr.bf16.mxu0 0
      %2384 = vmatpush1.bf16.msra.mxu0 %v2337
      %2385 = vmatprep.subr.bf16.mxu0 0
      %2386 = vmatpush2.bf16.msra.mxu0 0
      %2387 = vmatprep.subr.bf16.mxu0 0
      %2388 = vmatpush2.bf16.msra.mxu0 0
      %2389 = vmatprep.subr.bf16.mxu0 0
      %2390 = vmatpush2.bf16.msra.mxu0 0
      %2391 = vmatprep.subr.bf16.mxu0 0
      %2392 = vmatpush2.bf16.msra.mxu0 0
      %2393 = vmatprep.subr.bf16.mxu0 0
      %2394 = vmatpush2.bf16.msra.mxu0 0
      %2395 = vmatprep.subr.bf16.mxu0 0
      %2396 = vmatpush2.bf16.msra.mxu0 0
      %2397 = vmatprep.subr.bf16.mxu0 0
      %2398 = vmatpush2.bf16.msra.mxu0 0
      %2399 = vmatprep.subr.bf16.mxu0 0
      %2400 = vmatpush2.bf16.msra.mxu0 0
      %2401 = vmatprep.mubr.bf16.mxu0 0
      %2402 = vmatmul.mubr.bf16.gmra.mxu0 %v2346
      %v2403 = vpop.f32.mrf.mxu0
      %v2404 = vadd.f32 0.0, %v2403
      %v2405 = vpop.f32.mrf.mxu0
      %v2406 = vpop.f32.mrf.mxu0
      %v2407 = vadd.f32 0.0, %v2406
      %v2408 = vpop.f32.mrf.mxu0
      %2409 = vmatprep.mubr.bf16.mxu0 0
      %2410 = vmatmul.mubr.bf16.gmra.mxu0 %v2349
      %v2411 = vpop.f32.mrf.mxu0
      %v2412 = vadd.f32 0.0, %v2411
      %v2413 = vpop.f32.mrf.mxu0
      %v2414 = vpop.f32.mrf.mxu0
      %v2415 = vadd.f32 0.0, %v2414
      %v2416 = vpop.f32.mrf.mxu0
      %2417 = vmatprep.mubr.bf16.mxu0 0
      %2418 = vmatmul.mubr.bf16.gmra.mxu0 %v2352
      %v2419 = vpop.f32.mrf.mxu0
      %v2420 = vadd.f32 0.0, %v2419
      %v2421 = vpop.f32.mrf.mxu0
      %v2422 = vpop.f32.mrf.mxu0
      %v2423 = vadd.f32 0.0, %v2422
      %v2424 = vpop.f32.mrf.mxu0
      %2425 = vmatprep.mubr.bf16.mxu0 0
      %2426 = vmatmul.mubr.bf16.gmra.mxu0 %v2355
      %v2427 = vpop.f32.mrf.mxu0
      %v2428 = vadd.f32 0.0, %v2427
      %v2429 = vpop.f32.mrf.mxu0
      %v2430 = vpop.f32.mrf.mxu0
      %v2431 = vadd.f32 0.0, %v2430
      %v2432 = vpop.f32.mrf.mxu0
      %2433 = vmatprep.mubr.bf16.mxu0 0
      %2434 = vmatmul.mubr.bf16.gmra.mxu0 %v2358
      %v2435 = vpop.f32.mrf.mxu0
      %v2436 = vadd.f32 0.0, %v2435
      %v2437 = vpop.f32.mrf.mxu0
      %v2438 = vpop.f32.mrf.mxu0
      %v2439 = vadd.f32 0.0, %v2438
      %v2440 = vpop.f32.mrf.mxu0
      %2441 = vmatprep.mubr.bf16.mxu0 0
      %2442 = vmatmul.mubr.bf16.gmra.mxu0 %v2361
      %v2443 = vpop.f32.mrf.mxu0
      %v2444 = vadd.f32 0.0, %v2443
      %v2445 = vpop.f32.mrf.mxu0
      %v2446 = vpop.f32.mrf.mxu0
      %v2447 = vadd.f32 0.0, %v2446
      %v2448 = vpop.f32.mrf.mxu0
      %2449 = vmatprep.mubr.bf16.mxu0 0
      %2450 = vmatmul.mubr.bf16.gmra.mxu0 %v2364
      %v2451 = vpop.f32.mrf.mxu0
      %v2452 = vadd.f32 0.0, %v2451
      %v2453 = vpop.f32.mrf.mxu0
      %v2454 = vpop.f32.mrf.mxu0
      %v2455 = vadd.f32 0.0, %v2454
      %v2456 = vpop.f32.mrf.mxu0
      %2457 = vmatprep.mubr.bf16.mxu0 0
      %2458 = vmatmul.mubr.bf16.gmra.mxu0 %v2367
      %v2459 = vpop.f32.mrf.mxu0
      %v2460 = vadd.f32 0.0, %v2459
      %v2461 = vpop.f32.mrf.mxu0
      %v2462 = vpop.f32.mrf.mxu0
      %v2463 = vadd.f32 0.0, %v2462
      %v2464 = vpop.f32.mrf.mxu0
      %2465 = vdwg.mxu0
      %v2466 = vadd.f32 %v2056, %v2404
      %v2467 = vadd.f32 %v2057, %v2407
      %v2468 = vadd.f32 %v2058, %v2412
      %v2469 = vadd.f32 %v2059, %v2415
      %v2470 = vadd.f32 %v2060, %v2420
      %v2471 = vadd.f32 %v2061, %v2423
      %v2472 = vadd.f32 %v2062, %v2428
      %v2473 = vadd.f32 %v2063, %v2431
      %v2474 = vadd.f32 %v2064, %v2436
      %v2475 = vadd.f32 %v2065, %v2439
      %v2476 = vadd.f32 %v2066, %v2444
      %v2477 = vadd.f32 %v2067, %v2447
      %v2478 = vadd.f32 %v2068, %v2452
      %v2479 = vadd.f32 %v2069, %v2455
      %v2480 = vadd.f32 %v2070, %v2460
      %v2481 = vadd.f32 %v2071, %v2463
      %s2482 = scalar_lea.vmem [#allocation2], 32
      %v2483 = vld [vmem:[%s2482] sm:$0x8]
      %v2484 = vld [vmem:[%s2482 + $0x4] sm:$0xf]
      %v2485 = vld [vmem:[%s2482 + $0x8] sm:$0xf]
      %v2486 = vld [vmem:[%s2482 + $0x10] sm:$0x8]
      %v2487 = vld [vmem:[%s2482 + $0x14] sm:$0xf]
      %v2488 = vld [vmem:[%s2482 + $0x18] sm:$0xf]
      %v2489 = vld [vmem:[%s2482 + $0x20] sm:$0x8]
      %v2490 = vld [vmem:[%s2482 + $0x24] sm:$0xf]
      %v2491 = vld [vmem:[%s2482 + $0x28] sm:$0xf]
      %v2492 = vld [vmem:[%s2482 + $0x30] sm:$0x8]
      %v2493 = vld [vmem:[%s2482 + $0x34] sm:$0xf]
      %v2494 = vld [vmem:[%s2482 + $0x38] sm:$0xf]
      %v2495 = vld [vmem:[%s2482 + $0x40] sm:$0x8]
      %v2496 = vld [vmem:[%s2482 + $0x44] sm:$0xf]
      %v2497 = vld [vmem:[%s2482 + $0x48] sm:$0xf]
      %v2498 = vld [vmem:[%s2482 + $0x50] sm:$0x8]
      %v2499 = vld [vmem:[%s2482 + $0x54] sm:$0xf]
      %v2500 = vld [vmem:[%s2482 + $0x58] sm:$0xf]
      %v2501 = vld [vmem:[%s2482 + $0x60] sm:$0x8]
      %v2502 = vld [vmem:[%s2482 + $0x64] sm:$0xf]
      %v2503 = vld [vmem:[%s2482 + $0x68] sm:$0xf]
      %v2504 = vld [vmem:[%s2482 + $0x70] sm:$0x8]
      %v2505 = vld [vmem:[%s2482 + $0x74] sm:$0xf]
      %v2506 = vld [vmem:[%s2482 + $0x78] sm:$0xf]
      %v2508 = vshrl.u32 %v2483, 16
      %v2510 = vrot.slane %v2508, 7
      %v2511 = vrot.slane %v2510, 4
      %v2513 = vshrl.u32 %v2484, 16
      %v2515 = vrot.slane %v2513, 7
      %v2516 = vshll.u32 %v2484, 16
      %v2518 = vor.u32 %v2515, %v2516
      %v2519 = vsel %vm506, %v2511, %v2518
      %v2520 = vrot.slane %v2515, 4
      %v2522 = vshrl.u32 %v2485, 16
      %v2524 = vrot.slane %v2522, 7
      %v2525 = vshll.u32 %v2485, 16
      %v2527 = vor.u32 %v2524, %v2525
      %v2528 = vsel %vm506, %v2520, %v2527
      %v2530 = vshrl.u32 %v2486, 16
      %v2532 = vrot.slane %v2530, 7
      %v2533 = vrot.slane %v2532, 4
      %v2535 = vshrl.u32 %v2487, 16
      %v2537 = vrot.slane %v2535, 7
      %v2538 = vshll.u32 %v2487, 16
      %v2540 = vor.u32 %v2537, %v2538
      %v2541 = vsel %vm506, %v2533, %v2540
      %v2542 = vrot.slane %v2537, 4
      %v2544 = vshrl.u32 %v2488, 16
      %v2546 = vrot.slane %v2544, 7
      %v2547 = vshll.u32 %v2488, 16
      %v2549 = vor.u32 %v2546, %v2547
      %v2550 = vsel %vm506, %v2542, %v2549
      %v2552 = vshrl.u32 %v2489, 16
      %v2554 = vrot.slane %v2552, 7
      %v2555 = vrot.slane %v2554, 4
      %v2557 = vshrl.u32 %v2490, 16
      %v2559 = vrot.slane %v2557, 7
      %v2560 = vshll.u32 %v2490, 16
      %v2562 = vor.u32 %v2559, %v2560
      %v2563 = vsel %vm506, %v2555, %v2562
      %v2564 = vrot.slane %v2559, 4
      %v2566 = vshrl.u32 %v2491, 16
      %v2568 = vrot.slane %v2566, 7
      %v2569 = vshll.u32 %v2491, 16
      %v2571 = vor.u32 %v2568, %v2569
      %v2572 = vsel %vm506, %v2564, %v2571
      %v2574 = vshrl.u32 %v2492, 16
      %v2576 = vrot.slane %v2574, 7
      %v2577 = vrot.slane %v2576, 4
      %v2579 = vshrl.u32 %v2493, 16
      %v2581 = vrot.slane %v2579, 7
      %v2582 = vshll.u32 %v2493, 16
      %v2584 = vor.u32 %v2581, %v2582
      %v2585 = vsel %vm506, %v2577, %v2584
      %v2586 = vrot.slane %v2581, 4
      %v2588 = vshrl.u32 %v2494, 16
      %v2590 = vrot.slane %v2588, 7
      %v2591 = vshll.u32 %v2494, 16
      %v2593 = vor.u32 %v2590, %v2591
      %v2594 = vsel %vm506, %v2586, %v2593
      %v2596 = vshrl.u32 %v2495, 16
      %v2598 = vrot.slane %v2596, 7
      %v2599 = vrot.slane %v2598, 4
      %v2601 = vshrl.u32 %v2496, 16
      %v2603 = vrot.slane %v2601, 7
      %v2604 = vshll.u32 %v2496, 16
      %v2606 = vor.u32 %v2603, %v2604
      %v2607 = vsel %vm506, %v2599, %v2606
      %v2608 = vrot.slane %v2603, 4
      %v2610 = vshrl.u32 %v2497, 16
      %v2612 = vrot.slane %v2610, 7
      %v2613 = vshll.u32 %v2497, 16
      %v2615 = vor.u32 %v2612, %v2613
      %v2616 = vsel %vm506, %v2608, %v2615
      %v2618 = vshrl.u32 %v2498, 16
      %v2620 = vrot.slane %v2618, 7
      %v2621 = vrot.slane %v2620, 4
      %v2623 = vshrl.u32 %v2499, 16
      %v2625 = vrot.slane %v2623, 7
      %v2626 = vshll.u32 %v2499, 16
      %v2628 = vor.u32 %v2625, %v2626
      %v2629 = vsel %vm506, %v2621, %v2628
      %v2630 = vrot.slane %v2625, 4
      %v2632 = vshrl.u32 %v2500, 16
      %v2634 = vrot.slane %v2632, 7
      %v2635 = vshll.u32 %v2500, 16
      %v2637 = vor.u32 %v2634, %v2635
      %v2638 = vsel %vm506, %v2630, %v2637
      %v2640 = vshrl.u32 %v2501, 16
      %v2642 = vrot.slane %v2640, 7
      %v2643 = vrot.slane %v2642, 4
      %v2645 = vshrl.u32 %v2502, 16
      %v2647 = vrot.slane %v2645, 7
      %v2648 = vshll.u32 %v2502, 16
      %v2650 = vor.u32 %v2647, %v2648
      %v2651 = vsel %vm506, %v2643, %v2650
      %v2652 = vrot.slane %v2647, 4
      %v2654 = vshrl.u32 %v2503, 16
      %v2656 = vrot.slane %v2654, 7
      %v2657 = vshll.u32 %v2503, 16
      %v2659 = vor.u32 %v2656, %v2657
      %v2660 = vsel %vm506, %v2652, %v2659
      %v2662 = vshrl.u32 %v2504, 16
      %v2664 = vrot.slane %v2662, 7
      %v2665 = vrot.slane %v2664, 4
      %v2667 = vshrl.u32 %v2505, 16
      %v2669 = vrot.slane %v2667, 7
      %v2670 = vshll.u32 %v2505, 16
      %v2672 = vor.u32 %v2669, %v2670
      %v2673 = vsel %vm506, %v2665, %v2672
      %v2674 = vrot.slane %v2669, 4
      %v2676 = vshrl.u32 %v2506, 16
      %v2678 = vrot.slane %v2676, 7
      %v2679 = vshll.u32 %v2506, 16
      %v2681 = vor.u32 %v2678, %v2679
      %v2682 = vsel %vm506, %v2674, %v2681
      %s2683 = scalar_lea.vmem %s1, 192
      %v2684 = vld [vmem:[%s2683] sm:$0xf]
      %v2685 = vld [vmem:[%s2683 + $0x4] sm:$0xf]
      %v2686 = vld [vmem:[%s2683 + $0x8] sm:$0xf]
      %v2687 = vld [vmem:[%s2683 + $0xc] sm:$0xf]
      %v2688 = vld [vmem:[%s2683 + $0x10] sm:$0xf]
      %v2689 = vld [vmem:[%s2683 + $0x14] sm:$0xf]
      %v2690 = vld [vmem:[%s2683 + $0x18] sm:$0xf]
      %v2691 = vld [vmem:[%s2683 + $0x1c] sm:$0xf]
      %v2692 = vunpack.c.l.b16 %v2519
      %v2693 = vunpack.c.l.b16 %v2528
      %v2694 = vunpack.c.l.b16 %v2541
      %v2695 = vunpack.c.l.b16 %v2550
      %v2696 = vunpack.c.l.b16 %v2563
      %v2697 = vunpack.c.l.b16 %v2572
      %v2698 = vunpack.c.l.b16 %v2585
      %v2699 = vunpack.c.l.b16 %v2594
      %v2700 = vunpack.c.l.b16 %v2607
      %v2701 = vunpack.c.l.b16 %v2616
      %v2702 = vunpack.c.l.b16 %v2629
      %v2703 = vunpack.c.l.b16 %v2638
      %v2704 = vunpack.c.l.b16 %v2651
      %v2705 = vunpack.c.l.b16 %v2660
      %v2706 = vunpack.c.l.b16 %v2673
      %v2707 = vunpack.c.l.b16 %v2682
      %v2708 = vpack.c.b16 %v2693, %v2692
      %v2709 = vpack.c.b16 %v2695, %v2694
      %v2710 = vpack.c.b16 %v2697, %v2696
      %v2711 = vpack.c.b16 %v2699, %v2698
      %v2712 = vpack.c.b16 %v2701, %v2700
      %v2713 = vpack.c.b16 %v2703, %v2702
      %v2714 = vpack.c.b16 %v2705, %v2704
      %v2715 = vpack.c.b16 %v2707, %v2706
      %v2724 = vunpack.c.l.b16 %v2684
      %v2725 = vunpack.c.l.b16 %v2685
      %v2726 = vunpack.c.l.b16 %v2686
      %v2727 = vunpack.c.l.b16 %v2687
      %v2728 = vunpack.c.l.b16 %v2688
      %v2729 = vunpack.c.l.b16 %v2689
      %v2730 = vunpack.c.l.b16 %v2690
      %v2731 = vunpack.c.l.b16 %v2691
      %v2732 = vpack.c.b16 %v2725, %v2724
      %v2733 = vpack.c.b16 %v2727, %v2726
      %v2734 = vpack.c.b16 %v2729, %v2728
      %v2735 = vpack.c.b16 %v2731, %v2730
      %v2741 = vsel %vm764, %v2708, 0
      %v2744 = vsel %vm764, %v2709, 0
      %v2747 = vsel %vm764, %v2710, 0
      %v2750 = vsel %vm764, %v2711, 0
      %v2753 = vsel %vm764, %v2712, 0
      %v2756 = vsel %vm764, %v2713, 0
      %v2759 = vsel %vm764, %v2714, 0
      %v2762 = vsel %vm764, %v2715, 0
      %2764 = vmatprep.subr.bf16.mxu0 0
      %2765 = vmatpush1.bf16.msra.mxu0 0
      %2766 = vmatprep.subr.bf16.mxu0 0
      %2767 = vmatpush1.bf16.msra.mxu0 0
      %2768 = vmatprep.subr.bf16.mxu0 0
      %2769 = vmatpush1.bf16.msra.mxu0 0
      %2770 = vmatprep.subr.bf16.mxu0 0
      %2771 = vmatpush1.bf16.msra.mxu0 0
      %2772 = vmatprep.subr.bf16.mxu0 0
      %2773 = vmatpush1.bf16.msra.mxu0 %v2735
      %2774 = vmatprep.subr.bf16.mxu0 0
      %2775 = vmatpush1.bf16.msra.mxu0 %v2734
      %2776 = vmatprep.subr.bf16.mxu0 0
      %2777 = vmatpush1.bf16.msra.mxu0 %v2733
      %2778 = vmatprep.subr.bf16.mxu0 0
      %2779 = vmatpush1.bf16.msra.mxu0 %v2732
      %2780 = vmatprep.subr.bf16.mxu0 0
      %2781 = vmatpush2.bf16.msra.mxu0 0
      %2782 = vmatprep.subr.bf16.mxu0 0
      %2783 = vmatpush2.bf16.msra.mxu0 0
      %2784 = vmatprep.subr.bf16.mxu0 0
      %2785 = vmatpush2.bf16.msra.mxu0 0
      %2786 = vmatprep.subr.bf16.mxu0 0
      %2787 = vmatpush2.bf16.msra.mxu0 0
      %2788 = vmatprep.subr.bf16.mxu0 0
      %2789 = vmatpush2.bf16.msra.mxu0 0
      %2790 = vmatprep.subr.bf16.mxu0 0
      %2791 = vmatpush2.bf16.msra.mxu0 0
      %2792 = vmatprep.subr.bf16.mxu0 0
      %2793 = vmatpush2.bf16.msra.mxu0 0
      %2794 = vmatprep.subr.bf16.mxu0 0
      %2795 = vmatpush2.bf16.msra.mxu0 0
      %2796 = vmatprep.mubr.bf16.mxu0 0
      %2797 = vmatmul.mubr.bf16.gmra.mxu0 %v2741
      %v2798 = vpop.f32.mrf.mxu0
      %v2799 = vadd.f32 0.0, %v2798
      %v2800 = vpop.f32.mrf.mxu0
      %v2801 = vpop.f32.mrf.mxu0
      %v2802 = vadd.f32 0.0, %v2801
      %v2803 = vpop.f32.mrf.mxu0
      %2804 = vmatprep.mubr.bf16.mxu0 0
      %2805 = vmatmul.mubr.bf16.gmra.mxu0 %v2744
      %v2806 = vpop.f32.mrf.mxu0
      %v2807 = vadd.f32 0.0, %v2806
      %v2808 = vpop.f32.mrf.mxu0
      %v2809 = vpop.f32.mrf.mxu0
      %v2810 = vadd.f32 0.0, %v2809
      %v2811 = vpop.f32.mrf.mxu0
      %2812 = vmatprep.mubr.bf16.mxu0 0
      %2813 = vmatmul.mubr.bf16.gmra.mxu0 %v2747
      %v2814 = vpop.f32.mrf.mxu0
      %v2815 = vadd.f32 0.0, %v2814
      %v2816 = vpop.f32.mrf.mxu0
      %v2817 = vpop.f32.mrf.mxu0
      %v2818 = vadd.f32 0.0, %v2817
      %v2819 = vpop.f32.mrf.mxu0
      %2820 = vmatprep.mubr.bf16.mxu0 0
      %2821 = vmatmul.mubr.bf16.gmra.mxu0 %v2750
      %v2822 = vpop.f32.mrf.mxu0
      %v2823 = vadd.f32 0.0, %v2822
      %v2824 = vpop.f32.mrf.mxu0
      %v2825 = vpop.f32.mrf.mxu0
      %v2826 = vadd.f32 0.0, %v2825
      %v2827 = vpop.f32.mrf.mxu0
      %2828 = vmatprep.mubr.bf16.mxu0 0
      %2829 = vmatmul.mubr.bf16.gmra.mxu0 %v2753
      %v2830 = vpop.f32.mrf.mxu0
      %v2831 = vadd.f32 0.0, %v2830
      %v2832 = vpop.f32.mrf.mxu0
      %v2833 = vpop.f32.mrf.mxu0
      %v2834 = vadd.f32 0.0, %v2833
      %v2835 = vpop.f32.mrf.mxu0
      %2836 = vmatprep.mubr.bf16.mxu0 0
      %2837 = vmatmul.mubr.bf16.gmra.mxu0 %v2756
      %v2838 = vpop.f32.mrf.mxu0
      %v2839 = vadd.f32 0.0, %v2838
      %v2840 = vpop.f32.mrf.mxu0
      %v2841 = vpop.f32.mrf.mxu0
      %v2842 = vadd.f32 0.0, %v2841
      %v2843 = vpop.f32.mrf.mxu0
      %2844 = vmatprep.mubr.bf16.mxu0 0
      %2845 = vmatmul.mubr.bf16.gmra.mxu0 %v2759
      %v2846 = vpop.f32.mrf.mxu0
      %v2847 = vadd.f32 0.0, %v2846
      %v2848 = vpop.f32.mrf.mxu0
      %v2849 = vpop.f32.mrf.mxu0
      %v2850 = vadd.f32 0.0, %v2849
      %v2851 = vpop.f32.mrf.mxu0
      %2852 = vmatprep.mubr.bf16.mxu0 0
      %2853 = vmatmul.mubr.bf16.gmra.mxu0 %v2762
      %v2854 = vpop.f32.mrf.mxu0
      %v2855 = vadd.f32 0.0, %v2854
      %v2856 = vpop.f32.mrf.mxu0
      %v2857 = vpop.f32.mrf.mxu0
      %v2858 = vadd.f32 0.0, %v2857
      %v2859 = vpop.f32.mrf.mxu0
      %2860 = vdwg.mxu0
      %v2861 = vadd.f32 %v2466, %v2799
      %v2862 = vadd.f32 %v2467, %v2802
      %v2863 = vadd.f32 %v2468, %v2807
      %v2864 = vadd.f32 %v2469, %v2810
      %v2865 = vadd.f32 %v2470, %v2815
      %v2866 = vadd.f32 %v2471, %v2818
      %v2867 = vadd.f32 %v2472, %v2823
      %v2868 = vadd.f32 %v2473, %v2826
      %v2869 = vadd.f32 %v2474, %v2831
      %v2870 = vadd.f32 %v2475, %v2834
      %v2871 = vadd.f32 %v2476, %v2839
      %v2872 = vadd.f32 %v2477, %v2842
      %v2873 = vadd.f32 %v2478, %v2847
      %v2874 = vadd.f32 %v2479, %v2850
      %v2875 = vadd.f32 %v2480, %v2855
      %v2876 = vadd.f32 %v2481, %v2858
      %s2877 = scalar_lea.vmem %s1, 224
      %v2878 = vld [vmem:[%s2877] sm:$0xf]
      %v2879 = vld [vmem:[%s2877 + $0x4] sm:$0xf]
      %v2880 = vld [vmem:[%s2877 + $0x8] sm:$0xf]
      %v2881 = vld [vmem:[%s2877 + $0xc] sm:$0xf]
      %v2882 = vld [vmem:[%s2877 + $0x10] sm:$0xf]
      %v2883 = vld [vmem:[%s2877 + $0x14] sm:$0xf]
      %v2884 = vld [vmem:[%s2877 + $0x18] sm:$0xf]
      %v2885 = vld [vmem:[%s2877 + $0x1c] sm:$0xf]
      %v2902 = vunpack.c.l.b16 %v2484
      %v2903 = vunpack.c.l.b16 %v2485
      %v2904 = vunpack.c.l.b16 %v2487
      %v2905 = vunpack.c.l.b16 %v2488
      %v2906 = vunpack.c.l.b16 %v2490
      %v2907 = vunpack.c.l.b16 %v2491
      %v2908 = vunpack.c.l.b16 %v2493
      %v2909 = vunpack.c.l.b16 %v2494
      %v2910 = vunpack.c.l.b16 %v2496
      %v2911 = vunpack.c.l.b16 %v2497
      %v2912 = vunpack.c.l.b16 %v2499
      %v2913 = vunpack.c.l.b16 %v2500
      %v2914 = vunpack.c.l.b16 %v2502
      %v2915 = vunpack.c.l.b16 %v2503
      %v2916 = vunpack.c.l.b16 %v2505
      %v2917 = vunpack.c.l.b16 %v2506
      %v2918 = vpack.c.b16 %v2903, %v2902
      %v2919 = vpack.c.b16 %v2905, %v2904
      %v2920 = vpack.c.b16 %v2907, %v2906
      %v2921 = vpack.c.b16 %v2909, %v2908
      %v2922 = vpack.c.b16 %v2911, %v2910
      %v2923 = vpack.c.b16 %v2913, %v2912
      %v2924 = vpack.c.b16 %v2915, %v2914
      %v2925 = vpack.c.b16 %v2917, %v2916
      %v2934 = vunpack.c.l.b16 %v2878
      %v2935 = vunpack.c.l.b16 %v2879
      %v2936 = vunpack.c.l.b16 %v2880
      %v2937 = vunpack.c.l.b16 %v2881
      %v2938 = vunpack.c.l.b16 %v2882
      %v2939 = vunpack.c.l.b16 %v2883
      %v2940 = vunpack.c.l.b16 %v2884
      %v2941 = vunpack.c.l.b16 %v2885
      %v2942 = vpack.c.b16 %v2935, %v2934
      %v2943 = vpack.c.b16 %v2937, %v2936
      %v2944 = vpack.c.b16 %v2939, %v2938
      %v2945 = vpack.c.b16 %v2941, %v2940
      %v2951 = vsel %vm764, %v2918, 0
      %v2954 = vsel %vm764, %v2919, 0
      %v2957 = vsel %vm764, %v2920, 0
      %v2960 = vsel %vm764, %v2921, 0
      %v2963 = vsel %vm764, %v2922, 0
      %v2966 = vsel %vm764, %v2923, 0
      %v2969 = vsel %vm764, %v2924, 0
      %v2972 = vsel %vm764, %v2925, 0
      %2974 = vmatprep.subr.bf16.mxu0 0
      %2975 = vmatpush1.bf16.msra.mxu0 0
      %2976 = vmatprep.subr.bf16.mxu0 0
      %2977 = vmatpush1.bf16.msra.mxu0 0
      %2978 = vmatprep.subr.bf16.mxu0 0
      %2979 = vmatpush1.bf16.msra.mxu0 0
      %2980 = vmatprep.subr.bf16.mxu0 0
      %2981 = vmatpush1.bf16.msra.mxu0 0
      %2982 = vmatprep.subr.bf16.mxu0 0
      %2983 = vmatpush1.bf16.msra.mxu0 %v2945
      %2984 = vmatprep.subr.bf16.mxu0 0
      %2985 = vmatpush1.bf16.msra.mxu0 %v2944
      %2986 = vmatprep.subr.bf16.mxu0 0
      %2987 = vmatpush1.bf16.msra.mxu0 %v2943
      %2988 = vmatprep.subr.bf16.mxu0 0
      %2989 = vmatpush1.bf16.msra.mxu0 %v2942
      %2990 = vmatprep.subr.bf16.mxu0 0
      %2991 = vmatpush2.bf16.msra.mxu0 0
      %2992 = vmatprep.subr.bf16.mxu0 0
      %2993 = vmatpush2.bf16.msra.mxu0 0
      %2994 = vmatprep.subr.bf16.mxu0 0
      %2995 = vmatpush2.bf16.msra.mxu0 0
      %2996 = vmatprep.subr.bf16.mxu0 0
      %2997 = vmatpush2.bf16.msra.mxu0 0
      %2998 = vmatprep.subr.bf16.mxu0 0
      %2999 = vmatpush2.bf16.msra.mxu0 0
      %3000 = vmatprep.subr.bf16.mxu0 0
      %3001 = vmatpush2.bf16.msra.mxu0 0
      %3002 = vmatprep.subr.bf16.mxu0 0
      %3003 = vmatpush2.bf16.msra.mxu0 0
      %3004 = vmatprep.subr.bf16.mxu0 0
      %3005 = vmatpush2.bf16.msra.mxu0 0
      %3006 = vmatprep.mubr.bf16.mxu0 0
      %3007 = vmatmul.mubr.bf16.gmra.mxu0 %v2951
      %v3008 = vpop.f32.mrf.mxu0
      %v3009 = vadd.f32 0.0, %v3008
      %v3010 = vpop.f32.mrf.mxu0
      %v3011 = vpop.f32.mrf.mxu0
      %v3012 = vadd.f32 0.0, %v3011
      %v3013 = vpop.f32.mrf.mxu0
      %3014 = vmatprep.mubr.bf16.mxu0 0
      %3015 = vmatmul.mubr.bf16.gmra.mxu0 %v2954
      %v3016 = vpop.f32.mrf.mxu0
      %v3017 = vadd.f32 0.0, %v3016
      %v3018 = vpop.f32.mrf.mxu0
      %v3019 = vpop.f32.mrf.mxu0
      %v3020 = vadd.f32 0.0, %v3019
      %v3021 = vpop.f32.mrf.mxu0
      %3022 = vmatprep.mubr.bf16.mxu0 0
      %3023 = vmatmul.mubr.bf16.gmra.mxu0 %v2957
      %v3024 = vpop.f32.mrf.mxu0
      %v3025 = vadd.f32 0.0, %v3024
      %v3026 = vpop.f32.mrf.mxu0
      %v3027 = vpop.f32.mrf.mxu0
      %v3028 = vadd.f32 0.0, %v3027
      %v3029 = vpop.f32.mrf.mxu0
      %3030 = vmatprep.mubr.bf16.mxu0 0
      %3031 = vmatmul.mubr.bf16.gmra.mxu0 %v2960
      %v3032 = vpop.f32.mrf.mxu0
      %v3033 = vadd.f32 0.0, %v3032
      %v3034 = vpop.f32.mrf.mxu0
      %v3035 = vpop.f32.mrf.mxu0
      %v3036 = vadd.f32 0.0, %v3035
      %v3037 = vpop.f32.mrf.mxu0
      %3038 = vmatprep.mubr.bf16.mxu0 0
      %3039 = vmatmul.mubr.bf16.gmra.mxu0 %v2963
      %v3040 = vpop.f32.mrf.mxu0
      %v3041 = vadd.f32 0.0, %v3040
      %v3042 = vpop.f32.mrf.mxu0
      %v3043 = vpop.f32.mrf.mxu0
      %v3044 = vadd.f32 0.0, %v3043
      %v3045 = vpop.f32.mrf.mxu0
      %3046 = vmatprep.mubr.bf16.mxu0 0
      %3047 = vmatmul.mubr.bf16.gmra.mxu0 %v2966
      %v3048 = vpop.f32.mrf.mxu0
      %v3049 = vadd.f32 0.0, %v3048
      %v3050 = vpop.f32.mrf.mxu0
      %v3051 = vpop.f32.mrf.mxu0
      %v3052 = vadd.f32 0.0, %v3051
      %v3053 = vpop.f32.mrf.mxu0
      %3054 = vmatprep.mubr.bf16.mxu0 0
      %3055 = vmatmul.mubr.bf16.gmra.mxu0 %v2969
      %v3056 = vpop.f32.mrf.mxu0
      %v3057 = vadd.f32 0.0, %v3056
      %v3058 = vpop.f32.mrf.mxu0
      %v3059 = vpop.f32.mrf.mxu0
      %v3060 = vadd.f32 0.0, %v3059
      %v3061 = vpop.f32.mrf.mxu0
      %3062 = vmatprep.mubr.bf16.mxu0 0
      %3063 = vmatmul.mubr.bf16.gmra.mxu0 %v2972
      %v3064 = vpop.f32.mrf.mxu0
      %v3065 = vadd.f32 0.0, %v3064
      %v3066 = vpop.f32.mrf.mxu0
      %v3067 = vpop.f32.mrf.mxu0
      %v3068 = vadd.f32 0.0, %v3067
      %v3069 = vpop.f32.mrf.mxu0
      %3070 = vdwg.mxu0
      %v3071 = vadd.f32 %v2861, %v3009
      %v3072 = vadd.f32 %v2862, %v3012
      %v3073 = vadd.f32 %v2863, %v3017
      %v3074 = vadd.f32 %v2864, %v3020
      %v3075 = vadd.f32 %v2865, %v3025
      %v3076 = vadd.f32 %v2866, %v3028
      %v3077 = vadd.f32 %v2867, %v3033
      %v3078 = vadd.f32 %v2868, %v3036
      %v3079 = vadd.f32 %v2869, %v3041
      %v3080 = vadd.f32 %v2870, %v3044
      %v3081 = vadd.f32 %v2871, %v3049
      %v3082 = vadd.f32 %v2872, %v3052
      %v3083 = vadd.f32 %v2873, %v3057
      %v3084 = vadd.f32 %v2874, %v3060
      %v3085 = vadd.f32 %v2875, %v3065
      %v3086 = vadd.f32 %v2876, %v3068
      %v3087 = vld [vmem:[%s2482 + $0x4] sm:$0xf]
      %v3088 = vld [vmem:[%s2482 + $0x8] sm:$0xf]
      %v3089 = vld [vmem:[%s2482 + $0xc] sm:$0x1]
      %v3090 = vld [vmem:[%s2482 + $0x14] sm:$0xf]
      %v3091 = vld [vmem:[%s2482 + $0x18] sm:$0xf]
      %v3092 = vld [vmem:[%s2482 + $0x1c] sm:$0x1]
      %v3093 = vld [vmem:[%s2482 + $0x24] sm:$0xf]
      %v3094 = vld [vmem:[%s2482 + $0x28] sm:$0xf]
      %v3095 = vld [vmem:[%s2482 + $0x2c] sm:$0x1]
      %v3096 = vld [vmem:[%s2482 + $0x34] sm:$0xf]
      %v3097 = vld [vmem:[%s2482 + $0x38] sm:$0xf]
      %v3098 = vld [vmem:[%s2482 + $0x3c] sm:$0x1]
      %v3099 = vld [vmem:[%s2482 + $0x44] sm:$0xf]
      %v3100 = vld [vmem:[%s2482 + $0x48] sm:$0xf]
      %v3101 = vld [vmem:[%s2482 + $0x4c] sm:$0x1]
      %v3102 = vld [vmem:[%s2482 + $0x54] sm:$0xf]
      %v3103 = vld [vmem:[%s2482 + $0x58] sm:$0xf]
      %v3104 = vld [vmem:[%s2482 + $0x5c] sm:$0x1]
      %v3105 = vld [vmem:[%s2482 + $0x64] sm:$0xf]
      %v3106 = vld [vmem:[%s2482 + $0x68] sm:$0xf]
      %v3107 = vld [vmem:[%s2482 + $0x6c] sm:$0x1]
      %v3108 = vld [vmem:[%s2482 + $0x74] sm:$0xf]
      %v3109 = vld [vmem:[%s2482 + $0x78] sm:$0xf]
      %v3110 = vld [vmem:[%s2482 + $0x7c] sm:$0x1]
      %v3112 = vshrl.u32 %v3087, 16
      %v3114 = vrot.slane %v3112, 4
      %v3115 = vshll.u32 %v3087, 16
      %v3117 = vrot.slane %v3115, 5
      %v3118 = vor.u32 %v3114, %v3117
      %v3119 = vrot.slane %v3118, 4
      %v3121 = vshll.u32 %v3088, 16
      %v3123 = vrot.slane %v3121, 5
      %v3124 = vsel %vm1081, %v3119, %v3123
      %v3125 = vshrl.u32 %v3088, 16
      %v3127 = vrot.slane %v3125, 4
      %v3128 = vor.u32 %v3127, %v3123
      %v3129 = vrot.slane %v3128, 4
      %v3131 = vshll.u32 %v3089, 16
      %v3133 = vrot.slane %v3131, 5
      %v3134 = vsel %vm1081, %v3129, %v3133
      %v3136 = vshrl.u32 %v3090, 16
      %v3138 = vrot.slane %v3136, 4
      %v3139 = vshll.u32 %v3090, 16
      %v3141 = vrot.slane %v3139, 5
      %v3142 = vor.u32 %v3138, %v3141
      %v3143 = vrot.slane %v3142, 4
      %v3145 = vshll.u32 %v3091, 16
      %v3147 = vrot.slane %v3145, 5
      %v3148 = vsel %vm1081, %v3143, %v3147
      %v3149 = vshrl.u32 %v3091, 16
      %v3151 = vrot.slane %v3149, 4
      %v3152 = vor.u32 %v3151, %v3147
      %v3153 = vrot.slane %v3152, 4
      %v3155 = vshll.u32 %v3092, 16
      %v3157 = vrot.slane %v3155, 5
      %v3158 = vsel %vm1081, %v3153, %v3157
      %v3160 = vshrl.u32 %v3093, 16
      %v3162 = vrot.slane %v3160, 4
      %v3163 = vshll.u32 %v3093, 16
      %v3165 = vrot.slane %v3163, 5
      %v3166 = vor.u32 %v3162, %v3165
      %v3167 = vrot.slane %v3166, 4
      %v3169 = vshll.u32 %v3094, 16
      %v3171 = vrot.slane %v3169, 5
      %v3172 = vsel %vm1081, %v3167, %v3171
      %v3173 = vshrl.u32 %v3094, 16
      %v3175 = vrot.slane %v3173, 4
      %v3176 = vor.u32 %v3175, %v3171
      %v3177 = vrot.slane %v3176, 4
      %v3179 = vshll.u32 %v3095, 16
      %v3181 = vrot.slane %v3179, 5
      %v3182 = vsel %vm1081, %v3177, %v3181
      %v3184 = vshrl.u32 %v3096, 16
      %v3186 = vrot.slane %v3184, 4
      %v3187 = vshll.u32 %v3096, 16
      %v3189 = vrot.slane %v3187, 5
      %v3190 = vor.u32 %v3186, %v3189
      %v3191 = vrot.slane %v3190, 4
      %v3193 = vshll.u32 %v3097, 16
      %v3195 = vrot.slane %v3193, 5
      %v3196 = vsel %vm1081, %v3191, %v3195
      %v3197 = vshrl.u32 %v3097, 16
      %v3199 = vrot.slane %v3197, 4
      %v3200 = vor.u32 %v3199, %v3195
      %v3201 = vrot.slane %v3200, 4
      %v3203 = vshll.u32 %v3098, 16
      %v3205 = vrot.slane %v3203, 5
      %v3206 = vsel %vm1081, %v3201, %v3205
      %v3208 = vshrl.u32 %v3099, 16
      %v3210 = vrot.slane %v3208, 4
      %v3211 = vshll.u32 %v3099, 16
      %v3213 = vrot.slane %v3211, 5
      %v3214 = vor.u32 %v3210, %v3213
      %v3215 = vrot.slane %v3214, 4
      %v3217 = vshll.u32 %v3100, 16
      %v3219 = vrot.slane %v3217, 5
      %v3220 = vsel %vm1081, %v3215, %v3219
      %v3221 = vshrl.u32 %v3100, 16
      %v3223 = vrot.slane %v3221, 4
      %v3224 = vor.u32 %v3223, %v3219
      %v3225 = vrot.slane %v3224, 4
      %v3227 = vshll.u32 %v3101, 16
      %v3229 = vrot.slane %v3227, 5
      %v3230 = vsel %vm1081, %v3225, %v3229
      %v3232 = vshrl.u32 %v3102, 16
      %v3234 = vrot.slane %v3232, 4
      %v3235 = vshll.u32 %v3102, 16
      %v3237 = vrot.slane %v3235, 5
      %v3238 = vor.u32 %v3234, %v3237
      %v3239 = vrot.slane %v3238, 4
      %v3241 = vshll.u32 %v3103, 16
      %v3243 = vrot.slane %v3241, 5
      %v3244 = vsel %vm1081, %v3239, %v3243
      %v3245 = vshrl.u32 %v3103, 16
      %v3247 = vrot.slane %v3245, 4
      %v3248 = vor.u32 %v3247, %v3243
      %v3249 = vrot.slane %v3248, 4
      %v3251 = vshll.u32 %v3104, 16
      %v3253 = vrot.slane %v3251, 5
      %v3254 = vsel %vm1081, %v3249, %v3253
      %v3256 = vshrl.u32 %v3105, 16
      %v3258 = vrot.slane %v3256, 4
      %v3259 = vshll.u32 %v3105, 16
      %v3261 = vrot.slane %v3259, 5
      %v3262 = vor.u32 %v3258, %v3261
      %v3263 = vrot.slane %v3262, 4
      %v3265 = vshll.u32 %v3106, 16
      %v3267 = vrot.slane %v3265, 5
      %v3268 = vsel %vm1081, %v3263, %v3267
      %v3269 = vshrl.u32 %v3106, 16
      %v3271 = vrot.slane %v3269, 4
      %v3272 = vor.u32 %v3271, %v3267
      %v3273 = vrot.slane %v3272, 4
      %v3275 = vshll.u32 %v3107, 16
      %v3277 = vrot.slane %v3275, 5
      %v3278 = vsel %vm1081, %v3273, %v3277
      %v3280 = vshrl.u32 %v3108, 16
      %v3282 = vrot.slane %v3280, 4
      %v3283 = vshll.u32 %v3108, 16
      %v3285 = vrot.slane %v3283, 5
      %v3286 = vor.u32 %v3282, %v3285
      %v3287 = vrot.slane %v3286, 4
      %v3289 = vshll.u32 %v3109, 16
      %v3291 = vrot.slane %v3289, 5
      %v3292 = vsel %vm1081, %v3287, %v3291
      %v3293 = vshrl.u32 %v3109, 16
      %v3295 = vrot.slane %v3293, 4
      %v3296 = vor.u32 %v3295, %v3291
      %v3297 = vrot.slane %v3296, 4
      %v3299 = vshll.u32 %v3110, 16
      %v3301 = vrot.slane %v3299, 5
      %v3302 = vsel %vm1081, %v3297, %v3301
      %s3303 = scalar_lea.vmem %s1, 256
      %v3304 = vld [vmem:[%s3303] sm:$0xf]
      %v3305 = vld [vmem:[%s3303 + $0x4] sm:$0xf]
      %v3306 = vld [vmem:[%s3303 + $0x8] sm:$0xf]
      %v3307 = vld [vmem:[%s3303 + $0xc] sm:$0xf]
      %v3308 = vld [vmem:[%s3303 + $0x10] sm:$0xf]
      %v3309 = vld [vmem:[%s3303 + $0x14] sm:$0xf]
      %v3310 = vld [vmem:[%s3303 + $0x18] sm:$0xf]
      %v3311 = vld [vmem:[%s3303 + $0x1c] sm:$0xf]
      %v3312 = vunpack.c.l.b16 %v3124
      %v3313 = vunpack.c.l.b16 %v3134
      %v3314 = vunpack.c.l.b16 %v3148
      %v3315 = vunpack.c.l.b16 %v3158
      %v3316 = vunpack.c.l.b16 %v3172
      %v3317 = vunpack.c.l.b16 %v3182
      %v3318 = vunpack.c.l.b16 %v3196
      %v3319 = vunpack.c.l.b16 %v3206
      %v3320 = vunpack.c.l.b16 %v3220
      %v3321 = vunpack.c.l.b16 %v3230
      %v3322 = vunpack.c.l.b16 %v3244
      %v3323 = vunpack.c.l.b16 %v3254
      %v3324 = vunpack.c.l.b16 %v3268
      %v3325 = vunpack.c.l.b16 %v3278
      %v3326 = vunpack.c.l.b16 %v3292
      %v3327 = vunpack.c.l.b16 %v3302
      %v3328 = vpack.c.b16 %v3313, %v3312
      %v3329 = vpack.c.b16 %v3315, %v3314
      %v3330 = vpack.c.b16 %v3317, %v3316
      %v3331 = vpack.c.b16 %v3319, %v3318
      %v3332 = vpack.c.b16 %v3321, %v3320
      %v3333 = vpack.c.b16 %v3323, %v3322
      %v3334 = vpack.c.b16 %v3325, %v3324
      %v3335 = vpack.c.b16 %v3327, %v3326
      %v3344 = vunpack.c.l.b16 %v3304
      %v3345 = vunpack.c.l.b16 %v3305
      %v3346 = vunpack.c.l.b16 %v3306
      %v3347 = vunpack.c.l.b16 %v3307
      %v3348 = vunpack.c.l.b16 %v3308
      %v3349 = vunpack.c.l.b16 %v3309
      %v3350 = vunpack.c.l.b16 %v3310
      %v3351 = vunpack.c.l.b16 %v3311
      %v3352 = vpack.c.b16 %v3345, %v3344
      %v3353 = vpack.c.b16 %v3347, %v3346
      %v3354 = vpack.c.b16 %v3349, %v3348
      %v3355 = vpack.c.b16 %v3351, %v3350
      %v3361 = vsel %vm764, %v3328, 0
      %v3364 = vsel %vm764, %v3329, 0
      %v3367 = vsel %vm764, %v3330, 0
      %v3370 = vsel %vm764, %v3331, 0
      %v3373 = vsel %vm764, %v3332, 0
      %v3376 = vsel %vm764, %v3333, 0
      %v3379 = vsel %vm764, %v3334, 0
      %v3382 = vsel %vm764, %v3335, 0
      %3384 = vmatprep.subr.bf16.mxu0 0
      %3385 = vmatpush1.bf16.msra.mxu0 0
      %3386 = vmatprep.subr.bf16.mxu0 0
      %3387 = vmatpush1.bf16.msra.mxu0 0
      %3388 = vmatprep.subr.bf16.mxu0 0
      %3389 = vmatpush1.bf16.msra.mxu0 0
      %3390 = vmatprep.subr.bf16.mxu0 0
      %3391 = vmatpush1.bf16.msra.mxu0 0
      %3392 = vmatprep.subr.bf16.mxu0 0
      %3393 = vmatpush1.bf16.msra.mxu0 %v3355
      %3394 = vmatprep.subr.bf16.mxu0 0
      %3395 = vmatpush1.bf16.msra.mxu0 %v3354
      %3396 = vmatprep.subr.bf16.mxu0 0
      %3397 = vmatpush1.bf16.msra.mxu0 %v3353
      %3398 = vmatprep.subr.bf16.mxu0 0
      %3399 = vmatpush1.bf16.msra.mxu0 %v3352
      %3400 = vmatprep.subr.bf16.mxu0 0
      %3401 = vmatpush2.bf16.msra.mxu0 0
      %3402 = vmatprep.subr.bf16.mxu0 0
      %3403 = vmatpush2.bf16.msra.mxu0 0
      %3404 = vmatprep.subr.bf16.mxu0 0
      %3405 = vmatpush2.bf16.msra.mxu0 0
      %3406 = vmatprep.subr.bf16.mxu0 0
      %3407 = vmatpush2.bf16.msra.mxu0 0
      %3408 = vmatprep.subr.bf16.mxu0 0
      %3409 = vmatpush2.bf16.msra.mxu0 0
      %3410 = vmatprep.subr.bf16.mxu0 0
      %3411 = vmatpush2.bf16.msra.mxu0 0
      %3412 = vmatprep.subr.bf16.mxu0 0
      %3413 = vmatpush2.bf16.msra.mxu0 0
      %3414 = vmatprep.subr.bf16.mxu0 0
      %3415 = vmatpush2.bf16.msra.mxu0 0
      %3416 = vmatprep.mubr.bf16.mxu0 0
      %3417 = vmatmul.mubr.bf16.gmra.mxu0 %v3361
      %v3418 = vpop.f32.mrf.mxu0
      %v3419 = vadd.f32 0.0, %v3418
      %v3420 = vpop.f32.mrf.mxu0
      %v3421 = vpop.f32.mrf.mxu0
      %v3422 = vadd.f32 0.0, %v3421
      %v3423 = vpop.f32.mrf.mxu0
      %3424 = vmatprep.mubr.bf16.mxu0 0
      %3425 = vmatmul.mubr.bf16.gmra.mxu0 %v3364
      %v3426 = vpop.f32.mrf.mxu0
      %v3427 = vadd.f32 0.0, %v3426
      %v3428 = vpop.f32.mrf.mxu0
      %v3429 = vpop.f32.mrf.mxu0
      %v3430 = vadd.f32 0.0, %v3429
      %v3431 = vpop.f32.mrf.mxu0
      %3432 = vmatprep.mubr.bf16.mxu0 0
      %3433 = vmatmul.mubr.bf16.gmra.mxu0 %v3367
      %v3434 = vpop.f32.mrf.mxu0
      %v3435 = vadd.f32 0.0, %v3434
      %v3436 = vpop.f32.mrf.mxu0
      %v3437 = vpop.f32.mrf.mxu0
      %v3438 = vadd.f32 0.0, %v3437
      %v3439 = vpop.f32.mrf.mxu0
      %3440 = vmatprep.mubr.bf16.mxu0 0
      %3441 = vmatmul.mubr.bf16.gmra.mxu0 %v3370
      %v3442 = vpop.f32.mrf.mxu0
      %v3443 = vadd.f32 0.0, %v3442
      %v3444 = vpop.f32.mrf.mxu0
      %v3445 = vpop.f32.mrf.mxu0
      %v3446 = vadd.f32 0.0, %v3445
      %v3447 = vpop.f32.mrf.mxu0
      %3448 = vmatprep.mubr.bf16.mxu0 0
      %3449 = vmatmul.mubr.bf16.gmra.mxu0 %v3373
      %v3450 = vpop.f32.mrf.mxu0
      %v3451 = vadd.f32 0.0, %v3450
      %v3452 = vpop.f32.mrf.mxu0
      %v3453 = vpop.f32.mrf.mxu0
      %v3454 = vadd.f32 0.0, %v3453
      %v3455 = vpop.f32.mrf.mxu0
      %3456 = vmatprep.mubr.bf16.mxu0 0
      %3457 = vmatmul.mubr.bf16.gmra.mxu0 %v3376
      %v3458 = vpop.f32.mrf.mxu0
      %v3459 = vadd.f32 0.0, %v3458
      %v3460 = vpop.f32.mrf.mxu0
      %v3461 = vpop.f32.mrf.mxu0
      %v3462 = vadd.f32 0.0, %v3461
      %v3463 = vpop.f32.mrf.mxu0
      %3464 = vmatprep.mubr.bf16.mxu0 0
      %3465 = vmatmul.mubr.bf16.gmra.mxu0 %v3379
      %v3466 = vpop.f32.mrf.mxu0
      %v3467 = vadd.f32 0.0, %v3466
      %v3468 = vpop.f32.mrf.mxu0
      %v3469 = vpop.f32.mrf.mxu0
      %v3470 = vadd.f32 0.0, %v3469
      %v3471 = vpop.f32.mrf.mxu0
      %3472 = vmatprep.mubr.bf16.mxu0 0
      %3473 = vmatmul.mubr.bf16.gmra.mxu0 %v3382
      %v3474 = vpop.f32.mrf.mxu0
      %v3475 = vadd.f32 0.0, %v3474
      %v3476 = vpop.f32.mrf.mxu0
      %v3477 = vpop.f32.mrf.mxu0
      %v3478 = vadd.f32 0.0, %v3477
      %v3479 = vpop.f32.mrf.mxu0
      %3480 = vdwg.mxu0
      %v3481 = vadd.f32 %v3071, %v3419
      %v3482 = vadd.f32 %v3072, %v3422
      %v3483 = vadd.f32 %v3073, %v3427
      %v3484 = vadd.f32 %v3074, %v3430
      %v3485 = vadd.f32 %v3075, %v3435
      %v3486 = vadd.f32 %v3076, %v3438
      %v3487 = vadd.f32 %v3077, %v3443
      %v3488 = vadd.f32 %v3078, %v3446
      %v3489 = vadd.f32 %v3079, %v3451
      %v3490 = vadd.f32 %v3080, %v3454
      %v3491 = vadd.f32 %v3081, %v3459
      %v3492 = vadd.f32 %v3082, %v3462
      %v3493 = vadd.f32 %v3083, %v3467
      %v3494 = vadd.f32 %v3084, %v3470
      %v3495 = vadd.f32 %v3085, %v3475
      %v3496 = vadd.f32 %v3086, %v3478
      %v3497 = vpack.c.bf16 %v3482, %v3481
      %v3498 = vpack.c.bf16 %v3484, %v3483
      %v3499 = vpack.c.bf16 %v3486, %v3485
      %v3500 = vpack.c.bf16 %v3488, %v3487
      %v3501 = vpack.c.bf16 %v3490, %v3489
      %v3502 = vpack.c.bf16 %v3492, %v3491
      %v3503 = vpack.c.bf16 %v3494, %v3493
      %v3504 = vpack.c.bf16 %v3496, %v3495
      %v3513 = vunpack.c.l.b16 %v3497
      %v3514 = vunpack.c.h.b16 %v3497
      %v3515 = vunpack.c.l.b16 %v3498
      %v3516 = vunpack.c.h.b16 %v3498
      %v3517 = vunpack.c.l.b16 %v3499
      %v3518 = vunpack.c.h.b16 %v3499
      %v3519 = vunpack.c.l.b16 %v3500
      %v3520 = vunpack.c.h.b16 %v3500
      %v3521 = vunpack.c.l.b16 %v3501
      %v3522 = vunpack.c.h.b16 %v3501
      %v3523 = vunpack.c.l.b16 %v3502
      %v3524 = vunpack.c.h.b16 %v3502
      %v3525 = vunpack.c.l.b16 %v3503
      %v3526 = vunpack.c.h.b16 %v3503
      %v3527 = vunpack.c.l.b16 %v3504
      %v3528 = vunpack.c.h.b16 %v3504
      %v3529 = vpack.c.b16 %v3513, %v3513
      %v3530 = vpack.c.b16 %v3514, %v3514
      %v3531 = vpack.c.b16 %v3515, %v3515
      %v3532 = vpack.c.b16 %v3516, %v3516
      %v3533 = vpack.c.b16 %v3517, %v3517
      %v3534 = vpack.c.b16 %v3518, %v3518
      %v3535 = vpack.c.b16 %v3519, %v3519
      %v3536 = vpack.c.b16 %v3520, %v3520
      %v3537 = vpack.c.b16 %v3521, %v3521
      %v3538 = vpack.c.b16 %v3522, %v3522
      %v3539 = vpack.c.b16 %v3523, %v3523
      %v3540 = vpack.c.b16 %v3524, %v3524
      %v3541 = vpack.c.b16 %v3525, %v3525
      %v3542 = vpack.c.b16 %v3526, %v3526
      %v3543 = vpack.c.b16 %v3527, %v3527
      %v3544 = vpack.c.b16 %v3528, %v3528
      %3561 = vst [vmem:[%s288] sm:$0xf] %v3529
      %3562 = vst [vmem:[%s288 + $0x4] sm:$0xf] %v3530
      %3563 = vst [vmem:[%s288 + $0x8] sm:$0xf] %v3531
      %3564 = vst [vmem:[%s288 + $0xc] sm:$0xf] %v3532
      %3565 = vst [vmem:[%s288 + $0x10] sm:$0xf] %v3533
      %3566 = vst [vmem:[%s288 + $0x14] sm:$0xf] %v3534
      %3567 = vst [vmem:[%s288 + $0x18] sm:$0xf] %v3535
      %3568 = vst [vmem:[%s288 + $0x1c] sm:$0xf] %v3536
      %3569 = vst [vmem:[%s288 + $0x20] sm:$0xf] %v3537
      %3570 = vst [vmem:[%s288 + $0x24] sm:$0xf] %v3538
      %3571 = vst [vmem:[%s288 + $0x28] sm:$0xf] %v3539
      %3572 = vst [vmem:[%s288 + $0x2c] sm:$0xf] %v3540
      %3573 = vst [vmem:[%s288 + $0x30] sm:$0xf] %v3541
      %3574 = vst [vmem:[%s288 + $0x34] sm:$0xf] %v3542
      %3575 = vst [vmem:[%s288 + $0x38] sm:$0xf] %v3543
      %3576 = vst [vmem:[%s288 + $0x3c] sm:$0xf] %v3544
      %v3577 = vadd.f32 %v3481, %v3482
      %v3578 = vadd.f32 %v3577, %v3483
      %v3579 = vadd.f32 %v3578, %v3484
      %v3580 = vadd.f32 %v3579, %v3485
      %v3581 = vadd.f32 %v3580, %v3486
      %v3582 = vadd.f32 %v3581, %v3487
      %v3583 = vadd.f32 %v3582, %v3488
      %v3584 = vadd.f32 %v3583, %v3489
      %v3585 = vadd.f32 %v3584, %v3490
      %v3586 = vadd.f32 %v3585, %v3491
      %v3587 = vadd.f32 %v3586, %v3492
      %v3588 = vadd.f32 %v3587, %v3493
      %v3589 = vadd.f32 %v3588, %v3494
      %v3590 = vadd.f32 %v3589, %v3495
      %v3591 = vadd.f32 %v3590, %v3496
      %v3592 = vmul.f32 %v3481, %v3481
      %v3593 = vmul.f32 %v3482, %v3482
      %v3594 = vmul.f32 %v3483, %v3483
      %v3595 = vmul.f32 %v3484, %v3484
      %v3596 = vmul.f32 %v3485, %v3485
      %v3597 = vmul.f32 %v3486, %v3486
      %v3598 = vmul.f32 %v3487, %v3487
      %v3599 = vmul.f32 %v3488, %v3488
      %v3600 = vmul.f32 %v3489, %v3489
      %v3601 = vmul.f32 %v3490, %v3490
      %v3602 = vmul.f32 %v3491, %v3491
      %v3603 = vmul.f32 %v3492, %v3492
      %v3604 = vmul.f32 %v3493, %v3493
      %v3605 = vmul.f32 %v3494, %v3494
      %v3606 = vmul.f32 %v3495, %v3495
      %v3607 = vmul.f32 %v3496, %v3496
      %v3608 = vadd.f32 %v3592, %v3593
      %v3609 = vadd.f32 %v3608, %v3594
      %v3610 = vadd.f32 %v3609, %v3595
      %v3611 = vadd.f32 %v3610, %v3596
      %v3612 = vadd.f32 %v3611, %v3597
      %v3613 = vadd.f32 %v3612, %v3598
      %v3614 = vadd.f32 %v3613, %v3599
      %v3615 = vadd.f32 %v3614, %v3600
      %v3616 = vadd.f32 %v3615, %v3601
      %v3617 = vadd.f32 %v3616, %v3602
      %v3618 = vadd.f32 %v3617, %v3603
      %v3619 = vadd.f32 %v3618, %v3604
      %v3620 = vadd.f32 %v3619, %v3605
      %v3621 = vadd.f32 %v3620, %v3606
      %v3622 = vadd.f32 %v3621, %v3607
      %p3623 = scmp.eq.s32.totalorder %s23, 0
      // Predicated region
      $region45: #{conv_block3d_forward.2} parent=35 // pred_check
        %p3624 = pneg %p3623
      $region46: #{conv_block3d_forward.2} parent=35 // pred_check_branch
        %3626 = sbr.rel (%p3624) target = $region48
      $region47: #{conv_block3d_forward.2} parent=35 // pred_region
        %3627 = vst [vmem:[%s293] sm:$0xff] %v3591
        %3628 = vst [vmem:[%s297] sm:$0xff] %v3622
      $region48: #{conv_block3d_forward.2} parent=35 // pred_fallthru
        _
      // Predicated region
      $region49: #{conv_block3d_forward.2} parent=35 // pred_check
        %p3629 = pneg %p441
      $region50: #{conv_block3d_forward.2} parent=35 // pred_check_branch
        %3631 = sbr.rel (%p3629) target = $region52
      $region51: #{conv_block3d_forward.2} parent=35 // pred_region
        %v3632 = vld [vmem:[%s293] sm:$0xff]
        %v3633 = vadd.f32 %v3632, %v3591
        %3634 = vst [vmem:[%s293] sm:$0xff] %v3633
        %v3635 = vld [vmem:[%s297] sm:$0xff]
        %v3636 = vadd.f32 %v3635, %v3622
        %3637 = vst [vmem:[%s297] sm:$0xff] %v3636
      $region52: #{conv_block3d_forward.2} parent=35 // pred_fallthru
        _
      %s3638 = smul.u32 8, %s23
      %p3639 = scmp.lt.s32.totalorder %s22, 1
      %s3640 = scalar_select %p3639, %s22, 1
      %p3641 = scmp.lt.s32.totalorder %s3638, 15
      %s3642 = scalar_select %p3641, %s3638, 15
      %s3643 = smul.addr %s3642, 2
      %s3644 = smul.addr %s3640, 32
      %s3645 = sadd.s32 %s3643, %s3644
      %s3646 = smul.addr %s3645, 4
      %s3647 = scalar_lea.vmem %s4, %s3646
      %p3648 = scmp.lt.s32.totalorder %s22, 1
      %s3649 = scalar_select %p3648, %s22, 1
      %s3650 = smul.addr %s3649, 8
      %s3651 = scalar_lea.vmem %s5, %s3650
      %p3652 = scmp.lt.s32.totalorder %s22, 1
      %s3653 = scalar_select %p3652, %s22, 1
      %s3654 = smul.addr %s3653, 8
      %s3655 = scalar_lea.vmem %s6, %s3654
      // Predicated region
      $region53: #{conv_block3d_forward.2} parent=35 // pred_check
        %p3656 = pneg %p139
      $region54: #{conv_block3d_forward.2} parent=35 // pred_check_branch
        %3658 = sbr.rel (%p3656) target = $region56
      $region55: #{conv_block3d_forward.2} parent=35 // pred_region
        %s3659 = smul.u32 8, %s23
      $region56: #{conv_block3d_forward.2} parent=35 // pred_fallthru
        _
      // Predicated region
      $region57: #{conv_block3d_forward.2} parent=35 // pred_check
        %p3660 = pneg %p165
      $region58: #{conv_block3d_forward.2} parent=35 // pred_check_branch
        %3662 = sbr.rel (%p3660) target = $region60
      $region59: #{conv_block3d_forward.2} parent=35 // pred_region
        _
      $region60: #{conv_block3d_forward.2} parent=35 // pred_fallthru
        _
      // Predicated region
      $region61: #{conv_block3d_forward.2} parent=35 // pred_check
        %p3663 = pneg %p191
      $region62: #{conv_block3d_forward.2} parent=35 // pred_check_branch
        %3665 = sbr.rel (%p3663) target = $region64
      $region63: #{conv_block3d_forward.2} parent=35 // pred_region
        _
      $region64: #{conv_block3d_forward.2} parent=35 // pred_fallthru
        _
    $region36: #{conv_block3d_forward.2} parent=5 // pred_fallthru
      _
    %p3666 = scmp.le.s32.totalorder 2, %s13
    // Predicated region
    $region65: #{conv_block3d_forward.2} parent=5 // pred_check
      %p3667 = pneg %p3666
    $region66: #{conv_block3d_forward.2} parent=5 // pred_check_branch
      %3669 = sbr.rel (%p3667) target = $region68
    $region67: #{conv_block3d_forward.2} parent=5 // pred_region
      %s3670 = ssub.s32 %s13, 2
      // Predicated region
      $region69: #{conv_block3d_forward.2} parent=67 // pred_check
        %p3671 = pneg %p145
      $region70: #{conv_block3d_forward.2} parent=67 // pred_check_branch
        %3673 = sbr.rel (%p3671) target = $region72
      $region71: #{conv_block3d_forward.2} parent=67 // pred_region
        %s3674 = smul.u32 8, %s25
        %p3675 = scmp.lt.s32.totalorder %s24, 1
        %s3676 = scalar_select %p3675, %s24, 1
        %p3677 = scmp.lt.s32.totalorder %s3674, 15
        %s3678 = scalar_select %p3677, %s3674, 15
        %s3679 = smul.addr %s3678, 2
        %s3680 = smul.addr %s3676, 32
        %s3681 = sadd.s32 %s3679, %s3680
        %s3682 = smul.addr %s3681, 4
        %s3683 = scalar_lea.vmem %s4, %s3682
      $region72: #{conv_block3d_forward.2} parent=67 // pred_fallthru
        _
      // Predicated region
      $region73: #{conv_block3d_forward.2} parent=67 // pred_check
        %p3684 = pneg %p171
      $region74: #{conv_block3d_forward.2} parent=67 // pred_check_branch
        %3686 = sbr.rel (%p3684) target = $region76
      $region75: #{conv_block3d_forward.2} parent=67 // pred_region
        %p3687 = scmp.lt.s32.totalorder %s24, 1
        %s3688 = scalar_select %p3687, %s24, 1
        %s3689 = smul.addr %s3688, 8
        %s3690 = scalar_lea.vmem %s5, %s3689
      $region76: #{conv_block3d_forward.2} parent=67 // pred_fallthru
        _
      // Predicated region
      $region77: #{conv_block3d_forward.2} parent=67 // pred_check
        %p3691 = pneg %p197
      $region78: #{conv_block3d_forward.2} parent=67 // pred_check_branch
        %3693 = sbr.rel (%p3691) target = $region80
      $region79: #{conv_block3d_forward.2} parent=67 // pred_region
        %p3694 = scmp.lt.s32.totalorder %s24, 1
        %s3695 = scalar_select %p3694, %s24, 1
        %s3696 = smul.addr %s3695, 8
        %s3697 = scalar_lea.vmem %s6, %s3696
      $region80: #{conv_block3d_forward.2} parent=67 // pred_fallthru
        _
    $region68: #{conv_block3d_forward.2} parent=5 // pred_fallthru
      _
  $region6: #{conv_block3d_forward.2} parent=0 // loop_footer
    %s17 = sadd.s32 1, %s13
  $region7: #{conv_block3d_forward.2} parent=0 // loop_footer_branch
    %12 = sbr.rel target = $region3
  $region8: #{conv_block3d_forward.2} parent=0 // loop_exit
    _

// kernel: conv_block3d_forward.3
$region0: #{conv_block3d_forward.3}
  #allocation0 [shape = 'u32[]', space=smem, size = 0x4, offset = 0x4, fixed_abs, tag = 'smem constant byte address 0x4 - core index']
  #allocation1 [shape = 'u32[144,128]{1,0:T(1,128)}', space=vmem, size = 0x12000, scoped, tag = 'internal scratch']
  #allocation2 [shape = 'bf16[10,26,128]{2,1,0:T(8,128)(2,1)}', space=vmem, size = 0x14000, scoped, tag = 'scratch operand']
  %s0 = inlined_call_operand.vmem [shape: bf16[2,16,16,128], index: 0, kind: input, shape index: {}]
  %s1 = inlined_call_operand.vmem [shape: bf16[9,128,128], index: 1, kind: input, shape index: {}]
  %s2 = inlined_call_operand.vmem [shape: f32[1,128], index: 2, kind: input, shape index: {}]
  %s3 = inlined_call_operand.vmem [shape: f32[1,128], index: 3, kind: input, shape index: {}]
  %s4 = inlined_call_operand.vmem [shape: bf16[2,16,16,128], index: 4, kind: output, shape index: {0}]
  %s5 = inlined_call_operand.vmem [shape: f32[16,128], index: 5, kind: output, shape index: {1}]
  %s6 = inlined_call_operand.vmem [shape: f32[16,128], index: 6, kind: output, shape index: {2}]
  %7 = xla_tuple %s4, %s5, %s6
  %s8 = sld [smem:[#allocation0]]
  $region81: #{conv_block3d_forward.3} parent=0
    _
  %s10 = ssub.s32 1, %s8
  %s11 = scalar_select 0, %s10, %s8
  loop: start=0, step=1, limit=6
  $region2: #{conv_block3d_forward.3} parent=0 // loop_pre_header
    _
  $region3: #{conv_block3d_forward.3} parent=0 // loop_header
    %s13 = sphi 0, %s17
    %p14 = scmp.ge.s32.totalorder %s13, 6
    %s20 = sphi 0, %s32
    %s21 = sphi 0, %s28
    %s22 = sphi 0, %s20
    %s23 = sphi 0, %s21
    %s24 = sphi 0, %s22
    %s25 = sphi 0, %s23
    %s35 = sphi 0, %s37
    %s38 = sphi 0, %s35
    %s39 = sphi 0, %s38
    %s55 = sphi 0, %s39
    %s59 = sphi 0, %s59
    %s61 = sphi 0, %s59
    %s62 = sphi 0, %s61
    %s76 = sphi 0, %s62
    %s80 = sphi 0, %s80
    %s82 = sphi 0, %s80
    %s83 = sphi 0, %s82
    %s97 = sphi 0, %s83
    %s101 = sphi 0, %s101
    %s103 = sphi 0, %s101
    %s104 = sphi 0, %s103
    %s118 = sphi 0, %s104
    %s126 = sphi 0, %s128
    %s129 = sphi 0, %s126
    %s130 = sphi 0, %s129
    %s146 = sphi 0, %s130
    %s152 = sphi 0, %s154
    %s155 = sphi 0, %s152
    %s156 = sphi 0, %s155
    %s172 = sphi 0, %s156
    %s178 = sphi 0, %s180
    %s181 = sphi 0, %s178
    %s182 = sphi 0, %s181
    %s198 = sphi 0, %s182
  $region4: #{conv_block3d_forward.3} parent=0 // loop_header_branch
    %16 = sbr.rel (%p14) target = $region8
  $region5: #{conv_block3d_forward.3} parent=0 // loop_body
    %s18 = ssub.s32 %s13, 1
    %s19 = ssub.s32 %s13, 2
    %s26 = sadd.s32 1, %s21
    %p27 = scmp.ge.s32.totalorder %s26, 2
    %s28 = scalar_select %p27, 0, %s26
    %s29 = sadd.s32 1, %s20
    %s30 = scalar_select %p27, %s29, %s20
    %p31 = scmp.ge.s32.totalorder %s30, 2
    %s32 = scalar_select %p31, 0, %s30
    %s33 = ssub.s32 %s20, %s32
    %p34 = scmp.eq.s32.totalorder %s33, 0
    %s36 = sadd.s32 %s35, 1
    %s37 = scalar_select %p34, %s35, %s36
    %p40 = pneg %p34
    %p41 = scmp.eq.s32.totalorder %s13, 3
    %p42 = por %p40, %p41
    %p43 = scmp.ne.s32.totalorder %s35, %s38
    %p44 = scmp.eq.s32.totalorder %s13, 0
    %p45 = por %p43, %p44
    %p46 = scmp.ne.s32.totalorder %s35, %s38
    %p47 = scmp.eq.s32.totalorder %s18, 3
    %p48 = por %p46, %p47
    %p49 = scmp.ne.s32.totalorder %s38, %s39
    %p50 = scmp.eq.s32.totalorder %s18, 0
    %p51 = por %p49, %p50
    %p52 = scmp.ne.s32.totalorder %s38, %s39
    %p53 = scmp.eq.s32.totalorder %s19, 3
    %p54 = por %p52, %p53
    %p56 = scmp.ne.s32.totalorder %s39, %s55
    %p57 = scmp.eq.s32.totalorder %s19, 0
    %p58 = por %p56, %p57
    %s60 = sadd.s32 %s59, 1
    %p63 = scmp.eq.s32.totalorder %s13, 3
    %p64 = scmp.ne.s32.totalorder %s59, %s61
    %p65 = scmp.eq.s32.totalorder %s13, 0
    %p66 = por %p64, %p65
    %p67 = scmp.ne.s32.totalorder %s59, %s61
    %p68 = scmp.eq.s32.totalorder %s18, 3
    %p69 = por %p67, %p68
    %p70 = scmp.ne.s32.totalorder %s61, %s62
    %p71 = scmp.eq.s32.totalorder %s18, 0
    %p72 = por %p70, %p71
    %p73 = scmp.ne.s32.totalorder %s61, %s62
    %p74 = scmp.eq.s32.totalorder %s19, 3
    %p75 = por %p73, %p74
    %p77 = scmp.ne.s32.totalorder %s62, %s76
    %p78 = scmp.eq.s32.totalorder %s19, 0
    %p79 = por %p77, %p78
    %s81 = sadd.s32 %s80, 1
    %p84 = scmp.eq.s32.totalorder %s13, 3
    %p85 = scmp.ne.s32.totalorder %s80, %s82
    %p86 = scmp.eq.s32.totalorder %s13, 0
    %p87 = por %p85, %p86
    %p88 = scmp.ne.s32.totalorder %s80, %s82
    %p89 = scmp.eq.s32.totalorder %s18, 3
    %p90 = por %p88, %p89
    %p91 = scmp.ne.s32.totalorder %s82, %s83
    %p92 = scmp.eq.s32.totalorder %s18, 0
    %p93 = por %p91, %p92
    %p94 = scmp.ne.s32.totalorder %s82, %s83
    %p95 = scmp.eq.s32.totalorder %s19, 3
    %p96 = por %p94, %p95
    %p98 = scmp.ne.s32.totalorder %s83, %s97
    %p99 = scmp.eq.s32.totalorder %s19, 0
    %p100 = por %p98, %p99
    %s102 = sadd.s32 %s101, 1
    %p105 = scmp.eq.s32.totalorder %s13, 3
    %p106 = scmp.ne.s32.totalorder %s101, %s103
    %p107 = scmp.eq.s32.totalorder %s13, 0
    %p108 = por %p106, %p107
    %p109 = scmp.ne.s32.totalorder %s101, %s103
    %p110 = scmp.eq.s32.totalorder %s18, 3
    %p111 = por %p109, %p110
    %p112 = scmp.ne.s32.totalorder %s103, %s104
    %p113 = scmp.eq.s32.totalorder %s18, 0
    %p114 = por %p112, %p113
    %p115 = scmp.ne.s32.totalorder %s103, %s104
    %p116 = scmp.eq.s32.totalorder %s19, 3
    %p117 = por %p115, %p116
    %p119 = scmp.ne.s32.totalorder %s104, %s118
    %p120 = scmp.eq.s32.totalorder %s19, 0
    %p121 = por %p119, %p120
    %s122 = ssub.s32 %s20, %s32
    %s123 = ssub.s32 %s21, %s28
    %s124 = sor.u32 %s122, %s123
    %p125 = scmp.eq.s32.totalorder %s124, 0
    %s127 = sadd.s32 %s126, 1
    %s128 = scalar_select %p125, %s126, %s127
    %p131 = pneg %p125
    %p132 = scmp.eq.s32.totalorder %s13, 3
    %p133 = por %p131, %p132
    %p134 = scmp.ne.s32.totalorder %s126, %s129
    %p135 = scmp.eq.s32.totalorder %s13, 0
    %p136 = por %p134, %p135
    %p137 = scmp.ne.s32.totalorder %s126, %s129
    %p138 = scmp.eq.s32.totalorder %s18, 3
    %p139 = por %p137, %p138
    %p140 = scmp.ne.s32.totalorder %s129, %s130
    %p141 = scmp.eq.s32.totalorder %s18, 0
    %p142 = por %p140, %p141
    %p143 = scmp.ne.s32.totalorder %s129, %s130
    %p144 = scmp.eq.s32.totalorder %s19, 3
    %p145 = por %p143, %p144
    %p147 = scmp.ne.s32.totalorder %s130, %s146
    %p148 = scmp.eq.s32.totalorder %s19, 0
    %p149 = por %p147, %p148
    %s150 = ssub.s32 %s20, %s32
    %p151 = scmp.eq.s32.totalorder %s150, 0
    %s153 = sadd.s32 %s152, 1
    %s154 = scalar_select %p151, %s152, %s153
    %p157 = pneg %p151
    %p158 = scmp.eq.s32.totalorder %s13, 3
    %p159 = por %p157, %p158
    %p160 = scmp.ne.s32.totalorder %s152, %s155
    %p161 = scmp.eq.s32.totalorder %s13, 0
    %p162 = por %p160, %p161
    %p163 = scmp.ne.s32.totalorder %s152, %s155
    %p164 = scmp.eq.s32.totalorder %s18, 3
    %p165 = por %p163, %p164
    %p166 = scmp.ne.s32.totalorder %s155, %s156
    %p167 = scmp.eq.s32.totalorder %s18, 0
    %p168 = por %p166, %p167
    %p169 = scmp.ne.s32.totalorder %s155, %s156
    %p170 = scmp.eq.s32.totalorder %s19, 3
    %p171 = por %p169, %p170
    %p173 = scmp.ne.s32.totalorder %s156, %s172
    %p174 = scmp.eq.s32.totalorder %s19, 0
    %p175 = por %p173, %p174
    %s176 = ssub.s32 %s20, %s32
    %p177 = scmp.eq.s32.totalorder %s176, 0
    %s179 = sadd.s32 %s178, 1
    %s180 = scalar_select %p177, %s178, %s179
    %p183 = pneg %p177
    %p184 = scmp.eq.s32.totalorder %s13, 3
    %p185 = por %p183, %p184
    %p186 = scmp.ne.s32.totalorder %s178, %s181
    %p187 = scmp.eq.s32.totalorder %s13, 0
    %p188 = por %p186, %p187
    %p189 = scmp.ne.s32.totalorder %s178, %s181
    %p190 = scmp.eq.s32.totalorder %s18, 3
    %p191 = por %p189, %p190
    %p192 = scmp.ne.s32.totalorder %s181, %s182
    %p193 = scmp.eq.s32.totalorder %s18, 0
    %p194 = por %p192, %p193
    %p195 = scmp.ne.s32.totalorder %s181, %s182
    %p196 = scmp.eq.s32.totalorder %s19, 3
    %p197 = por %p195, %p196
    %p199 = scmp.ne.s32.totalorder %s182, %s198
    %p200 = scmp.eq.s32.totalorder %s19, 0
    %p201 = por %p199, %p200
    %p202 = scmp.le.s32.totalorder 1, %s13
    %p203 = scmp.lt.s32.totalorder %s13, 5
    %p204 = pnand %p202, %p203
    %p205 = pneg %p204
    // Predicated region
    $region9: #{conv_block3d_forward.3} parent=5 // pred_check
      _
    $region10: #{conv_block3d_forward.3} parent=5 // pred_check_branch
      %207 = sbr.rel (%p204) target = $region12
    $region11: #{conv_block3d_forward.3} parent=5 // pred_region
      %s208 = ssub.s32 %s13, 1
      // Predicated region
      $region13: #{conv_block3d_forward.3} parent=11 // pred_check
        %p209 = pneg %p72
      $region14: #{conv_block3d_forward.3} parent=11 // pred_check_branch
        %211 = sbr.rel (%p209) target = $region16
      $region15: #{conv_block3d_forward.3} parent=11 // pred_region
        _
      $region16: #{conv_block3d_forward.3} parent=11 // pred_fallthru
        _
      // Predicated region
      $region17: #{conv_block3d_forward.3} parent=11 // pred_check
        %p212 = pneg %p93
      $region18: #{conv_block3d_forward.3} parent=11 // pred_check_branch
        %214 = sbr.rel (%p212) target = $region20
      $region19: #{conv_block3d_forward.3} parent=11 // pred_region
        _
      $region20: #{conv_block3d_forward.3} parent=11 // pred_fallthru
        _
      // Predicated region
      $region21: #{conv_block3d_forward.3} parent=11 // pred_check
        %p215 = pneg %p114
      $region22: #{conv_block3d_forward.3} parent=11 // pred_check_branch
        %217 = sbr.rel (%p215) target = $region24
      $region23: #{conv_block3d_forward.3} parent=11 // pred_region
        _
      $region24: #{conv_block3d_forward.3} parent=11 // pred_fallthru
        _
    $region12: #{conv_block3d_forward.3} parent=5 // pred_fallthru
      _
    %p218 = scmp.lt.s32.totalorder %s13, 4
    // Predicated region
    $region25: #{conv_block3d_forward.3} parent=5 // pred_check
      %p219 = pneg %p218
    $region26: #{conv_block3d_forward.3} parent=5 // pred_check_branch
      %221 = sbr.rel (%p219) target = $region28
    $region27: #{conv_block3d_forward.3} parent=5 // pred_region
      // Predicated region
      $region29: #{conv_block3d_forward.3} parent=27 // pred_check
        %p222 = pneg %p45
      $region30: #{conv_block3d_forward.3} parent=27 // pred_check_branch
        %224 = sbr.rel (%p222) target = $region32
      $region31: #{conv_block3d_forward.3} parent=27 // pred_region
        %p225 = scmp.lt.s32.totalorder %s20, 1
        %s226 = scalar_select %p225, %s20, 1
        %s227 = smul.addr %s226, 32
        %s228 = smul.addr %s227, 4
        %s229 = scalar_lea.vmem %s0, %s228
      $region32: #{conv_block3d_forward.3} parent=27 // pred_fallthru
        _
    $region28: #{conv_block3d_forward.3} parent=5 // pred_fallthru
      _
    %p230 = scmp.le.s32.totalorder 1, %s13
    %p231 = scmp.lt.s32.totalorder %s13, 5
    %p232 = pnand %p230, %p231
    %p233 = pneg %p232
    // Predicated region
    $region33: #{conv_block3d_forward.3} parent=5 // pred_check
      _
    $region34: #{conv_block3d_forward.3} parent=5 // pred_check_branch
      %235 = sbr.rel (%p232) target = $region36
    $region35: #{conv_block3d_forward.3} parent=5 // pred_region
      %s236 = ssub.s32 %s13, 1
      %p237 = scmp.lt.s32.totalorder %s22, 1
      %s238 = scalar_select %p237, %s22, 1
      %s239 = smul.addr %s238, 32
      %s240 = smul.addr %s239, 4
      %s241 = scalar_lea.vmem %s0, %s240
      %p242 = pneg %p51
      %p243 = pneg %p48
      %p244 = pneg %p72
      %p245 = pneg %p69
      %p246 = pneg %p93
      %p247 = pneg %p90
      %p248 = pneg %p114
      %p249 = pneg %p111
      %p250 = pneg %p142
      %p251 = pneg %p139
      %s252 = smul.u32 8, %s23
      %p253 = scmp.lt.s32.totalorder %s22, 1
      %s254 = scalar_select %p253, %s22, 1
      %p255 = scmp.lt.s32.totalorder %s252, 15
      %s256 = scalar_select %p255, %s252, 15
      %s257 = smul.addr %s256, 2
      %s258 = smul.addr %s254, 32
      %s259 = sadd.s32 %s257, %s258
      %s260 = smul.addr %s259, 4
      %s261 = scalar_lea.vmem %s4, %s260
      %p262 = pneg %p168
      %p263 = pneg %p165
      %p264 = scmp.lt.s32.totalorder %s22, 1
      %s265 = scalar_select %p264, %s22, 1
      %s266 = smul.addr %s265, 8
      %s267 = scalar_lea.vmem %s5, %s266
      %p268 = pneg %p194
      %p269 = pneg %p191
      %p270 = scmp.lt.s32.totalorder %s22, 1
      %s271 = scalar_select %p270, %s22, 1
      %s272 = smul.addr %s271, 8
      %s273 = scalar_lea.vmem %s6, %s272
      %p274 = scmp.lt.s32.totalorder %s22, 1
      %s275 = scalar_select %p274, %s22, 1
      %s276 = smul.addr %s275, 32
      %s277 = smul.addr %s276, 4
      %s278 = scalar_lea.vmem %s0, %s277
      %s279 = smul.u32 8, %s23
      %p280 = scmp.lt.s32.totalorder %s22, 1
      %s281 = scalar_select %p280, %s22, 1
      %p282 = scmp.lt.s32.totalorder %s279, 15
      %s283 = scalar_select %p282, %s279, 15
      %s284 = smul.addr %s283, 2
      %s285 = smul.addr %s281, 32
      %s286 = sadd.s32 %s284, %s285
      %s287 = smul.addr %s286, 4
      %s288 = scalar_lea.vmem %s4, %s287
      %s289 = smul.u32 8, %s23
      %p290 = scmp.lt.s32.totalorder %s22, 1
      %s291 = scalar_select %p290, %s22, 1
      %s292 = smul.addr %s291, 8
      %s293 = scalar_lea.vmem %s5, %s292
      %p294 = scmp.lt.s32.totalorder %s22, 1
      %s295 = scalar_select %p294, %s22, 1
      %s296 = smul.addr %s295, 8
      %s297 = scalar_lea.vmem %s6, %s296
      %s299 = smul.u32 %s23, 8
      %v300 = vld [vmem:[%s2] sm:$0x1]
      %v301 = vld [vmem:[%s3] sm:$0x1]
      %302 = vst [vmem:[#allocation2] sm:$0xf] 0
      %303 = vst [vmem:[#allocation2 + $0x4] sm:$0xf] 0
      %304 = vst [vmem:[#allocation2 + $0x8] sm:$0xf] 0
      %305 = vst [vmem:[#allocation2 + $0xc] sm:$0x1] 0
      %306 = vst [vmem:[#allocation2 + $0x10] sm:$0xf] 0
      %307 = vst [vmem:[#allocation2 + $0x14] sm:$0xf] 0
      %308 = vst [vmem:[#allocation2 + $0x18] sm:$0xf] 0
      %309 = vst [vmem:[#allocation2 + $0x1c] sm:$0x1] 0
      %310 = vst [vmem:[#allocation2 + $0x20] sm:$0xf] 0
      %311 = vst [vmem:[#allocation2 + $0x24] sm:$0xf] 0
      %312 = vst [vmem:[#allocation2 + $0x28] sm:$0xf] 0
      %313 = vst [vmem:[#allocation2 + $0x2c] sm:$0x1] 0
      %314 = vst [vmem:[#allocation2 + $0x30] sm:$0xf] 0
      %315 = vst [vmem:[#allocation2 + $0x34] sm:$0xf] 0
      %316 = vst [vmem:[#allocation2 + $0x38] sm:$0xf] 0
      %317 = vst [vmem:[#allocation2 + $0x3c] sm:$0x1] 0
      %318 = vst [vmem:[#allocation2 + $0x40] sm:$0xf] 0
      %319 = vst [vmem:[#allocation2 + $0x44] sm:$0xf] 0
      %320 = vst [vmem:[#allocation2 + $0x48] sm:$0xf] 0
      %321 = vst [vmem:[#allocation2 + $0x4c] sm:$0x1] 0
      %322 = vst [vmem:[#allocation2 + $0x50] sm:$0xf] 0
      %323 = vst [vmem:[#allocation2 + $0x54] sm:$0xf] 0
      %324 = vst [vmem:[#allocation2 + $0x58] sm:$0xf] 0
      %325 = vst [vmem:[#allocation2 + $0x5c] sm:$0x1] 0
      %326 = vst [vmem:[#allocation2 + $0x60] sm:$0xf] 0
      %327 = vst [vmem:[#allocation2 + $0x64] sm:$0xf] 0
      %328 = vst [vmem:[#allocation2 + $0x68] sm:$0xf] 0
      %329 = vst [vmem:[#allocation2 + $0x6c] sm:$0x1] 0
      %330 = vst [vmem:[#allocation2 + $0x70] sm:$0xf] 0
      %331 = vst [vmem:[#allocation2 + $0x74] sm:$0xf] 0
      %332 = vst [vmem:[#allocation2 + $0x78] sm:$0xf] 0
      %333 = vst [vmem:[#allocation2 + $0x7c] sm:$0x1] 0
      %334 = vst [vmem:[#allocation2 + $0x80] sm:$0xf] 0
      %335 = vst [vmem:[#allocation2 + $0x84] sm:$0xf] 0
      %336 = vst [vmem:[#allocation2 + $0x88] sm:$0xf] 0
      %337 = vst [vmem:[#allocation2 + $0x8c] sm:$0x1] 0
      %338 = vst [vmem:[#allocation2 + $0x90] sm:$0xf] 0
      %339 = vst [vmem:[#allocation2 + $0x94] sm:$0xf] 0
      %340 = vst [vmem:[#allocation2 + $0x98] sm:$0xf] 0
      %341 = vst [vmem:[#allocation2 + $0x9c] sm:$0x1] 0
      %s342 = smul.u32 %s299, 2
      %s343 = smul.addr %s342, 4
      %s344 = scalar_lea.vmem %s278, %s343
      %v345 = vld [vmem:[%s344] sm:$0xf]
      %v346 = vld [vmem:[%s344 + $0x4] sm:$0xf]
      %v347 = vld [vmem:[%s344 + $0x8] sm:$0xf]
      %v348 = vld [vmem:[%s344 + $0xc] sm:$0xf]
      %v349 = vld [vmem:[%s344 + $0x10] sm:$0xf]
      %v350 = vld [vmem:[%s344 + $0x14] sm:$0xf]
      %v351 = vld [vmem:[%s344 + $0x18] sm:$0xf]
      %v352 = vld [vmem:[%s344 + $0x1c] sm:$0xf]
      %v353 = vld [vmem:[%s344 + $0x20] sm:$0xf]
      %v354 = vld [vmem:[%s344 + $0x24] sm:$0xf]
      %v355 = vld [vmem:[%s344 + $0x28] sm:$0xf]
      %v356 = vld [vmem:[%s344 + $0x2c] sm:$0xf]
      %v357 = vld [vmem:[%s344 + $0x30] sm:$0xf]
      %v358 = vld [vmem:[%s344 + $0x34] sm:$0xf]
      %v359 = vld [vmem:[%s344 + $0x38] sm:$0xf]
      %v360 = vld [vmem:[%s344 + $0x3c] sm:$0xf]
      %v361 = vunpack.c.l.bf16 %v345
      %v362 = vunpack.c.l.bf16 %v346
      %v363 = vunpack.c.l.bf16 %v347
      %v364 = vunpack.c.l.bf16 %v348
      %v365 = vunpack.c.l.bf16 %v349
      %v366 = vunpack.c.l.bf16 %v350
      %v367 = vunpack.c.l.bf16 %v351
      %v368 = vunpack.c.l.bf16 %v352
      %v369 = vunpack.c.l.bf16 %v353
      %v370 = vunpack.c.l.bf16 %v354
      %v371 = vunpack.c.l.bf16 %v355
      %v372 = vunpack.c.l.bf16 %v356
      %v373 = vunpack.c.l.bf16 %v357
      %v374 = vunpack.c.l.bf16 %v358
      %v375 = vunpack.c.l.bf16 %v359
      %v376 = vunpack.c.l.bf16 %v360
      %v378 = vlaneseq
      %v379 = vshrl.u32 %v378, 7
      %v380 = vsub.s32 0, %v379
      %v381 = vrot.slane %v300, %v380
      %v383 = vmul.f32 %v361, %v381
      %v384 = vmul.f32 %v362, %v381
      %v385 = vmul.f32 %v363, %v381
      %v386 = vmul.f32 %v364, %v381
      %v387 = vmul.f32 %v365, %v381
      %v388 = vmul.f32 %v366, %v381
      %v389 = vmul.f32 %v367, %v381
      %v390 = vmul.f32 %v368, %v381
      %v391 = vmul.f32 %v369, %v381
      %v392 = vmul.f32 %v370, %v381
      %v393 = vmul.f32 %v371, %v381
      %v394 = vmul.f32 %v372, %v381
      %v395 = vmul.f32 %v373, %v381
      %v396 = vmul.f32 %v374, %v381
      %v397 = vmul.f32 %v375, %v381
      %v398 = vmul.f32 %v376, %v381
      %v400 = vlaneseq
      %v401 = vshrl.u32 %v400, 7
      %v402 = vsub.s32 0, %v401
      %v403 = vrot.slane %v301, %v402
      %v405 = vadd.f32 %v383, %v403
      %v406 = vadd.f32 %v384, %v403
      %v407 = vadd.f32 %v385, %v403
      %v408 = vadd.f32 %v386, %v403
      %v409 = vadd.f32 %v387, %v403
      %v410 = vadd.f32 %v388, %v403
      %v411 = vadd.f32 %v389, %v403
      %v412 = vadd.f32 %v390, %v403
      %v413 = vadd.f32 %v391, %v403
      %v414 = vadd.f32 %v392, %v403
      %v415 = vadd.f32 %v393, %v403
      %v416 = vadd.f32 %v394, %v403
      %v417 = vadd.f32 %v395, %v403
      %v418 = vadd.f32 %v396, %v403
      %v419 = vadd.f32 %v397, %v403
      %v420 = vadd.f32 %v398, %v403
      %v421 = vmax.f32 %v405, 0.0
      %v422 = vmax.f32 %v406, 0.0
      %v423 = vmax.f32 %v407, 0.0
      %v424 = vmax.f32 %v408, 0.0
      %v425 = vmax.f32 %v409, 0.0
      %v426 = vmax.f32 %v410, 0.0
      %v427 = vmax.f32 %v411, 0.0
      %v428 = vmax.f32 %v412, 0.0
      %v429 = vmax.f32 %v413, 0.0
      %v430 = vmax.f32 %v414, 0.0
      %v431 = vmax.f32 %v415, 0.0
      %v432 = vmax.f32 %v416, 0.0
      %v433 = vmax.f32 %v417, 0.0
      %v434 = vmax.f32 %v418, 0.0
      %v435 = vmax.f32 %v419, 0.0
      %v436 = vmax.f32 %v420, 0.0
      %v437 = vpack.c.bf16 %v422, %v421
      %v438 = vpack.c.bf16 %v424, %v423
      %v439 = vpack.c.bf16 %v426, %v425
      %v440 = vpack.c.bf16 %v428, %v427
      %v441 = vpack.c.bf16 %v430, %v429
      %v442 = vpack.c.bf16 %v432, %v431
      %v443 = vpack.c.bf16 %v434, %v433
      %v444 = vpack.c.bf16 %v436, %v435
      %v453 = vunpack.c.l.b16 %v437
      %v454 = vunpack.c.h.b16 %v437
      %v455 = vunpack.c.l.b16 %v438
      %v456 = vunpack.c.h.b16 %v438
      %v457 = vunpack.c.l.b16 %v439
      %v458 = vunpack.c.h.b16 %v439
      %v459 = vunpack.c.l.b16 %v440
      %v460 = vunpack.c.h.b16 %v440
      %v461 = vunpack.c.l.b16 %v441
      %v462 = vunpack.c.h.b16 %v441
      %v463 = vunpack.c.l.b16 %v442
      %v464 = vunpack.c.h.b16 %v442
      %v465 = vunpack.c.l.b16 %v443
      %v466 = vunpack.c.h.b16 %v443
      %v467 = vunpack.c.l.b16 %v444
      %v468 = vunpack.c.h.b16 %v444
      %v469 = vpack.c.b16 %v453, %v453
      %v470 = vpack.c.b16 %v454, %v454
      %v471 = vpack.c.b16 %v455, %v455
      %v472 = vpack.c.b16 %v456, %v456
      %v473 = vpack.c.b16 %v457, %v457
      %v474 = vpack.c.b16 %v458, %v458
      %v475 = vpack.c.b16 %v459, %v459
      %v476 = vpack.c.b16 %v460, %v460
      %v477 = vpack.c.b16 %v461, %v461
      %v478 = vpack.c.b16 %v462, %v462
      %v479 = vpack.c.b16 %v463, %v463
      %v480 = vpack.c.b16 %v464, %v464
      %v481 = vpack.c.b16 %v465, %v465
      %v482 = vpack.c.b16 %v466, %v466
      %v483 = vpack.c.b16 %v467, %v467
      %v484 = vpack.c.b16 %v468, %v468
      %s501 = scalar_lea.vmem [#allocation2], 16
      %502 = vst [vmem:[%s501 + $0x4] sm:$0xf] %v469
      %503 = vst [vmem:[%s501 + $0x8] sm:$0xf] %v470
      %504 = vst [vmem:[%s501 + $0x14] sm:$0xf] %v471
      %505 = vst [vmem:[%s501 + $0x18] sm:$0xf] %v472
      %506 = vst [vmem:[%s501 + $0x24] sm:$0xf] %v473
      %507 = vst [vmem:[%s501 + $0x28] sm:$0xf] %v474
      %508 = vst [vmem:[%s501 + $0x34] sm:$0xf] %v475
      %509 = vst [vmem:[%s501 + $0x38] sm:$0xf] %v476
      %510 = vst [vmem:[%s501 + $0x44] sm:$0xf] %v477
      %511 = vst [vmem:[%s501 + $0x48] sm:$0xf] %v478
      %512 = vst [vmem:[%s501 + $0x54] sm:$0xf] %v479
      %513 = vst [vmem:[%s501 + $0x58] sm:$0xf] %v480
      %514 = vst [vmem:[%s501 + $0x64] sm:$0xf] %v481
      %515 = vst [vmem:[%s501 + $0x68] sm:$0xf] %v482
      %516 = vst [vmem:[%s501 + $0x74] sm:$0xf] %v483
      %517 = vst [vmem:[%s501 + $0x78] sm:$0xf] %v484
      %p518 = scmp.gt.s32.totalorder %s23, 0
      // Predicated region
      $region37: #{conv_block3d_forward.3} parent=35 // pred_check
        %p519 = pneg %p518
      $region38: #{conv_block3d_forward.3} parent=35 // pred_check_branch
        %521 = sbr.rel (%p519) target = $region40
      $region39: #{conv_block3d_forward.3} parent=35 // pred_region
        %s522 = ssub.s32 %s299, 1
        %s523 = smul.u32 %s522, 2
        %s524 = smul.addr %s523, 4
        %s525 = scalar_lea.vmem %s278, %s524
        %v526 = vld [vmem:[%s525] sm:$0xf]
        %v527 = vld [vmem:[%s525 + $0x4] sm:$0xf]
        %v528 = vunpack.c.l.bf16 %v526
        %v529 = vunpack.c.l.bf16 %v527
        %v530 = vmul.f32 %v528, %v381
        %v531 = vmul.f32 %v529, %v381
        %v532 = vadd.f32 %v530, %v403
        %v533 = vadd.f32 %v531, %v403
        %v534 = vmax.f32 %v532, 0.0
        %v535 = vmax.f32 %v533, 0.0
        %v536 = vpack.c.bf16 %v535, %v534
        %v538 = vunpack.c.l.b16 %v536
        %v539 = vunpack.c.h.b16 %v536
        %v540 = vpack.c.b16 %v538, %v538
        %v541 = vpack.c.b16 %v539, %v539
        %544 = vst [vmem:[#allocation2 + $0x4] sm:$0xf] %v540
        %545 = vst [vmem:[#allocation2 + $0x8] sm:$0xf] %v541
      $region40: #{conv_block3d_forward.3} parent=35 // pred_fallthru
        _
      %p546 = scmp.lt.s32.totalorder %s23, 1
      // Predicated region
      $region41: #{conv_block3d_forward.3} parent=35 // pred_check
        %p547 = pneg %p546
      $region42: #{conv_block3d_forward.3} parent=35 // pred_check_branch
        %549 = sbr.rel (%p547) target = $region44
      $region43: #{conv_block3d_forward.3} parent=35 // pred_region
        %s550 = sadd.s32 %s299, 8
        %s551 = smul.u32 %s550, 2
        %s552 = smul.addr %s551, 4
        %s553 = scalar_lea.vmem %s278, %s552
        %v554 = vld [vmem:[%s553] sm:$0xf]
        %v555 = vld [vmem:[%s553 + $0x4] sm:$0xf]
        %v556 = vunpack.c.l.bf16 %v554
        %v557 = vunpack.c.l.bf16 %v555
        %v558 = vmul.f32 %v556, %v381
        %v559 = vmul.f32 %v557, %v381
        %v560 = vadd.f32 %v558, %v403
        %v561 = vadd.f32 %v559, %v403
        %v562 = vmax.f32 %v560, 0.0
        %v563 = vmax.f32 %v561, 0.0
        %v564 = vpack.c.bf16 %v563, %v562
        %v566 = vunpack.c.l.b16 %v564
        %v567 = vunpack.c.h.b16 %v564
        %v568 = vpack.c.b16 %v566, %v566
        %v569 = vpack.c.b16 %v567, %v567
        %s572 = scalar_lea.vmem [#allocation2], 144
        %573 = vst [vmem:[%s572 + $0x4] sm:$0xf] %v568
        %574 = vst [vmem:[%s572 + $0x8] sm:$0xf] %v569
      $region44: #{conv_block3d_forward.3} parent=35 // pred_fallthru
        _
      %v575 = vld [vmem:[#allocation2] sm:$0x8]
      %v576 = vld [vmem:[#allocation2 + $0x4] sm:$0xf]
      %v577 = vld [vmem:[#allocation2 + $0x8] sm:$0xf]
      %v578 = vld [vmem:[#allocation2 + $0x10] sm:$0x8]
      %v579 = vld [vmem:[#allocation2 + $0x14] sm:$0xf]
      %v580 = vld [vmem:[#allocation2 + $0x18] sm:$0xf]
      %v581 = vld [vmem:[#allocation2 + $0x20] sm:$0x8]
      %v582 = vld [vmem:[#allocation2 + $0x24] sm:$0xf]
      %v583 = vld [vmem:[#allocation2 + $0x28] sm:$0xf]
      %v584 = vld [vmem:[#allocation2 + $0x30] sm:$0x8]
      %v585 = vld [vmem:[#allocation2 + $0x34] sm:$0xf]
      %v586 = vld [vmem:[#allocation2 + $0x38] sm:$0xf]
      %v587 = vld [vmem:[#allocation2 + $0x40] sm:$0x8]
      %v588 = vld [vmem:[#allocation2 + $0x44] sm:$0xf]
      %v589 = vld [vmem:[#allocation2 + $0x48] sm:$0xf]
      %v590 = vld [vmem:[#allocation2 + $0x50] sm:$0x8]
      %v591 = vld [vmem:[#allocation2 + $0x54] sm:$0xf]
      %v592 = vld [vmem:[#allocation2 + $0x58] sm:$0xf]
      %v593 = vld [vmem:[#allocation2 + $0x60] sm:$0x8]
      %v594 = vld [vmem:[#allocation2 + $0x64] sm:$0xf]
      %v595 = vld [vmem:[#allocation2 + $0x68] sm:$0xf]
      %v596 = vld [vmem:[#allocation2 + $0x70] sm:$0x8]
      %v597 = vld [vmem:[#allocation2 + $0x74] sm:$0xf]
      %v598 = vld [vmem:[#allocation2 + $0x78] sm:$0xf]
      %vm599 = vsmask.f32 256
      %vm600 = vsmask.f32 4368
      %vm601 = vmor %vm599, %vm600
      %v603 = vshrl.u32 %v575, 16
      %v605 = vrot.slane %v603, 7
      %v606 = vrot.slane %v605, 4
      %v608 = vshrl.u32 %v576, 16
      %v610 = vrot.slane %v608, 7
      %v611 = vshll.u32 %v576, 16
      %v613 = vor.u32 %v610, %v611
      %v614 = vsel %vm601, %v606, %v613
      %v615 = vrot.slane %v610, 4
      %v617 = vshrl.u32 %v577, 16
      %v619 = vrot.slane %v617, 7
      %v620 = vshll.u32 %v577, 16
      %v622 = vor.u32 %v619, %v620
      %v623 = vsel %vm601, %v615, %v622
      %v625 = vshrl.u32 %v578, 16
      %v627 = vrot.slane %v625, 7
      %v628 = vrot.slane %v627, 4
      %v630 = vshrl.u32 %v579, 16
      %v632 = vrot.slane %v630, 7
      %v633 = vshll.u32 %v579, 16
      %v635 = vor.u32 %v632, %v633
      %v636 = vsel %vm601, %v628, %v635
      %v637 = vrot.slane %v632, 4
      %v639 = vshrl.u32 %v580, 16
      %v641 = vrot.slane %v639, 7
      %v642 = vshll.u32 %v580, 16
      %v644 = vor.u32 %v641, %v642
      %v645 = vsel %vm601, %v637, %v644
      %v647 = vshrl.u32 %v581, 16
      %v649 = vrot.slane %v647, 7
      %v650 = vrot.slane %v649, 4
      %v652 = vshrl.u32 %v582, 16
      %v654 = vrot.slane %v652, 7
      %v655 = vshll.u32 %v582, 16
      %v657 = vor.u32 %v654, %v655
      %v658 = vsel %vm601, %v650, %v657
      %v659 = vrot.slane %v654, 4
      %v661 = vshrl.u32 %v583, 16
      %v663 = vrot.slane %v661, 7
      %v664 = vshll.u32 %v583, 16
      %v666 = vor.u32 %v663, %v664
      %v667 = vsel %vm601, %v659, %v666
      %v669 = vshrl.u32 %v584, 16
      %v671 = vrot.slane %v669, 7
      %v672 = vrot.slane %v671, 4
      %v674 = vshrl.u32 %v585, 16
      %v676 = vrot.slane %v674, 7
      %v677 = vshll.u32 %v585, 16
      %v679 = vor.u32 %v676, %v677
      %v680 = vsel %vm601, %v672, %v679
      %v681 = vrot.slane %v676, 4
      %v683 = vshrl.u32 %v586, 16
      %v685 = vrot.slane %v683, 7
      %v686 = vshll.u32 %v586, 16
      %v688 = vor.u32 %v685, %v686
      %v689 = vsel %vm601, %v681, %v688
      %v691 = vshrl.u32 %v587, 16
      %v693 = vrot.slane %v691, 7
      %v694 = vrot.slane %v693, 4
      %v696 = vshrl.u32 %v588, 16
      %v698 = vrot.slane %v696, 7
      %v699 = vshll.u32 %v588, 16
      %v701 = vor.u32 %v698, %v699
      %v702 = vsel %vm601, %v694, %v701
      %v703 = vrot.slane %v698, 4
      %v705 = vshrl.u32 %v589, 16
      %v707 = vrot.slane %v705, 7
      %v708 = vshll.u32 %v589, 16
      %v710 = vor.u32 %v707, %v708
      %v711 = vsel %vm601, %v703, %v710
      %v713 = vshrl.u32 %v590, 16
      %v715 = vrot.slane %v713, 7
      %v716 = vrot.slane %v715, 4
      %v718 = vshrl.u32 %v591, 16
      %v720 = vrot.slane %v718, 7
      %v721 = vshll.u32 %v591, 16
      %v723 = vor.u32 %v720, %v721
      %v724 = vsel %vm601, %v716, %v723
      %v725 = vrot.slane %v720, 4
      %v727 = vshrl.u32 %v592, 16
      %v729 = vrot.slane %v727, 7
      %v730 = vshll.u32 %v592, 16
      %v732 = vor.u32 %v729, %v730
      %v733 = vsel %vm601, %v725, %v732
      %v735 = vshrl.u32 %v593, 16
      %v737 = vrot.slane %v735, 7
      %v738 = vrot.slane %v737, 4
      %v740 = vshrl.u32 %v594, 16
      %v742 = vrot.slane %v740, 7
      %v743 = vshll.u32 %v594, 16
      %v745 = vor.u32 %v742, %v743
      %v746 = vsel %vm601, %v738, %v745
      %v747 = vrot.slane %v742, 4
      %v749 = vshrl.u32 %v595, 16
      %v751 = vrot.slane %v749, 7
      %v752 = vshll.u32 %v595, 16
      %v754 = vor.u32 %v751, %v752
      %v755 = vsel %vm601, %v747, %v754
      %v757 = vshrl.u32 %v596, 16
      %v759 = vrot.slane %v757, 7
      %v760 = vrot.slane %v759, 4
      %v762 = vshrl.u32 %v597, 16
      %v764 = vrot.slane %v762, 7
      %v765 = vshll.u32 %v597, 16
      %v767 = vor.u32 %v764, %v765
      %v768 = vsel %vm601, %v760, %v767
      %v769 = vrot.slane %v764, 4
      %v771 = vshrl.u32 %v598, 16
      %v773 = vrot.slane %v771, 7
      %v774 = vshll.u32 %v598, 16
      %v776 = vor.u32 %v773, %v774
      %v777 = vsel %vm601, %v769, %v776
      %v778 = vld [vmem:[%s1] sm:$0xf]
      %v779 = vld [vmem:[%s1 + $0x4] sm:$0xf]
      %v780 = vld [vmem:[%s1 + $0x8] sm:$0xf]
      %v781 = vld [vmem:[%s1 + $0xc] sm:$0xf]
      %v782 = vld [vmem:[%s1 + $0x10] sm:$0xf]
      %v783 = vld [vmem:[%s1 + $0x14] sm:$0xf]
      %v784 = vld [vmem:[%s1 + $0x18] sm:$0xf]
      %v785 = vld [vmem:[%s1 + $0x1c] sm:$0xf]
      %v786 = vld [vmem:[%s1 + $0x20] sm:$0xf]
      %v787 = vld [vmem:[%s1 + $0x24] sm:$0xf]
      %v788 = vld [vmem:[%s1 + $0x28] sm:$0xf]
      %v789 = vld [vmem:[%s1 + $0x2c] sm:$0xf]
      %v790 = vld [vmem:[%s1 + $0x30] sm:$0xf]
      %v791 = vld [vmem:[%s1 + $0x34] sm:$0xf]
      %v792 = vld [vmem:[%s1 + $0x38] sm:$0xf]
      %v793 = vld [vmem:[%s1 + $0x3c] sm:$0xf]
      %s794 = scalar_lea.vmem %s1, 64
      %v795 = vld [vmem:[%s794] sm:$0xf]
      %v796 = vld [vmem:[%s794 + $0x4] sm:$0xf]
      %v797 = vld [vmem:[%s794 + $0x8] sm:$0xf]
      %v798 = vld [vmem:[%s794 + $0xc] sm:$0xf]
      %v799 = vld [vmem:[%s794 + $0x10] sm:$0xf]
      %v800 = vld [vmem:[%s794 + $0x14] sm:$0xf]
      %v801 = vld [vmem:[%s794 + $0x18] sm:$0xf]
      %v802 = vld [vmem:[%s794 + $0x1c] sm:$0xf]
      %v803 = vld [vmem:[%s794 + $0x20] sm:$0xf]
      %v804 = vld [vmem:[%s794 + $0x24] sm:$0xf]
      %v805 = vld [vmem:[%s794 + $0x28] sm:$0xf]
      %v806 = vld [vmem:[%s794 + $0x2c] sm:$0xf]
      %v807 = vld [vmem:[%s794 + $0x30] sm:$0xf]
      %v808 = vld [vmem:[%s794 + $0x34] sm:$0xf]
      %v809 = vld [vmem:[%s794 + $0x38] sm:$0xf]
      %v810 = vld [vmem:[%s794 + $0x3c] sm:$0xf]
      %v827 = vunpack.c.l.b16 %v576
      %v828 = vunpack.c.l.b16 %v577
      %v829 = vunpack.c.l.b16 %v579
      %v830 = vunpack.c.l.b16 %v580
      %v831 = vunpack.c.l.b16 %v582
      %v832 = vunpack.c.l.b16 %v583
      %v833 = vunpack.c.l.b16 %v585
      %v834 = vunpack.c.l.b16 %v586
      %v835 = vunpack.c.l.b16 %v588
      %v836 = vunpack.c.l.b16 %v589
      %v837 = vunpack.c.l.b16 %v591
      %v838 = vunpack.c.l.b16 %v592
      %v839 = vunpack.c.l.b16 %v594
      %v840 = vunpack.c.l.b16 %v595
      %v841 = vunpack.c.l.b16 %v597
      %v842 = vunpack.c.l.b16 %v598
      %v843 = vpack.c.b16 %v828, %v827
      %v844 = vpack.c.b16 %v830, %v829
      %v845 = vpack.c.b16 %v832, %v831
      %v846 = vpack.c.b16 %v834, %v833
      %v847 = vpack.c.b16 %v836, %v835
      %v848 = vpack.c.b16 %v838, %v837
      %v849 = vpack.c.b16 %v840, %v839
      %v850 = vpack.c.b16 %v842, %v841
      %v875 = vunpack.c.l.b16 %v795
      %v876 = vunpack.c.l.b16 %v796
      %v877 = vunpack.c.l.b16 %v797
      %v878 = vunpack.c.l.b16 %v798
      %v879 = vunpack.c.l.b16 %v799
      %v880 = vunpack.c.l.b16 %v800
      %v881 = vunpack.c.l.b16 %v801
      %v882 = vunpack.c.l.b16 %v802
      %v883 = vunpack.c.l.b16 %v803
      %v884 = vunpack.c.l.b16 %v804
      %v885 = vunpack.c.l.b16 %v805
      %v886 = vunpack.c.l.b16 %v806
      %v887 = vunpack.c.l.b16 %v807
      %v888 = vunpack.c.l.b16 %v808
      %v889 = vunpack.c.l.b16 %v809
      %v890 = vunpack.c.l.b16 %v810
      %v891 = vpack.c.b16 %v876, %v875
      %v892 = vpack.c.b16 %v878, %v877
      %v893 = vpack.c.b16 %v880, %v879
      %v894 = vpack.c.b16 %v882, %v881
      %v895 = vpack.c.b16 %v884, %v883
      %v896 = vpack.c.b16 %v886, %v885
      %v897 = vpack.c.b16 %v888, %v887
      %v898 = vpack.c.b16 %v890, %v889
      %907 = vmatprep.subr.bf16.mxu0 0
      %908 = vmatpush1.bf16.msra.mxu0 %v898
      %909 = vmatprep.subr.bf16.mxu0 0
      %910 = vmatpush1.bf16.msra.mxu0 %v897
      %911 = vmatprep.subr.bf16.mxu0 0
      %912 = vmatpush1.bf16.msra.mxu0 %v896
      %913 = vmatprep.subr.bf16.mxu0 0
      %914 = vmatpush1.bf16.msra.mxu0 %v895
      %915 = vmatprep.subr.bf16.mxu0 0
      %916 = vmatpush1.bf16.msra.mxu0 %v894
      %917 = vmatprep.subr.bf16.mxu0 0
      %918 = vmatpush1.bf16.msra.mxu0 %v893
      %919 = vmatprep.subr.bf16.mxu0 0
      %920 = vmatpush1.bf16.msra.mxu0 %v892
      %921 = vmatprep.subr.bf16.mxu0 0
      %922 = vmatpush1.bf16.msra.mxu0 %v891
      %923 = vmatprep.subr.bf16.mxu0 0
      %924 = vmatpush2.bf16.msra.mxu0 0
      %925 = vmatprep.subr.bf16.mxu0 0
      %926 = vmatpush2.bf16.msra.mxu0 0
      %927 = vmatprep.subr.bf16.mxu0 0
      %928 = vmatpush2.bf16.msra.mxu0 0
      %929 = vmatprep.subr.bf16.mxu0 0
      %930 = vmatpush2.bf16.msra.mxu0 0
      %931 = vmatprep.subr.bf16.mxu0 0
      %932 = vmatpush2.bf16.msra.mxu0 0
      %933 = vmatprep.subr.bf16.mxu0 0
      %934 = vmatpush2.bf16.msra.mxu0 0
      %935 = vmatprep.subr.bf16.mxu0 0
      %936 = vmatpush2.bf16.msra.mxu0 0
      %937 = vmatprep.subr.bf16.mxu0 0
      %938 = vmatpush2.bf16.msra.mxu0 0
      %939 = vmatprep.mubr.bf16.mxu0 0
      %940 = vmatmul.mubr.bf16.gmra.mxu0 %v843
      %v941 = vpop.f32.mrf.mxu0
      %v942 = vadd.f32 0.0, %v941
      %v943 = vpop.f32.mrf.mxu0
      %v944 = vpop.f32.mrf.mxu0
      %v945 = vadd.f32 0.0, %v944
      %v946 = vpop.f32.mrf.mxu0
      %947 = vmatprep.mubr.bf16.mxu0 0
      %948 = vmatmul.mubr.bf16.gmra.mxu0 %v844
      %v949 = vpop.f32.mrf.mxu0
      %v950 = vadd.f32 0.0, %v949
      %v951 = vpop.f32.mrf.mxu0
      %v952 = vpop.f32.mrf.mxu0
      %v953 = vadd.f32 0.0, %v952
      %v954 = vpop.f32.mrf.mxu0
      %955 = vmatprep.mubr.bf16.mxu0 0
      %956 = vmatmul.mubr.bf16.gmra.mxu0 %v845
      %v957 = vpop.f32.mrf.mxu0
      %v958 = vadd.f32 0.0, %v957
      %v959 = vpop.f32.mrf.mxu0
      %v960 = vpop.f32.mrf.mxu0
      %v961 = vadd.f32 0.0, %v960
      %v962 = vpop.f32.mrf.mxu0
      %963 = vmatprep.mubr.bf16.mxu0 0
      %964 = vmatmul.mubr.bf16.gmra.mxu0 %v846
      %v965 = vpop.f32.mrf.mxu0
      %v966 = vadd.f32 0.0, %v965
      %v967 = vpop.f32.mrf.mxu0
      %v968 = vpop.f32.mrf.mxu0
      %v969 = vadd.f32 0.0, %v968
      %v970 = vpop.f32.mrf.mxu0
      %971 = vmatprep.mubr.bf16.mxu0 0
      %972 = vmatmul.mubr.bf16.gmra.mxu0 %v847
      %v973 = vpop.f32.mrf.mxu0
      %v974 = vadd.f32 0.0, %v973
      %v975 = vpop.f32.mrf.mxu0
      %v976 = vpop.f32.mrf.mxu0
      %v977 = vadd.f32 0.0, %v976
      %v978 = vpop.f32.mrf.mxu0
      %979 = vmatprep.mubr.bf16.mxu0 0
      %980 = vmatmul.mubr.bf16.gmra.mxu0 %v848
      %v981 = vpop.f32.mrf.mxu0
      %v982 = vadd.f32 0.0, %v981
      %v983 = vpop.f32.mrf.mxu0
      %v984 = vpop.f32.mrf.mxu0
      %v985 = vadd.f32 0.0, %v984
      %v986 = vpop.f32.mrf.mxu0
      %987 = vmatprep.mubr.bf16.mxu0 0
      %988 = vmatmul.mubr.bf16.gmra.mxu0 %v849
      %v989 = vpop.f32.mrf.mxu0
      %v990 = vadd.f32 0.0, %v989
      %v991 = vpop.f32.mrf.mxu0
      %v992 = vpop.f32.mrf.mxu0
      %v993 = vadd.f32 0.0, %v992
      %v994 = vpop.f32.mrf.mxu0
      %995 = vmatprep.mubr.bf16.mxu0 0
      %996 = vmatmul.mubr.bf16.gmra.mxu0 %v850
      %v997 = vpop.f32.mrf.mxu0
      %v998 = vadd.f32 0.0, %v997
      %v999 = vpop.f32.mrf.mxu0
      %v1000 = vpop.f32.mrf.mxu0
      %v1001 = vadd.f32 0.0, %v1000
      %v1002 = vpop.f32.mrf.mxu0
      %1003 = vdwg.mxu0
      %v1004 = vunpack.c.l.b16 %v614
      %v1005 = vunpack.c.l.b16 %v623
      %v1006 = vunpack.c.l.b16 %v636
      %v1007 = vunpack.c.l.b16 %v645
      %v1008 = vunpack.c.l.b16 %v658
      %v1009 = vunpack.c.l.b16 %v667
      %v1010 = vunpack.c.l.b16 %v680
      %v1011 = vunpack.c.l.b16 %v689
      %v1012 = vunpack.c.l.b16 %v702
      %v1013 = vunpack.c.l.b16 %v711
      %v1014 = vunpack.c.l.b16 %v724
      %v1015 = vunpack.c.l.b16 %v733
      %v1016 = vunpack.c.l.b16 %v746
      %v1017 = vunpack.c.l.b16 %v755
      %v1018 = vunpack.c.l.b16 %v768
      %v1019 = vunpack.c.l.b16 %v777
      %v1020 = vpack.c.b16 %v1005, %v1004
      %v1021 = vpack.c.b16 %v1007, %v1006
      %v1022 = vpack.c.b16 %v1009, %v1008
      %v1023 = vpack.c.b16 %v1011, %v1010
      %v1024 = vpack.c.b16 %v1013, %v1012
      %v1025 = vpack.c.b16 %v1015, %v1014
      %v1026 = vpack.c.b16 %v1017, %v1016
      %v1027 = vpack.c.b16 %v1019, %v1018
      %v1052 = vunpack.c.l.b16 %v778
      %v1053 = vunpack.c.l.b16 %v779
      %v1054 = vunpack.c.l.b16 %v780
      %v1055 = vunpack.c.l.b16 %v781
      %v1056 = vunpack.c.l.b16 %v782
      %v1057 = vunpack.c.l.b16 %v783
      %v1058 = vunpack.c.l.b16 %v784
      %v1059 = vunpack.c.l.b16 %v785
      %v1060 = vunpack.c.l.b16 %v786
      %v1061 = vunpack.c.l.b16 %v787
      %v1062 = vunpack.c.l.b16 %v788
      %v1063 = vunpack.c.l.b16 %v789
      %v1064 = vunpack.c.l.b16 %v790
      %v1065 = vunpack.c.l.b16 %v791
      %v1066 = vunpack.c.l.b16 %v792
      %v1067 = vunpack.c.l.b16 %v793
      %v1068 = vpack.c.b16 %v1053, %v1052
      %v1069 = vpack.c.b16 %v1055, %v1054
      %v1070 = vpack.c.b16 %v1057, %v1056
      %v1071 = vpack.c.b16 %v1059, %v1058
      %v1072 = vpack.c.b16 %v1061, %v1060
      %v1073 = vpack.c.b16 %v1063, %v1062
      %v1074 = vpack.c.b16 %v1065, %v1064
      %v1075 = vpack.c.b16 %v1067, %v1066
      %1084 = vmatprep.subr.bf16.mxu0 0
      %1085 = vmatpush1.bf16.msra.mxu0 %v1075
      %1086 = vmatprep.subr.bf16.mxu0 0
      %1087 = vmatpush1.bf16.msra.mxu0 %v1074
      %1088 = vmatprep.subr.bf16.mxu0 0
      %1089 = vmatpush1.bf16.msra.mxu0 %v1073
      %1090 = vmatprep.subr.bf16.mxu0 0
      %1091 = vmatpush1.bf16.msra.mxu0 %v1072
      %1092 = vmatprep.subr.bf16.mxu0 0
      %1093 = vmatpush1.bf16.msra.mxu0 %v1071
      %1094 = vmatprep.subr.bf16.mxu0 0
      %1095 = vmatpush1.bf16.msra.mxu0 %v1070
      %1096 = vmatprep.subr.bf16.mxu0 0
      %1097 = vmatpush1.bf16.msra.mxu0 %v1069
      %1098 = vmatprep.subr.bf16.mxu0 0
      %1099 = vmatpush1.bf16.msra.mxu0 %v1068
      %1100 = vmatprep.subr.bf16.mxu0 0
      %1101 = vmatpush2.bf16.msra.mxu0 0
      %1102 = vmatprep.subr.bf16.mxu0 0
      %1103 = vmatpush2.bf16.msra.mxu0 0
      %1104 = vmatprep.subr.bf16.mxu0 0
      %1105 = vmatpush2.bf16.msra.mxu0 0
      %1106 = vmatprep.subr.bf16.mxu0 0
      %1107 = vmatpush2.bf16.msra.mxu0 0
      %1108 = vmatprep.subr.bf16.mxu0 0
      %1109 = vmatpush2.bf16.msra.mxu0 0
      %1110 = vmatprep.subr.bf16.mxu0 0
      %1111 = vmatpush2.bf16.msra.mxu0 0
      %1112 = vmatprep.subr.bf16.mxu0 0
      %1113 = vmatpush2.bf16.msra.mxu0 0
      %1114 = vmatprep.subr.bf16.mxu0 0
      %1115 = vmatpush2.bf16.msra.mxu0 0
      %1116 = vmatprep.mubr.bf16.mxu0 0
      %1117 = vmatmul.mubr.bf16.gmra.mxu0 %v1020
      %v1118 = vpop.f32.mrf.mxu0
      %v1119 = vadd.f32 %v942, %v1118
      %v1120 = vpop.f32.mrf.mxu0
      %v1121 = vpop.f32.mrf.mxu0
      %v1122 = vadd.f32 %v945, %v1121
      %v1123 = vpop.f32.mrf.mxu0
      %1124 = vmatprep.mubr.bf16.mxu0 0
      %1125 = vmatmul.mubr.bf16.gmra.mxu0 %v1021
      %v1126 = vpop.f32.mrf.mxu0
      %v1127 = vadd.f32 %v950, %v1126
      %v1128 = vpop.f32.mrf.mxu0
      %v1129 = vpop.f32.mrf.mxu0
      %v1130 = vadd.f32 %v953, %v1129
      %v1131 = vpop.f32.mrf.mxu0
      %1132 = vmatprep.mubr.bf16.mxu0 0
      %1133 = vmatmul.mubr.bf16.gmra.mxu0 %v1022
      %v1134 = vpop.f32.mrf.mxu0
      %v1135 = vadd.f32 %v958, %v1134
      %v1136 = vpop.f32.mrf.mxu0
      %v1137 = vpop.f32.mrf.mxu0
      %v1138 = vadd.f32 %v961, %v1137
      %v1139 = vpop.f32.mrf.mxu0
      %1140 = vmatprep.mubr.bf16.mxu0 0
      %1141 = vmatmul.mubr.bf16.gmra.mxu0 %v1023
      %v1142 = vpop.f32.mrf.mxu0
      %v1143 = vadd.f32 %v966, %v1142
      %v1144 = vpop.f32.mrf.mxu0
      %v1145 = vpop.f32.mrf.mxu0
      %v1146 = vadd.f32 %v969, %v1145
      %v1147 = vpop.f32.mrf.mxu0
      %1148 = vmatprep.mubr.bf16.mxu0 0
      %1149 = vmatmul.mubr.bf16.gmra.mxu0 %v1024
      %v1150 = vpop.f32.mrf.mxu0
      %v1151 = vadd.f32 %v974, %v1150
      %v1152 = vpop.f32.mrf.mxu0
      %v1153 = vpop.f32.mrf.mxu0
      %v1154 = vadd.f32 %v977, %v1153
      %v1155 = vpop.f32.mrf.mxu0
      %1156 = vmatprep.mubr.bf16.mxu0 0
      %1157 = vmatmul.mubr.bf16.gmra.mxu0 %v1025
      %v1158 = vpop.f32.mrf.mxu0
      %v1159 = vadd.f32 %v982, %v1158
      %v1160 = vpop.f32.mrf.mxu0
      %v1161 = vpop.f32.mrf.mxu0
      %v1162 = vadd.f32 %v985, %v1161
      %v1163 = vpop.f32.mrf.mxu0
      %1164 = vmatprep.mubr.bf16.mxu0 0
      %1165 = vmatmul.mubr.bf16.gmra.mxu0 %v1026
      %v1166 = vpop.f32.mrf.mxu0
      %v1167 = vadd.f32 %v990, %v1166
      %v1168 = vpop.f32.mrf.mxu0
      %v1169 = vpop.f32.mrf.mxu0
      %v1170 = vadd.f32 %v993, %v1169
      %v1171 = vpop.f32.mrf.mxu0
      %1172 = vmatprep.mubr.bf16.mxu0 0
      %1173 = vmatmul.mubr.bf16.gmra.mxu0 %v1027
      %v1174 = vpop.f32.mrf.mxu0
      %v1175 = vadd.f32 %v998, %v1174
      %v1176 = vpop.f32.mrf.mxu0
      %v1177 = vpop.f32.mrf.mxu0
      %v1178 = vadd.f32 %v1001, %v1177
      %v1179 = vpop.f32.mrf.mxu0
      %1180 = vdwg.mxu0
      %v1181 = vld [vmem:[#allocation2 + $0x4] sm:$0xf]
      %v1182 = vld [vmem:[#allocation2 + $0x8] sm:$0xf]
      %v1183 = vld [vmem:[#allocation2 + $0xc] sm:$0x1]
      %v1184 = vld [vmem:[#allocation2 + $0x14] sm:$0xf]
      %v1185 = vld [vmem:[#allocation2 + $0x18] sm:$0xf]
      %v1186 = vld [vmem:[#allocation2 + $0x1c] sm:$0x1]
      %v1187 = vld [vmem:[#allocation2 + $0x24] sm:$0xf]
      %v1188 = vld [vmem:[#allocation2 + $0x28] sm:$0xf]
      %v1189 = vld [vmem:[#allocation2 + $0x2c] sm:$0x1]
      %v1190 = vld [vmem:[#allocation2 + $0x34] sm:$0xf]
      %v1191 = vld [vmem:[#allocation2 + $0x38] sm:$0xf]
      %v1192 = vld [vmem:[#allocation2 + $0x3c] sm:$0x1]
      %v1193 = vld [vmem:[#allocation2 + $0x44] sm:$0xf]
      %v1194 = vld [vmem:[#allocation2 + $0x48] sm:$0xf]
      %v1195 = vld [vmem:[#allocation2 + $0x4c] sm:$0x1]
      %v1196 = vld [vmem:[#allocation2 + $0x54] sm:$0xf]
      %v1197 = vld [vmem:[#allocation2 + $0x58] sm:$0xf]
      %v1198 = vld [vmem:[#allocation2 + $0x5c] sm:$0x1]
      %v1199 = vld [vmem:[#allocation2 + $0x64] sm:$0xf]
      %v1200 = vld [vmem:[#allocation2 + $0x68] sm:$0xf]
      %v1201 = vld [vmem:[#allocation2 + $0x6c] sm:$0x1]
      %v1202 = vld [vmem:[#allocation2 + $0x74] sm:$0xf]
      %v1203 = vld [vmem:[#allocation2 + $0x78] sm:$0xf]
      %v1204 = vld [vmem:[#allocation2 + $0x7c] sm:$0x1]
      %vm1205 = vsmask.f32 3328
      %vm1206 = vsmask.f32 7440
      %vm1207 = vmor %vm1205, %vm1206
      %v1209 = vshrl.u32 %v1181, 16
      %v1211 = vrot.slane %v1209, 4
      %v1212 = vshll.u32 %v1181, 16
      %v1214 = vrot.slane %v1212, 5
      %v1215 = vor.u32 %v1211, %v1214
      %v1216 = vrot.slane %v1215, 4
      %v1218 = vshll.u32 %v1182, 16
      %v1220 = vrot.slane %v1218, 5
      %v1221 = vsel %vm1207, %v1216, %v1220
      %v1222 = vshrl.u32 %v1182, 16
      %v1224 = vrot.slane %v1222, 4
      %v1225 = vor.u32 %v1224, %v1220
      %v1226 = vrot.slane %v1225, 4
      %v1228 = vshll.u32 %v1183, 16
      %v1230 = vrot.slane %v1228, 5
      %v1231 = vsel %vm1207, %v1226, %v1230
      %v1233 = vshrl.u32 %v1184, 16
      %v1235 = vrot.slane %v1233, 4
      %v1236 = vshll.u32 %v1184, 16
      %v1238 = vrot.slane %v1236, 5
      %v1239 = vor.u32 %v1235, %v1238
      %v1240 = vrot.slane %v1239, 4
      %v1242 = vshll.u32 %v1185, 16
      %v1244 = vrot.slane %v1242, 5
      %v1245 = vsel %vm1207, %v1240, %v1244
      %v1246 = vshrl.u32 %v1185, 16
      %v1248 = vrot.slane %v1246, 4
      %v1249 = vor.u32 %v1248, %v1244
      %v1250 = vrot.slane %v1249, 4
      %v1252 = vshll.u32 %v1186, 16
      %v1254 = vrot.slane %v1252, 5
      %v1255 = vsel %vm1207, %v1250, %v1254
      %v1257 = vshrl.u32 %v1187, 16
      %v1259 = vrot.slane %v1257, 4
      %v1260 = vshll.u32 %v1187, 16
      %v1262 = vrot.slane %v1260, 5
      %v1263 = vor.u32 %v1259, %v1262
      %v1264 = vrot.slane %v1263, 4
      %v1266 = vshll.u32 %v1188, 16
      %v1268 = vrot.slane %v1266, 5
      %v1269 = vsel %vm1207, %v1264, %v1268
      %v1270 = vshrl.u32 %v1188, 16
      %v1272 = vrot.slane %v1270, 4
      %v1273 = vor.u32 %v1272, %v1268
      %v1274 = vrot.slane %v1273, 4
      %v1276 = vshll.u32 %v1189, 16
      %v1278 = vrot.slane %v1276, 5
      %v1279 = vsel %vm1207, %v1274, %v1278
      %v1281 = vshrl.u32 %v1190, 16
      %v1283 = vrot.slane %v1281, 4
      %v1284 = vshll.u32 %v1190, 16
      %v1286 = vrot.slane %v1284, 5
      %v1287 = vor.u32 %v1283, %v1286
      %v1288 = vrot.slane %v1287, 4
      %v1290 = vshll.u32 %v1191, 16
      %v1292 = vrot.slane %v1290, 5
      %v1293 = vsel %vm1207, %v1288, %v1292
      %v1294 = vshrl.u32 %v1191, 16
      %v1296 = vrot.slane %v1294, 4
      %v1297 = vor.u32 %v1296, %v1292
      %v1298 = vrot.slane %v1297, 4
      %v1300 = vshll.u32 %v1192, 16
      %v1302 = vrot.slane %v1300, 5
      %v1303 = vsel %vm1207, %v1298, %v1302
      %v1305 = vshrl.u32 %v1193, 16
      %v1307 = vrot.slane %v1305, 4
      %v1308 = vshll.u32 %v1193, 16
      %v1310 = vrot.slane %v1308, 5
      %v1311 = vor.u32 %v1307, %v1310
      %v1312 = vrot.slane %v1311, 4
      %v1314 = vshll.u32 %v1194, 16
      %v1316 = vrot.slane %v1314, 5
      %v1317 = vsel %vm1207, %v1312, %v1316
      %v1318 = vshrl.u32 %v1194, 16
      %v1320 = vrot.slane %v1318, 4
      %v1321 = vor.u32 %v1320, %v1316
      %v1322 = vrot.slane %v1321, 4
      %v1324 = vshll.u32 %v1195, 16
      %v1326 = vrot.slane %v1324, 5
      %v1327 = vsel %vm1207, %v1322, %v1326
      %v1329 = vshrl.u32 %v1196, 16
      %v1331 = vrot.slane %v1329, 4
      %v1332 = vshll.u32 %v1196, 16
      %v1334 = vrot.slane %v1332, 5
      %v1335 = vor.u32 %v1331, %v1334
      %v1336 = vrot.slane %v1335, 4
      %v1338 = vshll.u32 %v1197, 16
      %v1340 = vrot.slane %v1338, 5
      %v1341 = vsel %vm1207, %v1336, %v1340
      %v1342 = vshrl.u32 %v1197, 16
      %v1344 = vrot.slane %v1342, 4
      %v1345 = vor.u32 %v1344, %v1340
      %v1346 = vrot.slane %v1345, 4
      %v1348 = vshll.u32 %v1198, 16
      %v1350 = vrot.slane %v1348, 5
      %v1351 = vsel %vm1207, %v1346, %v1350
      %v1353 = vshrl.u32 %v1199, 16
      %v1355 = vrot.slane %v1353, 4
      %v1356 = vshll.u32 %v1199, 16
      %v1358 = vrot.slane %v1356, 5
      %v1359 = vor.u32 %v1355, %v1358
      %v1360 = vrot.slane %v1359, 4
      %v1362 = vshll.u32 %v1200, 16
      %v1364 = vrot.slane %v1362, 5
      %v1365 = vsel %vm1207, %v1360, %v1364
      %v1366 = vshrl.u32 %v1200, 16
      %v1368 = vrot.slane %v1366, 4
      %v1369 = vor.u32 %v1368, %v1364
      %v1370 = vrot.slane %v1369, 4
      %v1372 = vshll.u32 %v1201, 16
      %v1374 = vrot.slane %v1372, 5
      %v1375 = vsel %vm1207, %v1370, %v1374
      %v1377 = vshrl.u32 %v1202, 16
      %v1379 = vrot.slane %v1377, 4
      %v1380 = vshll.u32 %v1202, 16
      %v1382 = vrot.slane %v1380, 5
      %v1383 = vor.u32 %v1379, %v1382
      %v1384 = vrot.slane %v1383, 4
      %v1386 = vshll.u32 %v1203, 16
      %v1388 = vrot.slane %v1386, 5
      %v1389 = vsel %vm1207, %v1384, %v1388
      %v1390 = vshrl.u32 %v1203, 16
      %v1392 = vrot.slane %v1390, 4
      %v1393 = vor.u32 %v1392, %v1388
      %v1394 = vrot.slane %v1393, 4
      %v1396 = vshll.u32 %v1204, 16
      %v1398 = vrot.slane %v1396, 5
      %v1399 = vsel %vm1207, %v1394, %v1398
      %s1400 = scalar_lea.vmem %s1, 128
      %v1401 = vld [vmem:[%s1400] sm:$0xf]
      %v1402 = vld [vmem:[%s1400 + $0x4] sm:$0xf]
      %v1403 = vld [vmem:[%s1400 + $0x8] sm:$0xf]
      %v1404 = vld [vmem:[%s1400 + $0xc] sm:$0xf]
      %v1405 = vld [vmem:[%s1400 + $0x10] sm:$0xf]
      %v1406 = vld [vmem:[%s1400 + $0x14] sm:$0xf]
      %v1407 = vld [vmem:[%s1400 + $0x18] sm:$0xf]
      %v1408 = vld [vmem:[%s1400 + $0x1c] sm:$0xf]
      %v1409 = vld [vmem:[%s1400 + $0x20] sm:$0xf]
      %v1410 = vld [vmem:[%s1400 + $0x24] sm:$0xf]
      %v1411 = vld [vmem:[%s1400 + $0x28] sm:$0xf]
      %v1412 = vld [vmem:[%s1400 + $0x2c] sm:$0xf]
      %v1413 = vld [vmem:[%s1400 + $0x30] sm:$0xf]
      %v1414 = vld [vmem:[%s1400 + $0x34] sm:$0xf]
      %v1415 = vld [vmem:[%s1400 + $0x38] sm:$0xf]
      %v1416 = vld [vmem:[%s1400 + $0x3c] sm:$0xf]
      %v1417 = vunpack.c.l.b16 %v1221
      %v1418 = vunpack.c.l.b16 %v1231
      %v1419 = vunpack.c.l.b16 %v1245
      %v1420 = vunpack.c.l.b16 %v1255
      %v1421 = vunpack.c.l.b16 %v1269
      %v1422 = vunpack.c.l.b16 %v1279
      %v1423 = vunpack.c.l.b16 %v1293
      %v1424 = vunpack.c.l.b16 %v1303
      %v1425 = vunpack.c.l.b16 %v1317
      %v1426 = vunpack.c.l.b16 %v1327
      %v1427 = vunpack.c.l.b16 %v1341
      %v1428 = vunpack.c.l.b16 %v1351
      %v1429 = vunpack.c.l.b16 %v1365
      %v1430 = vunpack.c.l.b16 %v1375
      %v1431 = vunpack.c.l.b16 %v1389
      %v1432 = vunpack.c.l.b16 %v1399
      %v1433 = vpack.c.b16 %v1418, %v1417
      %v1434 = vpack.c.b16 %v1420, %v1419
      %v1435 = vpack.c.b16 %v1422, %v1421
      %v1436 = vpack.c.b16 %v1424, %v1423
      %v1437 = vpack.c.b16 %v1426, %v1425
      %v1438 = vpack.c.b16 %v1428, %v1427
      %v1439 = vpack.c.b16 %v1430, %v1429
      %v1440 = vpack.c.b16 %v1432, %v1431
      %v1465 = vunpack.c.l.b16 %v1401
      %v1466 = vunpack.c.l.b16 %v1402
      %v1467 = vunpack.c.l.b16 %v1403
      %v1468 = vunpack.c.l.b16 %v1404
      %v1469 = vunpack.c.l.b16 %v1405
      %v1470 = vunpack.c.l.b16 %v1406
      %v1471 = vunpack.c.l.b16 %v1407
      %v1472 = vunpack.c.l.b16 %v1408
      %v1473 = vunpack.c.l.b16 %v1409
      %v1474 = vunpack.c.l.b16 %v1410
      %v1475 = vunpack.c.l.b16 %v1411
      %v1476 = vunpack.c.l.b16 %v1412
      %v1477 = vunpack.c.l.b16 %v1413
      %v1478 = vunpack.c.l.b16 %v1414
      %v1479 = vunpack.c.l.b16 %v1415
      %v1480 = vunpack.c.l.b16 %v1416
      %v1481 = vpack.c.b16 %v1466, %v1465
      %v1482 = vpack.c.b16 %v1468, %v1467
      %v1483 = vpack.c.b16 %v1470, %v1469
      %v1484 = vpack.c.b16 %v1472, %v1471
      %v1485 = vpack.c.b16 %v1474, %v1473
      %v1486 = vpack.c.b16 %v1476, %v1475
      %v1487 = vpack.c.b16 %v1478, %v1477
      %v1488 = vpack.c.b16 %v1480, %v1479
      %1497 = vmatprep.subr.bf16.mxu0 0
      %1498 = vmatpush1.bf16.msra.mxu0 %v1488
      %1499 = vmatprep.subr.bf16.mxu0 0
      %1500 = vmatpush1.bf16.msra.mxu0 %v1487
      %1501 = vmatprep.subr.bf16.mxu0 0
      %1502 = vmatpush1.bf16.msra.mxu0 %v1486
      %1503 = vmatprep.subr.bf16.mxu0 0
      %1504 = vmatpush1.bf16.msra.mxu0 %v1485
      %1505 = vmatprep.subr.bf16.mxu0 0
      %1506 = vmatpush1.bf16.msra.mxu0 %v1484
      %1507 = vmatprep.subr.bf16.mxu0 0
      %1508 = vmatpush1.bf16.msra.mxu0 %v1483
      %1509 = vmatprep.subr.bf16.mxu0 0
      %1510 = vmatpush1.bf16.msra.mxu0 %v1482
      %1511 = vmatprep.subr.bf16.mxu0 0
      %1512 = vmatpush1.bf16.msra.mxu0 %v1481
      %1513 = vmatprep.subr.bf16.mxu0 0
      %1514 = vmatpush2.bf16.msra.mxu0 0
      %1515 = vmatprep.subr.bf16.mxu0 0
      %1516 = vmatpush2.bf16.msra.mxu0 0
      %1517 = vmatprep.subr.bf16.mxu0 0
      %1518 = vmatpush2.bf16.msra.mxu0 0
      %1519 = vmatprep.subr.bf16.mxu0 0
      %1520 = vmatpush2.bf16.msra.mxu0 0
      %1521 = vmatprep.subr.bf16.mxu0 0
      %1522 = vmatpush2.bf16.msra.mxu0 0
      %1523 = vmatprep.subr.bf16.mxu0 0
      %1524 = vmatpush2.bf16.msra.mxu0 0
      %1525 = vmatprep.subr.bf16.mxu0 0
      %1526 = vmatpush2.bf16.msra.mxu0 0
      %1527 = vmatprep.subr.bf16.mxu0 0
      %1528 = vmatpush2.bf16.msra.mxu0 0
      %1529 = vmatprep.mubr.bf16.mxu0 0
      %1530 = vmatmul.mubr.bf16.gmra.mxu0 %v1433
      %v1531 = vpop.f32.mrf.mxu0
      %v1532 = vadd.f32 0.0, %v1531
      %v1533 = vpop.f32.mrf.mxu0
      %v1534 = vpop.f32.mrf.mxu0
      %v1535 = vadd.f32 0.0, %v1534
      %v1536 = vpop.f32.mrf.mxu0
      %1537 = vmatprep.mubr.bf16.mxu0 0
      %1538 = vmatmul.mubr.bf16.gmra.mxu0 %v1434
      %v1539 = vpop.f32.mrf.mxu0
      %v1540 = vadd.f32 0.0, %v1539
      %v1541 = vpop.f32.mrf.mxu0
      %v1542 = vpop.f32.mrf.mxu0
      %v1543 = vadd.f32 0.0, %v1542
      %v1544 = vpop.f32.mrf.mxu0
      %1545 = vmatprep.mubr.bf16.mxu0 0
      %1546 = vmatmul.mubr.bf16.gmra.mxu0 %v1435
      %v1547 = vpop.f32.mrf.mxu0
      %v1548 = vadd.f32 0.0, %v1547
      %v1549 = vpop.f32.mrf.mxu0
      %v1550 = vpop.f32.mrf.mxu0
      %v1551 = vadd.f32 0.0, %v1550
      %v1552 = vpop.f32.mrf.mxu0
      %1553 = vmatprep.mubr.bf16.mxu0 0
      %1554 = vmatmul.mubr.bf16.gmra.mxu0 %v1436
      %v1555 = vpop.f32.mrf.mxu0
      %v1556 = vadd.f32 0.0, %v1555
      %v1557 = vpop.f32.mrf.mxu0
      %v1558 = vpop.f32.mrf.mxu0
      %v1559 = vadd.f32 0.0, %v1558
      %v1560 = vpop.f32.mrf.mxu0
      %1561 = vmatprep.mubr.bf16.mxu0 0
      %1562 = vmatmul.mubr.bf16.gmra.mxu0 %v1437
      %v1563 = vpop.f32.mrf.mxu0
      %v1564 = vadd.f32 0.0, %v1563
      %v1565 = vpop.f32.mrf.mxu0
      %v1566 = vpop.f32.mrf.mxu0
      %v1567 = vadd.f32 0.0, %v1566
      %v1568 = vpop.f32.mrf.mxu0
      %1569 = vmatprep.mubr.bf16.mxu0 0
      %1570 = vmatmul.mubr.bf16.gmra.mxu0 %v1438
      %v1571 = vpop.f32.mrf.mxu0
      %v1572 = vadd.f32 0.0, %v1571
      %v1573 = vpop.f32.mrf.mxu0
      %v1574 = vpop.f32.mrf.mxu0
      %v1575 = vadd.f32 0.0, %v1574
      %v1576 = vpop.f32.mrf.mxu0
      %1577 = vmatprep.mubr.bf16.mxu0 0
      %1578 = vmatmul.mubr.bf16.gmra.mxu0 %v1439
      %v1579 = vpop.f32.mrf.mxu0
      %v1580 = vadd.f32 0.0, %v1579
      %v1581 = vpop.f32.mrf.mxu0
      %v1582 = vpop.f32.mrf.mxu0
      %v1583 = vadd.f32 0.0, %v1582
      %v1584 = vpop.f32.mrf.mxu0
      %1585 = vmatprep.mubr.bf16.mxu0 0
      %1586 = vmatmul.mubr.bf16.gmra.mxu0 %v1440
      %v1587 = vpop.f32.mrf.mxu0
      %v1588 = vadd.f32 0.0, %v1587
      %v1589 = vpop.f32.mrf.mxu0
      %v1590 = vpop.f32.mrf.mxu0
      %v1591 = vadd.f32 0.0, %v1590
      %v1592 = vpop.f32.mrf.mxu0
      %1593 = vdwg.mxu0
      %v1594 = vadd.f32 %v1119, %v1532
      %v1595 = vadd.f32 %v1122, %v1535
      %v1596 = vadd.f32 %v1127, %v1540
      %v1597 = vadd.f32 %v1130, %v1543
      %v1598 = vadd.f32 %v1135, %v1548
      %v1599 = vadd.f32 %v1138, %v1551
      %v1600 = vadd.f32 %v1143, %v1556
      %v1601 = vadd.f32 %v1146, %v1559
      %v1602 = vadd.f32 %v1151, %v1564
      %v1603 = vadd.f32 %v1154, %v1567
      %v1604 = vadd.f32 %v1159, %v1572
      %v1605 = vadd.f32 %v1162, %v1575
      %v1606 = vadd.f32 %v1167, %v1580
      %v1607 = vadd.f32 %v1170, %v1583
      %v1608 = vadd.f32 %v1175, %v1588
      %v1609 = vadd.f32 %v1178, %v1591
      %v1610 = vld [vmem:[%s501] sm:$0x8]
      %v1611 = vld [vmem:[%s501 + $0x4] sm:$0xf]
      %v1612 = vld [vmem:[%s501 + $0x8] sm:$0xf]
      %v1613 = vld [vmem:[%s501 + $0x10] sm:$0x8]
      %v1614 = vld [vmem:[%s501 + $0x14] sm:$0xf]
      %v1615 = vld [vmem:[%s501 + $0x18] sm:$0xf]
      %v1616 = vld [vmem:[%s501 + $0x20] sm:$0x8]
      %v1617 = vld [vmem:[%s501 + $0x24] sm:$0xf]
      %v1618 = vld [vmem:[%s501 + $0x28] sm:$0xf]
      %v1619 = vld [vmem:[%s501 + $0x30] sm:$0x8]
      %v1620 = vld [vmem:[%s501 + $0x34] sm:$0xf]
      %v1621 = vld [vmem:[%s501 + $0x38] sm:$0xf]
      %v1622 = vld [vmem:[%s501 + $0x40] sm:$0x8]
      %v1623 = vld [vmem:[%s501 + $0x44] sm:$0xf]
      %v1624 = vld [vmem:[%s501 + $0x48] sm:$0xf]
      %v1625 = vld [vmem:[%s501 + $0x50] sm:$0x8]
      %v1626 = vld [vmem:[%s501 + $0x54] sm:$0xf]
      %v1627 = vld [vmem:[%s501 + $0x58] sm:$0xf]
      %v1628 = vld [vmem:[%s501 + $0x60] sm:$0x8]
      %v1629 = vld [vmem:[%s501 + $0x64] sm:$0xf]
      %v1630 = vld [vmem:[%s501 + $0x68] sm:$0xf]
      %v1631 = vld [vmem:[%s501 + $0x70] sm:$0x8]
      %v1632 = vld [vmem:[%s501 + $0x74] sm:$0xf]
      %v1633 = vld [vmem:[%s501 + $0x78] sm:$0xf]
      %v1635 = vshrl.u32 %v1610, 16
      %v1637 = vrot.slane %v1635, 7
      %v1638 = vrot.slane %v1637, 4
      %v1640 = vshrl.u32 %v1611, 16
      %v1642 = vrot.slane %v1640, 7
      %v1643 = vshll.u32 %v1611, 16
      %v1645 = vor.u32 %v1642, %v1643
      %v1646 = vsel %vm601, %v1638, %v1645
      %v1647 = vrot.slane %v1642, 4
      %v1649 = vshrl.u32 %v1612, 16
      %v1651 = vrot.slane %v1649, 7
      %v1652 = vshll.u32 %v1612, 16
      %v1654 = vor.u32 %v1651, %v1652
      %v1655 = vsel %vm601, %v1647, %v1654
      %v1657 = vshrl.u32 %v1613, 16
      %v1659 = vrot.slane %v1657, 7
      %v1660 = vrot.slane %v1659, 4
      %v1662 = vshrl.u32 %v1614, 16
      %v1664 = vrot.slane %v1662, 7
      %v1665 = vshll.u32 %v1614, 16
      %v1667 = vor.u32 %v1664, %v1665
      %v1668 = vsel %vm601, %v1660, %v1667
      %v1669 = vrot.slane %v1664, 4
      %v1671 = vshrl.u32 %v1615, 16
      %v1673 = vrot.slane %v1671, 7
      %v1674 = vshll.u32 %v1615, 16
      %v1676 = vor.u32 %v1673, %v1674
      %v1677 = vsel %vm601, %v1669, %v1676
      %v1679 = vshrl.u32 %v1616, 16
      %v1681 = vrot.slane %v1679, 7
      %v1682 = vrot.slane %v1681, 4
      %v1684 = vshrl.u32 %v1617, 16
      %v1686 = vrot.slane %v1684, 7
      %v1687 = vshll.u32 %v1617, 16
      %v1689 = vor.u32 %v1686, %v1687
      %v1690 = vsel %vm601, %v1682, %v1689
      %v1691 = vrot.slane %v1686, 4
      %v1693 = vshrl.u32 %v1618, 16
      %v1695 = vrot.slane %v1693, 7
      %v1696 = vshll.u32 %v1618, 16
      %v1698 = vor.u32 %v1695, %v1696
      %v1699 = vsel %vm601, %v1691, %v1698
      %v1701 = vshrl.u32 %v1619, 16
      %v1703 = vrot.slane %v1701, 7
      %v1704 = vrot.slane %v1703, 4
      %v1706 = vshrl.u32 %v1620, 16
      %v1708 = vrot.slane %v1706, 7
      %v1709 = vshll.u32 %v1620, 16
      %v1711 = vor.u32 %v1708, %v1709
      %v1712 = vsel %vm601, %v1704, %v1711
      %v1713 = vrot.slane %v1708, 4
      %v1715 = vshrl.u32 %v1621, 16
      %v1717 = vrot.slane %v1715, 7
      %v1718 = vshll.u32 %v1621, 16
      %v1720 = vor.u32 %v1717, %v1718
      %v1721 = vsel %vm601, %v1713, %v1720
      %v1723 = vshrl.u32 %v1622, 16
      %v1725 = vrot.slane %v1723, 7
      %v1726 = vrot.slane %v1725, 4
      %v1728 = vshrl.u32 %v1623, 16
      %v1730 = vrot.slane %v1728, 7
      %v1731 = vshll.u32 %v1623, 16
      %v1733 = vor.u32 %v1730, %v1731
      %v1734 = vsel %vm601, %v1726, %v1733
      %v1735 = vrot.slane %v1730, 4
      %v1737 = vshrl.u32 %v1624, 16
      %v1739 = vrot.slane %v1737, 7
      %v1740 = vshll.u32 %v1624, 16
      %v1742 = vor.u32 %v1739, %v1740
      %v1743 = vsel %vm601, %v1735, %v1742
      %v1745 = vshrl.u32 %v1625, 16
      %v1747 = vrot.slane %v1745, 7
      %v1748 = vrot.slane %v1747, 4
      %v1750 = vshrl.u32 %v1626, 16
      %v1752 = vrot.slane %v1750, 7
      %v1753 = vshll.u32 %v1626, 16
      %v1755 = vor.u32 %v1752, %v1753
      %v1756 = vsel %vm601, %v1748, %v1755
      %v1757 = vrot.slane %v1752, 4
      %v1759 = vshrl.u32 %v1627, 16
      %v1761 = vrot.slane %v1759, 7
      %v1762 = vshll.u32 %v1627, 16
      %v1764 = vor.u32 %v1761, %v1762
      %v1765 = vsel %vm601, %v1757, %v1764
      %v1767 = vshrl.u32 %v1628, 16
      %v1769 = vrot.slane %v1767, 7
      %v1770 = vrot.slane %v1769, 4
      %v1772 = vshrl.u32 %v1629, 16
      %v1774 = vrot.slane %v1772, 7
      %v1775 = vshll.u32 %v1629, 16
      %v1777 = vor.u32 %v1774, %v1775
      %v1778 = vsel %vm601, %v1770, %v1777
      %v1779 = vrot.slane %v1774, 4
      %v1781 = vshrl.u32 %v1630, 16
      %v1783 = vrot.slane %v1781, 7
      %v1784 = vshll.u32 %v1630, 16
      %v1786 = vor.u32 %v1783, %v1784
      %v1787 = vsel %vm601, %v1779, %v1786
      %v1789 = vshrl.u32 %v1631, 16
      %v1791 = vrot.slane %v1789, 7
      %v1792 = vrot.slane %v1791, 4
      %v1794 = vshrl.u32 %v1632, 16
      %v1796 = vrot.slane %v1794, 7
      %v1797 = vshll.u32 %v1632, 16
      %v1799 = vor.u32 %v1796, %v1797
      %v1800 = vsel %vm601, %v1792, %v1799
      %v1801 = vrot.slane %v1796, 4
      %v1803 = vshrl.u32 %v1633, 16
      %v1805 = vrot.slane %v1803, 7
      %v1806 = vshll.u32 %v1633, 16
      %v1808 = vor.u32 %v1805, %v1806
      %v1809 = vsel %vm601, %v1801, %v1808
      %s1810 = scalar_lea.vmem %s1, 192
      %v1811 = vld [vmem:[%s1810] sm:$0xf]
      %v1812 = vld [vmem:[%s1810 + $0x4] sm:$0xf]
      %v1813 = vld [vmem:[%s1810 + $0x8] sm:$0xf]
      %v1814 = vld [vmem:[%s1810 + $0xc] sm:$0xf]
      %v1815 = vld [vmem:[%s1810 + $0x10] sm:$0xf]
      %v1816 = vld [vmem:[%s1810 + $0x14] sm:$0xf]
      %v1817 = vld [vmem:[%s1810 + $0x18] sm:$0xf]
      %v1818 = vld [vmem:[%s1810 + $0x1c] sm:$0xf]
      %v1819 = vld [vmem:[%s1810 + $0x20] sm:$0xf]
      %v1820 = vld [vmem:[%s1810 + $0x24] sm:$0xf]
      %v1821 = vld [vmem:[%s1810 + $0x28] sm:$0xf]
      %v1822 = vld [vmem:[%s1810 + $0x2c] sm:$0xf]
      %v1823 = vld [vmem:[%s1810 + $0x30] sm:$0xf]
      %v1824 = vld [vmem:[%s1810 + $0x34] sm:$0xf]
      %v1825 = vld [vmem:[%s1810 + $0x38] sm:$0xf]
      %v1826 = vld [vmem:[%s1810 + $0x3c] sm:$0xf]
      %v1827 = vunpack.c.l.b16 %v1646
      %v1828 = vunpack.c.l.b16 %v1655
      %v1829 = vunpack.c.l.b16 %v1668
      %v1830 = vunpack.c.l.b16 %v1677
      %v1831 = vunpack.c.l.b16 %v1690
      %v1832 = vunpack.c.l.b16 %v1699
      %v1833 = vunpack.c.l.b16 %v1712
      %v1834 = vunpack.c.l.b16 %v1721
      %v1835 = vunpack.c.l.b16 %v1734
      %v1836 = vunpack.c.l.b16 %v1743
      %v1837 = vunpack.c.l.b16 %v1756
      %v1838 = vunpack.c.l.b16 %v1765
      %v1839 = vunpack.c.l.b16 %v1778
      %v1840 = vunpack.c.l.b16 %v1787
      %v1841 = vunpack.c.l.b16 %v1800
      %v1842 = vunpack.c.l.b16 %v1809
      %v1843 = vpack.c.b16 %v1828, %v1827
      %v1844 = vpack.c.b16 %v1830, %v1829
      %v1845 = vpack.c.b16 %v1832, %v1831
      %v1846 = vpack.c.b16 %v1834, %v1833
      %v1847 = vpack.c.b16 %v1836, %v1835
      %v1848 = vpack.c.b16 %v1838, %v1837
      %v1849 = vpack.c.b16 %v1840, %v1839
      %v1850 = vpack.c.b16 %v1842, %v1841
      %v1875 = vunpack.c.l.b16 %v1811
      %v1876 = vunpack.c.l.b16 %v1812
      %v1877 = vunpack.c.l.b16 %v1813
      %v1878 = vunpack.c.l.b16 %v1814
      %v1879 = vunpack.c.l.b16 %v1815
      %v1880 = vunpack.c.l.b16 %v1816
      %v1881 = vunpack.c.l.b16 %v1817
      %v1882 = vunpack.c.l.b16 %v1818
      %v1883 = vunpack.c.l.b16 %v1819
      %v1884 = vunpack.c.l.b16 %v1820
      %v1885 = vunpack.c.l.b16 %v1821
      %v1886 = vunpack.c.l.b16 %v1822
      %v1887 = vunpack.c.l.b16 %v1823
      %v1888 = vunpack.c.l.b16 %v1824
      %v1889 = vunpack.c.l.b16 %v1825
      %v1890 = vunpack.c.l.b16 %v1826
      %v1891 = vpack.c.b16 %v1876, %v1875
      %v1892 = vpack.c.b16 %v1878, %v1877
      %v1893 = vpack.c.b16 %v1880, %v1879
      %v1894 = vpack.c.b16 %v1882, %v1881
      %v1895 = vpack.c.b16 %v1884, %v1883
      %v1896 = vpack.c.b16 %v1886, %v1885
      %v1897 = vpack.c.b16 %v1888, %v1887
      %v1898 = vpack.c.b16 %v1890, %v1889
      %1907 = vmatprep.subr.bf16.mxu0 0
      %1908 = vmatpush1.bf16.msra.mxu0 %v1898
      %1909 = vmatprep.subr.bf16.mxu0 0
      %1910 = vmatpush1.bf16.msra.mxu0 %v1897
      %1911 = vmatprep.subr.bf16.mxu0 0
      %1912 = vmatpush1.bf16.msra.mxu0 %v1896
      %1913 = vmatprep.subr.bf16.mxu0 0
      %1914 = vmatpush1.bf16.msra.mxu0 %v1895
      %1915 = vmatprep.subr.bf16.mxu0 0
      %1916 = vmatpush1.bf16.msra.mxu0 %v1894
      %1917 = vmatprep.subr.bf16.mxu0 0
      %1918 = vmatpush1.bf16.msra.mxu0 %v1893
      %1919 = vmatprep.subr.bf16.mxu0 0
      %1920 = vmatpush1.bf16.msra.mxu0 %v1892
      %1921 = vmatprep.subr.bf16.mxu0 0
      %1922 = vmatpush1.bf16.msra.mxu0 %v1891
      %1923 = vmatprep.subr.bf16.mxu0 0
      %1924 = vmatpush2.bf16.msra.mxu0 0
      %1925 = vmatprep.subr.bf16.mxu0 0
      %1926 = vmatpush2.bf16.msra.mxu0 0
      %1927 = vmatprep.subr.bf16.mxu0 0
      %1928 = vmatpush2.bf16.msra.mxu0 0
      %1929 = vmatprep.subr.bf16.mxu0 0
      %1930 = vmatpush2.bf16.msra.mxu0 0
      %1931 = vmatprep.subr.bf16.mxu0 0
      %1932 = vmatpush2.bf16.msra.mxu0 0
      %1933 = vmatprep.subr.bf16.mxu0 0
      %1934 = vmatpush2.bf16.msra.mxu0 0
      %1935 = vmatprep.subr.bf16.mxu0 0
      %1936 = vmatpush2.bf16.msra.mxu0 0
      %1937 = vmatprep.subr.bf16.mxu0 0
      %1938 = vmatpush2.bf16.msra.mxu0 0
      %1939 = vmatprep.mubr.bf16.mxu0 0
      %1940 = vmatmul.mubr.bf16.gmra.mxu0 %v1843
      %v1941 = vpop.f32.mrf.mxu0
      %v1942 = vadd.f32 0.0, %v1941
      %v1943 = vpop.f32.mrf.mxu0
      %v1944 = vpop.f32.mrf.mxu0
      %v1945 = vadd.f32 0.0, %v1944
      %v1946 = vpop.f32.mrf.mxu0
      %1947 = vmatprep.mubr.bf16.mxu0 0
      %1948 = vmatmul.mubr.bf16.gmra.mxu0 %v1844
      %v1949 = vpop.f32.mrf.mxu0
      %v1950 = vadd.f32 0.0, %v1949
      %v1951 = vpop.f32.mrf.mxu0
      %v1952 = vpop.f32.mrf.mxu0
      %v1953 = vadd.f32 0.0, %v1952
      %v1954 = vpop.f32.mrf.mxu0
      %1955 = vmatprep.mubr.bf16.mxu0 0
      %1956 = vmatmul.mubr.bf16.gmra.mxu0 %v1845
      %v1957 = vpop.f32.mrf.mxu0
      %v1958 = vadd.f32 0.0, %v1957
      %v1959 = vpop.f32.mrf.mxu0
      %v1960 = vpop.f32.mrf.mxu0
      %v1961 = vadd.f32 0.0, %v1960
      %v1962 = vpop.f32.mrf.mxu0
      %1963 = vmatprep.mubr.bf16.mxu0 0
      %1964 = vmatmul.mubr.bf16.gmra.mxu0 %v1846
      %v1965 = vpop.f32.mrf.mxu0
      %v1966 = vadd.f32 0.0, %v1965
      %v1967 = vpop.f32.mrf.mxu0
      %v1968 = vpop.f32.mrf.mxu0
      %v1969 = vadd.f32 0.0, %v1968
      %v1970 = vpop.f32.mrf.mxu0
      %1971 = vmatprep.mubr.bf16.mxu0 0
      %1972 = vmatmul.mubr.bf16.gmra.mxu0 %v1847
      %v1973 = vpop.f32.mrf.mxu0
      %v1974 = vadd.f32 0.0, %v1973
      %v1975 = vpop.f32.mrf.mxu0
      %v1976 = vpop.f32.mrf.mxu0
      %v1977 = vadd.f32 0.0, %v1976
      %v1978 = vpop.f32.mrf.mxu0
      %1979 = vmatprep.mubr.bf16.mxu0 0
      %1980 = vmatmul.mubr.bf16.gmra.mxu0 %v1848
      %v1981 = vpop.f32.mrf.mxu0
      %v1982 = vadd.f32 0.0, %v1981
      %v1983 = vpop.f32.mrf.mxu0
      %v1984 = vpop.f32.mrf.mxu0
      %v1985 = vadd.f32 0.0, %v1984
      %v1986 = vpop.f32.mrf.mxu0
      %1987 = vmatprep.mubr.bf16.mxu0 0
      %1988 = vmatmul.mubr.bf16.gmra.mxu0 %v1849
      %v1989 = vpop.f32.mrf.mxu0
      %v1990 = vadd.f32 0.0, %v1989
      %v1991 = vpop.f32.mrf.mxu0
      %v1992 = vpop.f32.mrf.mxu0
      %v1993 = vadd.f32 0.0, %v1992
      %v1994 = vpop.f32.mrf.mxu0
      %1995 = vmatprep.mubr.bf16.mxu0 0
      %1996 = vmatmul.mubr.bf16.gmra.mxu0 %v1850
      %v1997 = vpop.f32.mrf.mxu0
      %v1998 = vadd.f32 0.0, %v1997
      %v1999 = vpop.f32.mrf.mxu0
      %v2000 = vpop.f32.mrf.mxu0
      %v2001 = vadd.f32 0.0, %v2000
      %v2002 = vpop.f32.mrf.mxu0
      %2003 = vdwg.mxu0
      %v2004 = vadd.f32 %v1594, %v1942
      %v2005 = vadd.f32 %v1595, %v1945
      %v2006 = vadd.f32 %v1596, %v1950
      %v2007 = vadd.f32 %v1597, %v1953
      %v2008 = vadd.f32 %v1598, %v1958
      %v2009 = vadd.f32 %v1599, %v1961
      %v2010 = vadd.f32 %v1600, %v1966
      %v2011 = vadd.f32 %v1601, %v1969
      %v2012 = vadd.f32 %v1602, %v1974
      %v2013 = vadd.f32 %v1603, %v1977
      %v2014 = vadd.f32 %v1604, %v1982
      %v2015 = vadd.f32 %v1605, %v1985
      %v2016 = vadd.f32 %v1606, %v1990
      %v2017 = vadd.f32 %v1607, %v1993
      %v2018 = vadd.f32 %v1608, %v1998
      %v2019 = vadd.f32 %v1609, %v2001
      %s2020 = scalar_lea.vmem %s1, 256
      %v2021 = vld [vmem:[%s2020] sm:$0xf]
      %v2022 = vld [vmem:[%s2020 + $0x4] sm:$0xf]
      %v2023 = vld [vmem:[%s2020 + $0x8] sm:$0xf]
      %v2024 = vld [vmem:[%s2020 + $0xc] sm:$0xf]
      %v2025 = vld [vmem:[%s2020 + $0x10] sm:$0xf]
      %v2026 = vld [vmem:[%s2020 + $0x14] sm:$0xf]
      %v2027 = vld [vmem:[%s2020 + $0x18] sm:$0xf]
      %v2028 = vld [vmem:[%s2020 + $0x1c] sm:$0xf]
      %v2029 = vld [vmem:[%s2020 + $0x20] sm:$0xf]
      %v2030 = vld [vmem:[%s2020 + $0x24] sm:$0xf]
      %v2031 = vld [vmem:[%s2020 + $0x28] sm:$0xf]
      %v2032 = vld [vmem:[%s2020 + $0x2c] sm:$0xf]
      %v2033 = vld [vmem:[%s2020 + $0x30] sm:$0xf]
      %v2034 = vld [vmem:[%s2020 + $0x34] sm:$0xf]
      %v2035 = vld [vmem:[%s2020 + $0x38] sm:$0xf]
      %v2036 = vld [vmem:[%s2020 + $0x3c] sm:$0xf]
      %v2053 = vunpack.c.l.b16 %v1611
      %v2054 = vunpack.c.l.b16 %v1612
      %v2055 = vunpack.c.l.b16 %v1614
      %v2056 = vunpack.c.l.b16 %v1615
      %v2057 = vunpack.c.l.b16 %v1617
      %v2058 = vunpack.c.l.b16 %v1618
      %v2059 = vunpack.c.l.b16 %v1620
      %v2060 = vunpack.c.l.b16 %v1621
      %v2061 = vunpack.c.l.b16 %v1623
      %v2062 = vunpack.c.l.b16 %v1624
      %v2063 = vunpack.c.l.b16 %v1626
      %v2064 = vunpack.c.l.b16 %v1627
      %v2065 = vunpack.c.l.b16 %v1629
      %v2066 = vunpack.c.l.b16 %v1630
      %v2067 = vunpack.c.l.b16 %v1632
      %v2068 = vunpack.c.l.b16 %v1633
      %v2069 = vpack.c.b16 %v2054, %v2053
      %v2070 = vpack.c.b16 %v2056, %v2055
      %v2071 = vpack.c.b16 %v2058, %v2057
      %v2072 = vpack.c.b16 %v2060, %v2059
      %v2073 = vpack.c.b16 %v2062, %v2061
      %v2074 = vpack.c.b16 %v2064, %v2063
      %v2075 = vpack.c.b16 %v2066, %v2065
      %v2076 = vpack.c.b16 %v2068, %v2067
      %v2101 = vunpack.c.l.b16 %v2021
      %v2102 = vunpack.c.l.b16 %v2022
      %v2103 = vunpack.c.l.b16 %v2023
      %v2104 = vunpack.c.l.b16 %v2024
      %v2105 = vunpack.c.l.b16 %v2025
      %v2106 = vunpack.c.l.b16 %v2026
      %v2107 = vunpack.c.l.b16 %v2027
      %v2108 = vunpack.c.l.b16 %v2028
      %v2109 = vunpack.c.l.b16 %v2029
      %v2110 = vunpack.c.l.b16 %v2030
      %v2111 = vunpack.c.l.b16 %v2031
      %v2112 = vunpack.c.l.b16 %v2032
      %v2113 = vunpack.c.l.b16 %v2033
      %v2114 = vunpack.c.l.b16 %v2034
      %v2115 = vunpack.c.l.b16 %v2035
      %v2116 = vunpack.c.l.b16 %v2036
      %v2117 = vpack.c.b16 %v2102, %v2101
      %v2118 = vpack.c.b16 %v2104, %v2103
      %v2119 = vpack.c.b16 %v2106, %v2105
      %v2120 = vpack.c.b16 %v2108, %v2107
      %v2121 = vpack.c.b16 %v2110, %v2109
      %v2122 = vpack.c.b16 %v2112, %v2111
      %v2123 = vpack.c.b16 %v2114, %v2113
      %v2124 = vpack.c.b16 %v2116, %v2115
      %2133 = vmatprep.subr.bf16.mxu0 0
      %2134 = vmatpush1.bf16.msra.mxu0 %v2124
      %2135 = vmatprep.subr.bf16.mxu0 0
      %2136 = vmatpush1.bf16.msra.mxu0 %v2123
      %2137 = vmatprep.subr.bf16.mxu0 0
      %2138 = vmatpush1.bf16.msra.mxu0 %v2122
      %2139 = vmatprep.subr.bf16.mxu0 0
      %2140 = vmatpush1.bf16.msra.mxu0 %v2121
      %2141 = vmatprep.subr.bf16.mxu0 0
      %2142 = vmatpush1.bf16.msra.mxu0 %v2120
      %2143 = vmatprep.subr.bf16.mxu0 0
      %2144 = vmatpush1.bf16.msra.mxu0 %v2119
      %2145 = vmatprep.subr.bf16.mxu0 0
      %2146 = vmatpush1.bf16.msra.mxu0 %v2118
      %2147 = vmatprep.subr.bf16.mxu0 0
      %2148 = vmatpush1.bf16.msra.mxu0 %v2117
      %2149 = vmatprep.subr.bf16.mxu0 0
      %2150 = vmatpush2.bf16.msra.mxu0 0
      %2151 = vmatprep.subr.bf16.mxu0 0
      %2152 = vmatpush2.bf16.msra.mxu0 0
      %2153 = vmatprep.subr.bf16.mxu0 0
      %2154 = vmatpush2.bf16.msra.mxu0 0
      %2155 = vmatprep.subr.bf16.mxu0 0
      %2156 = vmatpush2.bf16.msra.mxu0 0
      %2157 = vmatprep.subr.bf16.mxu0 0
      %2158 = vmatpush2.bf16.msra.mxu0 0
      %2159 = vmatprep.subr.bf16.mxu0 0
      %2160 = vmatpush2.bf16.msra.mxu0 0
      %2161 = vmatprep.subr.bf16.mxu0 0
      %2162 = vmatpush2.bf16.msra.mxu0 0
      %2163 = vmatprep.subr.bf16.mxu0 0
      %2164 = vmatpush2.bf16.msra.mxu0 0
      %2165 = vmatprep.mubr.bf16.mxu0 0
      %2166 = vmatmul.mubr.bf16.gmra.mxu0 %v2069
      %v2167 = vpop.f32.mrf.mxu0
      %v2168 = vadd.f32 0.0, %v2167
      %v2169 = vpop.f32.mrf.mxu0
      %v2170 = vpop.f32.mrf.mxu0
      %v2171 = vadd.f32 0.0, %v2170
      %v2172 = vpop.f32.mrf.mxu0
      %2173 = vmatprep.mubr.bf16.mxu0 0
      %2174 = vmatmul.mubr.bf16.gmra.mxu0 %v2070
      %v2175 = vpop.f32.mrf.mxu0
      %v2176 = vadd.f32 0.0, %v2175
      %v2177 = vpop.f32.mrf.mxu0
      %v2178 = vpop.f32.mrf.mxu0
      %v2179 = vadd.f32 0.0, %v2178
      %v2180 = vpop.f32.mrf.mxu0
      %2181 = vmatprep.mubr.bf16.mxu0 0
      %2182 = vmatmul.mubr.bf16.gmra.mxu0 %v2071
      %v2183 = vpop.f32.mrf.mxu0
      %v2184 = vadd.f32 0.0, %v2183
      %v2185 = vpop.f32.mrf.mxu0
      %v2186 = vpop.f32.mrf.mxu0
      %v2187 = vadd.f32 0.0, %v2186
      %v2188 = vpop.f32.mrf.mxu0
      %2189 = vmatprep.mubr.bf16.mxu0 0
      %2190 = vmatmul.mubr.bf16.gmra.mxu0 %v2072
      %v2191 = vpop.f32.mrf.mxu0
      %v2192 = vadd.f32 0.0, %v2191
      %v2193 = vpop.f32.mrf.mxu0
      %v2194 = vpop.f32.mrf.mxu0
      %v2195 = vadd.f32 0.0, %v2194
      %v2196 = vpop.f32.mrf.mxu0
      %2197 = vmatprep.mubr.bf16.mxu0 0
      %2198 = vmatmul.mubr.bf16.gmra.mxu0 %v2073
      %v2199 = vpop.f32.mrf.mxu0
      %v2200 = vadd.f32 0.0, %v2199
      %v2201 = vpop.f32.mrf.mxu0
      %v2202 = vpop.f32.mrf.mxu0
      %v2203 = vadd.f32 0.0, %v2202
      %v2204 = vpop.f32.mrf.mxu0
      %2205 = vmatprep.mubr.bf16.mxu0 0
      %2206 = vmatmul.mubr.bf16.gmra.mxu0 %v2074
      %v2207 = vpop.f32.mrf.mxu0
      %v2208 = vadd.f32 0.0, %v2207
      %v2209 = vpop.f32.mrf.mxu0
      %v2210 = vpop.f32.mrf.mxu0
      %v2211 = vadd.f32 0.0, %v2210
      %v2212 = vpop.f32.mrf.mxu0
      %2213 = vmatprep.mubr.bf16.mxu0 0
      %2214 = vmatmul.mubr.bf16.gmra.mxu0 %v2075
      %v2215 = vpop.f32.mrf.mxu0
      %v2216 = vadd.f32 0.0, %v2215
      %v2217 = vpop.f32.mrf.mxu0
      %v2218 = vpop.f32.mrf.mxu0
      %v2219 = vadd.f32 0.0, %v2218
      %v2220 = vpop.f32.mrf.mxu0
      %2221 = vmatprep.mubr.bf16.mxu0 0
      %2222 = vmatmul.mubr.bf16.gmra.mxu0 %v2076
      %v2223 = vpop.f32.mrf.mxu0
      %v2224 = vadd.f32 0.0, %v2223
      %v2225 = vpop.f32.mrf.mxu0
      %v2226 = vpop.f32.mrf.mxu0
      %v2227 = vadd.f32 0.0, %v2226
      %v2228 = vpop.f32.mrf.mxu0
      %2229 = vdwg.mxu0
      %v2230 = vadd.f32 %v2004, %v2168
      %v2231 = vadd.f32 %v2005, %v2171
      %v2232 = vadd.f32 %v2006, %v2176
      %v2233 = vadd.f32 %v2007, %v2179
      %v2234 = vadd.f32 %v2008, %v2184
      %v2235 = vadd.f32 %v2009, %v2187
      %v2236 = vadd.f32 %v2010, %v2192
      %v2237 = vadd.f32 %v2011, %v2195
      %v2238 = vadd.f32 %v2012, %v2200
      %v2239 = vadd.f32 %v2013, %v2203
      %v2240 = vadd.f32 %v2014, %v2208
      %v2241 = vadd.f32 %v2015, %v2211
      %v2242 = vadd.f32 %v2016, %v2216
      %v2243 = vadd.f32 %v2017, %v2219
      %v2244 = vadd.f32 %v2018, %v2224
      %v2245 = vadd.f32 %v2019, %v2227
      %v2246 = vld [vmem:[%s501 + $0x4] sm:$0xf]
      %v2247 = vld [vmem:[%s501 + $0x8] sm:$0xf]
      %v2248 = vld [vmem:[%s501 + $0xc] sm:$0x1]
      %v2249 = vld [vmem:[%s501 + $0x14] sm:$0xf]
      %v2250 = vld [vmem:[%s501 + $0x18] sm:$0xf]
      %v2251 = vld [vmem:[%s501 + $0x1c] sm:$0x1]
      %v2252 = vld [vmem:[%s501 + $0x24] sm:$0xf]
      %v2253 = vld [vmem:[%s501 + $0x28] sm:$0xf]
      %v2254 = vld [vmem:[%s501 + $0x2c] sm:$0x1]
      %v2255 = vld [vmem:[%s501 + $0x34] sm:$0xf]
      %v2256 = vld [vmem:[%s501 + $0x38] sm:$0xf]
      %v2257 = vld [vmem:[%s501 + $0x3c] sm:$0x1]
      %v2258 = vld [vmem:[%s501 + $0x44] sm:$0xf]
      %v2259 = vld [vmem:[%s501 + $0x48] sm:$0xf]
      %v2260 = vld [vmem:[%s501 + $0x4c] sm:$0x1]
      %v2261 = vld [vmem:[%s501 + $0x54] sm:$0xf]
      %v2262 = vld [vmem:[%s501 + $0x58] sm:$0xf]
      %v2263 = vld [vmem:[%s501 + $0x5c] sm:$0x1]
      %v2264 = vld [vmem:[%s501 + $0x64] sm:$0xf]
      %v2265 = vld [vmem:[%s501 + $0x68] sm:$0xf]
      %v2266 = vld [vmem:[%s501 + $0x6c] sm:$0x1]
      %v2267 = vld [vmem:[%s501 + $0x74] sm:$0xf]
      %v2268 = vld [vmem:[%s501 + $0x78] sm:$0xf]
      %v2269 = vld [vmem:[%s501 + $0x7c] sm:$0x1]
      %v2271 = vshrl.u32 %v2246, 16
      %v2273 = vrot.slane %v2271, 4
      %v2274 = vshll.u32 %v2246, 16
      %v2276 = vrot.slane %v2274, 5
      %v2277 = vor.u32 %v2273, %v2276
      %v2278 = vrot.slane %v2277, 4
      %v2280 = vshll.u32 %v2247, 16
      %v2282 = vrot.slane %v2280, 5
      %v2283 = vsel %vm1207, %v2278, %v2282
      %v2284 = vshrl.u32 %v2247, 16
      %v2286 = vrot.slane %v2284, 4
      %v2287 = vor.u32 %v2286, %v2282
      %v2288 = vrot.slane %v2287, 4
      %v2290 = vshll.u32 %v2248, 16
      %v2292 = vrot.slane %v2290, 5
      %v2293 = vsel %vm1207, %v2288, %v2292
      %v2295 = vshrl.u32 %v2249, 16
      %v2297 = vrot.slane %v2295, 4
      %v2298 = vshll.u32 %v2249, 16
      %v2300 = vrot.slane %v2298, 5
      %v2301 = vor.u32 %v2297, %v2300
      %v2302 = vrot.slane %v2301, 4
      %v2304 = vshll.u32 %v2250, 16
      %v2306 = vrot.slane %v2304, 5
      %v2307 = vsel %vm1207, %v2302, %v2306
      %v2308 = vshrl.u32 %v2250, 16
      %v2310 = vrot.slane %v2308, 4
      %v2311 = vor.u32 %v2310, %v2306
      %v2312 = vrot.slane %v2311, 4
      %v2314 = vshll.u32 %v2251, 16
      %v2316 = vrot.slane %v2314, 5
      %v2317 = vsel %vm1207, %v2312, %v2316
      %v2319 = vshrl.u32 %v2252, 16
      %v2321 = vrot.slane %v2319, 4
      %v2322 = vshll.u32 %v2252, 16
      %v2324 = vrot.slane %v2322, 5
      %v2325 = vor.u32 %v2321, %v2324
      %v2326 = vrot.slane %v2325, 4
      %v2328 = vshll.u32 %v2253, 16
      %v2330 = vrot.slane %v2328, 5
      %v2331 = vsel %vm1207, %v2326, %v2330
      %v2332 = vshrl.u32 %v2253, 16
      %v2334 = vrot.slane %v2332, 4
      %v2335 = vor.u32 %v2334, %v2330
      %v2336 = vrot.slane %v2335, 4
      %v2338 = vshll.u32 %v2254, 16
      %v2340 = vrot.slane %v2338, 5
      %v2341 = vsel %vm1207, %v2336, %v2340
      %v2343 = vshrl.u32 %v2255, 16
      %v2345 = vrot.slane %v2343, 4
      %v2346 = vshll.u32 %v2255, 16
      %v2348 = vrot.slane %v2346, 5
      %v2349 = vor.u32 %v2345, %v2348
      %v2350 = vrot.slane %v2349, 4
      %v2352 = vshll.u32 %v2256, 16
      %v2354 = vrot.slane %v2352, 5
      %v2355 = vsel %vm1207, %v2350, %v2354
      %v2356 = vshrl.u32 %v2256, 16
      %v2358 = vrot.slane %v2356, 4
      %v2359 = vor.u32 %v2358, %v2354
      %v2360 = vrot.slane %v2359, 4
      %v2362 = vshll.u32 %v2257, 16
      %v2364 = vrot.slane %v2362, 5
      %v2365 = vsel %vm1207, %v2360, %v2364
      %v2367 = vshrl.u32 %v2258, 16
      %v2369 = vrot.slane %v2367, 4
      %v2370 = vshll.u32 %v2258, 16
      %v2372 = vrot.slane %v2370, 5
      %v2373 = vor.u32 %v2369, %v2372
      %v2374 = vrot.slane %v2373, 4
      %v2376 = vshll.u32 %v2259, 16
      %v2378 = vrot.slane %v2376, 5
      %v2379 = vsel %vm1207, %v2374, %v2378
      %v2380 = vshrl.u32 %v2259, 16
      %v2382 = vrot.slane %v2380, 4
      %v2383 = vor.u32 %v2382, %v2378
      %v2384 = vrot.slane %v2383, 4
      %v2386 = vshll.u32 %v2260, 16
      %v2388 = vrot.slane %v2386, 5
      %v2389 = vsel %vm1207, %v2384, %v2388
      %v2391 = vshrl.u32 %v2261, 16
      %v2393 = vrot.slane %v2391, 4
      %v2394 = vshll.u32 %v2261, 16
      %v2396 = vrot.slane %v2394, 5
      %v2397 = vor.u32 %v2393, %v2396
      %v2398 = vrot.slane %v2397, 4
      %v2400 = vshll.u32 %v2262, 16
      %v2402 = vrot.slane %v2400, 5
      %v2403 = vsel %vm1207, %v2398, %v2402
      %v2404 = vshrl.u32 %v2262, 16
      %v2406 = vrot.slane %v2404, 4
      %v2407 = vor.u32 %v2406, %v2402
      %v2408 = vrot.slane %v2407, 4
      %v2410 = vshll.u32 %v2263, 16
      %v2412 = vrot.slane %v2410, 5
      %v2413 = vsel %vm1207, %v2408, %v2412
      %v2415 = vshrl.u32 %v2264, 16
      %v2417 = vrot.slane %v2415, 4
      %v2418 = vshll.u32 %v2264, 16
      %v2420 = vrot.slane %v2418, 5
      %v2421 = vor.u32 %v2417, %v2420
      %v2422 = vrot.slane %v2421, 4
      %v2424 = vshll.u32 %v2265, 16
      %v2426 = vrot.slane %v2424, 5
      %v2427 = vsel %vm1207, %v2422, %v2426
      %v2428 = vshrl.u32 %v2265, 16
      %v2430 = vrot.slane %v2428, 4
      %v2431 = vor.u32 %v2430, %v2426
      %v2432 = vrot.slane %v2431, 4
      %v2434 = vshll.u32 %v2266, 16
      %v2436 = vrot.slane %v2434, 5
      %v2437 = vsel %vm1207, %v2432, %v2436
      %v2439 = vshrl.u32 %v2267, 16
      %v2441 = vrot.slane %v2439, 4
      %v2442 = vshll.u32 %v2267, 16
      %v2444 = vrot.slane %v2442, 5
      %v2445 = vor.u32 %v2441, %v2444
      %v2446 = vrot.slane %v2445, 4
      %v2448 = vshll.u32 %v2268, 16
      %v2450 = vrot.slane %v2448, 5
      %v2451 = vsel %vm1207, %v2446, %v2450
      %v2452 = vshrl.u32 %v2268, 16
      %v2454 = vrot.slane %v2452, 4
      %v2455 = vor.u32 %v2454, %v2450
      %v2456 = vrot.slane %v2455, 4
      %v2458 = vshll.u32 %v2269, 16
      %v2460 = vrot.slane %v2458, 5
      %v2461 = vsel %vm1207, %v2456, %v2460
      %s2462 = scalar_lea.vmem %s1, 320
      %v2463 = vld [vmem:[%s2462] sm:$0xf]
      %v2464 = vld [vmem:[%s2462 + $0x4] sm:$0xf]
      %v2465 = vld [vmem:[%s2462 + $0x8] sm:$0xf]
      %v2466 = vld [vmem:[%s2462 + $0xc] sm:$0xf]
      %v2467 = vld [vmem:[%s2462 + $0x10] sm:$0xf]
      %v2468 = vld [vmem:[%s2462 + $0x14] sm:$0xf]
      %v2469 = vld [vmem:[%s2462 + $0x18] sm:$0xf]
      %v2470 = vld [vmem:[%s2462 + $0x1c] sm:$0xf]
      %v2471 = vld [vmem:[%s2462 + $0x20] sm:$0xf]
      %v2472 = vld [vmem:[%s2462 + $0x24] sm:$0xf]
      %v2473 = vld [vmem:[%s2462 + $0x28] sm:$0xf]
      %v2474 = vld [vmem:[%s2462 + $0x2c] sm:$0xf]
      %v2475 = vld [vmem:[%s2462 + $0x30] sm:$0xf]
      %v2476 = vld [vmem:[%s2462 + $0x34] sm:$0xf]
      %v2477 = vld [vmem:[%s2462 + $0x38] sm:$0xf]
      %v2478 = vld [vmem:[%s2462 + $0x3c] sm:$0xf]
      %v2479 = vunpack.c.l.b16 %v2283
      %v2480 = vunpack.c.l.b16 %v2293
      %v2481 = vunpack.c.l.b16 %v2307
      %v2482 = vunpack.c.l.b16 %v2317
      %v2483 = vunpack.c.l.b16 %v2331
      %v2484 = vunpack.c.l.b16 %v2341
      %v2485 = vunpack.c.l.b16 %v2355
      %v2486 = vunpack.c.l.b16 %v2365
      %v2487 = vunpack.c.l.b16 %v2379
      %v2488 = vunpack.c.l.b16 %v2389
      %v2489 = vunpack.c.l.b16 %v2403
      %v2490 = vunpack.c.l.b16 %v2413
      %v2491 = vunpack.c.l.b16 %v2427
      %v2492 = vunpack.c.l.b16 %v2437
      %v2493 = vunpack.c.l.b16 %v2451
      %v2494 = vunpack.c.l.b16 %v2461
      %v2495 = vpack.c.b16 %v2480, %v2479
      %v2496 = vpack.c.b16 %v2482, %v2481
      %v2497 = vpack.c.b16 %v2484, %v2483
      %v2498 = vpack.c.b16 %v2486, %v2485
      %v2499 = vpack.c.b16 %v2488, %v2487
      %v2500 = vpack.c.b16 %v2490, %v2489
      %v2501 = vpack.c.b16 %v2492, %v2491
      %v2502 = vpack.c.b16 %v2494, %v2493
      %v2527 = vunpack.c.l.b16 %v2463
      %v2528 = vunpack.c.l.b16 %v2464
      %v2529 = vunpack.c.l.b16 %v2465
      %v2530 = vunpack.c.l.b16 %v2466
      %v2531 = vunpack.c.l.b16 %v2467
      %v2532 = vunpack.c.l.b16 %v2468
      %v2533 = vunpack.c.l.b16 %v2469
      %v2534 = vunpack.c.l.b16 %v2470
      %v2535 = vunpack.c.l.b16 %v2471
      %v2536 = vunpack.c.l.b16 %v2472
      %v2537 = vunpack.c.l.b16 %v2473
      %v2538 = vunpack.c.l.b16 %v2474
      %v2539 = vunpack.c.l.b16 %v2475
      %v2540 = vunpack.c.l.b16 %v2476
      %v2541 = vunpack.c.l.b16 %v2477
      %v2542 = vunpack.c.l.b16 %v2478
      %v2543 = vpack.c.b16 %v2528, %v2527
      %v2544 = vpack.c.b16 %v2530, %v2529
      %v2545 = vpack.c.b16 %v2532, %v2531
      %v2546 = vpack.c.b16 %v2534, %v2533
      %v2547 = vpack.c.b16 %v2536, %v2535
      %v2548 = vpack.c.b16 %v2538, %v2537
      %v2549 = vpack.c.b16 %v2540, %v2539
      %v2550 = vpack.c.b16 %v2542, %v2541
      %2559 = vmatprep.subr.bf16.mxu0 0
      %2560 = vmatpush1.bf16.msra.mxu0 %v2550
      %2561 = vmatprep.subr.bf16.mxu0 0
      %2562 = vmatpush1.bf16.msra.mxu0 %v2549
      %2563 = vmatprep.subr.bf16.mxu0 0
      %2564 = vmatpush1.bf16.msra.mxu0 %v2548
      %2565 = vmatprep.subr.bf16.mxu0 0
      %2566 = vmatpush1.bf16.msra.mxu0 %v2547
      %2567 = vmatprep.subr.bf16.mxu0 0
      %2568 = vmatpush1.bf16.msra.mxu0 %v2546
      %2569 = vmatprep.subr.bf16.mxu0 0
      %2570 = vmatpush1.bf16.msra.mxu0 %v2545
      %2571 = vmatprep.subr.bf16.mxu0 0
      %2572 = vmatpush1.bf16.msra.mxu0 %v2544
      %2573 = vmatprep.subr.bf16.mxu0 0
      %2574 = vmatpush1.bf16.msra.mxu0 %v2543
      %2575 = vmatprep.subr.bf16.mxu0 0
      %2576 = vmatpush2.bf16.msra.mxu0 0
      %2577 = vmatprep.subr.bf16.mxu0 0
      %2578 = vmatpush2.bf16.msra.mxu0 0
      %2579 = vmatprep.subr.bf16.mxu0 0
      %2580 = vmatpush2.bf16.msra.mxu0 0
      %2581 = vmatprep.subr.bf16.mxu0 0
      %2582 = vmatpush2.bf16.msra.mxu0 0
      %2583 = vmatprep.subr.bf16.mxu0 0
      %2584 = vmatpush2.bf16.msra.mxu0 0
      %2585 = vmatprep.subr.bf16.mxu0 0
      %2586 = vmatpush2.bf16.msra.mxu0 0
      %2587 = vmatprep.subr.bf16.mxu0 0
      %2588 = vmatpush2.bf16.msra.mxu0 0
      %2589 = vmatprep.subr.bf16.mxu0 0
      %2590 = vmatpush2.bf16.msra.mxu0 0
      %2591 = vmatprep.mubr.bf16.mxu0 0
      %2592 = vmatmul.mubr.bf16.gmra.mxu0 %v2495
      %v2593 = vpop.f32.mrf.mxu0
      %v2594 = vadd.f32 0.0, %v2593
      %v2595 = vpop.f32.mrf.mxu0
      %v2596 = vpop.f32.mrf.mxu0
      %v2597 = vadd.f32 0.0, %v2596
      %v2598 = vpop.f32.mrf.mxu0
      %2599 = vmatprep.mubr.bf16.mxu0 0
      %2600 = vmatmul.mubr.bf16.gmra.mxu0 %v2496
      %v2601 = vpop.f32.mrf.mxu0
      %v2602 = vadd.f32 0.0, %v2601
      %v2603 = vpop.f32.mrf.mxu0
      %v2604 = vpop.f32.mrf.mxu0
      %v2605 = vadd.f32 0.0, %v2604
      %v2606 = vpop.f32.mrf.mxu0
      %2607 = vmatprep.mubr.bf16.mxu0 0
      %2608 = vmatmul.mubr.bf16.gmra.mxu0 %v2497
      %v2609 = vpop.f32.mrf.mxu0
      %v2610 = vadd.f32 0.0, %v2609
      %v2611 = vpop.f32.mrf.mxu0
      %v2612 = vpop.f32.mrf.mxu0
      %v2613 = vadd.f32 0.0, %v2612
      %v2614 = vpop.f32.mrf.mxu0
      %2615 = vmatprep.mubr.bf16.mxu0 0
      %2616 = vmatmul.mubr.bf16.gmra.mxu0 %v2498
      %v2617 = vpop.f32.mrf.mxu0
      %v2618 = vadd.f32 0.0, %v2617
      %v2619 = vpop.f32.mrf.mxu0
      %v2620 = vpop.f32.mrf.mxu0
      %v2621 = vadd.f32 0.0, %v2620
      %v2622 = vpop.f32.mrf.mxu0
      %2623 = vmatprep.mubr.bf16.mxu0 0
      %2624 = vmatmul.mubr.bf16.gmra.mxu0 %v2499
      %v2625 = vpop.f32.mrf.mxu0
      %v2626 = vadd.f32 0.0, %v2625
      %v2627 = vpop.f32.mrf.mxu0
      %v2628 = vpop.f32.mrf.mxu0
      %v2629 = vadd.f32 0.0, %v2628
      %v2630 = vpop.f32.mrf.mxu0
      %2631 = vmatprep.mubr.bf16.mxu0 0
      %2632 = vmatmul.mubr.bf16.gmra.mxu0 %v2500
      %v2633 = vpop.f32.mrf.mxu0
      %v2634 = vadd.f32 0.0, %v2633
      %v2635 = vpop.f32.mrf.mxu0
      %v2636 = vpop.f32.mrf.mxu0
      %v2637 = vadd.f32 0.0, %v2636
      %v2638 = vpop.f32.mrf.mxu0
      %2639 = vmatprep.mubr.bf16.mxu0 0
      %2640 = vmatmul.mubr.bf16.gmra.mxu0 %v2501
      %v2641 = vpop.f32.mrf.mxu0
      %v2642 = vadd.f32 0.0, %v2641
      %v2643 = vpop.f32.mrf.mxu0
      %v2644 = vpop.f32.mrf.mxu0
      %v2645 = vadd.f32 0.0, %v2644
      %v2646 = vpop.f32.mrf.mxu0
      %2647 = vmatprep.mubr.bf16.mxu0 0
      %2648 = vmatmul.mubr.bf16.gmra.mxu0 %v2502
      %v2649 = vpop.f32.mrf.mxu0
      %v2650 = vadd.f32 0.0, %v2649
      %v2651 = vpop.f32.mrf.mxu0
      %v2652 = vpop.f32.mrf.mxu0
      %v2653 = vadd.f32 0.0, %v2652
      %v2654 = vpop.f32.mrf.mxu0
      %2655 = vdwg.mxu0
      %v2656 = vadd.f32 %v2230, %v2594
      %v2657 = vadd.f32 %v2231, %v2597
      %v2658 = vadd.f32 %v2232, %v2602
      %v2659 = vadd.f32 %v2233, %v2605
      %v2660 = vadd.f32 %v2234, %v2610
      %v2661 = vadd.f32 %v2235, %v2613
      %v2662 = vadd.f32 %v2236, %v2618
      %v2663 = vadd.f32 %v2237, %v2621
      %v2664 = vadd.f32 %v2238, %v2626
      %v2665 = vadd.f32 %v2239, %v2629
      %v2666 = vadd.f32 %v2240, %v2634
      %v2667 = vadd.f32 %v2241, %v2637
      %v2668 = vadd.f32 %v2242, %v2642
      %v2669 = vadd.f32 %v2243, %v2645
      %v2670 = vadd.f32 %v2244, %v2650
      %v2671 = vadd.f32 %v2245, %v2653
      %s2672 = scalar_lea.vmem [#allocation2], 32
      %v2673 = vld [vmem:[%s2672] sm:$0x8]
      %v2674 = vld [vmem:[%s2672 + $0x4] sm:$0xf]
      %v2675 = vld [vmem:[%s2672 + $0x8] sm:$0xf]
      %v2676 = vld [vmem:[%s2672 + $0x10] sm:$0x8]
      %v2677 = vld [vmem:[%s2672 + $0x14] sm:$0xf]
      %v2678 = vld [vmem:[%s2672 + $0x18] sm:$0xf]
      %v2679 = vld [vmem:[%s2672 + $0x20] sm:$0x8]
      %v2680 = vld [vmem:[%s2672 + $0x24] sm:$0xf]
      %v2681 = vld [vmem:[%s2672 + $0x28] sm:$0xf]
      %v2682 = vld [vmem:[%s2672 + $0x30] sm:$0x8]
      %v2683 = vld [vmem:[%s2672 + $0x34] sm:$0xf]
      %v2684 = vld [vmem:[%s2672 + $0x38] sm:$0xf]
      %v2685 = vld [vmem:[%s2672 + $0x40] sm:$0x8]
      %v2686 = vld [vmem:[%s2672 + $0x44] sm:$0xf]
      %v2687 = vld [vmem:[%s2672 + $0x48] sm:$0xf]
      %v2688 = vld [vmem:[%s2672 + $0x50] sm:$0x8]
      %v2689 = vld [vmem:[%s2672 + $0x54] sm:$0xf]
      %v2690 = vld [vmem:[%s2672 + $0x58] sm:$0xf]
      %v2691 = vld [vmem:[%s2672 + $0x60] sm:$0x8]
      %v2692 = vld [vmem:[%s2672 + $0x64] sm:$0xf]
      %v2693 = vld [vmem:[%s2672 + $0x68] sm:$0xf]
      %v2694 = vld [vmem:[%s2672 + $0x70] sm:$0x8]
      %v2695 = vld [vmem:[%s2672 + $0x74] sm:$0xf]
      %v2696 = vld [vmem:[%s2672 + $0x78] sm:$0xf]
      %v2698 = vshrl.u32 %v2673, 16
      %v2700 = vrot.slane %v2698, 7
      %v2701 = vrot.slane %v2700, 4
      %v2703 = vshrl.u32 %v2674, 16
      %v2705 = vrot.slane %v2703, 7
      %v2706 = vshll.u32 %v2674, 16
      %v2708 = vor.u32 %v2705, %v2706
      %v2709 = vsel %vm601, %v2701, %v2708
      %v2710 = vrot.slane %v2705, 4
      %v2712 = vshrl.u32 %v2675, 16
      %v2714 = vrot.slane %v2712, 7
      %v2715 = vshll.u32 %v2675, 16
      %v2717 = vor.u32 %v2714, %v2715
      %v2718 = vsel %vm601, %v2710, %v2717
      %v2720 = vshrl.u32 %v2676, 16
      %v2722 = vrot.slane %v2720, 7
      %v2723 = vrot.slane %v2722, 4
      %v2725 = vshrl.u32 %v2677, 16
      %v2727 = vrot.slane %v2725, 7
      %v2728 = vshll.u32 %v2677, 16
      %v2730 = vor.u32 %v2727, %v2728
      %v2731 = vsel %vm601, %v2723, %v2730
      %v2732 = vrot.slane %v2727, 4
      %v2734 = vshrl.u32 %v2678, 16
      %v2736 = vrot.slane %v2734, 7
      %v2737 = vshll.u32 %v2678, 16
      %v2739 = vor.u32 %v2736, %v2737
      %v2740 = vsel %vm601, %v2732, %v2739
      %v2742 = vshrl.u32 %v2679, 16
      %v2744 = vrot.slane %v2742, 7
      %v2745 = vrot.slane %v2744, 4
      %v2747 = vshrl.u32 %v2680, 16
      %v2749 = vrot.slane %v2747, 7
      %v2750 = vshll.u32 %v2680, 16
      %v2752 = vor.u32 %v2749, %v2750
      %v2753 = vsel %vm601, %v2745, %v2752
      %v2754 = vrot.slane %v2749, 4
      %v2756 = vshrl.u32 %v2681, 16
      %v2758 = vrot.slane %v2756, 7
      %v2759 = vshll.u32 %v2681, 16
      %v2761 = vor.u32 %v2758, %v2759
      %v2762 = vsel %vm601, %v2754, %v2761
      %v2764 = vshrl.u32 %v2682, 16
      %v2766 = vrot.slane %v2764, 7
      %v2767 = vrot.slane %v2766, 4
      %v2769 = vshrl.u32 %v2683, 16
      %v2771 = vrot.slane %v2769, 7
      %v2772 = vshll.u32 %v2683, 16
      %v2774 = vor.u32 %v2771, %v2772
      %v2775 = vsel %vm601, %v2767, %v2774
      %v2776 = vrot.slane %v2771, 4
      %v2778 = vshrl.u32 %v2684, 16
      %v2780 = vrot.slane %v2778, 7
      %v2781 = vshll.u32 %v2684, 16
      %v2783 = vor.u32 %v2780, %v2781
      %v2784 = vsel %vm601, %v2776, %v2783
      %v2786 = vshrl.u32 %v2685, 16
      %v2788 = vrot.slane %v2786, 7
      %v2789 = vrot.slane %v2788, 4
      %v2791 = vshrl.u32 %v2686, 16
      %v2793 = vrot.slane %v2791, 7
      %v2794 = vshll.u32 %v2686, 16
      %v2796 = vor.u32 %v2793, %v2794
      %v2797 = vsel %vm601, %v2789, %v2796
      %v2798 = vrot.slane %v2793, 4
      %v2800 = vshrl.u32 %v2687, 16
      %v2802 = vrot.slane %v2800, 7
      %v2803 = vshll.u32 %v2687, 16
      %v2805 = vor.u32 %v2802, %v2803
      %v2806 = vsel %vm601, %v2798, %v2805
      %v2808 = vshrl.u32 %v2688, 16
      %v2810 = vrot.slane %v2808, 7
      %v2811 = vrot.slane %v2810, 4
      %v2813 = vshrl.u32 %v2689, 16
      %v2815 = vrot.slane %v2813, 7
      %v2816 = vshll.u32 %v2689, 16
      %v2818 = vor.u32 %v2815, %v2816
      %v2819 = vsel %vm601, %v2811, %v2818
      %v2820 = vrot.slane %v2815, 4
      %v2822 = vshrl.u32 %v2690, 16
      %v2824 = vrot.slane %v2822, 7
      %v2825 = vshll.u32 %v2690, 16
      %v2827 = vor.u32 %v2824, %v2825
      %v2828 = vsel %vm601, %v2820, %v2827
      %v2830 = vshrl.u32 %v2691, 16
      %v2832 = vrot.slane %v2830, 7
      %v2833 = vrot.slane %v2832, 4
      %v2835 = vshrl.u32 %v2692, 16
      %v2837 = vrot.slane %v2835, 7
      %v2838 = vshll.u32 %v2692, 16
      %v2840 = vor.u32 %v2837, %v2838
      %v2841 = vsel %vm601, %v2833, %v2840
      %v2842 = vrot.slane %v2837, 4
      %v2844 = vshrl.u32 %v2693, 16
      %v2846 = vrot.slane %v2844, 7
      %v2847 = vshll.u32 %v2693, 16
      %v2849 = vor.u32 %v2846, %v2847
      %v2850 = vsel %vm601, %v2842, %v2849
      %v2852 = vshrl.u32 %v2694, 16
      %v2854 = vrot.slane %v2852, 7
      %v2855 = vrot.slane %v2854, 4
      %v2857 = vshrl.u32 %v2695, 16
      %v2859 = vrot.slane %v2857, 7
      %v2860 = vshll.u32 %v2695, 16
      %v2862 = vor.u32 %v2859, %v2860
      %v2863 = vsel %vm601, %v2855, %v2862
      %v2864 = vrot.slane %v2859, 4
      %v2866 = vshrl.u32 %v2696, 16
      %v2868 = vrot.slane %v2866, 7
      %v2869 = vshll.u32 %v2696, 16
      %v2871 = vor.u32 %v2868, %v2869
      %v2872 = vsel %vm601, %v2864, %v2871
      %s2873 = scalar_lea.vmem %s1, 384
      %v2874 = vld [vmem:[%s2873] sm:$0xf]
      %v2875 = vld [vmem:[%s2873 + $0x4] sm:$0xf]
      %v2876 = vld [vmem:[%s2873 + $0x8] sm:$0xf]
      %v2877 = vld [vmem:[%s2873 + $0xc] sm:$0xf]
      %v2878 = vld [vmem:[%s2873 + $0x10] sm:$0xf]
      %v2879 = vld [vmem:[%s2873 + $0x14] sm:$0xf]
      %v2880 = vld [vmem:[%s2873 + $0x18] sm:$0xf]
      %v2881 = vld [vmem:[%s2873 + $0x1c] sm:$0xf]
      %v2882 = vld [vmem:[%s2873 + $0x20] sm:$0xf]
      %v2883 = vld [vmem:[%s2873 + $0x24] sm:$0xf]
      %v2884 = vld [vmem:[%s2873 + $0x28] sm:$0xf]
      %v2885 = vld [vmem:[%s2873 + $0x2c] sm:$0xf]
      %v2886 = vld [vmem:[%s2873 + $0x30] sm:$0xf]
      %v2887 = vld [vmem:[%s2873 + $0x34] sm:$0xf]
      %v2888 = vld [vmem:[%s2873 + $0x38] sm:$0xf]
      %v2889 = vld [vmem:[%s2873 + $0x3c] sm:$0xf]
      %v2890 = vunpack.c.l.b16 %v2709
      %v2891 = vunpack.c.l.b16 %v2718
      %v2892 = vunpack.c.l.b16 %v2731
      %v2893 = vunpack.c.l.b16 %v2740
      %v2894 = vunpack.c.l.b16 %v2753
      %v2895 = vunpack.c.l.b16 %v2762
      %v2896 = vunpack.c.l.b16 %v2775
      %v2897 = vunpack.c.l.b16 %v2784
      %v2898 = vunpack.c.l.b16 %v2797
      %v2899 = vunpack.c.l.b16 %v2806
      %v2900 = vunpack.c.l.b16 %v2819
      %v2901 = vunpack.c.l.b16 %v2828
      %v2902 = vunpack.c.l.b16 %v2841
      %v2903 = vunpack.c.l.b16 %v2850
      %v2904 = vunpack.c.l.b16 %v2863
      %v2905 = vunpack.c.l.b16 %v2872
      %v2906 = vpack.c.b16 %v2891, %v2890
      %v2907 = vpack.c.b16 %v2893, %v2892
      %v2908 = vpack.c.b16 %v2895, %v2894
      %v2909 = vpack.c.b16 %v2897, %v2896
      %v2910 = vpack.c.b16 %v2899, %v2898
      %v2911 = vpack.c.b16 %v2901, %v2900
      %v2912 = vpack.c.b16 %v2903, %v2902
      %v2913 = vpack.c.b16 %v2905, %v2904
      %v2938 = vunpack.c.l.b16 %v2874
      %v2939 = vunpack.c.l.b16 %v2875
      %v2940 = vunpack.c.l.b16 %v2876
      %v2941 = vunpack.c.l.b16 %v2877
      %v2942 = vunpack.c.l.b16 %v2878
      %v2943 = vunpack.c.l.b16 %v2879
      %v2944 = vunpack.c.l.b16 %v2880
      %v2945 = vunpack.c.l.b16 %v2881
      %v2946 = vunpack.c.l.b16 %v2882
      %v2947 = vunpack.c.l.b16 %v2883
      %v2948 = vunpack.c.l.b16 %v2884
      %v2949 = vunpack.c.l.b16 %v2885
      %v2950 = vunpack.c.l.b16 %v2886
      %v2951 = vunpack.c.l.b16 %v2887
      %v2952 = vunpack.c.l.b16 %v2888
      %v2953 = vunpack.c.l.b16 %v2889
      %v2954 = vpack.c.b16 %v2939, %v2938
      %v2955 = vpack.c.b16 %v2941, %v2940
      %v2956 = vpack.c.b16 %v2943, %v2942
      %v2957 = vpack.c.b16 %v2945, %v2944
      %v2958 = vpack.c.b16 %v2947, %v2946
      %v2959 = vpack.c.b16 %v2949, %v2948
      %v2960 = vpack.c.b16 %v2951, %v2950
      %v2961 = vpack.c.b16 %v2953, %v2952
      %2970 = vmatprep.subr.bf16.mxu0 0
      %2971 = vmatpush1.bf16.msra.mxu0 %v2961
      %2972 = vmatprep.subr.bf16.mxu0 0
      %2973 = vmatpush1.bf16.msra.mxu0 %v2960
      %2974 = vmatprep.subr.bf16.mxu0 0
      %2975 = vmatpush1.bf16.msra.mxu0 %v2959
      %2976 = vmatprep.subr.bf16.mxu0 0
      %2977 = vmatpush1.bf16.msra.mxu0 %v2958
      %2978 = vmatprep.subr.bf16.mxu0 0
      %2979 = vmatpush1.bf16.msra.mxu0 %v2957
      %2980 = vmatprep.subr.bf16.mxu0 0
      %2981 = vmatpush1.bf16.msra.mxu0 %v2956
      %2982 = vmatprep.subr.bf16.mxu0 0
      %2983 = vmatpush1.bf16.msra.mxu0 %v2955
      %2984 = vmatprep.subr.bf16.mxu0 0
      %2985 = vmatpush1.bf16.msra.mxu0 %v2954
      %2986 = vmatprep.subr.bf16.mxu0 0
      %2987 = vmatpush2.bf16.msra.mxu0 0
      %2988 = vmatprep.subr.bf16.mxu0 0
      %2989 = vmatpush2.bf16.msra.mxu0 0
      %2990 = vmatprep.subr.bf16.mxu0 0
      %2991 = vmatpush2.bf16.msra.mxu0 0
      %2992 = vmatprep.subr.bf16.mxu0 0
      %2993 = vmatpush2.bf16.msra.mxu0 0
      %2994 = vmatprep.subr.bf16.mxu0 0
      %2995 = vmatpush2.bf16.msra.mxu0 0
      %2996 = vmatprep.subr.bf16.mxu0 0
      %2997 = vmatpush2.bf16.msra.mxu0 0
      %2998 = vmatprep.subr.bf16.mxu0 0
      %2999 = vmatpush2.bf16.msra.mxu0 0
      %3000 = vmatprep.subr.bf16.mxu0 0
      %3001 = vmatpush2.bf16.msra.mxu0 0
      %3002 = vmatprep.mubr.bf16.mxu0 0
      %3003 = vmatmul.mubr.bf16.gmra.mxu0 %v2906
      %v3004 = vpop.f32.mrf.mxu0
      %v3005 = vadd.f32 0.0, %v3004
      %v3006 = vpop.f32.mrf.mxu0
      %v3007 = vpop.f32.mrf.mxu0
      %v3008 = vadd.f32 0.0, %v3007
      %v3009 = vpop.f32.mrf.mxu0
      %3010 = vmatprep.mubr.bf16.mxu0 0
      %3011 = vmatmul.mubr.bf16.gmra.mxu0 %v2907
      %v3012 = vpop.f32.mrf.mxu0
      %v3013 = vadd.f32 0.0, %v3012
      %v3014 = vpop.f32.mrf.mxu0
      %v3015 = vpop.f32.mrf.mxu0
      %v3016 = vadd.f32 0.0, %v3015
      %v3017 = vpop.f32.mrf.mxu0
      %3018 = vmatprep.mubr.bf16.mxu0 0
      %3019 = vmatmul.mubr.bf16.gmra.mxu0 %v2908
      %v3020 = vpop.f32.mrf.mxu0
      %v3021 = vadd.f32 0.0, %v3020
      %v3022 = vpop.f32.mrf.mxu0
      %v3023 = vpop.f32.mrf.mxu0
      %v3024 = vadd.f32 0.0, %v3023
      %v3025 = vpop.f32.mrf.mxu0
      %3026 = vmatprep.mubr.bf16.mxu0 0
      %3027 = vmatmul.mubr.bf16.gmra.mxu0 %v2909
      %v3028 = vpop.f32.mrf.mxu0
      %v3029 = vadd.f32 0.0, %v3028
      %v3030 = vpop.f32.mrf.mxu0
      %v3031 = vpop.f32.mrf.mxu0
      %v3032 = vadd.f32 0.0, %v3031
      %v3033 = vpop.f32.mrf.mxu0
      %3034 = vmatprep.mubr.bf16.mxu0 0
      %3035 = vmatmul.mubr.bf16.gmra.mxu0 %v2910
      %v3036 = vpop.f32.mrf.mxu0
      %v3037 = vadd.f32 0.0, %v3036
      %v3038 = vpop.f32.mrf.mxu0
      %v3039 = vpop.f32.mrf.mxu0
      %v3040 = vadd.f32 0.0, %v3039
      %v3041 = vpop.f32.mrf.mxu0
      %3042 = vmatprep.mubr.bf16.mxu0 0
      %3043 = vmatmul.mubr.bf16.gmra.mxu0 %v2911
      %v3044 = vpop.f32.mrf.mxu0
      %v3045 = vadd.f32 0.0, %v3044
      %v3046 = vpop.f32.mrf.mxu0
      %v3047 = vpop.f32.mrf.mxu0
      %v3048 = vadd.f32 0.0, %v3047
      %v3049 = vpop.f32.mrf.mxu0
      %3050 = vmatprep.mubr.bf16.mxu0 0
      %3051 = vmatmul.mubr.bf16.gmra.mxu0 %v2912
      %v3052 = vpop.f32.mrf.mxu0
      %v3053 = vadd.f32 0.0, %v3052
      %v3054 = vpop.f32.mrf.mxu0
      %v3055 = vpop.f32.mrf.mxu0
      %v3056 = vadd.f32 0.0, %v3055
      %v3057 = vpop.f32.mrf.mxu0
      %3058 = vmatprep.mubr.bf16.mxu0 0
      %3059 = vmatmul.mubr.bf16.gmra.mxu0 %v2913
      %v3060 = vpop.f32.mrf.mxu0
      %v3061 = vadd.f32 0.0, %v3060
      %v3062 = vpop.f32.mrf.mxu0
      %v3063 = vpop.f32.mrf.mxu0
      %v3064 = vadd.f32 0.0, %v3063
      %v3065 = vpop.f32.mrf.mxu0
      %3066 = vdwg.mxu0
      %v3067 = vadd.f32 %v2656, %v3005
      %v3068 = vadd.f32 %v2657, %v3008
      %v3069 = vadd.f32 %v2658, %v3013
      %v3070 = vadd.f32 %v2659, %v3016
      %v3071 = vadd.f32 %v2660, %v3021
      %v3072 = vadd.f32 %v2661, %v3024
      %v3073 = vadd.f32 %v2662, %v3029
      %v3074 = vadd.f32 %v2663, %v3032
      %v3075 = vadd.f32 %v2664, %v3037
      %v3076 = vadd.f32 %v2665, %v3040
      %v3077 = vadd.f32 %v2666, %v3045
      %v3078 = vadd.f32 %v2667, %v3048
      %v3079 = vadd.f32 %v2668, %v3053
      %v3080 = vadd.f32 %v2669, %v3056
      %v3081 = vadd.f32 %v2670, %v3061
      %v3082 = vadd.f32 %v2671, %v3064
      %s3083 = scalar_lea.vmem %s1, 448
      %v3084 = vld [vmem:[%s3083] sm:$0xf]
      %v3085 = vld [vmem:[%s3083 + $0x4] sm:$0xf]
      %v3086 = vld [vmem:[%s3083 + $0x8] sm:$0xf]
      %v3087 = vld [vmem:[%s3083 + $0xc] sm:$0xf]
      %v3088 = vld [vmem:[%s3083 + $0x10] sm:$0xf]
      %v3089 = vld [vmem:[%s3083 + $0x14] sm:$0xf]
      %v3090 = vld [vmem:[%s3083 + $0x18] sm:$0xf]
      %v3091 = vld [vmem:[%s3083 + $0x1c] sm:$0xf]
      %v3092 = vld [vmem:[%s3083 + $0x20] sm:$0xf]
      %v3093 = vld [vmem:[%s3083 + $0x24] sm:$0xf]
      %v3094 = vld [vmem:[%s3083 + $0x28] sm:$0xf]
      %v3095 = vld [vmem:[%s3083 + $0x2c] sm:$0xf]
      %v3096 = vld [vmem:[%s3083 + $0x30] sm:$0xf]
      %v3097 = vld [vmem:[%s3083 + $0x34] sm:$0xf]
      %v3098 = vld [vmem:[%s3083 + $0x38] sm:$0xf]
      %v3099 = vld [vmem:[%s3083 + $0x3c] sm:$0xf]
      %v3116 = vunpack.c.l.b16 %v2674
      %v3117 = vunpack.c.l.b16 %v2675
      %v3118 = vunpack.c.l.b16 %v2677
      %v3119 = vunpack.c.l.b16 %v2678
      %v3120 = vunpack.c.l.b16 %v2680
      %v3121 = vunpack.c.l.b16 %v2681
      %v3122 = vunpack.c.l.b16 %v2683
      %v3123 = vunpack.c.l.b16 %v2684
      %v3124 = vunpack.c.l.b16 %v2686
      %v3125 = vunpack.c.l.b16 %v2687
      %v3126 = vunpack.c.l.b16 %v2689
      %v3127 = vunpack.c.l.b16 %v2690
      %v3128 = vunpack.c.l.b16 %v2692
      %v3129 = vunpack.c.l.b16 %v2693
      %v3130 = vunpack.c.l.b16 %v2695
      %v3131 = vunpack.c.l.b16 %v2696
      %v3132 = vpack.c.b16 %v3117, %v3116
      %v3133 = vpack.c.b16 %v3119, %v3118
      %v3134 = vpack.c.b16 %v3121, %v3120
      %v3135 = vpack.c.b16 %v3123, %v3122
      %v3136 = vpack.c.b16 %v3125, %v3124
      %v3137 = vpack.c.b16 %v3127, %v3126
      %v3138 = vpack.c.b16 %v3129, %v3128
      %v3139 = vpack.c.b16 %v3131, %v3130
      %v3164 = vunpack.c.l.b16 %v3084
      %v3165 = vunpack.c.l.b16 %v3085
      %v3166 = vunpack.c.l.b16 %v3086
      %v3167 = vunpack.c.l.b16 %v3087
      %v3168 = vunpack.c.l.b16 %v3088
      %v3169 = vunpack.c.l.b16 %v3089
      %v3170 = vunpack.c.l.b16 %v3090
      %v3171 = vunpack.c.l.b16 %v3091
      %v3172 = vunpack.c.l.b16 %v3092
      %v3173 = vunpack.c.l.b16 %v3093
      %v3174 = vunpack.c.l.b16 %v3094
      %v3175 = vunpack.c.l.b16 %v3095
      %v3176 = vunpack.c.l.b16 %v3096
      %v3177 = vunpack.c.l.b16 %v3097
      %v3178 = vunpack.c.l.b16 %v3098
      %v3179 = vunpack.c.l.b16 %v3099
      %v3180 = vpack.c.b16 %v3165, %v3164
      %v3181 = vpack.c.b16 %v3167, %v3166
      %v3182 = vpack.c.b16 %v3169, %v3168
      %v3183 = vpack.c.b16 %v3171, %v3170
      %v3184 = vpack.c.b16 %v3173, %v3172
      %v3185 = vpack.c.b16 %v3175, %v3174
      %v3186 = vpack.c.b16 %v3177, %v3176
      %v3187 = vpack.c.b16 %v3179, %v3178
      %3196 = vmatprep.subr.bf16.mxu0 0
      %3197 = vmatpush1.bf16.msra.mxu0 %v3187
      %3198 = vmatprep.subr.bf16.mxu0 0
      %3199 = vmatpush1.bf16.msra.mxu0 %v3186
      %3200 = vmatprep.subr.bf16.mxu0 0
      %3201 = vmatpush1.bf16.msra.mxu0 %v3185
      %3202 = vmatprep.subr.bf16.mxu0 0
      %3203 = vmatpush1.bf16.msra.mxu0 %v3184
      %3204 = vmatprep.subr.bf16.mxu0 0
      %3205 = vmatpush1.bf16.msra.mxu0 %v3183
      %3206 = vmatprep.subr.bf16.mxu0 0
      %3207 = vmatpush1.bf16.msra.mxu0 %v3182
      %3208 = vmatprep.subr.bf16.mxu0 0
      %3209 = vmatpush1.bf16.msra.mxu0 %v3181
      %3210 = vmatprep.subr.bf16.mxu0 0
      %3211 = vmatpush1.bf16.msra.mxu0 %v3180
      %3212 = vmatprep.subr.bf16.mxu0 0
      %3213 = vmatpush2.bf16.msra.mxu0 0
      %3214 = vmatprep.subr.bf16.mxu0 0
      %3215 = vmatpush2.bf16.msra.mxu0 0
      %3216 = vmatprep.subr.bf16.mxu0 0
      %3217 = vmatpush2.bf16.msra.mxu0 0
      %3218 = vmatprep.subr.bf16.mxu0 0
      %3219 = vmatpush2.bf16.msra.mxu0 0
      %3220 = vmatprep.subr.bf16.mxu0 0
      %3221 = vmatpush2.bf16.msra.mxu0 0
      %3222 = vmatprep.subr.bf16.mxu0 0
      %3223 = vmatpush2.bf16.msra.mxu0 0
      %3224 = vmatprep.subr.bf16.mxu0 0
      %3225 = vmatpush2.bf16.msra.mxu0 0
      %3226 = vmatprep.subr.bf16.mxu0 0
      %3227 = vmatpush2.bf16.msra.mxu0 0
      %3228 = vmatprep.mubr.bf16.mxu0 0
      %3229 = vmatmul.mubr.bf16.gmra.mxu0 %v3132
      %v3230 = vpop.f32.mrf.mxu0
      %v3231 = vadd.f32 0.0, %v3230
      %v3232 = vpop.f32.mrf.mxu0
      %v3233 = vpop.f32.mrf.mxu0
      %v3234 = vadd.f32 0.0, %v3233
      %v3235 = vpop.f32.mrf.mxu0
      %3236 = vmatprep.mubr.bf16.mxu0 0
      %3237 = vmatmul.mubr.bf16.gmra.mxu0 %v3133
      %v3238 = vpop.f32.mrf.mxu0
      %v3239 = vadd.f32 0.0, %v3238
      %v3240 = vpop.f32.mrf.mxu0
      %v3241 = vpop.f32.mrf.mxu0
      %v3242 = vadd.f32 0.0, %v3241
      %v3243 = vpop.f32.mrf.mxu0
      %3244 = vmatprep.mubr.bf16.mxu0 0
      %3245 = vmatmul.mubr.bf16.gmra.mxu0 %v3134
      %v3246 = vpop.f32.mrf.mxu0
      %v3247 = vadd.f32 0.0, %v3246
      %v3248 = vpop.f32.mrf.mxu0
      %v3249 = vpop.f32.mrf.mxu0
      %v3250 = vadd.f32 0.0, %v3249
      %v3251 = vpop.f32.mrf.mxu0
      %3252 = vmatprep.mubr.bf16.mxu0 0
      %3253 = vmatmul.mubr.bf16.gmra.mxu0 %v3135
      %v3254 = vpop.f32.mrf.mxu0
      %v3255 = vadd.f32 0.0, %v3254
      %v3256 = vpop.f32.mrf.mxu0
      %v3257 = vpop.f32.mrf.mxu0
      %v3258 = vadd.f32 0.0, %v3257
      %v3259 = vpop.f32.mrf.mxu0
      %3260 = vmatprep.mubr.bf16.mxu0 0
      %3261 = vmatmul.mubr.bf16.gmra.mxu0 %v3136
      %v3262 = vpop.f32.mrf.mxu0
      %v3263 = vadd.f32 0.0, %v3262
      %v3264 = vpop.f32.mrf.mxu0
      %v3265 = vpop.f32.mrf.mxu0
      %v3266 = vadd.f32 0.0, %v3265
      %v3267 = vpop.f32.mrf.mxu0
      %3268 = vmatprep.mubr.bf16.mxu0 0
      %3269 = vmatmul.mubr.bf16.gmra.mxu0 %v3137
      %v3270 = vpop.f32.mrf.mxu0
      %v3271 = vadd.f32 0.0, %v3270
      %v3272 = vpop.f32.mrf.mxu0
      %v3273 = vpop.f32.mrf.mxu0
      %v3274 = vadd.f32 0.0, %v3273
      %v3275 = vpop.f32.mrf.mxu0
      %3276 = vmatprep.mubr.bf16.mxu0 0
      %3277 = vmatmul.mubr.bf16.gmra.mxu0 %v3138
      %v3278 = vpop.f32.mrf.mxu0
      %v3279 = vadd.f32 0.0, %v3278
      %v3280 = vpop.f32.mrf.mxu0
      %v3281 = vpop.f32.mrf.mxu0
      %v3282 = vadd.f32 0.0, %v3281
      %v3283 = vpop.f32.mrf.mxu0
      %3284 = vmatprep.mubr.bf16.mxu0 0
      %3285 = vmatmul.mubr.bf16.gmra.mxu0 %v3139
      %v3286 = vpop.f32.mrf.mxu0
      %v3287 = vadd.f32 0.0, %v3286
      %v3288 = vpop.f32.mrf.mxu0
      %v3289 = vpop.f32.mrf.mxu0
      %v3290 = vadd.f32 0.0, %v3289
      %v3291 = vpop.f32.mrf.mxu0
      %3292 = vdwg.mxu0
      %v3293 = vadd.f32 %v3067, %v3231
      %v3294 = vadd.f32 %v3068, %v3234
      %v3295 = vadd.f32 %v3069, %v3239
      %v3296 = vadd.f32 %v3070, %v3242
      %v3297 = vadd.f32 %v3071, %v3247
      %v3298 = vadd.f32 %v3072, %v3250
      %v3299 = vadd.f32 %v3073, %v3255
      %v3300 = vadd.f32 %v3074, %v3258
      %v3301 = vadd.f32 %v3075, %v3263
      %v3302 = vadd.f32 %v3076, %v3266
      %v3303 = vadd.f32 %v3077, %v3271
      %v3304 = vadd.f32 %v3078, %v3274
      %v3305 = vadd.f32 %v3079, %v3279
      %v3306 = vadd.f32 %v3080, %v3282
      %v3307 = vadd.f32 %v3081, %v3287
      %v3308 = vadd.f32 %v3082, %v3290
      %v3309 = vld [vmem:[%s2672 + $0x4] sm:$0xf]
      %v3310 = vld [vmem:[%s2672 + $0x8] sm:$0xf]
      %v3311 = vld [vmem:[%s2672 + $0xc] sm:$0x1]
      %v3312 = vld [vmem:[%s2672 + $0x14] sm:$0xf]
      %v3313 = vld [vmem:[%s2672 + $0x18] sm:$0xf]
      %v3314 = vld [vmem:[%s2672 + $0x1c] sm:$0x1]
      %v3315 = vld [vmem:[%s2672 + $0x24] sm:$0xf]
      %v3316 = vld [vmem:[%s2672 + $0x28] sm:$0xf]
      %v3317 = vld [vmem:[%s2672 + $0x2c] sm:$0x1]
      %v3318 = vld [vmem:[%s2672 + $0x34] sm:$0xf]
      %v3319 = vld [vmem:[%s2672 + $0x38] sm:$0xf]
      %v3320 = vld [vmem:[%s2672 + $0x3c] sm:$0x1]
      %v3321 = vld [vmem:[%s2672 + $0x44] sm:$0xf]
      %v3322 = vld [vmem:[%s2672 + $0x48] sm:$0xf]
      %v3323 = vld [vmem:[%s2672 + $0x4c] sm:$0x1]
      %v3324 = vld [vmem:[%s2672 + $0x54] sm:$0xf]
      %v3325 = vld [vmem:[%s2672 + $0x58] sm:$0xf]
      %v3326 = vld [vmem:[%s2672 + $0x5c] sm:$0x1]
      %v3327 = vld [vmem:[%s2672 + $0x64] sm:$0xf]
      %v3328 = vld [vmem:[%s2672 + $0x68] sm:$0xf]
      %v3329 = vld [vmem:[%s2672 + $0x6c] sm:$0x1]
      %v3330 = vld [vmem:[%s2672 + $0x74] sm:$0xf]
      %v3331 = vld [vmem:[%s2672 + $0x78] sm:$0xf]
      %v3332 = vld [vmem:[%s2672 + $0x7c] sm:$0x1]
      %v3334 = vshrl.u32 %v3309, 16
      %v3336 = vrot.slane %v3334, 4
      %v3337 = vshll.u32 %v3309, 16
      %v3339 = vrot.slane %v3337, 5
      %v3340 = vor.u32 %v3336, %v3339
      %v3341 = vrot.slane %v3340, 4
      %v3343 = vshll.u32 %v3310, 16
      %v3345 = vrot.slane %v3343, 5
      %v3346 = vsel %vm1207, %v3341, %v3345
      %v3347 = vshrl.u32 %v3310, 16
      %v3349 = vrot.slane %v3347, 4
      %v3350 = vor.u32 %v3349, %v3345
      %v3351 = vrot.slane %v3350, 4
      %v3353 = vshll.u32 %v3311, 16
      %v3355 = vrot.slane %v3353, 5
      %v3356 = vsel %vm1207, %v3351, %v3355
      %v3358 = vshrl.u32 %v3312, 16
      %v3360 = vrot.slane %v3358, 4
      %v3361 = vshll.u32 %v3312, 16
      %v3363 = vrot.slane %v3361, 5
      %v3364 = vor.u32 %v3360, %v3363
      %v3365 = vrot.slane %v3364, 4
      %v3367 = vshll.u32 %v3313, 16
      %v3369 = vrot.slane %v3367, 5
      %v3370 = vsel %vm1207, %v3365, %v3369
      %v3371 = vshrl.u32 %v3313, 16
      %v3373 = vrot.slane %v3371, 4
      %v3374 = vor.u32 %v3373, %v3369
      %v3375 = vrot.slane %v3374, 4
      %v3377 = vshll.u32 %v3314, 16
      %v3379 = vrot.slane %v3377, 5
      %v3380 = vsel %vm1207, %v3375, %v3379
      %v3382 = vshrl.u32 %v3315, 16
      %v3384 = vrot.slane %v3382, 4
      %v3385 = vshll.u32 %v3315, 16
      %v3387 = vrot.slane %v3385, 5
      %v3388 = vor.u32 %v3384, %v3387
      %v3389 = vrot.slane %v3388, 4
      %v3391 = vshll.u32 %v3316, 16
      %v3393 = vrot.slane %v3391, 5
      %v3394 = vsel %vm1207, %v3389, %v3393
      %v3395 = vshrl.u32 %v3316, 16
      %v3397 = vrot.slane %v3395, 4
      %v3398 = vor.u32 %v3397, %v3393
      %v3399 = vrot.slane %v3398, 4
      %v3401 = vshll.u32 %v3317, 16
      %v3403 = vrot.slane %v3401, 5
      %v3404 = vsel %vm1207, %v3399, %v3403
      %v3406 = vshrl.u32 %v3318, 16
      %v3408 = vrot.slane %v3406, 4
      %v3409 = vshll.u32 %v3318, 16
      %v3411 = vrot.slane %v3409, 5
      %v3412 = vor.u32 %v3408, %v3411
      %v3413 = vrot.slane %v3412, 4
      %v3415 = vshll.u32 %v3319, 16
      %v3417 = vrot.slane %v3415, 5
      %v3418 = vsel %vm1207, %v3413, %v3417
      %v3419 = vshrl.u32 %v3319, 16
      %v3421 = vrot.slane %v3419, 4
      %v3422 = vor.u32 %v3421, %v3417
      %v3423 = vrot.slane %v3422, 4
      %v3425 = vshll.u32 %v3320, 16
      %v3427 = vrot.slane %v3425, 5
      %v3428 = vsel %vm1207, %v3423, %v3427
      %v3430 = vshrl.u32 %v3321, 16
      %v3432 = vrot.slane %v3430, 4
      %v3433 = vshll.u32 %v3321, 16
      %v3435 = vrot.slane %v3433, 5
      %v3436 = vor.u32 %v3432, %v3435
      %v3437 = vrot.slane %v3436, 4
      %v3439 = vshll.u32 %v3322, 16
      %v3441 = vrot.slane %v3439, 5
      %v3442 = vsel %vm1207, %v3437, %v3441
      %v3443 = vshrl.u32 %v3322, 16
      %v3445 = vrot.slane %v3443, 4
      %v3446 = vor.u32 %v3445, %v3441
      %v3447 = vrot.slane %v3446, 4
      %v3449 = vshll.u32 %v3323, 16
      %v3451 = vrot.slane %v3449, 5
      %v3452 = vsel %vm1207, %v3447, %v3451
      %v3454 = vshrl.u32 %v3324, 16
      %v3456 = vrot.slane %v3454, 4
      %v3457 = vshll.u32 %v3324, 16
      %v3459 = vrot.slane %v3457, 5
      %v3460 = vor.u32 %v3456, %v3459
      %v3461 = vrot.slane %v3460, 4
      %v3463 = vshll.u32 %v3325, 16
      %v3465 = vrot.slane %v3463, 5
      %v3466 = vsel %vm1207, %v3461, %v3465
      %v3467 = vshrl.u32 %v3325, 16
      %v3469 = vrot.slane %v3467, 4
      %v3470 = vor.u32 %v3469, %v3465
      %v3471 = vrot.slane %v3470, 4
      %v3473 = vshll.u32 %v3326, 16
      %v3475 = vrot.slane %v3473, 5
      %v3476 = vsel %vm1207, %v3471, %v3475
      %v3478 = vshrl.u32 %v3327, 16
      %v3480 = vrot.slane %v3478, 4
      %v3481 = vshll.u32 %v3327, 16
      %v3483 = vrot.slane %v3481, 5
      %v3484 = vor.u32 %v3480, %v3483
      %v3485 = vrot.slane %v3484, 4
      %v3487 = vshll.u32 %v3328, 16
      %v3489 = vrot.slane %v3487, 5
      %v3490 = vsel %vm1207, %v3485, %v3489
      %v3491 = vshrl.u32 %v3328, 16
      %v3493 = vrot.slane %v3491, 4
      %v3494 = vor.u32 %v3493, %v3489
      %v3495 = vrot.slane %v3494, 4
      %v3497 = vshll.u32 %v3329, 16
      %v3499 = vrot.slane %v3497, 5
      %v3500 = vsel %vm1207, %v3495, %v3499
      %v3502 = vshrl.u32 %v3330, 16
      %v3504 = vrot.slane %v3502, 4
      %v3505 = vshll.u32 %v3330, 16
      %v3507 = vrot.slane %v3505, 5
      %v3508 = vor.u32 %v3504, %v3507
      %v3509 = vrot.slane %v3508, 4
      %v3511 = vshll.u32 %v3331, 16
      %v3513 = vrot.slane %v3511, 5
      %v3514 = vsel %vm1207, %v3509, %v3513
      %v3515 = vshrl.u32 %v3331, 16
      %v3517 = vrot.slane %v3515, 4
      %v3518 = vor.u32 %v3517, %v3513
      %v3519 = vrot.slane %v3518, 4
      %v3521 = vshll.u32 %v3332, 16
      %v3523 = vrot.slane %v3521, 5
      %v3524 = vsel %vm1207, %v3519, %v3523
      %s3525 = scalar_lea.vmem %s1, 512
      %v3526 = vld [vmem:[%s3525] sm:$0xf]
      %v3527 = vld [vmem:[%s3525 + $0x4] sm:$0xf]
      %v3528 = vld [vmem:[%s3525 + $0x8] sm:$0xf]
      %v3529 = vld [vmem:[%s3525 + $0xc] sm:$0xf]
      %v3530 = vld [vmem:[%s3525 + $0x10] sm:$0xf]
      %v3531 = vld [vmem:[%s3525 + $0x14] sm:$0xf]
      %v3532 = vld [vmem:[%s3525 + $0x18] sm:$0xf]
      %v3533 = vld [vmem:[%s3525 + $0x1c] sm:$0xf]
      %v3534 = vld [vmem:[%s3525 + $0x20] sm:$0xf]
      %v3535 = vld [vmem:[%s3525 + $0x24] sm:$0xf]
      %v3536 = vld [vmem:[%s3525 + $0x28] sm:$0xf]
      %v3537 = vld [vmem:[%s3525 + $0x2c] sm:$0xf]
      %v3538 = vld [vmem:[%s3525 + $0x30] sm:$0xf]
      %v3539 = vld [vmem:[%s3525 + $0x34] sm:$0xf]
      %v3540 = vld [vmem:[%s3525 + $0x38] sm:$0xf]
      %v3541 = vld [vmem:[%s3525 + $0x3c] sm:$0xf]
      %v3542 = vunpack.c.l.b16 %v3346
      %v3543 = vunpack.c.l.b16 %v3356
      %v3544 = vunpack.c.l.b16 %v3370
      %v3545 = vunpack.c.l.b16 %v3380
      %v3546 = vunpack.c.l.b16 %v3394
      %v3547 = vunpack.c.l.b16 %v3404
      %v3548 = vunpack.c.l.b16 %v3418
      %v3549 = vunpack.c.l.b16 %v3428
      %v3550 = vunpack.c.l.b16 %v3442
      %v3551 = vunpack.c.l.b16 %v3452
      %v3552 = vunpack.c.l.b16 %v3466
      %v3553 = vunpack.c.l.b16 %v3476
      %v3554 = vunpack.c.l.b16 %v3490
      %v3555 = vunpack.c.l.b16 %v3500
      %v3556 = vunpack.c.l.b16 %v3514
      %v3557 = vunpack.c.l.b16 %v3524
      %v3558 = vpack.c.b16 %v3543, %v3542
      %v3559 = vpack.c.b16 %v3545, %v3544
      %v3560 = vpack.c.b16 %v3547, %v3546
      %v3561 = vpack.c.b16 %v3549, %v3548
      %v3562 = vpack.c.b16 %v3551, %v3550
      %v3563 = vpack.c.b16 %v3553, %v3552
      %v3564 = vpack.c.b16 %v3555, %v3554
      %v3565 = vpack.c.b16 %v3557, %v3556
      %v3590 = vunpack.c.l.b16 %v3526
      %v3591 = vunpack.c.l.b16 %v3527
      %v3592 = vunpack.c.l.b16 %v3528
      %v3593 = vunpack.c.l.b16 %v3529
      %v3594 = vunpack.c.l.b16 %v3530
      %v3595 = vunpack.c.l.b16 %v3531
      %v3596 = vunpack.c.l.b16 %v3532
      %v3597 = vunpack.c.l.b16 %v3533
      %v3598 = vunpack.c.l.b16 %v3534
      %v3599 = vunpack.c.l.b16 %v3535
      %v3600 = vunpack.c.l.b16 %v3536
      %v3601 = vunpack.c.l.b16 %v3537
      %v3602 = vunpack.c.l.b16 %v3538
      %v3603 = vunpack.c.l.b16 %v3539
      %v3604 = vunpack.c.l.b16 %v3540
      %v3605 = vunpack.c.l.b16 %v3541
      %v3606 = vpack.c.b16 %v3591, %v3590
      %v3607 = vpack.c.b16 %v3593, %v3592
      %v3608 = vpack.c.b16 %v3595, %v3594
      %v3609 = vpack.c.b16 %v3597, %v3596
      %v3610 = vpack.c.b16 %v3599, %v3598
      %v3611 = vpack.c.b16 %v3601, %v3600
      %v3612 = vpack.c.b16 %v3603, %v3602
      %v3613 = vpack.c.b16 %v3605, %v3604
      %3622 = vmatprep.subr.bf16.mxu0 0
      %3623 = vmatpush1.bf16.msra.mxu0 %v3613
      %3624 = vmatprep.subr.bf16.mxu0 0
      %3625 = vmatpush1.bf16.msra.mxu0 %v3612
      %3626 = vmatprep.subr.bf16.mxu0 0
      %3627 = vmatpush1.bf16.msra.mxu0 %v3611
      %3628 = vmatprep.subr.bf16.mxu0 0
      %3629 = vmatpush1.bf16.msra.mxu0 %v3610
      %3630 = vmatprep.subr.bf16.mxu0 0
      %3631 = vmatpush1.bf16.msra.mxu0 %v3609
      %3632 = vmatprep.subr.bf16.mxu0 0
      %3633 = vmatpush1.bf16.msra.mxu0 %v3608
      %3634 = vmatprep.subr.bf16.mxu0 0
      %3635 = vmatpush1.bf16.msra.mxu0 %v3607
      %3636 = vmatprep.subr.bf16.mxu0 0
      %3637 = vmatpush1.bf16.msra.mxu0 %v3606
      %3638 = vmatprep.subr.bf16.mxu0 0
      %3639 = vmatpush2.bf16.msra.mxu0 0
      %3640 = vmatprep.subr.bf16.mxu0 0
      %3641 = vmatpush2.bf16.msra.mxu0 0
      %3642 = vmatprep.subr.bf16.mxu0 0
      %3643 = vmatpush2.bf16.msra.mxu0 0
      %3644 = vmatprep.subr.bf16.mxu0 0
      %3645 = vmatpush2.bf16.msra.mxu0 0
      %3646 = vmatprep.subr.bf16.mxu0 0
      %3647 = vmatpush2.bf16.msra.mxu0 0
      %3648 = vmatprep.subr.bf16.mxu0 0
      %3649 = vmatpush2.bf16.msra.mxu0 0
      %3650 = vmatprep.subr.bf16.mxu0 0
      %3651 = vmatpush2.bf16.msra.mxu0 0
      %3652 = vmatprep.subr.bf16.mxu0 0
      %3653 = vmatpush2.bf16.msra.mxu0 0
      %3654 = vmatprep.mubr.bf16.mxu0 0
      %3655 = vmatmul.mubr.bf16.gmra.mxu0 %v3558
      %v3656 = vpop.f32.mrf.mxu0
      %v3657 = vadd.f32 0.0, %v3656
      %v3658 = vpop.f32.mrf.mxu0
      %v3659 = vpop.f32.mrf.mxu0
      %v3660 = vadd.f32 0.0, %v3659
      %v3661 = vpop.f32.mrf.mxu0
      %3662 = vmatprep.mubr.bf16.mxu0 0
      %3663 = vmatmul.mubr.bf16.gmra.mxu0 %v3559
      %v3664 = vpop.f32.mrf.mxu0
      %v3665 = vadd.f32 0.0, %v3664
      %v3666 = vpop.f32.mrf.mxu0
      %v3667 = vpop.f32.mrf.mxu0
      %v3668 = vadd.f32 0.0, %v3667
      %v3669 = vpop.f32.mrf.mxu0
      %3670 = vmatprep.mubr.bf16.mxu0 0
      %3671 = vmatmul.mubr.bf16.gmra.mxu0 %v3560
      %v3672 = vpop.f32.mrf.mxu0
      %v3673 = vadd.f32 0.0, %v3672
      %v3674 = vpop.f32.mrf.mxu0
      %v3675 = vpop.f32.mrf.mxu0
      %v3676 = vadd.f32 0.0, %v3675
      %v3677 = vpop.f32.mrf.mxu0
      %3678 = vmatprep.mubr.bf16.mxu0 0
      %3679 = vmatmul.mubr.bf16.gmra.mxu0 %v3561
      %v3680 = vpop.f32.mrf.mxu0
      %v3681 = vadd.f32 0.0, %v3680
      %v3682 = vpop.f32.mrf.mxu0
      %v3683 = vpop.f32.mrf.mxu0
      %v3684 = vadd.f32 0.0, %v3683
      %v3685 = vpop.f32.mrf.mxu0
      %3686 = vmatprep.mubr.bf16.mxu0 0
      %3687 = vmatmul.mubr.bf16.gmra.mxu0 %v3562
      %v3688 = vpop.f32.mrf.mxu0
      %v3689 = vadd.f32 0.0, %v3688
      %v3690 = vpop.f32.mrf.mxu0
      %v3691 = vpop.f32.mrf.mxu0
      %v3692 = vadd.f32 0.0, %v3691
      %v3693 = vpop.f32.mrf.mxu0
      %3694 = vmatprep.mubr.bf16.mxu0 0
      %3695 = vmatmul.mubr.bf16.gmra.mxu0 %v3563
      %v3696 = vpop.f32.mrf.mxu0
      %v3697 = vadd.f32 0.0, %v3696
      %v3698 = vpop.f32.mrf.mxu0
      %v3699 = vpop.f32.mrf.mxu0
      %v3700 = vadd.f32 0.0, %v3699
      %v3701 = vpop.f32.mrf.mxu0
      %3702 = vmatprep.mubr.bf16.mxu0 0
      %3703 = vmatmul.mubr.bf16.gmra.mxu0 %v3564
      %v3704 = vpop.f32.mrf.mxu0
      %v3705 = vadd.f32 0.0, %v3704
      %v3706 = vpop.f32.mrf.mxu0
      %v3707 = vpop.f32.mrf.mxu0
      %v3708 = vadd.f32 0.0, %v3707
      %v3709 = vpop.f32.mrf.mxu0
      %3710 = vmatprep.mubr.bf16.mxu0 0
      %3711 = vmatmul.mubr.bf16.gmra.mxu0 %v3565
      %v3712 = vpop.f32.mrf.mxu0
      %v3713 = vadd.f32 0.0, %v3712
      %v3714 = vpop.f32.mrf.mxu0
      %v3715 = vpop.f32.mrf.mxu0
      %v3716 = vadd.f32 0.0, %v3715
      %v3717 = vpop.f32.mrf.mxu0
      %3718 = vdwg.mxu0
      %v3719 = vadd.f32 %v3293, %v3657
      %v3720 = vadd.f32 %v3294, %v3660
      %v3721 = vadd.f32 %v3295, %v3665
      %v3722 = vadd.f32 %v3296, %v3668
      %v3723 = vadd.f32 %v3297, %v3673
      %v3724 = vadd.f32 %v3298, %v3676
      %v3725 = vadd.f32 %v3299, %v3681
      %v3726 = vadd.f32 %v3300, %v3684
      %v3727 = vadd.f32 %v3301, %v3689
      %v3728 = vadd.f32 %v3302, %v3692
      %v3729 = vadd.f32 %v3303, %v3697
      %v3730 = vadd.f32 %v3304, %v3700
      %v3731 = vadd.f32 %v3305, %v3705
      %v3732 = vadd.f32 %v3306, %v3708
      %v3733 = vadd.f32 %v3307, %v3713
      %v3734 = vadd.f32 %v3308, %v3716
      %v3735 = vpack.c.bf16 %v3720, %v3719
      %v3736 = vpack.c.bf16 %v3722, %v3721
      %v3737 = vpack.c.bf16 %v3724, %v3723
      %v3738 = vpack.c.bf16 %v3726, %v3725
      %v3739 = vpack.c.bf16 %v3728, %v3727
      %v3740 = vpack.c.bf16 %v3730, %v3729
      %v3741 = vpack.c.bf16 %v3732, %v3731
      %v3742 = vpack.c.bf16 %v3734, %v3733
      %v3751 = vunpack.c.l.b16 %v3735
      %v3752 = vunpack.c.h.b16 %v3735
      %v3753 = vunpack.c.l.b16 %v3736
      %v3754 = vunpack.c.h.b16 %v3736
      %v3755 = vunpack.c.l.b16 %v3737
      %v3756 = vunpack.c.h.b16 %v3737
      %v3757 = vunpack.c.l.b16 %v3738
      %v3758 = vunpack.c.h.b16 %v3738
      %v3759 = vunpack.c.l.b16 %v3739
      %v3760 = vunpack.c.h.b16 %v3739
      %v3761 = vunpack.c.l.b16 %v3740
      %v3762 = vunpack.c.h.b16 %v3740
      %v3763 = vunpack.c.l.b16 %v3741
      %v3764 = vunpack.c.h.b16 %v3741
      %v3765 = vunpack.c.l.b16 %v3742
      %v3766 = vunpack.c.h.b16 %v3742
      %v3767 = vpack.c.b16 %v3751, %v3751
      %v3768 = vpack.c.b16 %v3752, %v3752
      %v3769 = vpack.c.b16 %v3753, %v3753
      %v3770 = vpack.c.b16 %v3754, %v3754
      %v3771 = vpack.c.b16 %v3755, %v3755
      %v3772 = vpack.c.b16 %v3756, %v3756
      %v3773 = vpack.c.b16 %v3757, %v3757
      %v3774 = vpack.c.b16 %v3758, %v3758
      %v3775 = vpack.c.b16 %v3759, %v3759
      %v3776 = vpack.c.b16 %v3760, %v3760
      %v3777 = vpack.c.b16 %v3761, %v3761
      %v3778 = vpack.c.b16 %v3762, %v3762
      %v3779 = vpack.c.b16 %v3763, %v3763
      %v3780 = vpack.c.b16 %v3764, %v3764
      %v3781 = vpack.c.b16 %v3765, %v3765
      %v3782 = vpack.c.b16 %v3766, %v3766
      %3799 = vst [vmem:[%s288] sm:$0xf] %v3767
      %3800 = vst [vmem:[%s288 + $0x4] sm:$0xf] %v3768
      %3801 = vst [vmem:[%s288 + $0x8] sm:$0xf] %v3769
      %3802 = vst [vmem:[%s288 + $0xc] sm:$0xf] %v3770
      %3803 = vst [vmem:[%s288 + $0x10] sm:$0xf] %v3771
      %3804 = vst [vmem:[%s288 + $0x14] sm:$0xf] %v3772
      %3805 = vst [vmem:[%s288 + $0x18] sm:$0xf] %v3773
      %3806 = vst [vmem:[%s288 + $0x1c] sm:$0xf] %v3774
      %3807 = vst [vmem:[%s288 + $0x20] sm:$0xf] %v3775
      %3808 = vst [vmem:[%s288 + $0x24] sm:$0xf] %v3776
      %3809 = vst [vmem:[%s288 + $0x28] sm:$0xf] %v3777
      %3810 = vst [vmem:[%s288 + $0x2c] sm:$0xf] %v3778
      %3811 = vst [vmem:[%s288 + $0x30] sm:$0xf] %v3779
      %3812 = vst [vmem:[%s288 + $0x34] sm:$0xf] %v3780
      %3813 = vst [vmem:[%s288 + $0x38] sm:$0xf] %v3781
      %3814 = vst [vmem:[%s288 + $0x3c] sm:$0xf] %v3782
      %v3815 = vadd.f32 %v3719, %v3720
      %v3816 = vadd.f32 %v3815, %v3721
      %v3817 = vadd.f32 %v3816, %v3722
      %v3818 = vadd.f32 %v3817, %v3723
      %v3819 = vadd.f32 %v3818, %v3724
      %v3820 = vadd.f32 %v3819, %v3725
      %v3821 = vadd.f32 %v3820, %v3726
      %v3822 = vadd.f32 %v3821, %v3727
      %v3823 = vadd.f32 %v3822, %v3728
      %v3824 = vadd.f32 %v3823, %v3729
      %v3825 = vadd.f32 %v3824, %v3730
      %v3826 = vadd.f32 %v3825, %v3731
      %v3827 = vadd.f32 %v3826, %v3732
      %v3828 = vadd.f32 %v3827, %v3733
      %v3829 = vadd.f32 %v3828, %v3734
      %v3830 = vmul.f32 %v3719, %v3719
      %v3831 = vmul.f32 %v3720, %v3720
      %v3832 = vmul.f32 %v3721, %v3721
      %v3833 = vmul.f32 %v3722, %v3722
      %v3834 = vmul.f32 %v3723, %v3723
      %v3835 = vmul.f32 %v3724, %v3724
      %v3836 = vmul.f32 %v3725, %v3725
      %v3837 = vmul.f32 %v3726, %v3726
      %v3838 = vmul.f32 %v3727, %v3727
      %v3839 = vmul.f32 %v3728, %v3728
      %v3840 = vmul.f32 %v3729, %v3729
      %v3841 = vmul.f32 %v3730, %v3730
      %v3842 = vmul.f32 %v3731, %v3731
      %v3843 = vmul.f32 %v3732, %v3732
      %v3844 = vmul.f32 %v3733, %v3733
      %v3845 = vmul.f32 %v3734, %v3734
      %v3846 = vadd.f32 %v3830, %v3831
      %v3847 = vadd.f32 %v3846, %v3832
      %v3848 = vadd.f32 %v3847, %v3833
      %v3849 = vadd.f32 %v3848, %v3834
      %v3850 = vadd.f32 %v3849, %v3835
      %v3851 = vadd.f32 %v3850, %v3836
      %v3852 = vadd.f32 %v3851, %v3837
      %v3853 = vadd.f32 %v3852, %v3838
      %v3854 = vadd.f32 %v3853, %v3839
      %v3855 = vadd.f32 %v3854, %v3840
      %v3856 = vadd.f32 %v3855, %v3841
      %v3857 = vadd.f32 %v3856, %v3842
      %v3858 = vadd.f32 %v3857, %v3843
      %v3859 = vadd.f32 %v3858, %v3844
      %v3860 = vadd.f32 %v3859, %v3845
      %p3861 = scmp.eq.s32.totalorder %s23, 0
      // Predicated region
      $region45: #{conv_block3d_forward.3} parent=35 // pred_check
        %p3862 = pneg %p3861
      $region46: #{conv_block3d_forward.3} parent=35 // pred_check_branch
        %3864 = sbr.rel (%p3862) target = $region48
      $region47: #{conv_block3d_forward.3} parent=35 // pred_region
        %3865 = vst [vmem:[%s293] sm:$0xff] %v3829
        %3866 = vst [vmem:[%s297] sm:$0xff] %v3860
      $region48: #{conv_block3d_forward.3} parent=35 // pred_fallthru
        _
      // Predicated region
      $region49: #{conv_block3d_forward.3} parent=35 // pred_check
        %p3867 = pneg %p518
      $region50: #{conv_block3d_forward.3} parent=35 // pred_check_branch
        %3869 = sbr.rel (%p3867) target = $region52
      $region51: #{conv_block3d_forward.3} parent=35 // pred_region
        %v3870 = vld [vmem:[%s293] sm:$0xff]
        %v3871 = vadd.f32 %v3870, %v3829
        %3872 = vst [vmem:[%s293] sm:$0xff] %v3871
        %v3873 = vld [vmem:[%s297] sm:$0xff]
        %v3874 = vadd.f32 %v3873, %v3860
        %3875 = vst [vmem:[%s297] sm:$0xff] %v3874
      $region52: #{conv_block3d_forward.3} parent=35 // pred_fallthru
        _
      %s3876 = smul.u32 8, %s23
      %p3877 = scmp.lt.s32.totalorder %s22, 1
      %s3878 = scalar_select %p3877, %s22, 1
      %p3879 = scmp.lt.s32.totalorder %s3876, 15
      %s3880 = scalar_select %p3879, %s3876, 15
      %s3881 = smul.addr %s3880, 2
      %s3882 = smul.addr %s3878, 32
      %s3883 = sadd.s32 %s3881, %s3882
      %s3884 = smul.addr %s3883, 4
      %s3885 = scalar_lea.vmem %s4, %s3884
      %p3886 = scmp.lt.s32.totalorder %s22, 1
      %s3887 = scalar_select %p3886, %s22, 1
      %s3888 = smul.addr %s3887, 8
      %s3889 = scalar_lea.vmem %s5, %s3888
      %p3890 = scmp.lt.s32.totalorder %s22, 1
      %s3891 = scalar_select %p3890, %s22, 1
      %s3892 = smul.addr %s3891, 8
      %s3893 = scalar_lea.vmem %s6, %s3892
      // Predicated region
      $region53: #{conv_block3d_forward.3} parent=35 // pred_check
        %p3894 = pneg %p139
      $region54: #{conv_block3d_forward.3} parent=35 // pred_check_branch
        %3896 = sbr.rel (%p3894) target = $region56
      $region55: #{conv_block3d_forward.3} parent=35 // pred_region
        %s3897 = smul.u32 8, %s23
      $region56: #{conv_block3d_forward.3} parent=35 // pred_fallthru
        _
      // Predicated region
      $region57: #{conv_block3d_forward.3} parent=35 // pred_check
        %p3898 = pneg %p165
      $region58: #{conv_block3d_forward.3} parent=35 // pred_check_branch
        %3900 = sbr.rel (%p3898) target = $region60
      $region59: #{conv_block3d_forward.3} parent=35 // pred_region
        _
      $region60: #{conv_block3d_forward.3} parent=35 // pred_fallthru
        _
      // Predicated region
      $region61: #{conv_block3d_forward.3} parent=35 // pred_check
        %p3901 = pneg %p191
      $region62: #{conv_block3d_forward.3} parent=35 // pred_check_branch
        %3903 = sbr.rel (%p3901) target = $region64
      $region63: #{conv_block3d_forward.3} parent=35 // pred_region
        _
      $region64: #{conv_block3d_forward.3} parent=35 // pred_fallthru
        _
    $region36: #{conv_block3d_forward.3} parent=5 // pred_fallthru
      _
    %p3904 = scmp.le.s32.totalorder 2, %s13
    // Predicated region
    $region65: #{conv_block3d_forward.3} parent=5 // pred_check
      %p3905 = pneg %p3904
    $region66: #{conv_block3d_forward.3} parent=5 // pred_check_branch
      %3907 = sbr.rel (%p3905) target = $region68
    $region67: #{conv_block3d_forward.3} parent=5 // pred_region
      %s3908 = ssub.s32 %s13, 2
      // Predicated region
      $region69: #{conv_block3d_forward.3} parent=67 // pred_check
        %p3909 = pneg %p145
      $region70: #{conv_block3d_forward.3} parent=67 // pred_check_branch
        %3911 = sbr.rel (%p3909) target = $region72
      $region71: #{conv_block3d_forward.3} parent=67 // pred_region
        %s3912 = smul.u32 8, %s25
        %p3913 = scmp.lt.s32.totalorder %s24, 1
        %s3914 = scalar_select %p3913, %s24, 1
        %p3915 = scmp.lt.s32.totalorder %s3912, 15
        %s3916 = scalar_select %p3915, %s3912, 15
        %s3917 = smul.addr %s3916, 2
        %s3918 = smul.addr %s3914, 32
        %s3919 = sadd.s32 %s3917, %s3918
        %s3920 = smul.addr %s3919, 4
        %s3921 = scalar_lea.vmem %s4, %s3920
      $region72: #{conv_block3d_forward.3} parent=67 // pred_fallthru
        _
      // Predicated region
      $region73: #{conv_block3d_forward.3} parent=67 // pred_check
        %p3922 = pneg %p171
      $region74: #{conv_block3d_forward.3} parent=67 // pred_check_branch
        %3924 = sbr.rel (%p3922) target = $region76
      $region75: #{conv_block3d_forward.3} parent=67 // pred_region
        %p3925 = scmp.lt.s32.totalorder %s24, 1
        %s3926 = scalar_select %p3925, %s24, 1
        %s3927 = smul.addr %s3926, 8
        %s3928 = scalar_lea.vmem %s5, %s3927
      $region76: #{conv_block3d_forward.3} parent=67 // pred_fallthru
        _
      // Predicated region
      $region77: #{conv_block3d_forward.3} parent=67 // pred_check
        %p3929 = pneg %p197
      $region78: #{conv_block3d_forward.3} parent=67 // pred_check_branch
        %3931 = sbr.rel (%p3929) target = $region80
      $region79: #{conv_block3d_forward.3} parent=67 // pred_region
        %p3932 = scmp.lt.s32.totalorder %s24, 1
        %s3933 = scalar_select %p3932, %s24, 1
        %s3934 = smul.addr %s3933, 8
        %s3935 = scalar_lea.vmem %s6, %s3934
      $region80: #{conv_block3d_forward.3} parent=67 // pred_fallthru
        _
    $region68: #{conv_block3d_forward.3} parent=5 // pred_fallthru
      _
  $region6: #{conv_block3d_forward.3} parent=0 // loop_footer
    %s17 = sadd.s32 1, %s13
  $region7: #{conv_block3d_forward.3} parent=0 // loop_footer_branch
    %12 = sbr.rel target = $region3
  $region8: #{conv_block3d_forward.3} parent=0 // loop_exit
    _

</llo_original>
